<compile_context>
chip_gen: v6e
topology: v6e:2x2x1
jax: 0.10.0
libtpu: 0.0.40
codegen_flags: <defaults>
</compile_context>

<pallas_src>
import numpy as np
import jax
import jax.numpy as jnp
from jax.experimental import pallas as pl
from jax.experimental.pallas import tpu as pltpu


_LN_EPS = 1e-5
_INV_SQRT2 = 0.7071067811865476

# f32 keeps the correctness check tight at this tiny size; flip to jnp.bfloat16
# for large configs on v6e/v7x (operands only -- accumulation stays f32).
MATMUL_DTYPE = jnp.float32

# Max rows of the leading (parallel) axis per block; whole array when smaller.
_MAX_BLOCK_ROWS = 512


# ------------------------- in-kernel math helpers -------------------------

def _recip(x):
    # EUP approximate reciprocal + one cheap Newton step (VPU) instead of the
    # long VALU divide sequence; residual error ~1e-7, far below the erf
    # polynomial error.
    r = pl.reciprocal(x, approx=True)
    return r * (2.0 - x * r)


def _erf(x):
    # Abramowitz & Stegun 7.1.26 (|err| < 1.5e-7): abs/mul/add/exp/recip only,
    # so we don't rely on an erf lowering in Mosaic.
    a1, a2, a3, a4, a5 = (0.254829592, -0.284496736, 1.421413741,
                          -1.453152027, 1.061405429)
    p = 0.3275911
    ax = jnp.abs(x)
    t = _recip(1.0 + p * ax)
    poly = ((((a5 * t + a4) * t + a3) * t + a2) * t + a1) * t
    e = 1.0 - poly * jnp.exp(-ax * ax)
    return jnp.where(x >= 0.0, e, -e)


def _gelu(x):
    # exact (erf-based) GELU, matching torch.nn.GELU() default
    return 0.5 * x * (1.0 + _erf(x * _INV_SQRT2))


def _layernorm(x, gamma, beta):
    mu = jnp.mean(x, axis=-1, keepdims=True)
    var = jnp.mean((x - mu) ** 2, axis=-1, keepdims=True)
    return (x - mu) * jax.lax.rsqrt(var + _LN_EPS) * gamma + beta


def _bmm(eq, a, b):
    # Batched matmul on the MXU; operands optionally cast, accumulate in f32.
    return jnp.einsum(eq, a.astype(MATMUL_DTYPE), b.astype(MATMUL_DTYPE),
                      preferred_element_type=jnp.float32)


def _bcast_rows(w_ref, g):
    # Replicate a resident 2-D weight along the batch axis of the batched
    # matmul; pure leading-dim broadcast (vreg copies), no relayout.
    return jnp.broadcast_to(w_ref[...][None], (g,) + w_ref.shape)


# ------------------------------ Pallas kernels -----------------------------

def _ln_token_h_kernel(x_ref, g1_ref, b1_ref, w1_ref, bb1_ref, w2_ref, bb2_ref,
                       o_ref):
    # x: (G, H, C) with G = B*W (h sits on the sublane axis, c on lanes).
    # Fused: LayerNorm over c, then token MLP mixing over h, batched over G.
    t = _layernorm(x_ref[...], g1_ref[...], b1_ref[...])
    g = t.shape[0]
    h = _gelu(_bmm('gph,ghc->gpc', _bcast_rows(w1_ref, g), t) + bb1_ref[...])
    o_ref[...] = _bmm('ghp,gpc->ghc', _bcast_rows(w2_ref, g), h) + bb2_ref[...]


def _token_w_channel_kernel(x_ref, u_ref, g2_ref, b2_ref,
                            w1w_ref, bb1w_ref, w2w_ref, bb2w_ref,
                            w1c_ref, bb1c_ref, w2c_ref, bb2c_ref, o_ref):
    # x, u: (G, W, C) with G = B*H.  Fused:
    #   token-MLP over w on u -> x1 = x + tok -> LN2 -> channel MLP -> + x1
    x = x_ref[...]
    u = u_ref[...]
    g = x.shape[0]
    # token MLP over the w (sublane) axis
    h = _gelu(_bmm('gqw,gwc->gqc', _bcast_rows(w1w_ref, g), u) + bb1w_ref[...])
    tok = _bmm('gwq,gqc->gwc', _bcast_rows(w2w_ref, g), h) + bb2w_ref[...]
    x1 = x + tok
    # channel MLP over the c (lane) axis
    s = _layernorm(x1, g2_ref[...], b2_ref[...])
    hc = _gelu(_bmm('gwc,gjc->gwj', s, _bcast_rows(w1c_ref, g)) + bb1c_ref[...])
    yc = _bmm('gwj,gcj->gwc', hc, _bcast_rows(w2c_ref, g)) + bb2c_ref[...]
    o_ref[...] = x1 + yc


# ------------------------------ call wrappers -------------------------------

def _row_tiles(g):
    # One full block when small (no pointless grid steps on 1-TC chips); for
    # big inputs, the largest divisor <= _MAX_BLOCK_ROWS keeps equal-sized,
    # VMEM-friendly blocks on a "parallel" grid axis (v7x megacore).
    if g <= _MAX_BLOCK_ROWS:
        return 1, g
    tile = max(d for d in range(1, _MAX_BLOCK_ROWS + 1) if g % d == 0)
    return g // tile, tile


def _resident(shape):
    zeros = (0,) * len(shape)
    return pl.BlockSpec(shape, lambda i, z=zeros: z)


def _ln_token_h(x3, g1, b1, w1, bb1, w2, bb2):
    G, H, C = x3.shape
    nb, tg = _row_tiles(G)
    blk = pl.BlockSpec((tg, H, C), lambda i: (i, 0, 0))
    consts = [g1, b1, w1, bb1, w2, bb2]
    return pl.pallas_call(
        _ln_token_h_kernel,
        out_shape=jax.ShapeDtypeStruct((G, H, C), jnp.float32),
        grid=(nb,),
        in_specs=[blk] + [_resident(c.shape) for c in consts],
        out_specs=blk,
        compiler_params=pltpu.CompilerParams(
            dimension_semantics=("parallel",)),
    )(x3, *consts)


def _token_w_channel(x3, u3, g2, b2, w1w, bb1w, w2w, bb2w,
                     w1c, bb1c, w2c, bb2c):
    G, W, C = x3.shape
    nb, tg = _row_tiles(G)
    blk = pl.BlockSpec((tg, W, C), lambda i: (i, 0, 0))
    consts = [g2, b2, w1w, bb1w, w2w, bb2w, w1c, bb1c, w2c, bb2c]
    return pl.pallas_call(
        _token_w_channel_kernel,
        out_shape=jax.ShapeDtypeStruct((G, W, C), jnp.float32),
        grid=(nb,),
        in_specs=[blk, blk] + [_resident(c.shape) for c in consts],
        out_specs=blk,
        compiler_params=pltpu.CompilerParams(
            dimension_semantics=("parallel",)),
    )(x3, u3, *consts)


# ------------------------------ model forward -------------------------------

def mixer_forward(params, x):
    """Mixer block forward.  x: (B, H, W, C) with H == W == num_patches."""
    B, H, W, C = x.shape
    x = x.astype(jnp.float32)

    ln1, ln2 = params['ln1'], params['ln2']
    th, tw, ch = params['tok_h'], params['tok_w'], params['ch']
    Ph, Pw, Ch = th['w1'].shape[0], tw['w1'].shape[0], ch['w1'].shape[0]

    # ---- kernel 1: LN1 + token MLP over h  (h on the sublane axis) ----
    x_h = jnp.transpose(x, (0, 2, 1, 3)).reshape(B * W, H, C)   # (b w) h c
    u = _ln_token_h(
        x_h,
        ln1['gamma'].reshape(1, C), ln1['beta'].reshape(1, C),
        th['w1'], jnp.broadcast_to(th['b1'][:, None], (Ph, C)),
        th['w2'], jnp.broadcast_to(th['b2'][:, None], (H, C)))

    # ---- kernel 2: token MLP over w + residual + LN2 + channel MLP + residual
    u_w = jnp.transpose(u.reshape(B, W, H, C), (0, 2, 1, 3)).reshape(B * H, W, C)
    x_w = x.reshape(B * H, W, C)
    out = _token_w_channel(
        x_w, u_w,
        ln2['gamma'].reshape(1, C), ln2['beta'].reshape(1, C),
        tw['w1'], jnp.broadcast_to(tw['b1'][:, None], (Pw, C)),
        tw['w2'], jnp.broadcast_to(tw['b2'][:, None], (W, C)),
        ch['w1'], ch['b1'].reshape(1, Ch),
        ch['w2'], ch['b2'].reshape(1, C))
    return out.reshape(B, H, W, C)


# --------------------------- parameters & reference -------------------------

def init_params(key, num_patches, num_channels, f_hidden):
    P, C = num_patches, num_channels
    ks = iter(jax.random.split(key, 4))

    def linear(k, fan_in, fan_out):  # torch nn.Linear default init
        k1, k2 = jax.random.split(k)
        bound = 1.0 / np.sqrt(fan_in)
        w = jax.random.uniform(k1, (fan_out, fan_in), jnp.float32, -bound, bound)
        b = jax.random.uniform(k2, (fan_out,), jnp.float32, -bound, bound)
        return w, b

    def mlp(k, d_in, d_hidden):
        k1, k2 = jax.random.split(k)
        w1, b1 = linear(k1, d_in, d_hidden)
        w2, b2 = linear(k2, d_hidden, d_in)
        return dict(w1=w1, b1=b1, w2=w2, b2=b2)

    return dict(
        ln1=dict(gamma=jnp.ones((C,), jnp.float32),
                 beta=jnp.zeros((C,), jnp.float32)),
        ln2=dict(gamma=jnp.ones((C,), jnp.float32),
                 beta=jnp.zeros((C,), jnp.float32)),
        tok_h=mlp(next(ks), P, P * f_hidden),
        tok_w=mlp(next(ks), P, P * f_hidden),
        ch=mlp(next(ks), C, C * f_hidden))


def mixer_reference(params, x):
    """Pure-jnp mirror of the PyTorch module (for a correctness check)."""
    def ln(v, g, b):
        mu = jnp.mean(v, axis=-1, keepdims=True)
        var = jnp.mean((v - mu) ** 2, axis=-1, keepdims=True)
        return (v - mu) / jnp.sqrt(var + _LN_EPS) * g + b

    def mlp(v, p):  # Linear / GELU / Linear over last dim (torch weight (out,in))
        h = jax.nn.gelu(v @ p['w1'].T + p['b1'], approximate=False)
        return h @ p['w2'].T + p['b2']

    t = ln(x, params['ln1']['gamma'], params['ln1']['beta'])
    t = jnp.transpose(t, (0, 3, 2, 1))          # b h w c -> b c w h
    t = mlp(t, params['tok_h'])
    t = jnp.transpose(t, (0, 1, 3, 2))          # b c w h -> b c h w
    t = mlp(t, params['tok_w'])
    t = jnp.transpose(t, (0, 2, 3, 1))          # b c h w -> b h w c
    x = x + t
    s = ln(x, params['ln2']['gamma'], params['ln2']['beta'])
    return x + mlp(s, params['ch'])


# ----------------------------------- main -----------------------------------

if __name__ == "__main__":
    B, P, C, F = 2, 8, 32, 2        # batch, num_patches (H=W), num_channels, f_hidden
    key = jax.random.PRNGKey(0)
    pkey, xkey = jax.random.split(key)
    params = init_params(pkey, num_patches=P, num_channels=C, f_hidden=F)
    x = jax.random.normal(xkey, (B, P, P, C), jnp.float32)   # (b, h, w, c)

    fwd = jax.jit(mixer_forward)
    out = fwd(params, x)
    jax.block_until_ready(out)

    ref = mixer_reference(params, x)
    np.testing.assert_allclose(np.asarray(out), np.asarray(ref),
                               rtol=5e-3, atol=5e-3)
    assert out.shape == (B, P, P, C) and out.dtype == jnp.float32
    print("KERNEL_OK")
</pallas_src>

<mosaic_0001>
module attributes {stable_mosaic.version = 11 : i64} {
  func.func @_ln_token_h_kernel(%arg0: i32, %arg1: memref<16x8x32xf32, #tpu.memory_space<vmem>>, %arg2: memref<1x32xf32, #tpu.memory_space<vmem>>, %arg3: memref<1x32xf32, #tpu.memory_space<vmem>>, %arg4: memref<16x8xf32, #tpu.memory_space<vmem>>, %arg5: memref<16x32xf32, #tpu.memory_space<vmem>>, %arg6: memref<8x16xf32, #tpu.memory_space<vmem>>, %arg7: memref<8x32xf32, #tpu.memory_space<vmem>>, %arg8: memref<16x8x32xf32, #tpu.memory_space<vmem>>) attributes {dimension_semantics = [#tpu.dimension_semantics<parallel>], iteration_bounds = array<i64: 1>, scalar_prefetch = 0 : i64, scratch_operands = 0 : i64, tpu.core_type = #tpu.core_type<tc>, window_params = [{transform_indices = @transform_0, window_bounds = array<i64: 16, 8, 32>}, {pipeline_mode = #tpu.pipeline_mode<synchronous>, transform_indices = @transform_1, window_bounds = array<i64: 1, 32>}, {pipeline_mode = #tpu.pipeline_mode<synchronous>, transform_indices = @transform_2, window_bounds = array<i64: 1, 32>}, {pipeline_mode = #tpu.pipeline_mode<synchronous>, transform_indices = @transform_3, window_bounds = array<i64: 16, 8>}, {pipeline_mode = #tpu.pipeline_mode<synchronous>, transform_indices = @transform_4, window_bounds = array<i64: 16, 32>}, {pipeline_mode = #tpu.pipeline_mode<synchronous>, transform_indices = @transform_5, window_bounds = array<i64: 8, 16>}, {pipeline_mode = #tpu.pipeline_mode<synchronous>, transform_indices = @transform_6, window_bounds = array<i64: 8, 32>}, {transform_indices = @transform_7, window_bounds = array<i64: 16, 8, 32>}]} {
    %c0 = arith.constant 0 : index
    %c0_0 = arith.constant 0 : index
    %c0_1 = arith.constant 0 : index
    %0 = vector.load %arg1[%c0, %c0_0, %c0_1] : memref<16x8x32xf32, #tpu.memory_space<vmem>>, vector<16x8x32xf32>
    %c0_2 = arith.constant 0 : index
    %c0_3 = arith.constant 0 : index
    %1 = vector.load %arg2[%c0_2, %c0_3] : memref<1x32xf32, #tpu.memory_space<vmem>>, vector<1x32xf32>
    %c0_4 = arith.constant 0 : index
    %c0_5 = arith.constant 0 : index
    %2 = vector.load %arg3[%c0_4, %c0_5] : memref<1x32xf32, #tpu.memory_space<vmem>>, vector<1x32xf32>
    %cst = arith.constant dense<0.000000e+00> : vector<16x8xf32>
    %3 = vector.multi_reduction <add>, %0, %cst [2] : vector<16x8x32xf32> to vector<16x8xf32>
    %4 = vector.shape_cast %3 : vector<16x8xf32> to vector<16x8x1xf32>
    %cst_6 = arith.constant 3.200000e+01 : f32
    %5 = vector.broadcast %cst_6 : f32 to vector<16x8x1xf32>
    %6 = arith.divf %4, %5 : vector<16x8x1xf32>
    %7 = vector.broadcast %6 : vector<16x8x1xf32> to vector<16x8x32xf32>
    %8 = arith.subf %0, %7 : vector<16x8x32xf32>
    %9 = arith.mulf %8, %8 : vector<16x8x32xf32>
    %cst_7 = arith.constant dense<0.000000e+00> : vector<16x8xf32>
    %10 = vector.multi_reduction <add>, %9, %cst_7 [2] : vector<16x8x32xf32> to vector<16x8xf32>
    %11 = vector.shape_cast %10 : vector<16x8xf32> to vector<16x8x1xf32>
    %cst_8 = arith.constant 3.200000e+01 : f32
    %12 = vector.broadcast %cst_8 : f32 to vector<16x8x1xf32>
    %13 = arith.divf %11, %12 : vector<16x8x1xf32>
    %14 = vector.broadcast %6 : vector<16x8x1xf32> to vector<16x8x32xf32>
    %15 = arith.subf %0, %14 : vector<16x8x32xf32>
    %cst_9 = arith.constant 9.99999974E-6 : f32
    %16 = vector.broadcast %cst_9 : f32 to vector<16x8x1xf32>
    %17 = arith.addf %13, %16 : vector<16x8x1xf32>
    %18 = math.rsqrt %17 : vector<16x8x1xf32>
    %19 = vector.broadcast %18 : vector<16x8x1xf32> to vector<16x8x32xf32>
    %20 = arith.mulf %15, %19 : vector<16x8x32xf32>
    %21 = vector.shape_cast %1 : vector<1x32xf32> to vector<1x1x32xf32>
    %22 = vector.broadcast %21 : vector<1x1x32xf32> to vector<16x8x32xf32>
    %23 = arith.mulf %20, %22 : vector<16x8x32xf32>
    %24 = vector.shape_cast %2 : vector<1x32xf32> to vector<1x1x32xf32>
    %25 = vector.broadcast %24 : vector<1x1x32xf32> to vector<16x8x32xf32>
    %26 = arith.addf %23, %25 : vector<16x8x32xf32>
    %c0_10 = arith.constant 0 : index
    %c0_11 = arith.constant 0 : index
    %27 = vector.load %arg4[%c0_10, %c0_11] : memref<16x8xf32, #tpu.memory_space<vmem>>, vector<16x8xf32>
    %28 = vector.shape_cast %27 : vector<16x8xf32> to vector<1x16x8xf32>
    %29 = vector.shape_cast %28 : vector<1x16x8xf32> to vector<1x16x8xf32>
    %30 = vector.broadcast %29 : vector<1x16x8xf32> to vector<16x16x8xf32>
    "tpu.trace_start"() <{level = 10 : i32, message = "gph,ghc->gpc"}> : () -> ()
    %cst_12 = arith.constant dense<0.000000e+00> : vector<16x16x32xf32>
    %31 = tpu.matmul %30, %26, %cst_12 {dimension_numbers = #tpu.dot_dimension_numbers<[2], [1], [1], [2], [0, 0, 0, 1, 1, 2], [0], [0]>} : vector<16x16x8xf32>, vector<16x8x32xf32>, vector<16x16x32xf32> -> vector<16x16x32xf32>
    "tpu.trace_stop"() : () -> ()
    %c0_13 = arith.constant 0 : index
    %c0_14 = arith.constant 0 : index
    %32 = vector.load %arg5[%c0_13, %c0_14] : memref<16x32xf32, #tpu.memory_space<vmem>>, vector<16x32xf32>
    %33 = vector.shape_cast %32 : vector<16x32xf32> to vector<1x16x32xf32>
    %34 = vector.broadcast %33 : vector<1x16x32xf32> to vector<16x16x32xf32>
    %35 = arith.addf %31, %34 : vector<16x16x32xf32>
    %cst_15 = arith.constant 5.000000e-01 : f32
    %36 = vector.broadcast %cst_15 : f32 to vector<16x16x32xf32>
    %37 = arith.mulf %36, %35 : vector<16x16x32xf32>
    %cst_16 = arith.constant 0.707106769 : f32
    %38 = vector.broadcast %cst_16 : f32 to vector<16x16x32xf32>
    %39 = arith.mulf %35, %38 : vector<16x16x32xf32>
    %40 = math.absf %39 : vector<16x16x32xf32>
    %cst_17 = arith.constant 0.327591091 : f32
    %41 = vector.broadcast %cst_17 : f32 to vector<16x16x32xf32>
    %42 = arith.mulf %41, %40 : vector<16x16x32xf32>
    %cst_18 = arith.constant 1.000000e+00 : f32
    %43 = vector.broadcast %cst_18 : f32 to vector<16x16x32xf32>
    %44 = arith.addf %43, %42 : vector<16x16x32xf32>
    %45 = tpu.reciprocal %44 {approx = true} : vector<16x16x32xf32> -> vector<16x16x32xf32>
    %46 = arith.mulf %44, %45 : vector<16x16x32xf32>
    %cst_19 = arith.constant 2.000000e+00 : f32
    %47 = vector.broadcast %cst_19 : f32 to vector<16x16x32xf32>
    %48 = arith.subf %47, %46 : vector<16x16x32xf32>
    %49 = arith.mulf %45, %48 : vector<16x16x32xf32>
    %cst_20 = arith.constant 1.06140542 : f32
    %50 = vector.broadcast %cst_20 : f32 to vector<16x16x32xf32>
    %51 = arith.mulf %50, %49 : vector<16x16x32xf32>
    %cst_21 = arith.constant -1.45315206 : f32
    %52 = vector.broadcast %cst_21 : f32 to vector<16x16x32xf32>
    %53 = arith.addf %51, %52 : vector<16x16x32xf32>
    %54 = arith.mulf %53, %49 : vector<16x16x32xf32>
    %cst_22 = arith.constant 1.42141378 : f32
    %55 = vector.broadcast %cst_22 : f32 to vector<16x16x32xf32>
    %56 = arith.addf %54, %55 : vector<16x16x32xf32>
    %57 = arith.mulf %56, %49 : vector<16x16x32xf32>
    %cst_23 = arith.constant -0.284496725 : f32
    %58 = vector.broadcast %cst_23 : f32 to vector<16x16x32xf32>
    %59 = arith.addf %57, %58 : vector<16x16x32xf32>
    %60 = arith.mulf %59, %49 : vector<16x16x32xf32>
    %cst_24 = arith.constant 0.254829586 : f32
    %61 = vector.broadcast %cst_24 : f32 to vector<16x16x32xf32>
    %62 = arith.addf %60, %61 : vector<16x16x32xf32>
    %63 = arith.mulf %62, %49 : vector<16x16x32xf32>
    %cst_25 = arith.constant 0.000000e+00 : f32
    %64 = vector.broadcast %cst_25 : f32 to vector<16x16x32xf32>
    %65 = arith.subf %64, %40 : vector<16x16x32xf32>
    %66 = arith.mulf %65, %40 : vector<16x16x32xf32>
    %67 = math.exp %66 : vector<16x16x32xf32>
    %68 = arith.mulf %63, %67 : vector<16x16x32xf32>
    %cst_26 = arith.constant 1.000000e+00 : f32
    %69 = vector.broadcast %cst_26 : f32 to vector<16x16x32xf32>
    %70 = arith.subf %69, %68 : vector<16x16x32xf32>
    %cst_27 = arith.constant 0.000000e+00 : f32
    %71 = vector.broadcast %cst_27 : f32 to vector<16x16x32xf32>
    %72 = arith.cmpf oge, %39, %71 : vector<16x16x32xf32>
    %cst_28 = arith.constant 0.000000e+00 : f32
    %73 = vector.broadcast %cst_28 : f32 to vector<16x16x32xf32>
    %74 = arith.subf %73, %70 : vector<16x16x32xf32>
    %75 = arith.select %72, %70, %74 : vector<16x16x32xi1>, vector<16x16x32xf32>
    %cst_29 = arith.constant 1.000000e+00 : f32
    %76 = vector.broadcast %cst_29 : f32 to vector<16x16x32xf32>
    %77 = arith.addf %76, %75 : vector<16x16x32xf32>
    %78 = arith.mulf %37, %77 : vector<16x16x32xf32>
    %c0_30 = arith.constant 0 : index
    %c0_31 = arith.constant 0 : index
    %79 = vector.load %arg6[%c0_30, %c0_31] : memref<8x16xf32, #tpu.memory_space<vmem>>, vector<8x16xf32>
    %80 = vector.shape_cast %79 : vector<8x16xf32> to vector<1x8x16xf32>
    %81 = vector.shape_cast %80 : vector<1x8x16xf32> to vector<1x8x16xf32>
    %82 = vector.broadcast %81 : vector<1x8x16xf32> to vector<16x8x16xf32>
    "tpu.trace_start"() <{level = 10 : i32, message = "ghp,gpc->ghc"}> : () -> ()
    %cst_32 = arith.constant dense<0.000000e+00> : vector<16x8x32xf32>
    %83 = tpu.matmul %82, %78, %cst_32 {dimension_numbers = #tpu.dot_dimension_numbers<[2], [1], [1], [2], [0, 0, 0, 1, 1, 2], [0], [0]>} : vector<16x8x16xf32>, vector<16x16x32xf32>, vector<16x8x32xf32> -> vector<16x8x32xf32>
    "tpu.trace_stop"() : () -> ()
    %c0_33 = arith.constant 0 : index
    %c0_34 = arith.constant 0 : index
    %84 = vector.load %arg7[%c0_33, %c0_34] : memref<8x32xf32, #tpu.memory_space<vmem>>, vector<8x32xf32>
    %85 = vector.shape_cast %84 : vector<8x32xf32> to vector<1x8x32xf32>
    %86 = vector.broadcast %85 : vector<1x8x32xf32> to vector<16x8x32xf32>
    %87 = arith.addf %83, %86 : vector<16x8x32xf32>
    %c0_35 = arith.constant 0 : index
    %c0_36 = arith.constant 0 : index
    %c0_37 = arith.constant 0 : index
    %88 = vector.load %arg8[%c0_35, %c0_36, %c0_37] : memref<16x8x32xf32, #tpu.memory_space<vmem>>, vector<16x8x32xf32>
    tpu.vector_store %arg8[%c0_35, %c0_36, %c0_37], %87 {strides = array<i32>} : memref<16x8x32xf32, #tpu.memory_space<vmem>>, vector<16x8x32xf32>,
    return
  }
  func.func @transform_0(%arg0: i32) -> (i32, i32, i32) {
    %c0_i32 = arith.constant 0 : i32
    %c0_i32_0 = arith.constant 0 : i32
    %c0_i32_1 = arith.constant 0 : i32
    return %arg0, %c0_i32, %c0_i32_0 : i32, i32, i32
  }
  func.func @transform_1(%arg0: i32) -> (i32, i32) {
    %c0_i32 = arith.constant 0 : i32
    %c0_i32_0 = arith.constant 0 : i32
    %c0_i32_1 = arith.constant 0 : i32
    return %c0_i32, %c0_i32_0 : i32, i32
  }
  func.func @transform_2(%arg0: i32) -> (i32, i32) {
    %c0_i32 = arith.constant 0 : i32
    %c0_i32_0 = arith.constant 0 : i32
    %c0_i32_1 = arith.constant 0 : i32
    return %c0_i32, %c0_i32_0 : i32, i32
  }
  func.func @transform_3(%arg0: i32) -> (i32, i32) {
    %c0_i32 = arith.constant 0 : i32
    %c0_i32_0 = arith.constant 0 : i32
    %c0_i32_1 = arith.constant 0 : i32
    return %c0_i32, %c0_i32_0 : i32, i32
  }
  func.func @transform_4(%arg0: i32) -> (i32, i32) {
    %c0_i32 = arith.constant 0 : i32
    %c0_i32_0 = arith.constant 0 : i32
    %c0_i32_1 = arith.constant 0 : i32
    return %c0_i32, %c0_i32_0 : i32, i32
  }
  func.func @transform_5(%arg0: i32) -> (i32, i32) {
    %c0_i32 = arith.constant 0 : i32
    %c0_i32_0 = arith.constant 0 : i32
    %c0_i32_1 = arith.constant 0 : i32
    return %c0_i32, %c0_i32_0 : i32, i32
  }
  func.func @transform_6(%arg0: i32) -> (i32, i32) {
    %c0_i32 = arith.constant 0 : i32
    %c0_i32_0 = arith.constant 0 : i32
    %c0_i32_1 = arith.constant 0 : i32
    return %c0_i32, %c0_i32_0 : i32, i32
  }
  func.func @transform_7(%arg0: i32) -> (i32, i32, i32) {
    %c0_i32 = arith.constant 0 : i32
    %c0_i32_0 = arith.constant 0 : i32
    %c0_i32_1 = arith.constant 0 : i32
    return %arg0, %c0_i32, %c0_i32_0 : i32, i32, i32
  }
}

module attributes {stable_mosaic.version = 11 : i64} {
  func.func @_token_w_channel_kernel(%arg0: i32, %arg1: memref<16x8x32xf32, #tpu.memory_space<vmem>>, %arg2: memref<16x8x32xf32, #tpu.memory_space<vmem>>, %arg3: memref<1x32xf32, #tpu.memory_space<vmem>>, %arg4: memref<1x32xf32, #tpu.memory_space<vmem>>, %arg5: memref<16x8xf32, #tpu.memory_space<vmem>>, %arg6: memref<16x32xf32, #tpu.memory_space<vmem>>, %arg7: memref<8x16xf32, #tpu.memory_space<vmem>>, %arg8: memref<8x32xf32, #tpu.memory_space<vmem>>, %arg9: memref<64x32xf32, #tpu.memory_space<vmem>>, %arg10: memref<1x64xf32, #tpu.memory_space<vmem>>, %arg11: memref<32x64xf32, #tpu.memory_space<vmem>>, %arg12: memref<1x32xf32, #tpu.memory_space<vmem>>, %arg13: memref<16x8x32xf32, #tpu.memory_space<vmem>>) attributes {dimension_semantics = [#tpu.dimension_semantics<parallel>], iteration_bounds = array<i64: 1>, scalar_prefetch = 0 : i64, scratch_operands = 0 : i64, tpu.core_type = #tpu.core_type<tc>, window_params = [{transform_indices = @transform_0, window_bounds = array<i64: 16, 8, 32>}, {transform_indices = @transform_1, window_bounds = array<i64: 16, 8, 32>}, {pipeline_mode = #tpu.pipeline_mode<synchronous>, transform_indices = @transform_2, window_bounds = array<i64: 1, 32>}, {pipeline_mode = #tpu.pipeline_mode<synchronous>, transform_indices = @transform_3, window_bounds = array<i64: 1, 32>}, {pipeline_mode = #tpu.pipeline_mode<synchronous>, transform_indices = @transform_4, window_bounds = array<i64: 16, 8>}, {pipeline_mode = #tpu.pipeline_mode<synchronous>, transform_indices = @transform_5, window_bounds = array<i64: 16, 32>}, {pipeline_mode = #tpu.pipeline_mode<synchronous>, transform_indices = @transform_6, window_bounds = array<i64: 8, 16>}, {pipeline_mode = #tpu.pipeline_mode<synchronous>, transform_indices = @transform_7, window_bounds = array<i64: 8, 32>}, {pipeline_mode = #tpu.pipeline_mode<synchronous>, transform_indices = @transform_8, window_bounds = array<i64: 64, 32>}, {pipeline_mode = #tpu.pipeline_mode<synchronous>, transform_indices = @transform_9, window_bounds = array<i64: 1, 64>}, {pipeline_mode = #tpu.pipeline_mode<synchronous>, transform_indices = @transform_10, window_bounds = array<i64: 32, 64>}, {pipeline_mode = #tpu.pipeline_mode<synchronous>, transform_indices = @transform_11, window_bounds = array<i64: 1, 32>}, {transform_indices = @transform_12, window_bounds = array<i64: 16, 8, 32>}]} {
    %c0 = arith.constant 0 : index
    %c0_0 = arith.constant 0 : index
    %c0_1 = arith.constant 0 : index
    %0 = vector.load %arg1[%c0, %c0_0, %c0_1] : memref<16x8x32xf32, #tpu.memory_space<vmem>>, vector<16x8x32xf32>
    %c0_2 = arith.constant 0 : index
    %c0_3 = arith.constant 0 : index
    %c0_4 = arith.constant 0 : index
    %1 = vector.load %arg2[%c0_2, %c0_3, %c0_4] : memref<16x8x32xf32, #tpu.memory_space<vmem>>, vector<16x8x32xf32>
    %c0_5 = arith.constant 0 : index
    %c0_6 = arith.constant 0 : index
    %2 = vector.load %arg5[%c0_5, %c0_6] : memref<16x8xf32, #tpu.memory_space<vmem>>, vector<16x8xf32>
    %3 = vector.shape_cast %2 : vector<16x8xf32> to vector<1x16x8xf32>
    %4 = vector.shape_cast %3 : vector<1x16x8xf32> to vector<1x16x8xf32>
    %5 = vector.broadcast %4 : vector<1x16x8xf32> to vector<16x16x8xf32>
    "tpu.trace_start"() <{level = 10 : i32, message = "gqw,gwc->gqc"}> : () -> ()
    %cst = arith.constant dense<0.000000e+00> : vector<16x16x32xf32>
    %6 = tpu.matmul %5, %1, %cst {dimension_numbers = #tpu.dot_dimension_numbers<[2], [1], [1], [2], [0, 0, 0, 1, 1, 2], [0], [0]>} : vector<16x16x8xf32>, vector<16x8x32xf32>, vector<16x16x32xf32> -> vector<16x16x32xf32>
    "tpu.trace_stop"() : () -> ()
    %c0_7 = arith.constant 0 : index
    %c0_8 = arith.constant 0 : index
    %7 = vector.load %arg6[%c0_7, %c0_8] : memref<16x32xf32, #tpu.memory_space<vmem>>, vector<16x32xf32>
    %8 = vector.shape_cast %7 : vector<16x32xf32> to vector<1x16x32xf32>
    %9 = vector.broadcast %8 : vector<1x16x32xf32> to vector<16x16x32xf32>
    %10 = arith.addf %6, %9 : vector<16x16x32xf32>
    %cst_9 = arith.constant 5.000000e-01 : f32
    %11 = vector.broadcast %cst_9 : f32 to vector<16x16x32xf32>
    %12 = arith.mulf %11, %10 : vector<16x16x32xf32>
    %cst_10 = arith.constant 0.707106769 : f32
    %13 = vector.broadcast %cst_10 : f32 to vector<16x16x32xf32>
    %14 = arith.mulf %10, %13 : vector<16x16x32xf32>
    %15 = math.absf %14 : vector<16x16x32xf32>
    %cst_11 = arith.constant 0.327591091 : f32
    %16 = vector.broadcast %cst_11 : f32 to vector<16x16x32xf32>
    %17 = arith.mulf %16, %15 : vector<16x16x32xf32>
    %cst_12 = arith.constant 1.000000e+00 : f32
    %18 = vector.broadcast %cst_12 : f32 to vector<16x16x32xf32>
    %19 = arith.addf %18, %17 : vector<16x16x32xf32>
    %20 = tpu.reciprocal %19 {approx = true} : vector<16x16x32xf32> -> vector<16x16x32xf32>
    %21 = arith.mulf %19, %20 : vector<16x16x32xf32>
    %cst_13 = arith.constant 2.000000e+00 : f32
    %22 = vector.broadcast %cst_13 : f32 to vector<16x16x32xf32>
    %23 = arith.subf %22, %21 : vector<16x16x32xf32>
    %24 = arith.mulf %20, %23 : vector<16x16x32xf32>
    %cst_14 = arith.constant 1.06140542 : f32
    %25 = vector.broadcast %cst_14 : f32 to vector<16x16x32xf32>
    %26 = arith.mulf %25, %24 : vector<16x16x32xf32>
    %cst_15 = arith.constant -1.45315206 : f32
    %27 = vector.broadcast %cst_15 : f32 to vector<16x16x32xf32>
    %28 = arith.addf %26, %27 : vector<16x16x32xf32>
    %29 = arith.mulf %28, %24 : vector<16x16x32xf32>
    %cst_16 = arith.constant 1.42141378 : f32
    %30 = vector.broadcast %cst_16 : f32 to vector<16x16x32xf32>
    %31 = arith.addf %29, %30 : vector<16x16x32xf32>
    %32 = arith.mulf %31, %24 : vector<16x16x32xf32>
    %cst_17 = arith.constant -0.284496725 : f32
    %33 = vector.broadcast %cst_17 : f32 to vector<16x16x32xf32>
    %34 = arith.addf %32, %33 : vector<16x16x32xf32>
    %35 = arith.mulf %34, %24 : vector<16x16x32xf32>
    %cst_18 = arith.constant 0.254829586 : f32
    %36 = vector.broadcast %cst_18 : f32 to vector<16x16x32xf32>
    %37 = arith.addf %35, %36 : vector<16x16x32xf32>
    %38 = arith.mulf %37, %24 : vector<16x16x32xf32>
    %cst_19 = arith.constant 0.000000e+00 : f32
    %39 = vector.broadcast %cst_19 : f32 to vector<16x16x32xf32>
    %40 = arith.subf %39, %15 : vector<16x16x32xf32>
    %41 = arith.mulf %40, %15 : vector<16x16x32xf32>
    %42 = math.exp %41 : vector<16x16x32xf32>
    %43 = arith.mulf %38, %42 : vector<16x16x32xf32>
    %cst_20 = arith.constant 1.000000e+00 : f32
    %44 = vector.broadcast %cst_20 : f32 to vector<16x16x32xf32>
    %45 = arith.subf %44, %43 : vector<16x16x32xf32>
    %cst_21 = arith.constant 0.000000e+00 : f32
    %46 = vector.broadcast %cst_21 : f32 to vector<16x16x32xf32>
    %47 = arith.cmpf oge, %14, %46 : vector<16x16x32xf32>
    %cst_22 = arith.constant 0.000000e+00 : f32
    %48 = vector.broadcast %cst_22 : f32 to vector<16x16x32xf32>
    %49 = arith.subf %48, %45 : vector<16x16x32xf32>
    %50 = arith.select %47, %45, %49 : vector<16x16x32xi1>, vector<16x16x32xf32>
    %cst_23 = arith.constant 1.000000e+00 : f32
    %51 = vector.broadcast %cst_23 : f32 to vector<16x16x32xf32>
    %52 = arith.addf %51, %50 : vector<16x16x32xf32>
    %53 = arith.mulf %12, %52 : vector<16x16x32xf32>
    %c0_24 = arith.constant 0 : index
    %c0_25 = arith.constant 0 : index
    %54 = vector.load %arg7[%c0_24, %c0_25] : memref<8x16xf32, #tpu.memory_space<vmem>>, vector<8x16xf32>
    %55 = vector.shape_cast %54 : vector<8x16xf32> to vector<1x8x16xf32>
    %56 = vector.shape_cast %55 : vector<1x8x16xf32> to vector<1x8x16xf32>
    %57 = vector.broadcast %56 : vector<1x8x16xf32> to vector<16x8x16xf32>
    "tpu.trace_start"() <{level = 10 : i32, message = "gwq,gqc->gwc"}> : () -> ()
    %cst_26 = arith.constant dense<0.000000e+00> : vector<16x8x32xf32>
    %58 = tpu.matmul %57, %53, %cst_26 {dimension_numbers = #tpu.dot_dimension_numbers<[2], [1], [1], [2], [0, 0, 0, 1, 1, 2], [0], [0]>} : vector<16x8x16xf32>, vector<16x16x32xf32>, vector<16x8x32xf32> -> vector<16x8x32xf32>
    "tpu.trace_stop"() : () -> ()
    %c0_27 = arith.constant 0 : index
    %c0_28 = arith.constant 0 : index
    %59 = vector.load %arg8[%c0_27, %c0_28] : memref<8x32xf32, #tpu.memory_space<vmem>>, vector<8x32xf32>
    %60 = vector.shape_cast %59 : vector<8x32xf32> to vector<1x8x32xf32>
    %61 = vector.broadcast %60 : vector<1x8x32xf32> to vector<16x8x32xf32>
    %62 = arith.addf %58, %61 : vector<16x8x32xf32>
    %63 = arith.addf %0, %62 : vector<16x8x32xf32>
    %c0_29 = arith.constant 0 : index
    %c0_30 = arith.constant 0 : index
    %64 = vector.load %arg3[%c0_29, %c0_30] : memref<1x32xf32, #tpu.memory_space<vmem>>, vector<1x32xf32>
    %c0_31 = arith.constant 0 : index
    %c0_32 = arith.constant 0 : index
    %65 = vector.load %arg4[%c0_31, %c0_32] : memref<1x32xf32, #tpu.memory_space<vmem>>, vector<1x32xf32>
    %cst_33 = arith.constant dense<0.000000e+00> : vector<16x8xf32>
    %66 = vector.multi_reduction <add>, %63, %cst_33 [2] : vector<16x8x32xf32> to vector<16x8xf32>
    %67 = vector.shape_cast %66 : vector<16x8xf32> to vector<16x8x1xf32>
    %cst_34 = arith.constant 3.200000e+01 : f32
    %68 = vector.broadcast %cst_34 : f32 to vector<16x8x1xf32>
    %69 = arith.divf %67, %68 : vector<16x8x1xf32>
    %70 = vector.broadcast %69 : vector<16x8x1xf32> to vector<16x8x32xf32>
    %71 = arith.subf %63, %70 : vector<16x8x32xf32>
    %72 = arith.mulf %71, %71 : vector<16x8x32xf32>
    %cst_35 = arith.constant dense<0.000000e+00> : vector<16x8xf32>
    %73 = vector.multi_reduction <add>, %72, %cst_35 [2] : vector<16x8x32xf32> to vector<16x8xf32>
    %74 = vector.shape_cast %73 : vector<16x8xf32> to vector<16x8x1xf32>
    %cst_36 = arith.constant 3.200000e+01 : f32
    %75 = vector.broadcast %cst_36 : f32 to vector<16x8x1xf32>
    %76 = arith.divf %74, %75 : vector<16x8x1xf32>
    %77 = vector.broadcast %69 : vector<16x8x1xf32> to vector<16x8x32xf32>
    %78 = arith.subf %63, %77 : vector<16x8x32xf32>
    %cst_37 = arith.constant 9.99999974E-6 : f32
    %79 = vector.broadcast %cst_37 : f32 to vector<16x8x1xf32>
    %80 = arith.addf %76, %79 : vector<16x8x1xf32>
    %81 = math.rsqrt %80 : vector<16x8x1xf32>
    %82 = vector.broadcast %81 : vector<16x8x1xf32> to vector<16x8x32xf32>
    %83 = arith.mulf %78, %82 : vector<16x8x32xf32>
    %84 = vector.shape_cast %64 : vector<1x32xf32> to vector<1x1x32xf32>
    %85 = vector.broadcast %84 : vector<1x1x32xf32> to vector<16x8x32xf32>
    %86 = arith.mulf %83, %85 : vector<16x8x32xf32>
    %87 = vector.shape_cast %65 : vector<1x32xf32> to vector<1x1x32xf32>
    %88 = vector.broadcast %87 : vector<1x1x32xf32> to vector<16x8x32xf32>
    %89 = arith.addf %86, %88 : vector<16x8x32xf32>
    %c0_38 = arith.constant 0 : index
    %c0_39 = arith.constant 0 : index
    %90 = vector.load %arg9[%c0_38, %c0_39] : memref<64x32xf32, #tpu.memory_space<vmem>>, vector<64x32xf32>
    %91 = vector.shape_cast %90 : vector<64x32xf32> to vector<1x64x32xf32>
    %92 = vector.shape_cast %91 : vector<1x64x32xf32> to vector<1x64x32xf32>
    %93 = vector.broadcast %92 : vector<1x64x32xf32> to vector<16x64x32xf32>
    "tpu.trace_start"() <{level = 10 : i32, message = "gwc,gjc->gwj"}> : () -> ()
    %cst_40 = arith.constant dense<0.000000e+00> : vector<16x8x64xf32>
    %94 = tpu.matmul %89, %93, %cst_40 {dimension_numbers = #tpu.dot_dimension_numbers<[2], [2], [1], [1], [0, 0, 0, 1, 1, 1], [0], [0]>} : vector<16x8x32xf32>, vector<16x64x32xf32>, vector<16x8x64xf32> -> vector<16x8x64xf32>
    "tpu.trace_stop"() : () -> ()
    %c0_41 = arith.constant 0 : index
    %c0_42 = arith.constant 0 : index
    %95 = vector.load %arg10[%c0_41, %c0_42] : memref<1x64xf32, #tpu.memory_space<vmem>>, vector<1x64xf32>
    %96 = vector.shape_cast %95 : vector<1x64xf32> to vector<1x1x64xf32>
    %97 = vector.broadcast %96 : vector<1x1x64xf32> to vector<16x8x64xf32>
    %98 = arith.addf %94, %97 : vector<16x8x64xf32>
    %cst_43 = arith.constant 5.000000e-01 : f32
    %99 = vector.broadcast %cst_43 : f32 to vector<16x8x64xf32>
    %100 = arith.mulf %99, %98 : vector<16x8x64xf32>
    %cst_44 = arith.constant 0.707106769 : f32
    %101 = vector.broadcast %cst_44 : f32 to vector<16x8x64xf32>
    %102 = arith.mulf %98, %101 : vector<16x8x64xf32>
    %103 = math.absf %102 : vector<16x8x64xf32>
    %cst_45 = arith.constant 0.327591091 : f32
    %104 = vector.broadcast %cst_45 : f32 to vector<16x8x64xf32>
    %105 = arith.mulf %104, %103 : vector<16x8x64xf32>
    %cst_46 = arith.constant 1.000000e+00 : f32
    %106 = vector.broadcast %cst_46 : f32 to vector<16x8x64xf32>
    %107 = arith.addf %106, %105 : vector<16x8x64xf32>
    %108 = tpu.reciprocal %107 {approx = true} : vector<16x8x64xf32> -> vector<16x8x64xf32>
    %109 = arith.mulf %107, %108 : vector<16x8x64xf32>
    %cst_47 = arith.constant 2.000000e+00 : f32
    %110 = vector.broadcast %cst_47 : f32 to vector<16x8x64xf32>
    %111 = arith.subf %110, %109 : vector<16x8x64xf32>
    %112 = arith.mulf %108, %111 : vector<16x8x64xf32>
    %cst_48 = arith.constant 1.06140542 : f32
    %113 = vector.broadcast %cst_48 : f32 to vector<16x8x64xf32>
    %114 = arith.mulf %113, %112 : vector<16x8x64xf32>
    %cst_49 = arith.constant -1.45315206 : f32
    %115 = vector.broadcast %cst_49 : f32 to vector<16x8x64xf32>
    %116 = arith.addf %114, %115 : vector<16x8x64xf32>
    %117 = arith.mulf %116, %112 : vector<16x8x64xf32>
    %cst_50 = arith.constant 1.42141378 : f32
    %118 = vector.broadcast %cst_50 : f32 to vector<16x8x64xf32>
    %119 = arith.addf %117, %118 : vector<16x8x64xf32>
    %120 = arith.mulf %119, %112 : vector<16x8x64xf32>
    %cst_51 = arith.constant -0.284496725 : f32
    %121 = vector.broadcast %cst_51 : f32 to vector<16x8x64xf32>
    %122 = arith.addf %120, %121 : vector<16x8x64xf32>
    %123 = arith.mulf %122, %112 : vector<16x8x64xf32>
    %cst_52 = arith.constant 0.254829586 : f32
    %124 = vector.broadcast %cst_52 : f32 to vector<16x8x64xf32>
    %125 = arith.addf %123, %124 : vector<16x8x64xf32>
    %126 = arith.mulf %125, %112 : vector<16x8x64xf32>
    %cst_53 = arith.constant 0.000000e+00 : f32
    %127 = vector.broadcast %cst_53 : f32 to vector<16x8x64xf32>
    %128 = arith.subf %127, %103 : vector<16x8x64xf32>
    %129 = arith.mulf %128, %103 : vector<16x8x64xf32>
    %130 = math.exp %129 : vector<16x8x64xf32>
    %131 = arith.mulf %126, %130 : vector<16x8x64xf32>
    %cst_54 = arith.constant 1.000000e+00 : f32
    %132 = vector.broadcast %cst_54 : f32 to vector<16x8x64xf32>
    %133 = arith.subf %132, %131 : vector<16x8x64xf32>
    %cst_55 = arith.constant 0.000000e+00 : f32
    %134 = vector.broadcast %cst_55 : f32 to vector<16x8x64xf32>
    %135 = arith.cmpf oge, %102, %134 : vector<16x8x64xf32>
    %cst_56 = arith.constant 0.000000e+00 : f32
    %136 = vector.broadcast %cst_56 : f32 to vector<16x8x64xf32>
    %137 = arith.subf %136, %133 : vector<16x8x64xf32>
    %138 = arith.select %135, %133, %137 : vector<16x8x64xi1>, vector<16x8x64xf32>
    %cst_57 = arith.constant 1.000000e+00 : f32
    %139 = vector.broadcast %cst_57 : f32 to vector<16x8x64xf32>
    %140 = arith.addf %139, %138 : vector<16x8x64xf32>
    %141 = arith.mulf %100, %140 : vector<16x8x64xf32>
    %c0_58 = arith.constant 0 : index
    %c0_59 = arith.constant 0 : index
    %142 = vector.load %arg11[%c0_58, %c0_59] : memref<32x64xf32, #tpu.memory_space<vmem>>, vector<32x64xf32>
    %143 = vector.shape_cast %142 : vector<32x64xf32> to vector<1x32x64xf32>
    %144 = vector.shape_cast %143 : vector<1x32x64xf32> to vector<1x32x64xf32>
    %145 = vector.broadcast %144 : vector<1x32x64xf32> to vector<16x32x64xf32>
    "tpu.trace_start"() <{level = 10 : i32, message = "gwj,gcj->gwc"}> : () -> ()
    %cst_60 = arith.constant dense<0.000000e+00> : vector<16x8x32xf32>
    %146 = tpu.matmul %141, %145, %cst_60 {dimension_numbers = #tpu.dot_dimension_numbers<[2], [2], [1], [1], [0, 0, 0, 1, 1, 1], [0], [0]>} : vector<16x8x64xf32>, vector<16x32x64xf32>, vector<16x8x32xf32> -> vector<16x8x32xf32>
    "tpu.trace_stop"() : () -> ()
    %c0_61 = arith.constant 0 : index
    %c0_62 = arith.constant 0 : index
    %147 = vector.load %arg12[%c0_61, %c0_62] : memref<1x32xf32, #tpu.memory_space<vmem>>, vector<1x32xf32>
    %148 = vector.shape_cast %147 : vector<1x32xf32> to vector<1x1x32xf32>
    %149 = vector.broadcast %148 : vector<1x1x32xf32> to vector<16x8x32xf32>
    %150 = arith.addf %146, %149 : vector<16x8x32xf32>
    %151 = arith.addf %63, %150 : vector<16x8x32xf32>
    %c0_63 = arith.constant 0 : index
    %c0_64 = arith.constant 0 : index
    %c0_65 = arith.constant 0 : index
    %152 = vector.load %arg13[%c0_63, %c0_64, %c0_65] : memref<16x8x32xf32, #tpu.memory_space<vmem>>, vector<16x8x32xf32>
    tpu.vector_store %arg13[%c0_63, %c0_64, %c0_65], %151 {strides = array<i32>} : memref<16x8x32xf32, #tpu.memory_space<vmem>>, vector<16x8x32xf32>,
    return
  }
  func.func @transform_0(%arg0: i32) -> (i32, i32, i32) {
    %c0_i32 = arith.constant 0 : i32
    %c0_i32_0 = arith.constant 0 : i32
    %c0_i32_1 = arith.constant 0 : i32
    return %arg0, %c0_i32, %c0_i32_0 : i32, i32, i32
  }
  func.func @transform_1(%arg0: i32) -> (i32, i32, i32) {
    %c0_i32 = arith.constant 0 : i32
    %c0_i32_0 = arith.constant 0 : i32
    %c0_i32_1 = arith.constant 0 : i32
    return %arg0, %c0_i32, %c0_i32_0 : i32, i32, i32
  }
  func.func @transform_2(%arg0: i32) -> (i32, i32) {
    %c0_i32 = arith.constant 0 : i32
    %c0_i32_0 = arith.constant 0 : i32
    %c0_i32_1 = arith.constant 0 : i32
    return %c0_i32, %c0_i32_0 : i32, i32
  }
  func.func @transform_3(%arg0: i32) -> (i32, i32) {
    %c0_i32 = arith.constant 0 : i32
    %c0_i32_0 = arith.constant 0 : i32
    %c0_i32_1 = arith.constant 0 : i32
    return %c0_i32, %c0_i32_0 : i32, i32
  }
  func.func @transform_4(%arg0: i32) -> (i32, i32) {
    %c0_i32 = arith.constant 0 : i32
    %c0_i32_0 = arith.constant 0 : i32
    %c0_i32_1 = arith.constant 0 : i32
    return %c0_i32, %c0_i32_0 : i32, i32
  }
  func.func @transform_5(%arg0: i32) -> (i32, i32) {
    %c0_i32 = arith.constant 0 : i32
    %c0_i32_0 = arith.constant 0 : i32
    %c0_i32_1 = arith.constant 0 : i32
    return %c0_i32, %c0_i32_0 : i32, i32
  }
  func.func @transform_6(%arg0: i32) -> (i32, i32) {
    %c0_i32 = arith.constant 0 : i32
    %c0_i32_0 = arith.constant 0 : i32
    %c0_i32_1 = arith.constant 0 : i32
    return %c0_i32, %c0_i32_0 : i32, i32
  }
  func.func @transform_7(%arg0: i32) -> (i32, i32) {
    %c0_i32 = arith.constant 0 : i32
    %c0_i32_0 = arith.constant 0 : i32
    %c0_i32_1 = arith.constant 0 : i32
    return %c0_i32, %c0_i32_0 : i32, i32
  }
  func.func @transform_8(%arg0: i32) -> (i32, i32) {
    %c0_i32 = arith.constant 0 : i32
    %c0_i32_0 = arith.constant 0 : i32
    %c0_i32_1 = arith.constant 0 : i32
    return %c0_i32, %c0_i32_0 : i32, i32
  }
  func.func @transform_9(%arg0: i32) -> (i32, i32) {
    %c0_i32 = arith.constant 0 : i32
    %c0_i32_0 = arith.constant 0 : i32
    %c0_i32_1 = arith.constant 0 : i32
    return %c0_i32, %c0_i32_0 : i32, i32
  }
  func.func @transform_10(%arg0: i32) -> (i32, i32) {
    %c0_i32 = arith.constant 0 : i32
    %c0_i32_0 = arith.constant 0 : i32
    %c0_i32_1 = arith.constant 0 : i32
    return %c0_i32, %c0_i32_0 : i32, i32
  }
  func.func @transform_11(%arg0: i32) -> (i32, i32) {
    %c0_i32 = arith.constant 0 : i32
    %c0_i32_0 = arith.constant 0 : i32
    %c0_i32_1 = arith.constant 0 : i32
    return %c0_i32, %c0_i32_0 : i32, i32
  }
  func.func @transform_12(%arg0: i32) -> (i32, i32, i32) {
    %c0_i32 = arith.constant 0 : i32
    %c0_i32_0 = arith.constant 0 : i32
    %c0_i32_1 = arith.constant 0 : i32
    return %arg0, %c0_i32, %c0_i32_0 : i32, i32, i32
  }
}

</mosaic_0001>

<llo_original>
// kernel: mixer_forward.2
$region0: #{mixer_forward.2}
  #allocation0 [shape = 'u32[]', space=smem, size = 0x4, offset = 0x4, fixed_abs, tag = 'smem constant byte address 0x4 - core index']
  #allocation1 [shape = 'u32[144,128]{1,0:T(1,128)}', space=vmem, size = 0x12000, scoped, tag = 'internal scratch']
  %s0 = inlined_call_operand.vmem [shape: f32[16,8,32], index: 0, kind: input, shape index: {}]
  %s1 = inlined_call_operand.vmem [shape: f32[1,32], index: 1, kind: input, shape index: {}]
  %s2 = inlined_call_operand.vmem [shape: f32[1,32], index: 2, kind: input, shape index: {}]
  %s3 = inlined_call_operand.vmem [shape: f32[16,8], index: 3, kind: input, shape index: {}]
  %s4 = inlined_call_operand.vmem [shape: f32[16,32], index: 4, kind: input, shape index: {}]
  %s5 = inlined_call_operand.vmem [shape: f32[8,16], index: 5, kind: input, shape index: {}]
  %s6 = inlined_call_operand.vmem [shape: f32[8,32], index: 6, kind: input, shape index: {}]
  %s7 = inlined_call_operand.vmem [shape: f32[16,8,32], index: 7, kind: output, shape index: {}]
  %s8 = sld [smem:[#allocation0]]
  $region38: #{mixer_forward.2} parent=0
    _
  %s10 = ssub.s32 1, %s8
  %s11 = scalar_select 0, %s10, %s8
  // Predicated region
  $region2: #{mixer_forward.2} parent=0 // pred_check
    _
  $region3: #{mixer_forward.2} parent=0 // pred_check_branch
    %13 = sbr.rel (0) target = $region5
  $region4: #{mixer_forward.2} parent=0 // pred_region
    _
  $region5: #{mixer_forward.2} parent=0 // pred_fallthru
    _
  // Predicated region
  $region6: #{mixer_forward.2} parent=0 // pred_check
    _
  $region7: #{mixer_forward.2} parent=0 // pred_check_branch
    %15 = sbr.rel (0) target = $region9
  $region8: #{mixer_forward.2} parent=0 // pred_region
    _
  $region9: #{mixer_forward.2} parent=0 // pred_fallthru
    _
  // Predicated region
  $region10: #{mixer_forward.2} parent=0 // pred_check
    _
  $region11: #{mixer_forward.2} parent=0 // pred_check_branch
    %17 = sbr.rel (0) target = $region13
  $region12: #{mixer_forward.2} parent=0 // pred_region
    _
  $region13: #{mixer_forward.2} parent=0 // pred_fallthru
    _
  // Predicated region
  $region14: #{mixer_forward.2} parent=0 // pred_check
    _
  $region15: #{mixer_forward.2} parent=0 // pred_check_branch
    %19 = sbr.rel (0) target = $region17
  $region16: #{mixer_forward.2} parent=0 // pred_region
    _
  $region17: #{mixer_forward.2} parent=0 // pred_fallthru
    _
  // Predicated region
  $region18: #{mixer_forward.2} parent=0 // pred_check
    _
  $region19: #{mixer_forward.2} parent=0 // pred_check_branch
    %21 = sbr.rel (0) target = $region21
  $region20: #{mixer_forward.2} parent=0 // pred_region
    _
  $region21: #{mixer_forward.2} parent=0 // pred_fallthru
    _
  // Predicated region
  $region22: #{mixer_forward.2} parent=0 // pred_check
    _
  $region23: #{mixer_forward.2} parent=0 // pred_check_branch
    %23 = sbr.rel (0) target = $region25
  $region24: #{mixer_forward.2} parent=0 // pred_region
    _
  $region25: #{mixer_forward.2} parent=0 // pred_fallthru
    _
  // Predicated region
  $region26: #{mixer_forward.2} parent=0 // pred_check
    _
  $region27: #{mixer_forward.2} parent=0 // pred_check_branch
    %25 = sbr.rel (0) target = $region29
  $region28: #{mixer_forward.2} parent=0 // pred_region
    _
  $region29: #{mixer_forward.2} parent=0 // pred_fallthru
    _
  %v26 = vld [vmem:[%s0] sm:$0xff]
  %v27 = vld [vmem:[%s0 + $0x8] sm:$0xff]
  %v28 = vld [vmem:[%s0 + $0x10] sm:$0xff]
  %v29 = vld [vmem:[%s0 + $0x18] sm:$0xff]
  %v30 = vld [vmem:[%s0 + $0x20] sm:$0xff]
  %v31 = vld [vmem:[%s0 + $0x28] sm:$0xff]
  %v32 = vld [vmem:[%s0 + $0x30] sm:$0xff]
  %v33 = vld [vmem:[%s0 + $0x38] sm:$0xff]
  %v34 = vld [vmem:[%s0 + $0x40] sm:$0xff]
  %v35 = vld [vmem:[%s0 + $0x48] sm:$0xff]
  %v36 = vld [vmem:[%s0 + $0x50] sm:$0xff]
  %v37 = vld [vmem:[%s0 + $0x58] sm:$0xff]
  %v38 = vld [vmem:[%s0 + $0x60] sm:$0xff]
  %v39 = vld [vmem:[%s0 + $0x68] sm:$0xff]
  %v40 = vld [vmem:[%s0 + $0x70] sm:$0xff]
  %v41 = vld [vmem:[%s0 + $0x78] sm:$0xff]
  %v42 = vld [vmem:[%s1] sm:$0x1]
  %v43 = vld [vmem:[%s2] sm:$0x1]
  %vm44 = vcmask 261120
  %v45 = vsel %vm44, %v26, 0.0
  %46 = vadd.xlane.f32.xlu0 %v45
  %v47 = vpop.xlane.xlu0 %46
  %v48 = vsel %vm44, %v27, 0.0
  %49 = vadd.xlane.f32.xlu0 %v48
  %v50 = vpop.xlane.xlu0 %49
  %v51 = vsel %vm44, %v28, 0.0
  %52 = vadd.xlane.f32.xlu0 %v51
  %v53 = vpop.xlane.xlu0 %52
  %v54 = vsel %vm44, %v29, 0.0
  %55 = vadd.xlane.f32.xlu0 %v54
  %v56 = vpop.xlane.xlu0 %55
  %v57 = vsel %vm44, %v30, 0.0
  %58 = vadd.xlane.f32.xlu0 %v57
  %v59 = vpop.xlane.xlu0 %58
  %v60 = vsel %vm44, %v31, 0.0
  %61 = vadd.xlane.f32.xlu0 %v60
  %v62 = vpop.xlane.xlu0 %61
  %v63 = vsel %vm44, %v32, 0.0
  %64 = vadd.xlane.f32.xlu0 %v63
  %v65 = vpop.xlane.xlu0 %64
  %v66 = vsel %vm44, %v33, 0.0
  %67 = vadd.xlane.f32.xlu0 %v66
  %v68 = vpop.xlane.xlu0 %67
  %v69 = vsel %vm44, %v34, 0.0
  %70 = vadd.xlane.f32.xlu0 %v69
  %v71 = vpop.xlane.xlu0 %70
  %v72 = vsel %vm44, %v35, 0.0
  %73 = vadd.xlane.f32.xlu0 %v72
  %v74 = vpop.xlane.xlu0 %73
  %v75 = vsel %vm44, %v36, 0.0
  %76 = vadd.xlane.f32.xlu0 %v75
  %v77 = vpop.xlane.xlu0 %76
  %v78 = vsel %vm44, %v37, 0.0
  %79 = vadd.xlane.f32.xlu0 %v78
  %v80 = vpop.xlane.xlu0 %79
  %v81 = vsel %vm44, %v38, 0.0
  %82 = vadd.xlane.f32.xlu0 %v81
  %v83 = vpop.xlane.xlu0 %82
  %v84 = vsel %vm44, %v39, 0.0
  %85 = vadd.xlane.f32.xlu0 %v84
  %v86 = vpop.xlane.xlu0 %85
  %v87 = vsel %vm44, %v40, 0.0
  %88 = vadd.xlane.f32.xlu0 %v87
  %v89 = vpop.xlane.xlu0 %88
  %v90 = vsel %vm44, %v41, 0.0
  %91 = vadd.xlane.f32.xlu0 %v90
  %v92 = vpop.xlane.xlu0 %91
  %v93 = vrcp.pop 32.0
  %v94 = vmul.f32 %v47, %v93
  %v95 = vmul.f32 %v50, %v93
  %v96 = vmul.f32 %v53, %v93
  %v97 = vmul.f32 %v56, %v93
  %v98 = vmul.f32 %v59, %v93
  %v99 = vmul.f32 %v62, %v93
  %v100 = vmul.f32 %v65, %v93
  %v101 = vmul.f32 %v68, %v93
  %v102 = vmul.f32 %v71, %v93
  %v103 = vmul.f32 %v74, %v93
  %v104 = vmul.f32 %v77, %v93
  %v105 = vmul.f32 %v80, %v93
  %v106 = vmul.f32 %v83, %v93
  %v107 = vmul.f32 %v86, %v93
  %v108 = vmul.f32 %v89, %v93
  %v109 = vmul.f32 %v92, %v93
  %v110 = vsub.f32 %v26, %v94
  %v111 = vsub.f32 %v27, %v95
  %v112 = vsub.f32 %v28, %v96
  %v113 = vsub.f32 %v29, %v97
  %v114 = vsub.f32 %v30, %v98
  %v115 = vsub.f32 %v31, %v99
  %v116 = vsub.f32 %v32, %v100
  %v117 = vsub.f32 %v33, %v101
  %v118 = vsub.f32 %v34, %v102
  %v119 = vsub.f32 %v35, %v103
  %v120 = vsub.f32 %v36, %v104
  %v121 = vsub.f32 %v37, %v105
  %v122 = vsub.f32 %v38, %v106
  %v123 = vsub.f32 %v39, %v107
  %v124 = vsub.f32 %v40, %v108
  %v125 = vsub.f32 %v41, %v109
  %v126 = vmul.f32 %v110, %v110
  %v127 = vmul.f32 %v111, %v111
  %v128 = vmul.f32 %v112, %v112
  %v129 = vmul.f32 %v113, %v113
  %v130 = vmul.f32 %v114, %v114
  %v131 = vmul.f32 %v115, %v115
  %v132 = vmul.f32 %v116, %v116
  %v133 = vmul.f32 %v117, %v117
  %v134 = vmul.f32 %v118, %v118
  %v135 = vmul.f32 %v119, %v119
  %v136 = vmul.f32 %v120, %v120
  %v137 = vmul.f32 %v121, %v121
  %v138 = vmul.f32 %v122, %v122
  %v139 = vmul.f32 %v123, %v123
  %v140 = vmul.f32 %v124, %v124
  %v141 = vmul.f32 %v125, %v125
  %v142 = vsel %vm44, %v126, 0.0
  %143 = vadd.xlane.f32.xlu0 %v142
  %v144 = vpop.xlane.xlu0 %143
  %v145 = vsel %vm44, %v127, 0.0
  %146 = vadd.xlane.f32.xlu0 %v145
  %v147 = vpop.xlane.xlu0 %146
  %v148 = vsel %vm44, %v128, 0.0
  %149 = vadd.xlane.f32.xlu0 %v148
  %v150 = vpop.xlane.xlu0 %149
  %v151 = vsel %vm44, %v129, 0.0
  %152 = vadd.xlane.f32.xlu0 %v151
  %v153 = vpop.xlane.xlu0 %152
  %v154 = vsel %vm44, %v130, 0.0
  %155 = vadd.xlane.f32.xlu0 %v154
  %v156 = vpop.xlane.xlu0 %155
  %v157 = vsel %vm44, %v131, 0.0
  %158 = vadd.xlane.f32.xlu0 %v157
  %v159 = vpop.xlane.xlu0 %158
  %v160 = vsel %vm44, %v132, 0.0
  %161 = vadd.xlane.f32.xlu0 %v160
  %v162 = vpop.xlane.xlu0 %161
  %v163 = vsel %vm44, %v133, 0.0
  %164 = vadd.xlane.f32.xlu0 %v163
  %v165 = vpop.xlane.xlu0 %164
  %v166 = vsel %vm44, %v134, 0.0
  %167 = vadd.xlane.f32.xlu0 %v166
  %v168 = vpop.xlane.xlu0 %167
  %v169 = vsel %vm44, %v135, 0.0
  %170 = vadd.xlane.f32.xlu0 %v169
  %v171 = vpop.xlane.xlu0 %170
  %v172 = vsel %vm44, %v136, 0.0
  %173 = vadd.xlane.f32.xlu0 %v172
  %v174 = vpop.xlane.xlu0 %173
  %v175 = vsel %vm44, %v137, 0.0
  %176 = vadd.xlane.f32.xlu0 %v175
  %v177 = vpop.xlane.xlu0 %176
  %v178 = vsel %vm44, %v138, 0.0
  %179 = vadd.xlane.f32.xlu0 %v178
  %v180 = vpop.xlane.xlu0 %179
  %v181 = vsel %vm44, %v139, 0.0
  %182 = vadd.xlane.f32.xlu0 %v181
  %v183 = vpop.xlane.xlu0 %182
  %v184 = vsel %vm44, %v140, 0.0
  %185 = vadd.xlane.f32.xlu0 %v184
  %v186 = vpop.xlane.xlu0 %185
  %v187 = vsel %vm44, %v141, 0.0
  %188 = vadd.xlane.f32.xlu0 %v187
  %v189 = vpop.xlane.xlu0 %188
  %v190 = vmul.f32 %v144, %v93
  %v191 = vmul.f32 %v147, %v93
  %v192 = vmul.f32 %v150, %v93
  %v193 = vmul.f32 %v153, %v93
  %v194 = vmul.f32 %v156, %v93
  %v195 = vmul.f32 %v159, %v93
  %v196 = vmul.f32 %v162, %v93
  %v197 = vmul.f32 %v165, %v93
  %v198 = vmul.f32 %v168, %v93
  %v199 = vmul.f32 %v171, %v93
  %v200 = vmul.f32 %v174, %v93
  %v201 = vmul.f32 %v177, %v93
  %v202 = vmul.f32 %v180, %v93
  %v203 = vmul.f32 %v183, %v93
  %v204 = vmul.f32 %v186, %v93
  %v205 = vmul.f32 %v189, %v93
  %v206 = vadd.f32 %v190, 1e-05
  %v207 = vadd.f32 %v191, 1e-05
  %v208 = vadd.f32 %v192, 1e-05
  %v209 = vadd.f32 %v193, 1e-05
  %v210 = vadd.f32 %v194, 1e-05
  %v211 = vadd.f32 %v195, 1e-05
  %v212 = vadd.f32 %v196, 1e-05
  %v213 = vadd.f32 %v197, 1e-05
  %v214 = vadd.f32 %v198, 1e-05
  %v215 = vadd.f32 %v199, 1e-05
  %v216 = vadd.f32 %v200, 1e-05
  %v217 = vadd.f32 %v201, 1e-05
  %v218 = vadd.f32 %v202, 1e-05
  %v219 = vadd.f32 %v203, 1e-05
  %v220 = vadd.f32 %v204, 1e-05
  %v221 = vadd.f32 %v205, 1e-05
  %v222 = vrsqrt.pop %v206
  %v223 = vrsqrt.pop %v207
  %v224 = vrsqrt.pop %v208
  %v225 = vrsqrt.pop %v209
  %v226 = vrsqrt.pop %v210
  %v227 = vrsqrt.pop %v211
  %v228 = vrsqrt.pop %v212
  %v229 = vrsqrt.pop %v213
  %v230 = vrsqrt.pop %v214
  %v231 = vrsqrt.pop %v215
  %v232 = vrsqrt.pop %v216
  %v233 = vrsqrt.pop %v217
  %v234 = vrsqrt.pop %v218
  %v235 = vrsqrt.pop %v219
  %v236 = vrsqrt.pop %v220
  %v237 = vrsqrt.pop %v221
  %v238 = vmul.f32 %v110, %v222
  %v239 = vmul.f32 %v111, %v223
  %v240 = vmul.f32 %v112, %v224
  %v241 = vmul.f32 %v113, %v225
  %v242 = vmul.f32 %v114, %v226
  %v243 = vmul.f32 %v115, %v227
  %v244 = vmul.f32 %v116, %v228
  %v245 = vmul.f32 %v117, %v229
  %v246 = vmul.f32 %v118, %v230
  %v247 = vmul.f32 %v119, %v231
  %v248 = vmul.f32 %v120, %v232
  %v249 = vmul.f32 %v121, %v233
  %v250 = vmul.f32 %v122, %v234
  %v251 = vmul.f32 %v123, %v235
  %v252 = vmul.f32 %v124, %v236
  %v253 = vmul.f32 %v125, %v237
  %v255 = vlaneseq
  %v256 = vshrl.u32 %v255, 7
  %v257 = vsub.s32 0, %v256
  %v258 = vrot.slane %v42, %v257
  %v260 = vmul.f32 %v238, %v258
  %v261 = vmul.f32 %v239, %v258
  %v262 = vmul.f32 %v240, %v258
  %v263 = vmul.f32 %v241, %v258
  %v264 = vmul.f32 %v242, %v258
  %v265 = vmul.f32 %v243, %v258
  %v266 = vmul.f32 %v244, %v258
  %v267 = vmul.f32 %v245, %v258
  %v268 = vmul.f32 %v246, %v258
  %v269 = vmul.f32 %v247, %v258
  %v270 = vmul.f32 %v248, %v258
  %v271 = vmul.f32 %v249, %v258
  %v272 = vmul.f32 %v250, %v258
  %v273 = vmul.f32 %v251, %v258
  %v274 = vmul.f32 %v252, %v258
  %v275 = vmul.f32 %v253, %v258
  %v277 = vlaneseq
  %v278 = vshrl.u32 %v277, 7
  %v279 = vsub.s32 0, %v278
  %v280 = vrot.slane %v43, %v279
  %v282 = vadd.f32 %v260, %v280
  %v283 = vadd.f32 %v261, %v280
  %v284 = vadd.f32 %v262, %v280
  %v285 = vadd.f32 %v263, %v280
  %v286 = vadd.f32 %v264, %v280
  %v287 = vadd.f32 %v265, %v280
  %v288 = vadd.f32 %v266, %v280
  %v289 = vadd.f32 %v267, %v280
  %v290 = vadd.f32 %v268, %v280
  %v291 = vadd.f32 %v269, %v280
  %v292 = vadd.f32 %v270, %v280
  %v293 = vadd.f32 %v271, %v280
  %v294 = vadd.f32 %v272, %v280
  %v295 = vadd.f32 %v273, %v280
  %v296 = vadd.f32 %v274, %v280
  %v297 = vadd.f32 %v275, %v280
  %v298 = vld [vmem:[%s3] sm:$0xff]
  %v299 = vld [vmem:[%s3 + $0x8] sm:$0xff]
  %v300 = vld [vmem:[%s4] sm:$0xff]
  %v301 = vld [vmem:[%s4 + $0x8] sm:$0xff]
  %vm302 = vcmask 64512
  %v304 = vsel %vm302, %v298, 0
  %v307 = vsel %vm302, %v299, 0
  %309 = vmatprep.subr.mxu0 0.0
  %310 = vmatpush1.msra.mxu0 0.0
  %311 = vmatprep.subr.mxu0 0.0
  %312 = vmatpush1.msra.mxu0 0.0
  %313 = vmatprep.subr.mxu0 0.0
  %314 = vmatpush1.msra.mxu0 0.0
  %315 = vmatprep.subr.mxu0 0.0
  %316 = vmatpush1.msra.mxu0 0.0
  %317 = vmatprep.subr.mxu0 0.0
  %318 = vmatpush1.msra.mxu0 0.0
  %319 = vmatprep.subr.mxu0 0.0
  %320 = vmatpush1.msra.mxu0 0.0
  %321 = vmatprep.subr.mxu0 0.0
  %322 = vmatpush1.msra.mxu0 0.0
  %323 = vmatprep.subr.mxu0 0.0
  %324 = vmatpush1.msra.mxu0 0.0
  %325 = vmatprep.subr.mxu0 0.0
  %326 = vmatpush1.msra.mxu0 0.0
  %327 = vmatprep.subr.mxu0 0.0
  %328 = vmatpush1.msra.mxu0 0.0
  %329 = vmatprep.subr.mxu0 0.0
  %330 = vmatpush1.msra.mxu0 0.0
  %331 = vmatprep.subr.mxu0 0.0
  %332 = vmatpush1.msra.mxu0 0.0
  %333 = vmatprep.subr.mxu0 0.0
  %334 = vmatpush1.msra.mxu0 0.0
  %335 = vmatprep.subr.mxu0 0.0
  %336 = vmatpush1.msra.mxu0 0.0
  %337 = vmatprep.subr.mxu0 0.0
  %338 = vmatpush1.msra.mxu0 0.0
  %339 = vmatprep.subr.mxu0 0.0
  %340 = vmatpush1.msra.mxu0 %v282
  %341 = vmatprep.subr.mxu0 0.0
  %342 = vmatpush2.msra.mxu0 0.0
  %343 = vmatprep.subr.mxu0 0.0
  %344 = vmatpush2.msra.mxu0 0.0
  %345 = vmatprep.subr.mxu0 0.0
  %346 = vmatpush2.msra.mxu0 0.0
  %347 = vmatprep.subr.mxu0 0.0
  %348 = vmatpush2.msra.mxu0 0.0
  %349 = vmatprep.subr.mxu0 0.0
  %350 = vmatpush2.msra.mxu0 0.0
  %351 = vmatprep.subr.mxu0 0.0
  %352 = vmatpush2.msra.mxu0 0.0
  %353 = vmatprep.subr.mxu0 0.0
  %354 = vmatpush2.msra.mxu0 0.0
  %355 = vmatprep.subr.mxu0 0.0
  %356 = vmatpush2.msra.mxu0 0.0
  %357 = vmatprep.subr.mxu0 0.0
  %358 = vmatpush2.msra.mxu0 0.0
  %359 = vmatprep.subr.mxu0 0.0
  %360 = vmatpush2.msra.mxu0 0.0
  %361 = vmatprep.subr.mxu0 0.0
  %362 = vmatpush2.msra.mxu0 0.0
  %363 = vmatprep.subr.mxu0 0.0
  %364 = vmatpush2.msra.mxu0 0.0
  %365 = vmatprep.subr.mxu0 0.0
  %366 = vmatpush2.msra.mxu0 0.0
  %367 = vmatprep.subr.mxu0 0.0
  %368 = vmatpush2.msra.mxu0 0.0
  %369 = vmatprep.subr.mxu0 0.0
  %370 = vmatpush2.msra.mxu0 0.0
  %371 = vmatprep.subr.mxu0 0.0
  %372 = vmatpush2.msra.mxu0 0.0
  %373 = vmatprep.mubr.f32.mxu0 0.0
  %374 = vmatmul.mubr.f32.gmra.mxu0 %v304
  %v375 = vpop.f32.mrf.mxu0
  %v376 = vadd.f32 %v300, %v375
  %v377 = vpop.f32.mrf.mxu0
  %378 = vmatprep.mubr.f32.mxu0 0.0
  %379 = vmatmul.mubr.f32.gmra.mxu0 %v307
  %v380 = vpop.f32.mrf.mxu0
  %v381 = vadd.f32 %v301, %v380
  %v382 = vpop.f32.mrf.mxu0
  %383 = vdwg.mxu0
  %384 = vmatprep.subr.mxu0 0.0
  %385 = vmatpush1.msra.mxu0 0.0
  %386 = vmatprep.subr.mxu0 0.0
  %387 = vmatpush1.msra.mxu0 0.0
  %388 = vmatprep.subr.mxu0 0.0
  %389 = vmatpush1.msra.mxu0 0.0
  %390 = vmatprep.subr.mxu0 0.0
  %391 = vmatpush1.msra.mxu0 0.0
  %392 = vmatprep.subr.mxu0 0.0
  %393 = vmatpush1.msra.mxu0 0.0
  %394 = vmatprep.subr.mxu0 0.0
  %395 = vmatpush1.msra.mxu0 0.0
  %396 = vmatprep.subr.mxu0 0.0
  %397 = vmatpush1.msra.mxu0 0.0
  %398 = vmatprep.subr.mxu0 0.0
  %399 = vmatpush1.msra.mxu0 0.0
  %400 = vmatprep.subr.mxu0 0.0
  %401 = vmatpush1.msra.mxu0 0.0
  %402 = vmatprep.subr.mxu0 0.0
  %403 = vmatpush1.msra.mxu0 0.0
  %404 = vmatprep.subr.mxu0 0.0
  %405 = vmatpush1.msra.mxu0 0.0
  %406 = vmatprep.subr.mxu0 0.0
  %407 = vmatpush1.msra.mxu0 0.0
  %408 = vmatprep.subr.mxu0 0.0
  %409 = vmatpush1.msra.mxu0 0.0
  %410 = vmatprep.subr.mxu0 0.0
  %411 = vmatpush1.msra.mxu0 0.0
  %412 = vmatprep.subr.mxu0 0.0
  %413 = vmatpush1.msra.mxu0 0.0
  %414 = vmatprep.subr.mxu0 0.0
  %415 = vmatpush1.msra.mxu0 %v283
  %416 = vmatprep.subr.mxu0 0.0
  %417 = vmatpush2.msra.mxu0 0.0
  %418 = vmatprep.subr.mxu0 0.0
  %419 = vmatpush2.msra.mxu0 0.0
  %420 = vmatprep.subr.mxu0 0.0
  %421 = vmatpush2.msra.mxu0 0.0
  %422 = vmatprep.subr.mxu0 0.0
  %423 = vmatpush2.msra.mxu0 0.0
  %424 = vmatprep.subr.mxu0 0.0
  %425 = vmatpush2.msra.mxu0 0.0
  %426 = vmatprep.subr.mxu0 0.0
  %427 = vmatpush2.msra.mxu0 0.0
  %428 = vmatprep.subr.mxu0 0.0
  %429 = vmatpush2.msra.mxu0 0.0
  %430 = vmatprep.subr.mxu0 0.0
  %431 = vmatpush2.msra.mxu0 0.0
  %432 = vmatprep.subr.mxu0 0.0
  %433 = vmatpush2.msra.mxu0 0.0
  %434 = vmatprep.subr.mxu0 0.0
  %435 = vmatpush2.msra.mxu0 0.0
  %436 = vmatprep.subr.mxu0 0.0
  %437 = vmatpush2.msra.mxu0 0.0
  %438 = vmatprep.subr.mxu0 0.0
  %439 = vmatpush2.msra.mxu0 0.0
  %440 = vmatprep.subr.mxu0 0.0
  %441 = vmatpush2.msra.mxu0 0.0
  %442 = vmatprep.subr.mxu0 0.0
  %443 = vmatpush2.msra.mxu0 0.0
  %444 = vmatprep.subr.mxu0 0.0
  %445 = vmatpush2.msra.mxu0 0.0
  %446 = vmatprep.subr.mxu0 0.0
  %447 = vmatpush2.msra.mxu0 0.0
  %448 = vmatprep.mubr.f32.mxu0 0.0
  %449 = vmatmul.mubr.f32.gmra.mxu0 %v304
  %v450 = vpop.f32.mrf.mxu0
  %v451 = vadd.f32 %v300, %v450
  %v452 = vpop.f32.mrf.mxu0
  %453 = vmatprep.mubr.f32.mxu0 0.0
  %454 = vmatmul.mubr.f32.gmra.mxu0 %v307
  %v455 = vpop.f32.mrf.mxu0
  %v456 = vadd.f32 %v301, %v455
  %v457 = vpop.f32.mrf.mxu0
  %458 = vdwg.mxu0
  %459 = vmatprep.subr.mxu0 0.0
  %460 = vmatpush1.msra.mxu0 0.0
  %461 = vmatprep.subr.mxu0 0.0
  %462 = vmatpush1.msra.mxu0 0.0
  %463 = vmatprep.subr.mxu0 0.0
  %464 = vmatpush1.msra.mxu0 0.0
  %465 = vmatprep.subr.mxu0 0.0
  %466 = vmatpush1.msra.mxu0 0.0
  %467 = vmatprep.subr.mxu0 0.0
  %468 = vmatpush1.msra.mxu0 0.0
  %469 = vmatprep.subr.mxu0 0.0
  %470 = vmatpush1.msra.mxu0 0.0
  %471 = vmatprep.subr.mxu0 0.0
  %472 = vmatpush1.msra.mxu0 0.0
  %473 = vmatprep.subr.mxu0 0.0
  %474 = vmatpush1.msra.mxu0 0.0
  %475 = vmatprep.subr.mxu0 0.0
  %476 = vmatpush1.msra.mxu0 0.0
  %477 = vmatprep.subr.mxu0 0.0
  %478 = vmatpush1.msra.mxu0 0.0
  %479 = vmatprep.subr.mxu0 0.0
  %480 = vmatpush1.msra.mxu0 0.0
  %481 = vmatprep.subr.mxu0 0.0
  %482 = vmatpush1.msra.mxu0 0.0
  %483 = vmatprep.subr.mxu0 0.0
  %484 = vmatpush1.msra.mxu0 0.0
  %485 = vmatprep.subr.mxu0 0.0
  %486 = vmatpush1.msra.mxu0 0.0
  %487 = vmatprep.subr.mxu0 0.0
  %488 = vmatpush1.msra.mxu0 0.0
  %489 = vmatprep.subr.mxu0 0.0
  %490 = vmatpush1.msra.mxu0 %v284
  %491 = vmatprep.subr.mxu0 0.0
  %492 = vmatpush2.msra.mxu0 0.0
  %493 = vmatprep.subr.mxu0 0.0
  %494 = vmatpush2.msra.mxu0 0.0
  %495 = vmatprep.subr.mxu0 0.0
  %496 = vmatpush2.msra.mxu0 0.0
  %497 = vmatprep.subr.mxu0 0.0
  %498 = vmatpush2.msra.mxu0 0.0
  %499 = vmatprep.subr.mxu0 0.0
  %500 = vmatpush2.msra.mxu0 0.0
  %501 = vmatprep.subr.mxu0 0.0
  %502 = vmatpush2.msra.mxu0 0.0
  %503 = vmatprep.subr.mxu0 0.0
  %504 = vmatpush2.msra.mxu0 0.0
  %505 = vmatprep.subr.mxu0 0.0
  %506 = vmatpush2.msra.mxu0 0.0
  %507 = vmatprep.subr.mxu0 0.0
  %508 = vmatpush2.msra.mxu0 0.0
  %509 = vmatprep.subr.mxu0 0.0
  %510 = vmatpush2.msra.mxu0 0.0
  %511 = vmatprep.subr.mxu0 0.0
  %512 = vmatpush2.msra.mxu0 0.0
  %513 = vmatprep.subr.mxu0 0.0
  %514 = vmatpush2.msra.mxu0 0.0
  %515 = vmatprep.subr.mxu0 0.0
  %516 = vmatpush2.msra.mxu0 0.0
  %517 = vmatprep.subr.mxu0 0.0
  %518 = vmatpush2.msra.mxu0 0.0
  %519 = vmatprep.subr.mxu0 0.0
  %520 = vmatpush2.msra.mxu0 0.0
  %521 = vmatprep.subr.mxu0 0.0
  %522 = vmatpush2.msra.mxu0 0.0
  %523 = vmatprep.mubr.f32.mxu0 0.0
  %524 = vmatmul.mubr.f32.gmra.mxu0 %v304
  %v525 = vpop.f32.mrf.mxu0
  %v526 = vadd.f32 %v300, %v525
  %v527 = vpop.f32.mrf.mxu0
  %528 = vmatprep.mubr.f32.mxu0 0.0
  %529 = vmatmul.mubr.f32.gmra.mxu0 %v307
  %v530 = vpop.f32.mrf.mxu0
  %v531 = vadd.f32 %v301, %v530
  %v532 = vpop.f32.mrf.mxu0
  %533 = vdwg.mxu0
  %534 = vmatprep.subr.mxu0 0.0
  %535 = vmatpush1.msra.mxu0 0.0
  %536 = vmatprep.subr.mxu0 0.0
  %537 = vmatpush1.msra.mxu0 0.0
  %538 = vmatprep.subr.mxu0 0.0
  %539 = vmatpush1.msra.mxu0 0.0
  %540 = vmatprep.subr.mxu0 0.0
  %541 = vmatpush1.msra.mxu0 0.0
  %542 = vmatprep.subr.mxu0 0.0
  %543 = vmatpush1.msra.mxu0 0.0
  %544 = vmatprep.subr.mxu0 0.0
  %545 = vmatpush1.msra.mxu0 0.0
  %546 = vmatprep.subr.mxu0 0.0
  %547 = vmatpush1.msra.mxu0 0.0
  %548 = vmatprep.subr.mxu0 0.0
  %549 = vmatpush1.msra.mxu0 0.0
  %550 = vmatprep.subr.mxu0 0.0
  %551 = vmatpush1.msra.mxu0 0.0
  %552 = vmatprep.subr.mxu0 0.0
  %553 = vmatpush1.msra.mxu0 0.0
  %554 = vmatprep.subr.mxu0 0.0
  %555 = vmatpush1.msra.mxu0 0.0
  %556 = vmatprep.subr.mxu0 0.0
  %557 = vmatpush1.msra.mxu0 0.0
  %558 = vmatprep.subr.mxu0 0.0
  %559 = vmatpush1.msra.mxu0 0.0
  %560 = vmatprep.subr.mxu0 0.0
  %561 = vmatpush1.msra.mxu0 0.0
  %562 = vmatprep.subr.mxu0 0.0
  %563 = vmatpush1.msra.mxu0 0.0
  %564 = vmatprep.subr.mxu0 0.0
  %565 = vmatpush1.msra.mxu0 %v285
  %566 = vmatprep.subr.mxu0 0.0
  %567 = vmatpush2.msra.mxu0 0.0
  %568 = vmatprep.subr.mxu0 0.0
  %569 = vmatpush2.msra.mxu0 0.0
  %570 = vmatprep.subr.mxu0 0.0
  %571 = vmatpush2.msra.mxu0 0.0
  %572 = vmatprep.subr.mxu0 0.0
  %573 = vmatpush2.msra.mxu0 0.0
  %574 = vmatprep.subr.mxu0 0.0
  %575 = vmatpush2.msra.mxu0 0.0
  %576 = vmatprep.subr.mxu0 0.0
  %577 = vmatpush2.msra.mxu0 0.0
  %578 = vmatprep.subr.mxu0 0.0
  %579 = vmatpush2.msra.mxu0 0.0
  %580 = vmatprep.subr.mxu0 0.0
  %581 = vmatpush2.msra.mxu0 0.0
  %582 = vmatprep.subr.mxu0 0.0
  %583 = vmatpush2.msra.mxu0 0.0
  %584 = vmatprep.subr.mxu0 0.0
  %585 = vmatpush2.msra.mxu0 0.0
  %586 = vmatprep.subr.mxu0 0.0
  %587 = vmatpush2.msra.mxu0 0.0
  %588 = vmatprep.subr.mxu0 0.0
  %589 = vmatpush2.msra.mxu0 0.0
  %590 = vmatprep.subr.mxu0 0.0
  %591 = vmatpush2.msra.mxu0 0.0
  %592 = vmatprep.subr.mxu0 0.0
  %593 = vmatpush2.msra.mxu0 0.0
  %594 = vmatprep.subr.mxu0 0.0
  %595 = vmatpush2.msra.mxu0 0.0
  %596 = vmatprep.subr.mxu0 0.0
  %597 = vmatpush2.msra.mxu0 0.0
  %598 = vmatprep.mubr.f32.mxu0 0.0
  %599 = vmatmul.mubr.f32.gmra.mxu0 %v304
  %v600 = vpop.f32.mrf.mxu0
  %v601 = vadd.f32 %v300, %v600
  %v602 = vpop.f32.mrf.mxu0
  %603 = vmatprep.mubr.f32.mxu0 0.0
  %604 = vmatmul.mubr.f32.gmra.mxu0 %v307
  %v605 = vpop.f32.mrf.mxu0
  %v606 = vadd.f32 %v301, %v605
  %v607 = vpop.f32.mrf.mxu0
  %608 = vdwg.mxu0
  %609 = vmatprep.subr.mxu0 0.0
  %610 = vmatpush1.msra.mxu0 0.0
  %611 = vmatprep.subr.mxu0 0.0
  %612 = vmatpush1.msra.mxu0 0.0
  %613 = vmatprep.subr.mxu0 0.0
  %614 = vmatpush1.msra.mxu0 0.0
  %615 = vmatprep.subr.mxu0 0.0
  %616 = vmatpush1.msra.mxu0 0.0
  %617 = vmatprep.subr.mxu0 0.0
  %618 = vmatpush1.msra.mxu0 0.0
  %619 = vmatprep.subr.mxu0 0.0
  %620 = vmatpush1.msra.mxu0 0.0
  %621 = vmatprep.subr.mxu0 0.0
  %622 = vmatpush1.msra.mxu0 0.0
  %623 = vmatprep.subr.mxu0 0.0
  %624 = vmatpush1.msra.mxu0 0.0
  %625 = vmatprep.subr.mxu0 0.0
  %626 = vmatpush1.msra.mxu0 0.0
  %627 = vmatprep.subr.mxu0 0.0
  %628 = vmatpush1.msra.mxu0 0.0
  %629 = vmatprep.subr.mxu0 0.0
  %630 = vmatpush1.msra.mxu0 0.0
  %631 = vmatprep.subr.mxu0 0.0
  %632 = vmatpush1.msra.mxu0 0.0
  %633 = vmatprep.subr.mxu0 0.0
  %634 = vmatpush1.msra.mxu0 0.0
  %635 = vmatprep.subr.mxu0 0.0
  %636 = vmatpush1.msra.mxu0 0.0
  %637 = vmatprep.subr.mxu0 0.0
  %638 = vmatpush1.msra.mxu0 0.0
  %639 = vmatprep.subr.mxu0 0.0
  %640 = vmatpush1.msra.mxu0 %v286
  %641 = vmatprep.subr.mxu0 0.0
  %642 = vmatpush2.msra.mxu0 0.0
  %643 = vmatprep.subr.mxu0 0.0
  %644 = vmatpush2.msra.mxu0 0.0
  %645 = vmatprep.subr.mxu0 0.0
  %646 = vmatpush2.msra.mxu0 0.0
  %647 = vmatprep.subr.mxu0 0.0
  %648 = vmatpush2.msra.mxu0 0.0
  %649 = vmatprep.subr.mxu0 0.0
  %650 = vmatpush2.msra.mxu0 0.0
  %651 = vmatprep.subr.mxu0 0.0
  %652 = vmatpush2.msra.mxu0 0.0
  %653 = vmatprep.subr.mxu0 0.0
  %654 = vmatpush2.msra.mxu0 0.0
  %655 = vmatprep.subr.mxu0 0.0
  %656 = vmatpush2.msra.mxu0 0.0
  %657 = vmatprep.subr.mxu0 0.0
  %658 = vmatpush2.msra.mxu0 0.0
  %659 = vmatprep.subr.mxu0 0.0
  %660 = vmatpush2.msra.mxu0 0.0
  %661 = vmatprep.subr.mxu0 0.0
  %662 = vmatpush2.msra.mxu0 0.0
  %663 = vmatprep.subr.mxu0 0.0
  %664 = vmatpush2.msra.mxu0 0.0
  %665 = vmatprep.subr.mxu0 0.0
  %666 = vmatpush2.msra.mxu0 0.0
  %667 = vmatprep.subr.mxu0 0.0
  %668 = vmatpush2.msra.mxu0 0.0
  %669 = vmatprep.subr.mxu0 0.0
  %670 = vmatpush2.msra.mxu0 0.0
  %671 = vmatprep.subr.mxu0 0.0
  %672 = vmatpush2.msra.mxu0 0.0
  %673 = vmatprep.mubr.f32.mxu0 0.0
  %674 = vmatmul.mubr.f32.gmra.mxu0 %v304
  %v675 = vpop.f32.mrf.mxu0
  %v676 = vadd.f32 %v300, %v675
  %v677 = vpop.f32.mrf.mxu0
  %678 = vmatprep.mubr.f32.mxu0 0.0
  %679 = vmatmul.mubr.f32.gmra.mxu0 %v307
  %v680 = vpop.f32.mrf.mxu0
  %v681 = vadd.f32 %v301, %v680
  %v682 = vpop.f32.mrf.mxu0
  %683 = vdwg.mxu0
  %684 = vmatprep.subr.mxu0 0.0
  %685 = vmatpush1.msra.mxu0 0.0
  %686 = vmatprep.subr.mxu0 0.0
  %687 = vmatpush1.msra.mxu0 0.0
  %688 = vmatprep.subr.mxu0 0.0
  %689 = vmatpush1.msra.mxu0 0.0
  %690 = vmatprep.subr.mxu0 0.0
  %691 = vmatpush1.msra.mxu0 0.0
  %692 = vmatprep.subr.mxu0 0.0
  %693 = vmatpush1.msra.mxu0 0.0
  %694 = vmatprep.subr.mxu0 0.0
  %695 = vmatpush1.msra.mxu0 0.0
  %696 = vmatprep.subr.mxu0 0.0
  %697 = vmatpush1.msra.mxu0 0.0
  %698 = vmatprep.subr.mxu0 0.0
  %699 = vmatpush1.msra.mxu0 0.0
  %700 = vmatprep.subr.mxu0 0.0
  %701 = vmatpush1.msra.mxu0 0.0
  %702 = vmatprep.subr.mxu0 0.0
  %703 = vmatpush1.msra.mxu0 0.0
  %704 = vmatprep.subr.mxu0 0.0
  %705 = vmatpush1.msra.mxu0 0.0
  %706 = vmatprep.subr.mxu0 0.0
  %707 = vmatpush1.msra.mxu0 0.0
  %708 = vmatprep.subr.mxu0 0.0
  %709 = vmatpush1.msra.mxu0 0.0
  %710 = vmatprep.subr.mxu0 0.0
  %711 = vmatpush1.msra.mxu0 0.0
  %712 = vmatprep.subr.mxu0 0.0
  %713 = vmatpush1.msra.mxu0 0.0
  %714 = vmatprep.subr.mxu0 0.0
  %715 = vmatpush1.msra.mxu0 %v287
  %716 = vmatprep.subr.mxu0 0.0
  %717 = vmatpush2.msra.mxu0 0.0
  %718 = vmatprep.subr.mxu0 0.0
  %719 = vmatpush2.msra.mxu0 0.0
  %720 = vmatprep.subr.mxu0 0.0
  %721 = vmatpush2.msra.mxu0 0.0
  %722 = vmatprep.subr.mxu0 0.0
  %723 = vmatpush2.msra.mxu0 0.0
  %724 = vmatprep.subr.mxu0 0.0
  %725 = vmatpush2.msra.mxu0 0.0
  %726 = vmatprep.subr.mxu0 0.0
  %727 = vmatpush2.msra.mxu0 0.0
  %728 = vmatprep.subr.mxu0 0.0
  %729 = vmatpush2.msra.mxu0 0.0
  %730 = vmatprep.subr.mxu0 0.0
  %731 = vmatpush2.msra.mxu0 0.0
  %732 = vmatprep.subr.mxu0 0.0
  %733 = vmatpush2.msra.mxu0 0.0
  %734 = vmatprep.subr.mxu0 0.0
  %735 = vmatpush2.msra.mxu0 0.0
  %736 = vmatprep.subr.mxu0 0.0
  %737 = vmatpush2.msra.mxu0 0.0
  %738 = vmatprep.subr.mxu0 0.0
  %739 = vmatpush2.msra.mxu0 0.0
  %740 = vmatprep.subr.mxu0 0.0
  %741 = vmatpush2.msra.mxu0 0.0
  %742 = vmatprep.subr.mxu0 0.0
  %743 = vmatpush2.msra.mxu0 0.0
  %744 = vmatprep.subr.mxu0 0.0
  %745 = vmatpush2.msra.mxu0 0.0
  %746 = vmatprep.subr.mxu0 0.0
  %747 = vmatpush2.msra.mxu0 0.0
  %748 = vmatprep.mubr.f32.mxu0 0.0
  %749 = vmatmul.mubr.f32.gmra.mxu0 %v304
  %v750 = vpop.f32.mrf.mxu0
  %v751 = vadd.f32 %v300, %v750
  %v752 = vpop.f32.mrf.mxu0
  %753 = vmatprep.mubr.f32.mxu0 0.0
  %754 = vmatmul.mubr.f32.gmra.mxu0 %v307
  %v755 = vpop.f32.mrf.mxu0
  %v756 = vadd.f32 %v301, %v755
  %v757 = vpop.f32.mrf.mxu0
  %758 = vdwg.mxu0
  %759 = vmatprep.subr.mxu0 0.0
  %760 = vmatpush1.msra.mxu0 0.0
  %761 = vmatprep.subr.mxu0 0.0
  %762 = vmatpush1.msra.mxu0 0.0
  %763 = vmatprep.subr.mxu0 0.0
  %764 = vmatpush1.msra.mxu0 0.0
  %765 = vmatprep.subr.mxu0 0.0
  %766 = vmatpush1.msra.mxu0 0.0
  %767 = vmatprep.subr.mxu0 0.0
  %768 = vmatpush1.msra.mxu0 0.0
  %769 = vmatprep.subr.mxu0 0.0
  %770 = vmatpush1.msra.mxu0 0.0
  %771 = vmatprep.subr.mxu0 0.0
  %772 = vmatpush1.msra.mxu0 0.0
  %773 = vmatprep.subr.mxu0 0.0
  %774 = vmatpush1.msra.mxu0 0.0
  %775 = vmatprep.subr.mxu0 0.0
  %776 = vmatpush1.msra.mxu0 0.0
  %777 = vmatprep.subr.mxu0 0.0
  %778 = vmatpush1.msra.mxu0 0.0
  %779 = vmatprep.subr.mxu0 0.0
  %780 = vmatpush1.msra.mxu0 0.0
  %781 = vmatprep.subr.mxu0 0.0
  %782 = vmatpush1.msra.mxu0 0.0
  %783 = vmatprep.subr.mxu0 0.0
  %784 = vmatpush1.msra.mxu0 0.0
  %785 = vmatprep.subr.mxu0 0.0
  %786 = vmatpush1.msra.mxu0 0.0
  %787 = vmatprep.subr.mxu0 0.0
  %788 = vmatpush1.msra.mxu0 0.0
  %789 = vmatprep.subr.mxu0 0.0
  %790 = vmatpush1.msra.mxu0 %v288
  %791 = vmatprep.subr.mxu0 0.0
  %792 = vmatpush2.msra.mxu0 0.0
  %793 = vmatprep.subr.mxu0 0.0
  %794 = vmatpush2.msra.mxu0 0.0
  %795 = vmatprep.subr.mxu0 0.0
  %796 = vmatpush2.msra.mxu0 0.0
  %797 = vmatprep.subr.mxu0 0.0
  %798 = vmatpush2.msra.mxu0 0.0
  %799 = vmatprep.subr.mxu0 0.0
  %800 = vmatpush2.msra.mxu0 0.0
  %801 = vmatprep.subr.mxu0 0.0
  %802 = vmatpush2.msra.mxu0 0.0
  %803 = vmatprep.subr.mxu0 0.0
  %804 = vmatpush2.msra.mxu0 0.0
  %805 = vmatprep.subr.mxu0 0.0
  %806 = vmatpush2.msra.mxu0 0.0
  %807 = vmatprep.subr.mxu0 0.0
  %808 = vmatpush2.msra.mxu0 0.0
  %809 = vmatprep.subr.mxu0 0.0
  %810 = vmatpush2.msra.mxu0 0.0
  %811 = vmatprep.subr.mxu0 0.0
  %812 = vmatpush2.msra.mxu0 0.0
  %813 = vmatprep.subr.mxu0 0.0
  %814 = vmatpush2.msra.mxu0 0.0
  %815 = vmatprep.subr.mxu0 0.0
  %816 = vmatpush2.msra.mxu0 0.0
  %817 = vmatprep.subr.mxu0 0.0
  %818 = vmatpush2.msra.mxu0 0.0
  %819 = vmatprep.subr.mxu0 0.0
  %820 = vmatpush2.msra.mxu0 0.0
  %821 = vmatprep.subr.mxu0 0.0
  %822 = vmatpush2.msra.mxu0 0.0
  %823 = vmatprep.mubr.f32.mxu0 0.0
  %824 = vmatmul.mubr.f32.gmra.mxu0 %v304
  %v825 = vpop.f32.mrf.mxu0
  %v826 = vadd.f32 %v300, %v825
  %v827 = vpop.f32.mrf.mxu0
  %828 = vmatprep.mubr.f32.mxu0 0.0
  %829 = vmatmul.mubr.f32.gmra.mxu0 %v307
  %v830 = vpop.f32.mrf.mxu0
  %v831 = vadd.f32 %v301, %v830
  %v832 = vpop.f32.mrf.mxu0
  %833 = vdwg.mxu0
  %834 = vmatprep.subr.mxu0 0.0
  %835 = vmatpush1.msra.mxu0 0.0
  %836 = vmatprep.subr.mxu0 0.0
  %837 = vmatpush1.msra.mxu0 0.0
  %838 = vmatprep.subr.mxu0 0.0
  %839 = vmatpush1.msra.mxu0 0.0
  %840 = vmatprep.subr.mxu0 0.0
  %841 = vmatpush1.msra.mxu0 0.0
  %842 = vmatprep.subr.mxu0 0.0
  %843 = vmatpush1.msra.mxu0 0.0
  %844 = vmatprep.subr.mxu0 0.0
  %845 = vmatpush1.msra.mxu0 0.0
  %846 = vmatprep.subr.mxu0 0.0
  %847 = vmatpush1.msra.mxu0 0.0
  %848 = vmatprep.subr.mxu0 0.0
  %849 = vmatpush1.msra.mxu0 0.0
  %850 = vmatprep.subr.mxu0 0.0
  %851 = vmatpush1.msra.mxu0 0.0
  %852 = vmatprep.subr.mxu0 0.0
  %853 = vmatpush1.msra.mxu0 0.0
  %854 = vmatprep.subr.mxu0 0.0
  %855 = vmatpush1.msra.mxu0 0.0
  %856 = vmatprep.subr.mxu0 0.0
  %857 = vmatpush1.msra.mxu0 0.0
  %858 = vmatprep.subr.mxu0 0.0
  %859 = vmatpush1.msra.mxu0 0.0
  %860 = vmatprep.subr.mxu0 0.0
  %861 = vmatpush1.msra.mxu0 0.0
  %862 = vmatprep.subr.mxu0 0.0
  %863 = vmatpush1.msra.mxu0 0.0
  %864 = vmatprep.subr.mxu0 0.0
  %865 = vmatpush1.msra.mxu0 %v289
  %866 = vmatprep.subr.mxu0 0.0
  %867 = vmatpush2.msra.mxu0 0.0
  %868 = vmatprep.subr.mxu0 0.0
  %869 = vmatpush2.msra.mxu0 0.0
  %870 = vmatprep.subr.mxu0 0.0
  %871 = vmatpush2.msra.mxu0 0.0
  %872 = vmatprep.subr.mxu0 0.0
  %873 = vmatpush2.msra.mxu0 0.0
  %874 = vmatprep.subr.mxu0 0.0
  %875 = vmatpush2.msra.mxu0 0.0
  %876 = vmatprep.subr.mxu0 0.0
  %877 = vmatpush2.msra.mxu0 0.0
  %878 = vmatprep.subr.mxu0 0.0
  %879 = vmatpush2.msra.mxu0 0.0
  %880 = vmatprep.subr.mxu0 0.0
  %881 = vmatpush2.msra.mxu0 0.0
  %882 = vmatprep.subr.mxu0 0.0
  %883 = vmatpush2.msra.mxu0 0.0
  %884 = vmatprep.subr.mxu0 0.0
  %885 = vmatpush2.msra.mxu0 0.0
  %886 = vmatprep.subr.mxu0 0.0
  %887 = vmatpush2.msra.mxu0 0.0
  %888 = vmatprep.subr.mxu0 0.0
  %889 = vmatpush2.msra.mxu0 0.0
  %890 = vmatprep.subr.mxu0 0.0
  %891 = vmatpush2.msra.mxu0 0.0
  %892 = vmatprep.subr.mxu0 0.0
  %893 = vmatpush2.msra.mxu0 0.0
  %894 = vmatprep.subr.mxu0 0.0
  %895 = vmatpush2.msra.mxu0 0.0
  %896 = vmatprep.subr.mxu0 0.0
  %897 = vmatpush2.msra.mxu0 0.0
  %898 = vmatprep.mubr.f32.mxu0 0.0
  %899 = vmatmul.mubr.f32.gmra.mxu0 %v304
  %v900 = vpop.f32.mrf.mxu0
  %v901 = vadd.f32 %v300, %v900
  %v902 = vpop.f32.mrf.mxu0
  %903 = vmatprep.mubr.f32.mxu0 0.0
  %904 = vmatmul.mubr.f32.gmra.mxu0 %v307
  %v905 = vpop.f32.mrf.mxu0
  %v906 = vadd.f32 %v301, %v905
  %v907 = vpop.f32.mrf.mxu0
  %908 = vdwg.mxu0
  %909 = vmatprep.subr.mxu0 0.0
  %910 = vmatpush1.msra.mxu0 0.0
  %911 = vmatprep.subr.mxu0 0.0
  %912 = vmatpush1.msra.mxu0 0.0
  %913 = vmatprep.subr.mxu0 0.0
  %914 = vmatpush1.msra.mxu0 0.0
  %915 = vmatprep.subr.mxu0 0.0
  %916 = vmatpush1.msra.mxu0 0.0
  %917 = vmatprep.subr.mxu0 0.0
  %918 = vmatpush1.msra.mxu0 0.0
  %919 = vmatprep.subr.mxu0 0.0
  %920 = vmatpush1.msra.mxu0 0.0
  %921 = vmatprep.subr.mxu0 0.0
  %922 = vmatpush1.msra.mxu0 0.0
  %923 = vmatprep.subr.mxu0 0.0
  %924 = vmatpush1.msra.mxu0 0.0
  %925 = vmatprep.subr.mxu0 0.0
  %926 = vmatpush1.msra.mxu0 0.0
  %927 = vmatprep.subr.mxu0 0.0
  %928 = vmatpush1.msra.mxu0 0.0
  %929 = vmatprep.subr.mxu0 0.0
  %930 = vmatpush1.msra.mxu0 0.0
  %931 = vmatprep.subr.mxu0 0.0
  %932 = vmatpush1.msra.mxu0 0.0
  %933 = vmatprep.subr.mxu0 0.0
  %934 = vmatpush1.msra.mxu0 0.0
  %935 = vmatprep.subr.mxu0 0.0
  %936 = vmatpush1.msra.mxu0 0.0
  %937 = vmatprep.subr.mxu0 0.0
  %938 = vmatpush1.msra.mxu0 0.0
  %939 = vmatprep.subr.mxu0 0.0
  %940 = vmatpush1.msra.mxu0 %v290
  %941 = vmatprep.subr.mxu0 0.0
  %942 = vmatpush2.msra.mxu0 0.0
  %943 = vmatprep.subr.mxu0 0.0
  %944 = vmatpush2.msra.mxu0 0.0
  %945 = vmatprep.subr.mxu0 0.0
  %946 = vmatpush2.msra.mxu0 0.0
  %947 = vmatprep.subr.mxu0 0.0
  %948 = vmatpush2.msra.mxu0 0.0
  %949 = vmatprep.subr.mxu0 0.0
  %950 = vmatpush2.msra.mxu0 0.0
  %951 = vmatprep.subr.mxu0 0.0
  %952 = vmatpush2.msra.mxu0 0.0
  %953 = vmatprep.subr.mxu0 0.0
  %954 = vmatpush2.msra.mxu0 0.0
  %955 = vmatprep.subr.mxu0 0.0
  %956 = vmatpush2.msra.mxu0 0.0
  %957 = vmatprep.subr.mxu0 0.0
  %958 = vmatpush2.msra.mxu0 0.0
  %959 = vmatprep.subr.mxu0 0.0
  %960 = vmatpush2.msra.mxu0 0.0
  %961 = vmatprep.subr.mxu0 0.0
  %962 = vmatpush2.msra.mxu0 0.0
  %963 = vmatprep.subr.mxu0 0.0
  %964 = vmatpush2.msra.mxu0 0.0
  %965 = vmatprep.subr.mxu0 0.0
  %966 = vmatpush2.msra.mxu0 0.0
  %967 = vmatprep.subr.mxu0 0.0
  %968 = vmatpush2.msra.mxu0 0.0
  %969 = vmatprep.subr.mxu0 0.0
  %970 = vmatpush2.msra.mxu0 0.0
  %971 = vmatprep.subr.mxu0 0.0
  %972 = vmatpush2.msra.mxu0 0.0
  %973 = vmatprep.mubr.f32.mxu0 0.0
  %974 = vmatmul.mubr.f32.gmra.mxu0 %v304
  %v975 = vpop.f32.mrf.mxu0
  %v976 = vadd.f32 %v300, %v975
  %v977 = vpop.f32.mrf.mxu0
  %978 = vmatprep.mubr.f32.mxu0 0.0
  %979 = vmatmul.mubr.f32.gmra.mxu0 %v307
  %v980 = vpop.f32.mrf.mxu0
  %v981 = vadd.f32 %v301, %v980
  %v982 = vpop.f32.mrf.mxu0
  %983 = vdwg.mxu0
  %984 = vmatprep.subr.mxu0 0.0
  %985 = vmatpush1.msra.mxu0 0.0
  %986 = vmatprep.subr.mxu0 0.0
  %987 = vmatpush1.msra.mxu0 0.0
  %988 = vmatprep.subr.mxu0 0.0
  %989 = vmatpush1.msra.mxu0 0.0
  %990 = vmatprep.subr.mxu0 0.0
  %991 = vmatpush1.msra.mxu0 0.0
  %992 = vmatprep.subr.mxu0 0.0
  %993 = vmatpush1.msra.mxu0 0.0
  %994 = vmatprep.subr.mxu0 0.0
  %995 = vmatpush1.msra.mxu0 0.0
  %996 = vmatprep.subr.mxu0 0.0
  %997 = vmatpush1.msra.mxu0 0.0
  %998 = vmatprep.subr.mxu0 0.0
  %999 = vmatpush1.msra.mxu0 0.0
  %1000 = vmatprep.subr.mxu0 0.0
  %1001 = vmatpush1.msra.mxu0 0.0
  %1002 = vmatprep.subr.mxu0 0.0
  %1003 = vmatpush1.msra.mxu0 0.0
  %1004 = vmatprep.subr.mxu0 0.0
  %1005 = vmatpush1.msra.mxu0 0.0
  %1006 = vmatprep.subr.mxu0 0.0
  %1007 = vmatpush1.msra.mxu0 0.0
  %1008 = vmatprep.subr.mxu0 0.0
  %1009 = vmatpush1.msra.mxu0 0.0
  %1010 = vmatprep.subr.mxu0 0.0
  %1011 = vmatpush1.msra.mxu0 0.0
  %1012 = vmatprep.subr.mxu0 0.0
  %1013 = vmatpush1.msra.mxu0 0.0
  %1014 = vmatprep.subr.mxu0 0.0
  %1015 = vmatpush1.msra.mxu0 %v291
  %1016 = vmatprep.subr.mxu0 0.0
  %1017 = vmatpush2.msra.mxu0 0.0
  %1018 = vmatprep.subr.mxu0 0.0
  %1019 = vmatpush2.msra.mxu0 0.0
  %1020 = vmatprep.subr.mxu0 0.0
  %1021 = vmatpush2.msra.mxu0 0.0
  %1022 = vmatprep.subr.mxu0 0.0
  %1023 = vmatpush2.msra.mxu0 0.0
  %1024 = vmatprep.subr.mxu0 0.0
  %1025 = vmatpush2.msra.mxu0 0.0
  %1026 = vmatprep.subr.mxu0 0.0
  %1027 = vmatpush2.msra.mxu0 0.0
  %1028 = vmatprep.subr.mxu0 0.0
  %1029 = vmatpush2.msra.mxu0 0.0
  %1030 = vmatprep.subr.mxu0 0.0
  %1031 = vmatpush2.msra.mxu0 0.0
  %1032 = vmatprep.subr.mxu0 0.0
  %1033 = vmatpush2.msra.mxu0 0.0
  %1034 = vmatprep.subr.mxu0 0.0
  %1035 = vmatpush2.msra.mxu0 0.0
  %1036 = vmatprep.subr.mxu0 0.0
  %1037 = vmatpush2.msra.mxu0 0.0
  %1038 = vmatprep.subr.mxu0 0.0
  %1039 = vmatpush2.msra.mxu0 0.0
  %1040 = vmatprep.subr.mxu0 0.0
  %1041 = vmatpush2.msra.mxu0 0.0
  %1042 = vmatprep.subr.mxu0 0.0
  %1043 = vmatpush2.msra.mxu0 0.0
  %1044 = vmatprep.subr.mxu0 0.0
  %1045 = vmatpush2.msra.mxu0 0.0
  %1046 = vmatprep.subr.mxu0 0.0
  %1047 = vmatpush2.msra.mxu0 0.0
  %1048 = vmatprep.mubr.f32.mxu0 0.0
  %1049 = vmatmul.mubr.f32.gmra.mxu0 %v304
  %v1050 = vpop.f32.mrf.mxu0
  %v1051 = vadd.f32 %v300, %v1050
  %v1052 = vpop.f32.mrf.mxu0
  %1053 = vmatprep.mubr.f32.mxu0 0.0
  %1054 = vmatmul.mubr.f32.gmra.mxu0 %v307
  %v1055 = vpop.f32.mrf.mxu0
  %v1056 = vadd.f32 %v301, %v1055
  %v1057 = vpop.f32.mrf.mxu0
  %1058 = vdwg.mxu0
  %1059 = vmatprep.subr.mxu0 0.0
  %1060 = vmatpush1.msra.mxu0 0.0
  %1061 = vmatprep.subr.mxu0 0.0
  %1062 = vmatpush1.msra.mxu0 0.0
  %1063 = vmatprep.subr.mxu0 0.0
  %1064 = vmatpush1.msra.mxu0 0.0
  %1065 = vmatprep.subr.mxu0 0.0
  %1066 = vmatpush1.msra.mxu0 0.0
  %1067 = vmatprep.subr.mxu0 0.0
  %1068 = vmatpush1.msra.mxu0 0.0
  %1069 = vmatprep.subr.mxu0 0.0
  %1070 = vmatpush1.msra.mxu0 0.0
  %1071 = vmatprep.subr.mxu0 0.0
  %1072 = vmatpush1.msra.mxu0 0.0
  %1073 = vmatprep.subr.mxu0 0.0
  %1074 = vmatpush1.msra.mxu0 0.0
  %1075 = vmatprep.subr.mxu0 0.0
  %1076 = vmatpush1.msra.mxu0 0.0
  %1077 = vmatprep.subr.mxu0 0.0
  %1078 = vmatpush1.msra.mxu0 0.0
  %1079 = vmatprep.subr.mxu0 0.0
  %1080 = vmatpush1.msra.mxu0 0.0
  %1081 = vmatprep.subr.mxu0 0.0
  %1082 = vmatpush1.msra.mxu0 0.0
  %1083 = vmatprep.subr.mxu0 0.0
  %1084 = vmatpush1.msra.mxu0 0.0
  %1085 = vmatprep.subr.mxu0 0.0
  %1086 = vmatpush1.msra.mxu0 0.0
  %1087 = vmatprep.subr.mxu0 0.0
  %1088 = vmatpush1.msra.mxu0 0.0
  %1089 = vmatprep.subr.mxu0 0.0
  %1090 = vmatpush1.msra.mxu0 %v292
  %1091 = vmatprep.subr.mxu0 0.0
  %1092 = vmatpush2.msra.mxu0 0.0
  %1093 = vmatprep.subr.mxu0 0.0
  %1094 = vmatpush2.msra.mxu0 0.0
  %1095 = vmatprep.subr.mxu0 0.0
  %1096 = vmatpush2.msra.mxu0 0.0
  %1097 = vmatprep.subr.mxu0 0.0
  %1098 = vmatpush2.msra.mxu0 0.0
  %1099 = vmatprep.subr.mxu0 0.0
  %1100 = vmatpush2.msra.mxu0 0.0
  %1101 = vmatprep.subr.mxu0 0.0
  %1102 = vmatpush2.msra.mxu0 0.0
  %1103 = vmatprep.subr.mxu0 0.0
  %1104 = vmatpush2.msra.mxu0 0.0
  %1105 = vmatprep.subr.mxu0 0.0
  %1106 = vmatpush2.msra.mxu0 0.0
  %1107 = vmatprep.subr.mxu0 0.0
  %1108 = vmatpush2.msra.mxu0 0.0
  %1109 = vmatprep.subr.mxu0 0.0
  %1110 = vmatpush2.msra.mxu0 0.0
  %1111 = vmatprep.subr.mxu0 0.0
  %1112 = vmatpush2.msra.mxu0 0.0
  %1113 = vmatprep.subr.mxu0 0.0
  %1114 = vmatpush2.msra.mxu0 0.0
  %1115 = vmatprep.subr.mxu0 0.0
  %1116 = vmatpush2.msra.mxu0 0.0
  %1117 = vmatprep.subr.mxu0 0.0
  %1118 = vmatpush2.msra.mxu0 0.0
  %1119 = vmatprep.subr.mxu0 0.0
  %1120 = vmatpush2.msra.mxu0 0.0
  %1121 = vmatprep.subr.mxu0 0.0
  %1122 = vmatpush2.msra.mxu0 0.0
  %1123 = vmatprep.mubr.f32.mxu0 0.0
  %1124 = vmatmul.mubr.f32.gmra.mxu0 %v304
  %v1125 = vpop.f32.mrf.mxu0
  %v1126 = vadd.f32 %v300, %v1125
  %v1127 = vpop.f32.mrf.mxu0
  %1128 = vmatprep.mubr.f32.mxu0 0.0
  %1129 = vmatmul.mubr.f32.gmra.mxu0 %v307
  %v1130 = vpop.f32.mrf.mxu0
  %v1131 = vadd.f32 %v301, %v1130
  %v1132 = vpop.f32.mrf.mxu0
  %1133 = vdwg.mxu0
  %1134 = vmatprep.subr.mxu0 0.0
  %1135 = vmatpush1.msra.mxu0 0.0
  %1136 = vmatprep.subr.mxu0 0.0
  %1137 = vmatpush1.msra.mxu0 0.0
  %1138 = vmatprep.subr.mxu0 0.0
  %1139 = vmatpush1.msra.mxu0 0.0
  %1140 = vmatprep.subr.mxu0 0.0
  %1141 = vmatpush1.msra.mxu0 0.0
  %1142 = vmatprep.subr.mxu0 0.0
  %1143 = vmatpush1.msra.mxu0 0.0
  %1144 = vmatprep.subr.mxu0 0.0
  %1145 = vmatpush1.msra.mxu0 0.0
  %1146 = vmatprep.subr.mxu0 0.0
  %1147 = vmatpush1.msra.mxu0 0.0
  %1148 = vmatprep.subr.mxu0 0.0
  %1149 = vmatpush1.msra.mxu0 0.0
  %1150 = vmatprep.subr.mxu0 0.0
  %1151 = vmatpush1.msra.mxu0 0.0
  %1152 = vmatprep.subr.mxu0 0.0
  %1153 = vmatpush1.msra.mxu0 0.0
  %1154 = vmatprep.subr.mxu0 0.0
  %1155 = vmatpush1.msra.mxu0 0.0
  %1156 = vmatprep.subr.mxu0 0.0
  %1157 = vmatpush1.msra.mxu0 0.0
  %1158 = vmatprep.subr.mxu0 0.0
  %1159 = vmatpush1.msra.mxu0 0.0
  %1160 = vmatprep.subr.mxu0 0.0
  %1161 = vmatpush1.msra.mxu0 0.0
  %1162 = vmatprep.subr.mxu0 0.0
  %1163 = vmatpush1.msra.mxu0 0.0
  %1164 = vmatprep.subr.mxu0 0.0
  %1165 = vmatpush1.msra.mxu0 %v293
  %1166 = vmatprep.subr.mxu0 0.0
  %1167 = vmatpush2.msra.mxu0 0.0
  %1168 = vmatprep.subr.mxu0 0.0
  %1169 = vmatpush2.msra.mxu0 0.0
  %1170 = vmatprep.subr.mxu0 0.0
  %1171 = vmatpush2.msra.mxu0 0.0
  %1172 = vmatprep.subr.mxu0 0.0
  %1173 = vmatpush2.msra.mxu0 0.0
  %1174 = vmatprep.subr.mxu0 0.0
  %1175 = vmatpush2.msra.mxu0 0.0
  %1176 = vmatprep.subr.mxu0 0.0
  %1177 = vmatpush2.msra.mxu0 0.0
  %1178 = vmatprep.subr.mxu0 0.0
  %1179 = vmatpush2.msra.mxu0 0.0
  %1180 = vmatprep.subr.mxu0 0.0
  %1181 = vmatpush2.msra.mxu0 0.0
  %1182 = vmatprep.subr.mxu0 0.0
  %1183 = vmatpush2.msra.mxu0 0.0
  %1184 = vmatprep.subr.mxu0 0.0
  %1185 = vmatpush2.msra.mxu0 0.0
  %1186 = vmatprep.subr.mxu0 0.0
  %1187 = vmatpush2.msra.mxu0 0.0
  %1188 = vmatprep.subr.mxu0 0.0
  %1189 = vmatpush2.msra.mxu0 0.0
  %1190 = vmatprep.subr.mxu0 0.0
  %1191 = vmatpush2.msra.mxu0 0.0
  %1192 = vmatprep.subr.mxu0 0.0
  %1193 = vmatpush2.msra.mxu0 0.0
  %1194 = vmatprep.subr.mxu0 0.0
  %1195 = vmatpush2.msra.mxu0 0.0
  %1196 = vmatprep.subr.mxu0 0.0
  %1197 = vmatpush2.msra.mxu0 0.0
  %1198 = vmatprep.mubr.f32.mxu0 0.0
  %1199 = vmatmul.mubr.f32.gmra.mxu0 %v304
  %v1200 = vpop.f32.mrf.mxu0
  %v1201 = vadd.f32 %v300, %v1200
  %v1202 = vpop.f32.mrf.mxu0
  %1203 = vmatprep.mubr.f32.mxu0 0.0
  %1204 = vmatmul.mubr.f32.gmra.mxu0 %v307
  %v1205 = vpop.f32.mrf.mxu0
  %v1206 = vadd.f32 %v301, %v1205
  %v1207 = vpop.f32.mrf.mxu0
  %1208 = vdwg.mxu0
  %1209 = vmatprep.subr.mxu0 0.0
  %1210 = vmatpush1.msra.mxu0 0.0
  %1211 = vmatprep.subr.mxu0 0.0
  %1212 = vmatpush1.msra.mxu0 0.0
  %1213 = vmatprep.subr.mxu0 0.0
  %1214 = vmatpush1.msra.mxu0 0.0
  %1215 = vmatprep.subr.mxu0 0.0
  %1216 = vmatpush1.msra.mxu0 0.0
  %1217 = vmatprep.subr.mxu0 0.0
  %1218 = vmatpush1.msra.mxu0 0.0
  %1219 = vmatprep.subr.mxu0 0.0
  %1220 = vmatpush1.msra.mxu0 0.0
  %1221 = vmatprep.subr.mxu0 0.0
  %1222 = vmatpush1.msra.mxu0 0.0
  %1223 = vmatprep.subr.mxu0 0.0
  %1224 = vmatpush1.msra.mxu0 0.0
  %1225 = vmatprep.subr.mxu0 0.0
  %1226 = vmatpush1.msra.mxu0 0.0
  %1227 = vmatprep.subr.mxu0 0.0
  %1228 = vmatpush1.msra.mxu0 0.0
  %1229 = vmatprep.subr.mxu0 0.0
  %1230 = vmatpush1.msra.mxu0 0.0
  %1231 = vmatprep.subr.mxu0 0.0
  %1232 = vmatpush1.msra.mxu0 0.0
  %1233 = vmatprep.subr.mxu0 0.0
  %1234 = vmatpush1.msra.mxu0 0.0
  %1235 = vmatprep.subr.mxu0 0.0
  %1236 = vmatpush1.msra.mxu0 0.0
  %1237 = vmatprep.subr.mxu0 0.0
  %1238 = vmatpush1.msra.mxu0 0.0
  %1239 = vmatprep.subr.mxu0 0.0
  %1240 = vmatpush1.msra.mxu0 %v294
  %1241 = vmatprep.subr.mxu0 0.0
  %1242 = vmatpush2.msra.mxu0 0.0
  %1243 = vmatprep.subr.mxu0 0.0
  %1244 = vmatpush2.msra.mxu0 0.0
  %1245 = vmatprep.subr.mxu0 0.0
  %1246 = vmatpush2.msra.mxu0 0.0
  %1247 = vmatprep.subr.mxu0 0.0
  %1248 = vmatpush2.msra.mxu0 0.0
  %1249 = vmatprep.subr.mxu0 0.0
  %1250 = vmatpush2.msra.mxu0 0.0
  %1251 = vmatprep.subr.mxu0 0.0
  %1252 = vmatpush2.msra.mxu0 0.0
  %1253 = vmatprep.subr.mxu0 0.0
  %1254 = vmatpush2.msra.mxu0 0.0
  %1255 = vmatprep.subr.mxu0 0.0
  %1256 = vmatpush2.msra.mxu0 0.0
  %1257 = vmatprep.subr.mxu0 0.0
  %1258 = vmatpush2.msra.mxu0 0.0
  %1259 = vmatprep.subr.mxu0 0.0
  %1260 = vmatpush2.msra.mxu0 0.0
  %1261 = vmatprep.subr.mxu0 0.0
  %1262 = vmatpush2.msra.mxu0 0.0
  %1263 = vmatprep.subr.mxu0 0.0
  %1264 = vmatpush2.msra.mxu0 0.0
  %1265 = vmatprep.subr.mxu0 0.0
  %1266 = vmatpush2.msra.mxu0 0.0
  %1267 = vmatprep.subr.mxu0 0.0
  %1268 = vmatpush2.msra.mxu0 0.0
  %1269 = vmatprep.subr.mxu0 0.0
  %1270 = vmatpush2.msra.mxu0 0.0
  %1271 = vmatprep.subr.mxu0 0.0
  %1272 = vmatpush2.msra.mxu0 0.0
  %1273 = vmatprep.mubr.f32.mxu0 0.0
  %1274 = vmatmul.mubr.f32.gmra.mxu0 %v304
  %v1275 = vpop.f32.mrf.mxu0
  %v1276 = vadd.f32 %v300, %v1275
  %v1277 = vpop.f32.mrf.mxu0
  %1278 = vmatprep.mubr.f32.mxu0 0.0
  %1279 = vmatmul.mubr.f32.gmra.mxu0 %v307
  %v1280 = vpop.f32.mrf.mxu0
  %v1281 = vadd.f32 %v301, %v1280
  %v1282 = vpop.f32.mrf.mxu0
  %1283 = vdwg.mxu0
  %1284 = vmatprep.subr.mxu0 0.0
  %1285 = vmatpush1.msra.mxu0 0.0
  %1286 = vmatprep.subr.mxu0 0.0
  %1287 = vmatpush1.msra.mxu0 0.0
  %1288 = vmatprep.subr.mxu0 0.0
  %1289 = vmatpush1.msra.mxu0 0.0
  %1290 = vmatprep.subr.mxu0 0.0
  %1291 = vmatpush1.msra.mxu0 0.0
  %1292 = vmatprep.subr.mxu0 0.0
  %1293 = vmatpush1.msra.mxu0 0.0
  %1294 = vmatprep.subr.mxu0 0.0
  %1295 = vmatpush1.msra.mxu0 0.0
  %1296 = vmatprep.subr.mxu0 0.0
  %1297 = vmatpush1.msra.mxu0 0.0
  %1298 = vmatprep.subr.mxu0 0.0
  %1299 = vmatpush1.msra.mxu0 0.0
  %1300 = vmatprep.subr.mxu0 0.0
  %1301 = vmatpush1.msra.mxu0 0.0
  %1302 = vmatprep.subr.mxu0 0.0
  %1303 = vmatpush1.msra.mxu0 0.0
  %1304 = vmatprep.subr.mxu0 0.0
  %1305 = vmatpush1.msra.mxu0 0.0
  %1306 = vmatprep.subr.mxu0 0.0
  %1307 = vmatpush1.msra.mxu0 0.0
  %1308 = vmatprep.subr.mxu0 0.0
  %1309 = vmatpush1.msra.mxu0 0.0
  %1310 = vmatprep.subr.mxu0 0.0
  %1311 = vmatpush1.msra.mxu0 0.0
  %1312 = vmatprep.subr.mxu0 0.0
  %1313 = vmatpush1.msra.mxu0 0.0
  %1314 = vmatprep.subr.mxu0 0.0
  %1315 = vmatpush1.msra.mxu0 %v295
  %1316 = vmatprep.subr.mxu0 0.0
  %1317 = vmatpush2.msra.mxu0 0.0
  %1318 = vmatprep.subr.mxu0 0.0
  %1319 = vmatpush2.msra.mxu0 0.0
  %1320 = vmatprep.subr.mxu0 0.0
  %1321 = vmatpush2.msra.mxu0 0.0
  %1322 = vmatprep.subr.mxu0 0.0
  %1323 = vmatpush2.msra.mxu0 0.0
  %1324 = vmatprep.subr.mxu0 0.0
  %1325 = vmatpush2.msra.mxu0 0.0
  %1326 = vmatprep.subr.mxu0 0.0
  %1327 = vmatpush2.msra.mxu0 0.0
  %1328 = vmatprep.subr.mxu0 0.0
  %1329 = vmatpush2.msra.mxu0 0.0
  %1330 = vmatprep.subr.mxu0 0.0
  %1331 = vmatpush2.msra.mxu0 0.0
  %1332 = vmatprep.subr.mxu0 0.0
  %1333 = vmatpush2.msra.mxu0 0.0
  %1334 = vmatprep.subr.mxu0 0.0
  %1335 = vmatpush2.msra.mxu0 0.0
  %1336 = vmatprep.subr.mxu0 0.0
  %1337 = vmatpush2.msra.mxu0 0.0
  %1338 = vmatprep.subr.mxu0 0.0
  %1339 = vmatpush2.msra.mxu0 0.0
  %1340 = vmatprep.subr.mxu0 0.0
  %1341 = vmatpush2.msra.mxu0 0.0
  %1342 = vmatprep.subr.mxu0 0.0
  %1343 = vmatpush2.msra.mxu0 0.0
  %1344 = vmatprep.subr.mxu0 0.0
  %1345 = vmatpush2.msra.mxu0 0.0
  %1346 = vmatprep.subr.mxu0 0.0
  %1347 = vmatpush2.msra.mxu0 0.0
  %1348 = vmatprep.mubr.f32.mxu0 0.0
  %1349 = vmatmul.mubr.f32.gmra.mxu0 %v304
  %v1350 = vpop.f32.mrf.mxu0
  %v1351 = vadd.f32 %v300, %v1350
  %v1352 = vpop.f32.mrf.mxu0
  %1353 = vmatprep.mubr.f32.mxu0 0.0
  %1354 = vmatmul.mubr.f32.gmra.mxu0 %v307
  %v1355 = vpop.f32.mrf.mxu0
  %v1356 = vadd.f32 %v301, %v1355
  %v1357 = vpop.f32.mrf.mxu0
  %1358 = vdwg.mxu0
  %1359 = vmatprep.subr.mxu0 0.0
  %1360 = vmatpush1.msra.mxu0 0.0
  %1361 = vmatprep.subr.mxu0 0.0
  %1362 = vmatpush1.msra.mxu0 0.0
  %1363 = vmatprep.subr.mxu0 0.0
  %1364 = vmatpush1.msra.mxu0 0.0
  %1365 = vmatprep.subr.mxu0 0.0
  %1366 = vmatpush1.msra.mxu0 0.0
  %1367 = vmatprep.subr.mxu0 0.0
  %1368 = vmatpush1.msra.mxu0 0.0
  %1369 = vmatprep.subr.mxu0 0.0
  %1370 = vmatpush1.msra.mxu0 0.0
  %1371 = vmatprep.subr.mxu0 0.0
  %1372 = vmatpush1.msra.mxu0 0.0
  %1373 = vmatprep.subr.mxu0 0.0
  %1374 = vmatpush1.msra.mxu0 0.0
  %1375 = vmatprep.subr.mxu0 0.0
  %1376 = vmatpush1.msra.mxu0 0.0
  %1377 = vmatprep.subr.mxu0 0.0
  %1378 = vmatpush1.msra.mxu0 0.0
  %1379 = vmatprep.subr.mxu0 0.0
  %1380 = vmatpush1.msra.mxu0 0.0
  %1381 = vmatprep.subr.mxu0 0.0
  %1382 = vmatpush1.msra.mxu0 0.0
  %1383 = vmatprep.subr.mxu0 0.0
  %1384 = vmatpush1.msra.mxu0 0.0
  %1385 = vmatprep.subr.mxu0 0.0
  %1386 = vmatpush1.msra.mxu0 0.0
  %1387 = vmatprep.subr.mxu0 0.0
  %1388 = vmatpush1.msra.mxu0 0.0
  %1389 = vmatprep.subr.mxu0 0.0
  %1390 = vmatpush1.msra.mxu0 %v296
  %1391 = vmatprep.subr.mxu0 0.0
  %1392 = vmatpush2.msra.mxu0 0.0
  %1393 = vmatprep.subr.mxu0 0.0
  %1394 = vmatpush2.msra.mxu0 0.0
  %1395 = vmatprep.subr.mxu0 0.0
  %1396 = vmatpush2.msra.mxu0 0.0
  %1397 = vmatprep.subr.mxu0 0.0
  %1398 = vmatpush2.msra.mxu0 0.0
  %1399 = vmatprep.subr.mxu0 0.0
  %1400 = vmatpush2.msra.mxu0 0.0
  %1401 = vmatprep.subr.mxu0 0.0
  %1402 = vmatpush2.msra.mxu0 0.0
  %1403 = vmatprep.subr.mxu0 0.0
  %1404 = vmatpush2.msra.mxu0 0.0
  %1405 = vmatprep.subr.mxu0 0.0
  %1406 = vmatpush2.msra.mxu0 0.0
  %1407 = vmatprep.subr.mxu0 0.0
  %1408 = vmatpush2.msra.mxu0 0.0
  %1409 = vmatprep.subr.mxu0 0.0
  %1410 = vmatpush2.msra.mxu0 0.0
  %1411 = vmatprep.subr.mxu0 0.0
  %1412 = vmatpush2.msra.mxu0 0.0
  %1413 = vmatprep.subr.mxu0 0.0
  %1414 = vmatpush2.msra.mxu0 0.0
  %1415 = vmatprep.subr.mxu0 0.0
  %1416 = vmatpush2.msra.mxu0 0.0
  %1417 = vmatprep.subr.mxu0 0.0
  %1418 = vmatpush2.msra.mxu0 0.0
  %1419 = vmatprep.subr.mxu0 0.0
  %1420 = vmatpush2.msra.mxu0 0.0
  %1421 = vmatprep.subr.mxu0 0.0
  %1422 = vmatpush2.msra.mxu0 0.0
  %1423 = vmatprep.mubr.f32.mxu0 0.0
  %1424 = vmatmul.mubr.f32.gmra.mxu0 %v304
  %v1425 = vpop.f32.mrf.mxu0
  %v1426 = vadd.f32 %v300, %v1425
  %v1427 = vpop.f32.mrf.mxu0
  %1428 = vmatprep.mubr.f32.mxu0 0.0
  %1429 = vmatmul.mubr.f32.gmra.mxu0 %v307
  %v1430 = vpop.f32.mrf.mxu0
  %v1431 = vadd.f32 %v301, %v1430
  %v1432 = vpop.f32.mrf.mxu0
  %1433 = vdwg.mxu0
  %1434 = vmatprep.subr.mxu0 0.0
  %1435 = vmatpush1.msra.mxu0 0.0
  %1436 = vmatprep.subr.mxu0 0.0
  %1437 = vmatpush1.msra.mxu0 0.0
  %1438 = vmatprep.subr.mxu0 0.0
  %1439 = vmatpush1.msra.mxu0 0.0
  %1440 = vmatprep.subr.mxu0 0.0
  %1441 = vmatpush1.msra.mxu0 0.0
  %1442 = vmatprep.subr.mxu0 0.0
  %1443 = vmatpush1.msra.mxu0 0.0
  %1444 = vmatprep.subr.mxu0 0.0
  %1445 = vmatpush1.msra.mxu0 0.0
  %1446 = vmatprep.subr.mxu0 0.0
  %1447 = vmatpush1.msra.mxu0 0.0
  %1448 = vmatprep.subr.mxu0 0.0
  %1449 = vmatpush1.msra.mxu0 0.0
  %1450 = vmatprep.subr.mxu0 0.0
  %1451 = vmatpush1.msra.mxu0 0.0
  %1452 = vmatprep.subr.mxu0 0.0
  %1453 = vmatpush1.msra.mxu0 0.0
  %1454 = vmatprep.subr.mxu0 0.0
  %1455 = vmatpush1.msra.mxu0 0.0
  %1456 = vmatprep.subr.mxu0 0.0
  %1457 = vmatpush1.msra.mxu0 0.0
  %1458 = vmatprep.subr.mxu0 0.0
  %1459 = vmatpush1.msra.mxu0 0.0
  %1460 = vmatprep.subr.mxu0 0.0
  %1461 = vmatpush1.msra.mxu0 0.0
  %1462 = vmatprep.subr.mxu0 0.0
  %1463 = vmatpush1.msra.mxu0 0.0
  %1464 = vmatprep.subr.mxu0 0.0
  %1465 = vmatpush1.msra.mxu0 %v297
  %1466 = vmatprep.subr.mxu0 0.0
  %1467 = vmatpush2.msra.mxu0 0.0
  %1468 = vmatprep.subr.mxu0 0.0
  %1469 = vmatpush2.msra.mxu0 0.0
  %1470 = vmatprep.subr.mxu0 0.0
  %1471 = vmatpush2.msra.mxu0 0.0
  %1472 = vmatprep.subr.mxu0 0.0
  %1473 = vmatpush2.msra.mxu0 0.0
  %1474 = vmatprep.subr.mxu0 0.0
  %1475 = vmatpush2.msra.mxu0 0.0
  %1476 = vmatprep.subr.mxu0 0.0
  %1477 = vmatpush2.msra.mxu0 0.0
  %1478 = vmatprep.subr.mxu0 0.0
  %1479 = vmatpush2.msra.mxu0 0.0
  %1480 = vmatprep.subr.mxu0 0.0
  %1481 = vmatpush2.msra.mxu0 0.0
  %1482 = vmatprep.subr.mxu0 0.0
  %1483 = vmatpush2.msra.mxu0 0.0
  %1484 = vmatprep.subr.mxu0 0.0
  %1485 = vmatpush2.msra.mxu0 0.0
  %1486 = vmatprep.subr.mxu0 0.0
  %1487 = vmatpush2.msra.mxu0 0.0
  %1488 = vmatprep.subr.mxu0 0.0
  %1489 = vmatpush2.msra.mxu0 0.0
  %1490 = vmatprep.subr.mxu0 0.0
  %1491 = vmatpush2.msra.mxu0 0.0
  %1492 = vmatprep.subr.mxu0 0.0
  %1493 = vmatpush2.msra.mxu0 0.0
  %1494 = vmatprep.subr.mxu0 0.0
  %1495 = vmatpush2.msra.mxu0 0.0
  %1496 = vmatprep.subr.mxu0 0.0
  %1497 = vmatpush2.msra.mxu0 0.0
  %1498 = vmatprep.mubr.f32.mxu0 0.0
  %1499 = vmatmul.mubr.f32.gmra.mxu0 %v304
  %v1500 = vpop.f32.mrf.mxu0
  %v1501 = vadd.f32 %v300, %v1500
  %v1502 = vpop.f32.mrf.mxu0
  %1503 = vmatprep.mubr.f32.mxu0 0.0
  %1504 = vmatmul.mubr.f32.gmra.mxu0 %v307
  %v1505 = vpop.f32.mrf.mxu0
  %v1506 = vadd.f32 %v301, %v1505
  %v1507 = vpop.f32.mrf.mxu0
  %1508 = vdwg.mxu0
  %v1509 = vmul.f32 %v376, 0.5
  %v1510 = vmul.f32 %v381, 0.5
  %v1511 = vmul.f32 %v451, 0.5
  %v1512 = vmul.f32 %v456, 0.5
  %v1513 = vmul.f32 %v526, 0.5
  %v1514 = vmul.f32 %v531, 0.5
  %v1515 = vmul.f32 %v601, 0.5
  %v1516 = vmul.f32 %v606, 0.5
  %v1517 = vmul.f32 %v676, 0.5
  %v1518 = vmul.f32 %v681, 0.5
  %v1519 = vmul.f32 %v751, 0.5
  %v1520 = vmul.f32 %v756, 0.5
  %v1521 = vmul.f32 %v826, 0.5
  %v1522 = vmul.f32 %v831, 0.5
  %v1523 = vmul.f32 %v901, 0.5
  %v1524 = vmul.f32 %v906, 0.5
  %v1525 = vmul.f32 %v976, 0.5
  %v1526 = vmul.f32 %v981, 0.5
  %v1527 = vmul.f32 %v1051, 0.5
  %v1528 = vmul.f32 %v1056, 0.5
  %v1529 = vmul.f32 %v1126, 0.5
  %v1530 = vmul.f32 %v1131, 0.5
  %v1531 = vmul.f32 %v1201, 0.5
  %v1532 = vmul.f32 %v1206, 0.5
  %v1533 = vmul.f32 %v1276, 0.5
  %v1534 = vmul.f32 %v1281, 0.5
  %v1535 = vmul.f32 %v1351, 0.5
  %v1536 = vmul.f32 %v1356, 0.5
  %v1537 = vmul.f32 %v1426, 0.5
  %v1538 = vmul.f32 %v1431, 0.5
  %v1539 = vmul.f32 %v1501, 0.5
  %v1540 = vmul.f32 %v1506, 0.5
  %v1541 = vmul.f32 %v376, 0.70710677
  %v1542 = vmul.f32 %v381, 0.70710677
  %v1543 = vmul.f32 %v451, 0.70710677
  %v1544 = vmul.f32 %v456, 0.70710677
  %v1545 = vmul.f32 %v526, 0.70710677
  %v1546 = vmul.f32 %v531, 0.70710677
  %v1547 = vmul.f32 %v601, 0.70710677
  %v1548 = vmul.f32 %v606, 0.70710677
  %v1549 = vmul.f32 %v676, 0.70710677
  %v1550 = vmul.f32 %v681, 0.70710677
  %v1551 = vmul.f32 %v751, 0.70710677
  %v1552 = vmul.f32 %v756, 0.70710677
  %v1553 = vmul.f32 %v826, 0.70710677
  %v1554 = vmul.f32 %v831, 0.70710677
  %v1555 = vmul.f32 %v901, 0.70710677
  %v1556 = vmul.f32 %v906, 0.70710677
  %v1557 = vmul.f32 %v976, 0.70710677
  %v1558 = vmul.f32 %v981, 0.70710677
  %v1559 = vmul.f32 %v1051, 0.70710677
  %v1560 = vmul.f32 %v1056, 0.70710677
  %v1561 = vmul.f32 %v1126, 0.70710677
  %v1562 = vmul.f32 %v1131, 0.70710677
  %v1563 = vmul.f32 %v1201, 0.70710677
  %v1564 = vmul.f32 %v1206, 0.70710677
  %v1565 = vmul.f32 %v1276, 0.70710677
  %v1566 = vmul.f32 %v1281, 0.70710677
  %v1567 = vmul.f32 %v1351, 0.70710677
  %v1568 = vmul.f32 %v1356, 0.70710677
  %v1569 = vmul.f32 %v1426, 0.70710677
  %v1570 = vmul.f32 %v1431, 0.70710677
  %v1571 = vmul.f32 %v1501, 0.70710677
  %v1572 = vmul.f32 %v1506, 0.70710677
  %v1573 = vand.u32 2147483647, %v1541
  %v1574 = vand.u32 2147483647, %v1542
  %v1575 = vand.u32 2147483647, %v1543
  %v1576 = vand.u32 2147483647, %v1544
  %v1577 = vand.u32 2147483647, %v1545
  %v1578 = vand.u32 2147483647, %v1546
  %v1579 = vand.u32 2147483647, %v1547
  %v1580 = vand.u32 2147483647, %v1548
  %v1581 = vand.u32 2147483647, %v1549
  %v1582 = vand.u32 2147483647, %v1550
  %v1583 = vand.u32 2147483647, %v1551
  %v1584 = vand.u32 2147483647, %v1552
  %v1585 = vand.u32 2147483647, %v1553
  %v1586 = vand.u32 2147483647, %v1554
  %v1587 = vand.u32 2147483647, %v1555
  %v1588 = vand.u32 2147483647, %v1556
  %v1589 = vand.u32 2147483647, %v1557
  %v1590 = vand.u32 2147483647, %v1558
  %v1591 = vand.u32 2147483647, %v1559
  %v1592 = vand.u32 2147483647, %v1560
  %v1593 = vand.u32 2147483647, %v1561
  %v1594 = vand.u32 2147483647, %v1562
  %v1595 = vand.u32 2147483647, %v1563
  %v1596 = vand.u32 2147483647, %v1564
  %v1597 = vand.u32 2147483647, %v1565
  %v1598 = vand.u32 2147483647, %v1566
  %v1599 = vand.u32 2147483647, %v1567
  %v1600 = vand.u32 2147483647, %v1568
  %v1601 = vand.u32 2147483647, %v1569
  %v1602 = vand.u32 2147483647, %v1570
  %v1603 = vand.u32 2147483647, %v1571
  %v1604 = vand.u32 2147483647, %v1572
  %v1605 = vmul.f32 %v1573, 0.3275911
  %v1606 = vmul.f32 %v1574, 0.3275911
  %v1607 = vmul.f32 %v1575, 0.3275911
  %v1608 = vmul.f32 %v1576, 0.3275911
  %v1609 = vmul.f32 %v1577, 0.3275911
  %v1610 = vmul.f32 %v1578, 0.3275911
  %v1611 = vmul.f32 %v1579, 0.3275911
  %v1612 = vmul.f32 %v1580, 0.3275911
  %v1613 = vmul.f32 %v1581, 0.3275911
  %v1614 = vmul.f32 %v1582, 0.3275911
  %v1615 = vmul.f32 %v1583, 0.3275911
  %v1616 = vmul.f32 %v1584, 0.3275911
  %v1617 = vmul.f32 %v1585, 0.3275911
  %v1618 = vmul.f32 %v1586, 0.3275911
  %v1619 = vmul.f32 %v1587, 0.3275911
  %v1620 = vmul.f32 %v1588, 0.3275911
  %v1621 = vmul.f32 %v1589, 0.3275911
  %v1622 = vmul.f32 %v1590, 0.3275911
  %v1623 = vmul.f32 %v1591, 0.3275911
  %v1624 = vmul.f32 %v1592, 0.3275911
  %v1625 = vmul.f32 %v1593, 0.3275911
  %v1626 = vmul.f32 %v1594, 0.3275911
  %v1627 = vmul.f32 %v1595, 0.3275911
  %v1628 = vmul.f32 %v1596, 0.3275911
  %v1629 = vmul.f32 %v1597, 0.3275911
  %v1630 = vmul.f32 %v1598, 0.3275911
  %v1631 = vmul.f32 %v1599, 0.3275911
  %v1632 = vmul.f32 %v1600, 0.3275911
  %v1633 = vmul.f32 %v1601, 0.3275911
  %v1634 = vmul.f32 %v1602, 0.3275911
  %v1635 = vmul.f32 %v1603, 0.3275911
  %v1636 = vmul.f32 %v1604, 0.3275911
  %v1637 = vadd.f32 %v1605, 1.0
  %v1638 = vadd.f32 %v1606, 1.0
  %v1639 = vadd.f32 %v1607, 1.0
  %v1640 = vadd.f32 %v1608, 1.0
  %v1641 = vadd.f32 %v1609, 1.0
  %v1642 = vadd.f32 %v1610, 1.0
  %v1643 = vadd.f32 %v1611, 1.0
  %v1644 = vadd.f32 %v1612, 1.0
  %v1645 = vadd.f32 %v1613, 1.0
  %v1646 = vadd.f32 %v1614, 1.0
  %v1647 = vadd.f32 %v1615, 1.0
  %v1648 = vadd.f32 %v1616, 1.0
  %v1649 = vadd.f32 %v1617, 1.0
  %v1650 = vadd.f32 %v1618, 1.0
  %v1651 = vadd.f32 %v1619, 1.0
  %v1652 = vadd.f32 %v1620, 1.0
  %v1653 = vadd.f32 %v1621, 1.0
  %v1654 = vadd.f32 %v1622, 1.0
  %v1655 = vadd.f32 %v1623, 1.0
  %v1656 = vadd.f32 %v1624, 1.0
  %v1657 = vadd.f32 %v1625, 1.0
  %v1658 = vadd.f32 %v1626, 1.0
  %v1659 = vadd.f32 %v1627, 1.0
  %v1660 = vadd.f32 %v1628, 1.0
  %v1661 = vadd.f32 %v1629, 1.0
  %v1662 = vadd.f32 %v1630, 1.0
  %v1663 = vadd.f32 %v1631, 1.0
  %v1664 = vadd.f32 %v1632, 1.0
  %v1665 = vadd.f32 %v1633, 1.0
  %v1666 = vadd.f32 %v1634, 1.0
  %v1667 = vadd.f32 %v1635, 1.0
  %v1668 = vadd.f32 %v1636, 1.0
  %v1669 = vrcp.pop %v1637
  %v1670 = vrcp.pop %v1638
  %v1671 = vrcp.pop %v1639
  %v1672 = vrcp.pop %v1640
  %v1673 = vrcp.pop %v1641
  %v1674 = vrcp.pop %v1642
  %v1675 = vrcp.pop %v1643
  %v1676 = vrcp.pop %v1644
  %v1677 = vrcp.pop %v1645
  %v1678 = vrcp.pop %v1646
  %v1679 = vrcp.pop %v1647
  %v1680 = vrcp.pop %v1648
  %v1681 = vrcp.pop %v1649
  %v1682 = vrcp.pop %v1650
  %v1683 = vrcp.pop %v1651
  %v1684 = vrcp.pop %v1652
  %v1685 = vrcp.pop %v1653
  %v1686 = vrcp.pop %v1654
  %v1687 = vrcp.pop %v1655
  %v1688 = vrcp.pop %v1656
  %v1689 = vrcp.pop %v1657
  %v1690 = vrcp.pop %v1658
  %v1691 = vrcp.pop %v1659
  %v1692 = vrcp.pop %v1660
  %v1693 = vrcp.pop %v1661
  %v1694 = vrcp.pop %v1662
  %v1695 = vrcp.pop %v1663
  %v1696 = vrcp.pop %v1664
  %v1697 = vrcp.pop %v1665
  %v1698 = vrcp.pop %v1666
  %v1699 = vrcp.pop %v1667
  %v1700 = vrcp.pop %v1668
  %v1701 = vmul.f32 %v1637, %v1669
  %v1702 = vmul.f32 %v1638, %v1670
  %v1703 = vmul.f32 %v1639, %v1671
  %v1704 = vmul.f32 %v1640, %v1672
  %v1705 = vmul.f32 %v1641, %v1673
  %v1706 = vmul.f32 %v1642, %v1674
  %v1707 = vmul.f32 %v1643, %v1675
  %v1708 = vmul.f32 %v1644, %v1676
  %v1709 = vmul.f32 %v1645, %v1677
  %v1710 = vmul.f32 %v1646, %v1678
  %v1711 = vmul.f32 %v1647, %v1679
  %v1712 = vmul.f32 %v1648, %v1680
  %v1713 = vmul.f32 %v1649, %v1681
  %v1714 = vmul.f32 %v1650, %v1682
  %v1715 = vmul.f32 %v1651, %v1683
  %v1716 = vmul.f32 %v1652, %v1684
  %v1717 = vmul.f32 %v1653, %v1685
  %v1718 = vmul.f32 %v1654, %v1686
  %v1719 = vmul.f32 %v1655, %v1687
  %v1720 = vmul.f32 %v1656, %v1688
  %v1721 = vmul.f32 %v1657, %v1689
  %v1722 = vmul.f32 %v1658, %v1690
  %v1723 = vmul.f32 %v1659, %v1691
  %v1724 = vmul.f32 %v1660, %v1692
  %v1725 = vmul.f32 %v1661, %v1693
  %v1726 = vmul.f32 %v1662, %v1694
  %v1727 = vmul.f32 %v1663, %v1695
  %v1728 = vmul.f32 %v1664, %v1696
  %v1729 = vmul.f32 %v1665, %v1697
  %v1730 = vmul.f32 %v1666, %v1698
  %v1731 = vmul.f32 %v1667, %v1699
  %v1732 = vmul.f32 %v1668, %v1700
  %v1733 = vsub.f32 2.0, %v1701
  %v1734 = vsub.f32 2.0, %v1702
  %v1735 = vsub.f32 2.0, %v1703
  %v1736 = vsub.f32 2.0, %v1704
  %v1737 = vsub.f32 2.0, %v1705
  %v1738 = vsub.f32 2.0, %v1706
  %v1739 = vsub.f32 2.0, %v1707
  %v1740 = vsub.f32 2.0, %v1708
  %v1741 = vsub.f32 2.0, %v1709
  %v1742 = vsub.f32 2.0, %v1710
  %v1743 = vsub.f32 2.0, %v1711
  %v1744 = vsub.f32 2.0, %v1712
  %v1745 = vsub.f32 2.0, %v1713
  %v1746 = vsub.f32 2.0, %v1714
  %v1747 = vsub.f32 2.0, %v1715
  %v1748 = vsub.f32 2.0, %v1716
  %v1749 = vsub.f32 2.0, %v1717
  %v1750 = vsub.f32 2.0, %v1718
  %v1751 = vsub.f32 2.0, %v1719
  %v1752 = vsub.f32 2.0, %v1720
  %v1753 = vsub.f32 2.0, %v1721
  %v1754 = vsub.f32 2.0, %v1722
  %v1755 = vsub.f32 2.0, %v1723
  %v1756 = vsub.f32 2.0, %v1724
  %v1757 = vsub.f32 2.0, %v1725
  %v1758 = vsub.f32 2.0, %v1726
  %v1759 = vsub.f32 2.0, %v1727
  %v1760 = vsub.f32 2.0, %v1728
  %v1761 = vsub.f32 2.0, %v1729
  %v1762 = vsub.f32 2.0, %v1730
  %v1763 = vsub.f32 2.0, %v1731
  %v1764 = vsub.f32 2.0, %v1732
  %v1765 = vmul.f32 %v1669, %v1733
  %v1766 = vmul.f32 %v1670, %v1734
  %v1767 = vmul.f32 %v1671, %v1735
  %v1768 = vmul.f32 %v1672, %v1736
  %v1769 = vmul.f32 %v1673, %v1737
  %v1770 = vmul.f32 %v1674, %v1738
  %v1771 = vmul.f32 %v1675, %v1739
  %v1772 = vmul.f32 %v1676, %v1740
  %v1773 = vmul.f32 %v1677, %v1741
  %v1774 = vmul.f32 %v1678, %v1742
  %v1775 = vmul.f32 %v1679, %v1743
  %v1776 = vmul.f32 %v1680, %v1744
  %v1777 = vmul.f32 %v1681, %v1745
  %v1778 = vmul.f32 %v1682, %v1746
  %v1779 = vmul.f32 %v1683, %v1747
  %v1780 = vmul.f32 %v1684, %v1748
  %v1781 = vmul.f32 %v1685, %v1749
  %v1782 = vmul.f32 %v1686, %v1750
  %v1783 = vmul.f32 %v1687, %v1751
  %v1784 = vmul.f32 %v1688, %v1752
  %v1785 = vmul.f32 %v1689, %v1753
  %v1786 = vmul.f32 %v1690, %v1754
  %v1787 = vmul.f32 %v1691, %v1755
  %v1788 = vmul.f32 %v1692, %v1756
  %v1789 = vmul.f32 %v1693, %v1757
  %v1790 = vmul.f32 %v1694, %v1758
  %v1791 = vmul.f32 %v1695, %v1759
  %v1792 = vmul.f32 %v1696, %v1760
  %v1793 = vmul.f32 %v1697, %v1761
  %v1794 = vmul.f32 %v1698, %v1762
  %v1795 = vmul.f32 %v1699, %v1763
  %v1796 = vmul.f32 %v1700, %v1764
  %v1797 = vmul.f32 %v1765, 1.0614054
  %v1798 = vmul.f32 %v1766, 1.0614054
  %v1799 = vmul.f32 %v1767, 1.0614054
  %v1800 = vmul.f32 %v1768, 1.0614054
  %v1801 = vmul.f32 %v1769, 1.0614054
  %v1802 = vmul.f32 %v1770, 1.0614054
  %v1803 = vmul.f32 %v1771, 1.0614054
  %v1804 = vmul.f32 %v1772, 1.0614054
  %v1805 = vmul.f32 %v1773, 1.0614054
  %v1806 = vmul.f32 %v1774, 1.0614054
  %v1807 = vmul.f32 %v1775, 1.0614054
  %v1808 = vmul.f32 %v1776, 1.0614054
  %v1809 = vmul.f32 %v1777, 1.0614054
  %v1810 = vmul.f32 %v1778, 1.0614054
  %v1811 = vmul.f32 %v1779, 1.0614054
  %v1812 = vmul.f32 %v1780, 1.0614054
  %v1813 = vmul.f32 %v1781, 1.0614054
  %v1814 = vmul.f32 %v1782, 1.0614054
  %v1815 = vmul.f32 %v1783, 1.0614054
  %v1816 = vmul.f32 %v1784, 1.0614054
  %v1817 = vmul.f32 %v1785, 1.0614054
  %v1818 = vmul.f32 %v1786, 1.0614054
  %v1819 = vmul.f32 %v1787, 1.0614054
  %v1820 = vmul.f32 %v1788, 1.0614054
  %v1821 = vmul.f32 %v1789, 1.0614054
  %v1822 = vmul.f32 %v1790, 1.0614054
  %v1823 = vmul.f32 %v1791, 1.0614054
  %v1824 = vmul.f32 %v1792, 1.0614054
  %v1825 = vmul.f32 %v1793, 1.0614054
  %v1826 = vmul.f32 %v1794, 1.0614054
  %v1827 = vmul.f32 %v1795, 1.0614054
  %v1828 = vmul.f32 %v1796, 1.0614054
  %v1829 = vadd.f32 %v1797, -1.4531521
  %v1830 = vadd.f32 %v1798, -1.4531521
  %v1831 = vadd.f32 %v1799, -1.4531521
  %v1832 = vadd.f32 %v1800, -1.4531521
  %v1833 = vadd.f32 %v1801, -1.4531521
  %v1834 = vadd.f32 %v1802, -1.4531521
  %v1835 = vadd.f32 %v1803, -1.4531521
  %v1836 = vadd.f32 %v1804, -1.4531521
  %v1837 = vadd.f32 %v1805, -1.4531521
  %v1838 = vadd.f32 %v1806, -1.4531521
  %v1839 = vadd.f32 %v1807, -1.4531521
  %v1840 = vadd.f32 %v1808, -1.4531521
  %v1841 = vadd.f32 %v1809, -1.4531521
  %v1842 = vadd.f32 %v1810, -1.4531521
  %v1843 = vadd.f32 %v1811, -1.4531521
  %v1844 = vadd.f32 %v1812, -1.4531521
  %v1845 = vadd.f32 %v1813, -1.4531521
  %v1846 = vadd.f32 %v1814, -1.4531521
  %v1847 = vadd.f32 %v1815, -1.4531521
  %v1848 = vadd.f32 %v1816, -1.4531521
  %v1849 = vadd.f32 %v1817, -1.4531521
  %v1850 = vadd.f32 %v1818, -1.4531521
  %v1851 = vadd.f32 %v1819, -1.4531521
  %v1852 = vadd.f32 %v1820, -1.4531521
  %v1853 = vadd.f32 %v1821, -1.4531521
  %v1854 = vadd.f32 %v1822, -1.4531521
  %v1855 = vadd.f32 %v1823, -1.4531521
  %v1856 = vadd.f32 %v1824, -1.4531521
  %v1857 = vadd.f32 %v1825, -1.4531521
  %v1858 = vadd.f32 %v1826, -1.4531521
  %v1859 = vadd.f32 %v1827, -1.4531521
  %v1860 = vadd.f32 %v1828, -1.4531521
  %v1861 = vmul.f32 %v1829, %v1765
  %v1862 = vmul.f32 %v1830, %v1766
  %v1863 = vmul.f32 %v1831, %v1767
  %v1864 = vmul.f32 %v1832, %v1768
  %v1865 = vmul.f32 %v1833, %v1769
  %v1866 = vmul.f32 %v1834, %v1770
  %v1867 = vmul.f32 %v1835, %v1771
  %v1868 = vmul.f32 %v1836, %v1772
  %v1869 = vmul.f32 %v1837, %v1773
  %v1870 = vmul.f32 %v1838, %v1774
  %v1871 = vmul.f32 %v1839, %v1775
  %v1872 = vmul.f32 %v1840, %v1776
  %v1873 = vmul.f32 %v1841, %v1777
  %v1874 = vmul.f32 %v1842, %v1778
  %v1875 = vmul.f32 %v1843, %v1779
  %v1876 = vmul.f32 %v1844, %v1780
  %v1877 = vmul.f32 %v1845, %v1781
  %v1878 = vmul.f32 %v1846, %v1782
  %v1879 = vmul.f32 %v1847, %v1783
  %v1880 = vmul.f32 %v1848, %v1784
  %v1881 = vmul.f32 %v1849, %v1785
  %v1882 = vmul.f32 %v1850, %v1786
  %v1883 = vmul.f32 %v1851, %v1787
  %v1884 = vmul.f32 %v1852, %v1788
  %v1885 = vmul.f32 %v1853, %v1789
  %v1886 = vmul.f32 %v1854, %v1790
  %v1887 = vmul.f32 %v1855, %v1791
  %v1888 = vmul.f32 %v1856, %v1792
  %v1889 = vmul.f32 %v1857, %v1793
  %v1890 = vmul.f32 %v1858, %v1794
  %v1891 = vmul.f32 %v1859, %v1795
  %v1892 = vmul.f32 %v1860, %v1796
  %v1893 = vadd.f32 %v1861, 1.4214138
  %v1894 = vadd.f32 %v1862, 1.4214138
  %v1895 = vadd.f32 %v1863, 1.4214138
  %v1896 = vadd.f32 %v1864, 1.4214138
  %v1897 = vadd.f32 %v1865, 1.4214138
  %v1898 = vadd.f32 %v1866, 1.4214138
  %v1899 = vadd.f32 %v1867, 1.4214138
  %v1900 = vadd.f32 %v1868, 1.4214138
  %v1901 = vadd.f32 %v1869, 1.4214138
  %v1902 = vadd.f32 %v1870, 1.4214138
  %v1903 = vadd.f32 %v1871, 1.4214138
  %v1904 = vadd.f32 %v1872, 1.4214138
  %v1905 = vadd.f32 %v1873, 1.4214138
  %v1906 = vadd.f32 %v1874, 1.4214138
  %v1907 = vadd.f32 %v1875, 1.4214138
  %v1908 = vadd.f32 %v1876, 1.4214138
  %v1909 = vadd.f32 %v1877, 1.4214138
  %v1910 = vadd.f32 %v1878, 1.4214138
  %v1911 = vadd.f32 %v1879, 1.4214138
  %v1912 = vadd.f32 %v1880, 1.4214138
  %v1913 = vadd.f32 %v1881, 1.4214138
  %v1914 = vadd.f32 %v1882, 1.4214138
  %v1915 = vadd.f32 %v1883, 1.4214138
  %v1916 = vadd.f32 %v1884, 1.4214138
  %v1917 = vadd.f32 %v1885, 1.4214138
  %v1918 = vadd.f32 %v1886, 1.4214138
  %v1919 = vadd.f32 %v1887, 1.4214138
  %v1920 = vadd.f32 %v1888, 1.4214138
  %v1921 = vadd.f32 %v1889, 1.4214138
  %v1922 = vadd.f32 %v1890, 1.4214138
  %v1923 = vadd.f32 %v1891, 1.4214138
  %v1924 = vadd.f32 %v1892, 1.4214138
  %v1925 = vmul.f32 %v1893, %v1765
  %v1926 = vmul.f32 %v1894, %v1766
  %v1927 = vmul.f32 %v1895, %v1767
  %v1928 = vmul.f32 %v1896, %v1768
  %v1929 = vmul.f32 %v1897, %v1769
  %v1930 = vmul.f32 %v1898, %v1770
  %v1931 = vmul.f32 %v1899, %v1771
  %v1932 = vmul.f32 %v1900, %v1772
  %v1933 = vmul.f32 %v1901, %v1773
  %v1934 = vmul.f32 %v1902, %v1774
  %v1935 = vmul.f32 %v1903, %v1775
  %v1936 = vmul.f32 %v1904, %v1776
  %v1937 = vmul.f32 %v1905, %v1777
  %v1938 = vmul.f32 %v1906, %v1778
  %v1939 = vmul.f32 %v1907, %v1779
  %v1940 = vmul.f32 %v1908, %v1780
  %v1941 = vmul.f32 %v1909, %v1781
  %v1942 = vmul.f32 %v1910, %v1782
  %v1943 = vmul.f32 %v1911, %v1783
  %v1944 = vmul.f32 %v1912, %v1784
  %v1945 = vmul.f32 %v1913, %v1785
  %v1946 = vmul.f32 %v1914, %v1786
  %v1947 = vmul.f32 %v1915, %v1787
  %v1948 = vmul.f32 %v1916, %v1788
  %v1949 = vmul.f32 %v1917, %v1789
  %v1950 = vmul.f32 %v1918, %v1790
  %v1951 = vmul.f32 %v1919, %v1791
  %v1952 = vmul.f32 %v1920, %v1792
  %v1953 = vmul.f32 %v1921, %v1793
  %v1954 = vmul.f32 %v1922, %v1794
  %v1955 = vmul.f32 %v1923, %v1795
  %v1956 = vmul.f32 %v1924, %v1796
  %v1957 = vadd.f32 %v1925, -0.28449672
  %v1958 = vadd.f32 %v1926, -0.28449672
  %v1959 = vadd.f32 %v1927, -0.28449672
  %v1960 = vadd.f32 %v1928, -0.28449672
  %v1961 = vadd.f32 %v1929, -0.28449672
  %v1962 = vadd.f32 %v1930, -0.28449672
  %v1963 = vadd.f32 %v1931, -0.28449672
  %v1964 = vadd.f32 %v1932, -0.28449672
  %v1965 = vadd.f32 %v1933, -0.28449672
  %v1966 = vadd.f32 %v1934, -0.28449672
  %v1967 = vadd.f32 %v1935, -0.28449672
  %v1968 = vadd.f32 %v1936, -0.28449672
  %v1969 = vadd.f32 %v1937, -0.28449672
  %v1970 = vadd.f32 %v1938, -0.28449672
  %v1971 = vadd.f32 %v1939, -0.28449672
  %v1972 = vadd.f32 %v1940, -0.28449672
  %v1973 = vadd.f32 %v1941, -0.28449672
  %v1974 = vadd.f32 %v1942, -0.28449672
  %v1975 = vadd.f32 %v1943, -0.28449672
  %v1976 = vadd.f32 %v1944, -0.28449672
  %v1977 = vadd.f32 %v1945, -0.28449672
  %v1978 = vadd.f32 %v1946, -0.28449672
  %v1979 = vadd.f32 %v1947, -0.28449672
  %v1980 = vadd.f32 %v1948, -0.28449672
  %v1981 = vadd.f32 %v1949, -0.28449672
  %v1982 = vadd.f32 %v1950, -0.28449672
  %v1983 = vadd.f32 %v1951, -0.28449672
  %v1984 = vadd.f32 %v1952, -0.28449672
  %v1985 = vadd.f32 %v1953, -0.28449672
  %v1986 = vadd.f32 %v1954, -0.28449672
  %v1987 = vadd.f32 %v1955, -0.28449672
  %v1988 = vadd.f32 %v1956, -0.28449672
  %v1989 = vmul.f32 %v1957, %v1765
  %v1990 = vmul.f32 %v1958, %v1766
  %v1991 = vmul.f32 %v1959, %v1767
  %v1992 = vmul.f32 %v1960, %v1768
  %v1993 = vmul.f32 %v1961, %v1769
  %v1994 = vmul.f32 %v1962, %v1770
  %v1995 = vmul.f32 %v1963, %v1771
  %v1996 = vmul.f32 %v1964, %v1772
  %v1997 = vmul.f32 %v1965, %v1773
  %v1998 = vmul.f32 %v1966, %v1774
  %v1999 = vmul.f32 %v1967, %v1775
  %v2000 = vmul.f32 %v1968, %v1776
  %v2001 = vmul.f32 %v1969, %v1777
  %v2002 = vmul.f32 %v1970, %v1778
  %v2003 = vmul.f32 %v1971, %v1779
  %v2004 = vmul.f32 %v1972, %v1780
  %v2005 = vmul.f32 %v1973, %v1781
  %v2006 = vmul.f32 %v1974, %v1782
  %v2007 = vmul.f32 %v1975, %v1783
  %v2008 = vmul.f32 %v1976, %v1784
  %v2009 = vmul.f32 %v1977, %v1785
  %v2010 = vmul.f32 %v1978, %v1786
  %v2011 = vmul.f32 %v1979, %v1787
  %v2012 = vmul.f32 %v1980, %v1788
  %v2013 = vmul.f32 %v1981, %v1789
  %v2014 = vmul.f32 %v1982, %v1790
  %v2015 = vmul.f32 %v1983, %v1791
  %v2016 = vmul.f32 %v1984, %v1792
  %v2017 = vmul.f32 %v1985, %v1793
  %v2018 = vmul.f32 %v1986, %v1794
  %v2019 = vmul.f32 %v1987, %v1795
  %v2020 = vmul.f32 %v1988, %v1796
  %v2021 = vadd.f32 %v1989, 0.2548296
  %v2022 = vadd.f32 %v1990, 0.2548296
  %v2023 = vadd.f32 %v1991, 0.2548296
  %v2024 = vadd.f32 %v1992, 0.2548296
  %v2025 = vadd.f32 %v1993, 0.2548296
  %v2026 = vadd.f32 %v1994, 0.2548296
  %v2027 = vadd.f32 %v1995, 0.2548296
  %v2028 = vadd.f32 %v1996, 0.2548296
  %v2029 = vadd.f32 %v1997, 0.2548296
  %v2030 = vadd.f32 %v1998, 0.2548296
  %v2031 = vadd.f32 %v1999, 0.2548296
  %v2032 = vadd.f32 %v2000, 0.2548296
  %v2033 = vadd.f32 %v2001, 0.2548296
  %v2034 = vadd.f32 %v2002, 0.2548296
  %v2035 = vadd.f32 %v2003, 0.2548296
  %v2036 = vadd.f32 %v2004, 0.2548296
  %v2037 = vadd.f32 %v2005, 0.2548296
  %v2038 = vadd.f32 %v2006, 0.2548296
  %v2039 = vadd.f32 %v2007, 0.2548296
  %v2040 = vadd.f32 %v2008, 0.2548296
  %v2041 = vadd.f32 %v2009, 0.2548296
  %v2042 = vadd.f32 %v2010, 0.2548296
  %v2043 = vadd.f32 %v2011, 0.2548296
  %v2044 = vadd.f32 %v2012, 0.2548296
  %v2045 = vadd.f32 %v2013, 0.2548296
  %v2046 = vadd.f32 %v2014, 0.2548296
  %v2047 = vadd.f32 %v2015, 0.2548296
  %v2048 = vadd.f32 %v2016, 0.2548296
  %v2049 = vadd.f32 %v2017, 0.2548296
  %v2050 = vadd.f32 %v2018, 0.2548296
  %v2051 = vadd.f32 %v2019, 0.2548296
  %v2052 = vadd.f32 %v2020, 0.2548296
  %v2053 = vmul.f32 %v2021, %v1765
  %v2054 = vmul.f32 %v2022, %v1766
  %v2055 = vmul.f32 %v2023, %v1767
  %v2056 = vmul.f32 %v2024, %v1768
  %v2057 = vmul.f32 %v2025, %v1769
  %v2058 = vmul.f32 %v2026, %v1770
  %v2059 = vmul.f32 %v2027, %v1771
  %v2060 = vmul.f32 %v2028, %v1772
  %v2061 = vmul.f32 %v2029, %v1773
  %v2062 = vmul.f32 %v2030, %v1774
  %v2063 = vmul.f32 %v2031, %v1775
  %v2064 = vmul.f32 %v2032, %v1776
  %v2065 = vmul.f32 %v2033, %v1777
  %v2066 = vmul.f32 %v2034, %v1778
  %v2067 = vmul.f32 %v2035, %v1779
  %v2068 = vmul.f32 %v2036, %v1780
  %v2069 = vmul.f32 %v2037, %v1781
  %v2070 = vmul.f32 %v2038, %v1782
  %v2071 = vmul.f32 %v2039, %v1783
  %v2072 = vmul.f32 %v2040, %v1784
  %v2073 = vmul.f32 %v2041, %v1785
  %v2074 = vmul.f32 %v2042, %v1786
  %v2075 = vmul.f32 %v2043, %v1787
  %v2076 = vmul.f32 %v2044, %v1788
  %v2077 = vmul.f32 %v2045, %v1789
  %v2078 = vmul.f32 %v2046, %v1790
  %v2079 = vmul.f32 %v2047, %v1791
  %v2080 = vmul.f32 %v2048, %v1792
  %v2081 = vmul.f32 %v2049, %v1793
  %v2082 = vmul.f32 %v2050, %v1794
  %v2083 = vmul.f32 %v2051, %v1795
  %v2084 = vmul.f32 %v2052, %v1796
  %v2085 = vsub.f32 0.0, %v1573
  %v2086 = vsub.f32 0.0, %v1574
  %v2087 = vsub.f32 0.0, %v1575
  %v2088 = vsub.f32 0.0, %v1576
  %v2089 = vsub.f32 0.0, %v1577
  %v2090 = vsub.f32 0.0, %v1578
  %v2091 = vsub.f32 0.0, %v1579
  %v2092 = vsub.f32 0.0, %v1580
  %v2093 = vsub.f32 0.0, %v1581
  %v2094 = vsub.f32 0.0, %v1582
  %v2095 = vsub.f32 0.0, %v1583
  %v2096 = vsub.f32 0.0, %v1584
  %v2097 = vsub.f32 0.0, %v1585
  %v2098 = vsub.f32 0.0, %v1586
  %v2099 = vsub.f32 0.0, %v1587
  %v2100 = vsub.f32 0.0, %v1588
  %v2101 = vsub.f32 0.0, %v1589
  %v2102 = vsub.f32 0.0, %v1590
  %v2103 = vsub.f32 0.0, %v1591
  %v2104 = vsub.f32 0.0, %v1592
  %v2105 = vsub.f32 0.0, %v1593
  %v2106 = vsub.f32 0.0, %v1594
  %v2107 = vsub.f32 0.0, %v1595
  %v2108 = vsub.f32 0.0, %v1596
  %v2109 = vsub.f32 0.0, %v1597
  %v2110 = vsub.f32 0.0, %v1598
  %v2111 = vsub.f32 0.0, %v1599
  %v2112 = vsub.f32 0.0, %v1600
  %v2113 = vsub.f32 0.0, %v1601
  %v2114 = vsub.f32 0.0, %v1602
  %v2115 = vsub.f32 0.0, %v1603
  %v2116 = vsub.f32 0.0, %v1604
  %v2117 = vmul.f32 %v2085, %v1573
  %v2118 = vmul.f32 %v2086, %v1574
  %v2119 = vmul.f32 %v2087, %v1575
  %v2120 = vmul.f32 %v2088, %v1576
  %v2121 = vmul.f32 %v2089, %v1577
  %v2122 = vmul.f32 %v2090, %v1578
  %v2123 = vmul.f32 %v2091, %v1579
  %v2124 = vmul.f32 %v2092, %v1580
  %v2125 = vmul.f32 %v2093, %v1581
  %v2126 = vmul.f32 %v2094, %v1582
  %v2127 = vmul.f32 %v2095, %v1583
  %v2128 = vmul.f32 %v2096, %v1584
  %v2129 = vmul.f32 %v2097, %v1585
  %v2130 = vmul.f32 %v2098, %v1586
  %v2131 = vmul.f32 %v2099, %v1587
  %v2132 = vmul.f32 %v2100, %v1588
  %v2133 = vmul.f32 %v2101, %v1589
  %v2134 = vmul.f32 %v2102, %v1590
  %v2135 = vmul.f32 %v2103, %v1591
  %v2136 = vmul.f32 %v2104, %v1592
  %v2137 = vmul.f32 %v2105, %v1593
  %v2138 = vmul.f32 %v2106, %v1594
  %v2139 = vmul.f32 %v2107, %v1595
  %v2140 = vmul.f32 %v2108, %v1596
  %v2141 = vmul.f32 %v2109, %v1597
  %v2142 = vmul.f32 %v2110, %v1598
  %v2143 = vmul.f32 %v2111, %v1599
  %v2144 = vmul.f32 %v2112, %v1600
  %v2145 = vmul.f32 %v2113, %v1601
  %v2146 = vmul.f32 %v2114, %v1602
  %v2147 = vmul.f32 %v2115, %v1603
  %v2148 = vmul.f32 %v2116, %v1604
  %v2149 = vmul.f32 %v2117, 1.442695
  %v2150 = vpow.pop %v2149
  %v2151 = vmul.f32 %v2118, 1.442695
  %v2152 = vpow.pop %v2151
  %v2153 = vmul.f32 %v2119, 1.442695
  %v2154 = vpow.pop %v2153
  %v2155 = vmul.f32 %v2120, 1.442695
  %v2156 = vpow.pop %v2155
  %v2157 = vmul.f32 %v2121, 1.442695
  %v2158 = vpow.pop %v2157
  %v2159 = vmul.f32 %v2122, 1.442695
  %v2160 = vpow.pop %v2159
  %v2161 = vmul.f32 %v2123, 1.442695
  %v2162 = vpow.pop %v2161
  %v2163 = vmul.f32 %v2124, 1.442695
  %v2164 = vpow.pop %v2163
  %v2165 = vmul.f32 %v2125, 1.442695
  %v2166 = vpow.pop %v2165
  %v2167 = vmul.f32 %v2126, 1.442695
  %v2168 = vpow.pop %v2167
  %v2169 = vmul.f32 %v2127, 1.442695
  %v2170 = vpow.pop %v2169
  %v2171 = vmul.f32 %v2128, 1.442695
  %v2172 = vpow.pop %v2171
  %v2173 = vmul.f32 %v2129, 1.442695
  %v2174 = vpow.pop %v2173
  %v2175 = vmul.f32 %v2130, 1.442695
  %v2176 = vpow.pop %v2175
  %v2177 = vmul.f32 %v2131, 1.442695
  %v2178 = vpow.pop %v2177
  %v2179 = vmul.f32 %v2132, 1.442695
  %v2180 = vpow.pop %v2179
  %v2181 = vmul.f32 %v2133, 1.442695
  %v2182 = vpow.pop %v2181
  %v2183 = vmul.f32 %v2134, 1.442695
  %v2184 = vpow.pop %v2183
  %v2185 = vmul.f32 %v2135, 1.442695
  %v2186 = vpow.pop %v2185
  %v2187 = vmul.f32 %v2136, 1.442695
  %v2188 = vpow.pop %v2187
  %v2189 = vmul.f32 %v2137, 1.442695
  %v2190 = vpow.pop %v2189
  %v2191 = vmul.f32 %v2138, 1.442695
  %v2192 = vpow.pop %v2191
  %v2193 = vmul.f32 %v2139, 1.442695
  %v2194 = vpow.pop %v2193
  %v2195 = vmul.f32 %v2140, 1.442695
  %v2196 = vpow.pop %v2195
  %v2197 = vmul.f32 %v2141, 1.442695
  %v2198 = vpow.pop %v2197
  %v2199 = vmul.f32 %v2142, 1.442695
  %v2200 = vpow.pop %v2199
  %v2201 = vmul.f32 %v2143, 1.442695
  %v2202 = vpow.pop %v2201
  %v2203 = vmul.f32 %v2144, 1.442695
  %v2204 = vpow.pop %v2203
  %v2205 = vmul.f32 %v2145, 1.442695
  %v2206 = vpow.pop %v2205
  %v2207 = vmul.f32 %v2146, 1.442695
  %v2208 = vpow.pop %v2207
  %v2209 = vmul.f32 %v2147, 1.442695
  %v2210 = vpow.pop %v2209
  %v2211 = vmul.f32 %v2148, 1.442695
  %v2212 = vpow.pop %v2211
  %v2213 = vmul.f32 %v2053, %v2150
  %v2214 = vmul.f32 %v2054, %v2152
  %v2215 = vmul.f32 %v2055, %v2154
  %v2216 = vmul.f32 %v2056, %v2156
  %v2217 = vmul.f32 %v2057, %v2158
  %v2218 = vmul.f32 %v2058, %v2160
  %v2219 = vmul.f32 %v2059, %v2162
  %v2220 = vmul.f32 %v2060, %v2164
  %v2221 = vmul.f32 %v2061, %v2166
  %v2222 = vmul.f32 %v2062, %v2168
  %v2223 = vmul.f32 %v2063, %v2170
  %v2224 = vmul.f32 %v2064, %v2172
  %v2225 = vmul.f32 %v2065, %v2174
  %v2226 = vmul.f32 %v2066, %v2176
  %v2227 = vmul.f32 %v2067, %v2178
  %v2228 = vmul.f32 %v2068, %v2180
  %v2229 = vmul.f32 %v2069, %v2182
  %v2230 = vmul.f32 %v2070, %v2184
  %v2231 = vmul.f32 %v2071, %v2186
  %v2232 = vmul.f32 %v2072, %v2188
  %v2233 = vmul.f32 %v2073, %v2190
  %v2234 = vmul.f32 %v2074, %v2192
  %v2235 = vmul.f32 %v2075, %v2194
  %v2236 = vmul.f32 %v2076, %v2196
  %v2237 = vmul.f32 %v2077, %v2198
  %v2238 = vmul.f32 %v2078, %v2200
  %v2239 = vmul.f32 %v2079, %v2202
  %v2240 = vmul.f32 %v2080, %v2204
  %v2241 = vmul.f32 %v2081, %v2206
  %v2242 = vmul.f32 %v2082, %v2208
  %v2243 = vmul.f32 %v2083, %v2210
  %v2244 = vmul.f32 %v2084, %v2212
  %v2245 = vsub.f32 1.0, %v2213
  %v2246 = vsub.f32 1.0, %v2214
  %v2247 = vsub.f32 1.0, %v2215
  %v2248 = vsub.f32 1.0, %v2216
  %v2249 = vsub.f32 1.0, %v2217
  %v2250 = vsub.f32 1.0, %v2218
  %v2251 = vsub.f32 1.0, %v2219
  %v2252 = vsub.f32 1.0, %v2220
  %v2253 = vsub.f32 1.0, %v2221
  %v2254 = vsub.f32 1.0, %v2222
  %v2255 = vsub.f32 1.0, %v2223
  %v2256 = vsub.f32 1.0, %v2224
  %v2257 = vsub.f32 1.0, %v2225
  %v2258 = vsub.f32 1.0, %v2226
  %v2259 = vsub.f32 1.0, %v2227
  %v2260 = vsub.f32 1.0, %v2228
  %v2261 = vsub.f32 1.0, %v2229
  %v2262 = vsub.f32 1.0, %v2230
  %v2263 = vsub.f32 1.0, %v2231
  %v2264 = vsub.f32 1.0, %v2232
  %v2265 = vsub.f32 1.0, %v2233
  %v2266 = vsub.f32 1.0, %v2234
  %v2267 = vsub.f32 1.0, %v2235
  %v2268 = vsub.f32 1.0, %v2236
  %v2269 = vsub.f32 1.0, %v2237
  %v2270 = vsub.f32 1.0, %v2238
  %v2271 = vsub.f32 1.0, %v2239
  %v2272 = vsub.f32 1.0, %v2240
  %v2273 = vsub.f32 1.0, %v2241
  %v2274 = vsub.f32 1.0, %v2242
  %v2275 = vsub.f32 1.0, %v2243
  %v2276 = vsub.f32 1.0, %v2244
  %vm2277 = vcmp.ge.f32.partialorder %v1541, 0.0
  %vm2278 = vcmp.ge.f32.partialorder %v1542, 0.0
  %vm2279 = vcmp.ge.f32.partialorder %v1543, 0.0
  %vm2280 = vcmp.ge.f32.partialorder %v1544, 0.0
  %vm2281 = vcmp.ge.f32.partialorder %v1545, 0.0
  %vm2282 = vcmp.ge.f32.partialorder %v1546, 0.0
  %vm2283 = vcmp.ge.f32.partialorder %v1547, 0.0
  %vm2284 = vcmp.ge.f32.partialorder %v1548, 0.0
  %vm2285 = vcmp.ge.f32.partialorder %v1549, 0.0
  %vm2286 = vcmp.ge.f32.partialorder %v1550, 0.0
  %vm2287 = vcmp.ge.f32.partialorder %v1551, 0.0
  %vm2288 = vcmp.ge.f32.partialorder %v1552, 0.0
  %vm2289 = vcmp.ge.f32.partialorder %v1553, 0.0
  %vm2290 = vcmp.ge.f32.partialorder %v1554, 0.0
  %vm2291 = vcmp.ge.f32.partialorder %v1555, 0.0
  %vm2292 = vcmp.ge.f32.partialorder %v1556, 0.0
  %vm2293 = vcmp.ge.f32.partialorder %v1557, 0.0
  %vm2294 = vcmp.ge.f32.partialorder %v1558, 0.0
  %vm2295 = vcmp.ge.f32.partialorder %v1559, 0.0
  %vm2296 = vcmp.ge.f32.partialorder %v1560, 0.0
  %vm2297 = vcmp.ge.f32.partialorder %v1561, 0.0
  %vm2298 = vcmp.ge.f32.partialorder %v1562, 0.0
  %vm2299 = vcmp.ge.f32.partialorder %v1563, 0.0
  %vm2300 = vcmp.ge.f32.partialorder %v1564, 0.0
  %vm2301 = vcmp.ge.f32.partialorder %v1565, 0.0
  %vm2302 = vcmp.ge.f32.partialorder %v1566, 0.0
  %vm2303 = vcmp.ge.f32.partialorder %v1567, 0.0
  %vm2304 = vcmp.ge.f32.partialorder %v1568, 0.0
  %vm2305 = vcmp.ge.f32.partialorder %v1569, 0.0
  %vm2306 = vcmp.ge.f32.partialorder %v1570, 0.0
  %vm2307 = vcmp.ge.f32.partialorder %v1571, 0.0
  %vm2308 = vcmp.ge.f32.partialorder %v1572, 0.0
  %v2309 = vsub.f32 0.0, %v2245
  %v2310 = vsub.f32 0.0, %v2246
  %v2311 = vsub.f32 0.0, %v2247
  %v2312 = vsub.f32 0.0, %v2248
  %v2313 = vsub.f32 0.0, %v2249
  %v2314 = vsub.f32 0.0, %v2250
  %v2315 = vsub.f32 0.0, %v2251
  %v2316 = vsub.f32 0.0, %v2252
  %v2317 = vsub.f32 0.0, %v2253
  %v2318 = vsub.f32 0.0, %v2254
  %v2319 = vsub.f32 0.0, %v2255
  %v2320 = vsub.f32 0.0, %v2256
  %v2321 = vsub.f32 0.0, %v2257
  %v2322 = vsub.f32 0.0, %v2258
  %v2323 = vsub.f32 0.0, %v2259
  %v2324 = vsub.f32 0.0, %v2260
  %v2325 = vsub.f32 0.0, %v2261
  %v2326 = vsub.f32 0.0, %v2262
  %v2327 = vsub.f32 0.0, %v2263
  %v2328 = vsub.f32 0.0, %v2264
  %v2329 = vsub.f32 0.0, %v2265
  %v2330 = vsub.f32 0.0, %v2266
  %v2331 = vsub.f32 0.0, %v2267
  %v2332 = vsub.f32 0.0, %v2268
  %v2333 = vsub.f32 0.0, %v2269
  %v2334 = vsub.f32 0.0, %v2270
  %v2335 = vsub.f32 0.0, %v2271
  %v2336 = vsub.f32 0.0, %v2272
  %v2337 = vsub.f32 0.0, %v2273
  %v2338 = vsub.f32 0.0, %v2274
  %v2339 = vsub.f32 0.0, %v2275
  %v2340 = vsub.f32 0.0, %v2276
  %v2341 = vsel %vm2277, %v2245, %v2309
  %v2342 = vsel %vm2278, %v2246, %v2310
  %v2343 = vsel %vm2279, %v2247, %v2311
  %v2344 = vsel %vm2280, %v2248, %v2312
  %v2345 = vsel %vm2281, %v2249, %v2313
  %v2346 = vsel %vm2282, %v2250, %v2314
  %v2347 = vsel %vm2283, %v2251, %v2315
  %v2348 = vsel %vm2284, %v2252, %v2316
  %v2349 = vsel %vm2285, %v2253, %v2317
  %v2350 = vsel %vm2286, %v2254, %v2318
  %v2351 = vsel %vm2287, %v2255, %v2319
  %v2352 = vsel %vm2288, %v2256, %v2320
  %v2353 = vsel %vm2289, %v2257, %v2321
  %v2354 = vsel %vm2290, %v2258, %v2322
  %v2355 = vsel %vm2291, %v2259, %v2323
  %v2356 = vsel %vm2292, %v2260, %v2324
  %v2357 = vsel %vm2293, %v2261, %v2325
  %v2358 = vsel %vm2294, %v2262, %v2326
  %v2359 = vsel %vm2295, %v2263, %v2327
  %v2360 = vsel %vm2296, %v2264, %v2328
  %v2361 = vsel %vm2297, %v2265, %v2329
  %v2362 = vsel %vm2298, %v2266, %v2330
  %v2363 = vsel %vm2299, %v2267, %v2331
  %v2364 = vsel %vm2300, %v2268, %v2332
  %v2365 = vsel %vm2301, %v2269, %v2333
  %v2366 = vsel %vm2302, %v2270, %v2334
  %v2367 = vsel %vm2303, %v2271, %v2335
  %v2368 = vsel %vm2304, %v2272, %v2336
  %v2369 = vsel %vm2305, %v2273, %v2337
  %v2370 = vsel %vm2306, %v2274, %v2338
  %v2371 = vsel %vm2307, %v2275, %v2339
  %v2372 = vsel %vm2308, %v2276, %v2340
  %v2373 = vadd.f32 %v2341, 1.0
  %v2374 = vadd.f32 %v2342, 1.0
  %v2375 = vadd.f32 %v2343, 1.0
  %v2376 = vadd.f32 %v2344, 1.0
  %v2377 = vadd.f32 %v2345, 1.0
  %v2378 = vadd.f32 %v2346, 1.0
  %v2379 = vadd.f32 %v2347, 1.0
  %v2380 = vadd.f32 %v2348, 1.0
  %v2381 = vadd.f32 %v2349, 1.0
  %v2382 = vadd.f32 %v2350, 1.0
  %v2383 = vadd.f32 %v2351, 1.0
  %v2384 = vadd.f32 %v2352, 1.0
  %v2385 = vadd.f32 %v2353, 1.0
  %v2386 = vadd.f32 %v2354, 1.0
  %v2387 = vadd.f32 %v2355, 1.0
  %v2388 = vadd.f32 %v2356, 1.0
  %v2389 = vadd.f32 %v2357, 1.0
  %v2390 = vadd.f32 %v2358, 1.0
  %v2391 = vadd.f32 %v2359, 1.0
  %v2392 = vadd.f32 %v2360, 1.0
  %v2393 = vadd.f32 %v2361, 1.0
  %v2394 = vadd.f32 %v2362, 1.0
  %v2395 = vadd.f32 %v2363, 1.0
  %v2396 = vadd.f32 %v2364, 1.0
  %v2397 = vadd.f32 %v2365, 1.0
  %v2398 = vadd.f32 %v2366, 1.0
  %v2399 = vadd.f32 %v2367, 1.0
  %v2400 = vadd.f32 %v2368, 1.0
  %v2401 = vadd.f32 %v2369, 1.0
  %v2402 = vadd.f32 %v2370, 1.0
  %v2403 = vadd.f32 %v2371, 1.0
  %v2404 = vadd.f32 %v2372, 1.0
  %v2405 = vmul.f32 %v1509, %v2373
  %v2406 = vmul.f32 %v1510, %v2374
  %v2407 = vmul.f32 %v1511, %v2375
  %v2408 = vmul.f32 %v1512, %v2376
  %v2409 = vmul.f32 %v1513, %v2377
  %v2410 = vmul.f32 %v1514, %v2378
  %v2411 = vmul.f32 %v1515, %v2379
  %v2412 = vmul.f32 %v1516, %v2380
  %v2413 = vmul.f32 %v1517, %v2381
  %v2414 = vmul.f32 %v1518, %v2382
  %v2415 = vmul.f32 %v1519, %v2383
  %v2416 = vmul.f32 %v1520, %v2384
  %v2417 = vmul.f32 %v1521, %v2385
  %v2418 = vmul.f32 %v1522, %v2386
  %v2419 = vmul.f32 %v1523, %v2387
  %v2420 = vmul.f32 %v1524, %v2388
  %v2421 = vmul.f32 %v1525, %v2389
  %v2422 = vmul.f32 %v1526, %v2390
  %v2423 = vmul.f32 %v1527, %v2391
  %v2424 = vmul.f32 %v1528, %v2392
  %v2425 = vmul.f32 %v1529, %v2393
  %v2426 = vmul.f32 %v1530, %v2394
  %v2427 = vmul.f32 %v1531, %v2395
  %v2428 = vmul.f32 %v1532, %v2396
  %v2429 = vmul.f32 %v1533, %v2397
  %v2430 = vmul.f32 %v1534, %v2398
  %v2431 = vmul.f32 %v1535, %v2399
  %v2432 = vmul.f32 %v1536, %v2400
  %v2433 = vmul.f32 %v1537, %v2401
  %v2434 = vmul.f32 %v1538, %v2402
  %v2435 = vmul.f32 %v1539, %v2403
  %v2436 = vmul.f32 %v1540, %v2404
  %v2437 = vld [vmem:[%s5] sm:$0xff]
  %v2438 = vld [vmem:[%s6] sm:$0xff]
  %vm2439 = vcmask 130048
  %v2441 = vsel %vm2439, %v2437, 0
  %2443 = vmatprep.subr.mxu0 0.0
  %2444 = vmatpush1.msra.mxu0 0.0
  %2445 = vmatprep.subr.mxu0 0.0
  %2446 = vmatpush1.msra.mxu0 0.0
  %2447 = vmatprep.subr.mxu0 0.0
  %2448 = vmatpush1.msra.mxu0 0.0
  %2449 = vmatprep.subr.mxu0 0.0
  %2450 = vmatpush1.msra.mxu0 0.0
  %2451 = vmatprep.subr.mxu0 0.0
  %2452 = vmatpush1.msra.mxu0 0.0
  %2453 = vmatprep.subr.mxu0 0.0
  %2454 = vmatpush1.msra.mxu0 0.0
  %2455 = vmatprep.subr.mxu0 0.0
  %2456 = vmatpush1.msra.mxu0 0.0
  %2457 = vmatprep.subr.mxu0 0.0
  %2458 = vmatpush1.msra.mxu0 0.0
  %2459 = vmatprep.subr.mxu0 0.0
  %2460 = vmatpush1.msra.mxu0 0.0
  %2461 = vmatprep.subr.mxu0 0.0
  %2462 = vmatpush1.msra.mxu0 0.0
  %2463 = vmatprep.subr.mxu0 0.0
  %2464 = vmatpush1.msra.mxu0 0.0
  %2465 = vmatprep.subr.mxu0 0.0
  %2466 = vmatpush1.msra.mxu0 0.0
  %2467 = vmatprep.subr.mxu0 0.0
  %2468 = vmatpush1.msra.mxu0 0.0
  %2469 = vmatprep.subr.mxu0 0.0
  %2470 = vmatpush1.msra.mxu0 0.0
  %2471 = vmatprep.subr.mxu0 0.0
  %2472 = vmatpush1.msra.mxu0 %v2406
  %2473 = vmatprep.subr.mxu0 0.0
  %2474 = vmatpush1.msra.mxu0 %v2405
  %2475 = vmatprep.subr.mxu0 0.0
  %2476 = vmatpush2.msra.mxu0 0.0
  %2477 = vmatprep.subr.mxu0 0.0
  %2478 = vmatpush2.msra.mxu0 0.0
  %2479 = vmatprep.subr.mxu0 0.0
  %2480 = vmatpush2.msra.mxu0 0.0
  %2481 = vmatprep.subr.mxu0 0.0
  %2482 = vmatpush2.msra.mxu0 0.0
  %2483 = vmatprep.subr.mxu0 0.0
  %2484 = vmatpush2.msra.mxu0 0.0
  %2485 = vmatprep.subr.mxu0 0.0
  %2486 = vmatpush2.msra.mxu0 0.0
  %2487 = vmatprep.subr.mxu0 0.0
  %2488 = vmatpush2.msra.mxu0 0.0
  %2489 = vmatprep.subr.mxu0 0.0
  %2490 = vmatpush2.msra.mxu0 0.0
  %2491 = vmatprep.subr.mxu0 0.0
  %2492 = vmatpush2.msra.mxu0 0.0
  %2493 = vmatprep.subr.mxu0 0.0
  %2494 = vmatpush2.msra.mxu0 0.0
  %2495 = vmatprep.subr.mxu0 0.0
  %2496 = vmatpush2.msra.mxu0 0.0
  %2497 = vmatprep.subr.mxu0 0.0
  %2498 = vmatpush2.msra.mxu0 0.0
  %2499 = vmatprep.subr.mxu0 0.0
  %2500 = vmatpush2.msra.mxu0 0.0
  %2501 = vmatprep.subr.mxu0 0.0
  %2502 = vmatpush2.msra.mxu0 0.0
  %2503 = vmatprep.subr.mxu0 0.0
  %2504 = vmatpush2.msra.mxu0 0.0
  %2505 = vmatprep.subr.mxu0 0.0
  %2506 = vmatpush2.msra.mxu0 0.0
  %2507 = vmatprep.mubr.f32.mxu0 0.0
  %2508 = vmatmul.mubr.f32.gmra.mxu0 %v2441
  %v2509 = vpop.f32.mrf.mxu0
  %v2510 = vadd.f32 %v2438, %v2509
  %v2511 = vpop.f32.mrf.mxu0
  %2512 = vdwg.mxu0
  %2513 = vmatprep.subr.mxu0 0.0
  %2514 = vmatpush1.msra.mxu0 0.0
  %2515 = vmatprep.subr.mxu0 0.0
  %2516 = vmatpush1.msra.mxu0 0.0
  %2517 = vmatprep.subr.mxu0 0.0
  %2518 = vmatpush1.msra.mxu0 0.0
  %2519 = vmatprep.subr.mxu0 0.0
  %2520 = vmatpush1.msra.mxu0 0.0
  %2521 = vmatprep.subr.mxu0 0.0
  %2522 = vmatpush1.msra.mxu0 0.0
  %2523 = vmatprep.subr.mxu0 0.0
  %2524 = vmatpush1.msra.mxu0 0.0
  %2525 = vmatprep.subr.mxu0 0.0
  %2526 = vmatpush1.msra.mxu0 0.0
  %2527 = vmatprep.subr.mxu0 0.0
  %2528 = vmatpush1.msra.mxu0 0.0
  %2529 = vmatprep.subr.mxu0 0.0
  %2530 = vmatpush1.msra.mxu0 0.0
  %2531 = vmatprep.subr.mxu0 0.0
  %2532 = vmatpush1.msra.mxu0 0.0
  %2533 = vmatprep.subr.mxu0 0.0
  %2534 = vmatpush1.msra.mxu0 0.0
  %2535 = vmatprep.subr.mxu0 0.0
  %2536 = vmatpush1.msra.mxu0 0.0
  %2537 = vmatprep.subr.mxu0 0.0
  %2538 = vmatpush1.msra.mxu0 0.0
  %2539 = vmatprep.subr.mxu0 0.0
  %2540 = vmatpush1.msra.mxu0 0.0
  %2541 = vmatprep.subr.mxu0 0.0
  %2542 = vmatpush1.msra.mxu0 %v2408
  %2543 = vmatprep.subr.mxu0 0.0
  %2544 = vmatpush1.msra.mxu0 %v2407
  %2545 = vmatprep.subr.mxu0 0.0
  %2546 = vmatpush2.msra.mxu0 0.0
  %2547 = vmatprep.subr.mxu0 0.0
  %2548 = vmatpush2.msra.mxu0 0.0
  %2549 = vmatprep.subr.mxu0 0.0
  %2550 = vmatpush2.msra.mxu0 0.0
  %2551 = vmatprep.subr.mxu0 0.0
  %2552 = vmatpush2.msra.mxu0 0.0
  %2553 = vmatprep.subr.mxu0 0.0
  %2554 = vmatpush2.msra.mxu0 0.0
  %2555 = vmatprep.subr.mxu0 0.0
  %2556 = vmatpush2.msra.mxu0 0.0
  %2557 = vmatprep.subr.mxu0 0.0
  %2558 = vmatpush2.msra.mxu0 0.0
  %2559 = vmatprep.subr.mxu0 0.0
  %2560 = vmatpush2.msra.mxu0 0.0
  %2561 = vmatprep.subr.mxu0 0.0
  %2562 = vmatpush2.msra.mxu0 0.0
  %2563 = vmatprep.subr.mxu0 0.0
  %2564 = vmatpush2.msra.mxu0 0.0
  %2565 = vmatprep.subr.mxu0 0.0
  %2566 = vmatpush2.msra.mxu0 0.0
  %2567 = vmatprep.subr.mxu0 0.0
  %2568 = vmatpush2.msra.mxu0 0.0
  %2569 = vmatprep.subr.mxu0 0.0
  %2570 = vmatpush2.msra.mxu0 0.0
  %2571 = vmatprep.subr.mxu0 0.0
  %2572 = vmatpush2.msra.mxu0 0.0
  %2573 = vmatprep.subr.mxu0 0.0
  %2574 = vmatpush2.msra.mxu0 0.0
  %2575 = vmatprep.subr.mxu0 0.0
  %2576 = vmatpush2.msra.mxu0 0.0
  %2577 = vmatprep.mubr.f32.mxu0 0.0
  %2578 = vmatmul.mubr.f32.gmra.mxu0 %v2441
  %v2579 = vpop.f32.mrf.mxu0
  %v2580 = vadd.f32 %v2438, %v2579
  %v2581 = vpop.f32.mrf.mxu0
  %2582 = vdwg.mxu0
  %2583 = vmatprep.subr.mxu0 0.0
  %2584 = vmatpush1.msra.mxu0 0.0
  %2585 = vmatprep.subr.mxu0 0.0
  %2586 = vmatpush1.msra.mxu0 0.0
  %2587 = vmatprep.subr.mxu0 0.0
  %2588 = vmatpush1.msra.mxu0 0.0
  %2589 = vmatprep.subr.mxu0 0.0
  %2590 = vmatpush1.msra.mxu0 0.0
  %2591 = vmatprep.subr.mxu0 0.0
  %2592 = vmatpush1.msra.mxu0 0.0
  %2593 = vmatprep.subr.mxu0 0.0
  %2594 = vmatpush1.msra.mxu0 0.0
  %2595 = vmatprep.subr.mxu0 0.0
  %2596 = vmatpush1.msra.mxu0 0.0
  %2597 = vmatprep.subr.mxu0 0.0
  %2598 = vmatpush1.msra.mxu0 0.0
  %2599 = vmatprep.subr.mxu0 0.0
  %2600 = vmatpush1.msra.mxu0 0.0
  %2601 = vmatprep.subr.mxu0 0.0
  %2602 = vmatpush1.msra.mxu0 0.0
  %2603 = vmatprep.subr.mxu0 0.0
  %2604 = vmatpush1.msra.mxu0 0.0
  %2605 = vmatprep.subr.mxu0 0.0
  %2606 = vmatpush1.msra.mxu0 0.0
  %2607 = vmatprep.subr.mxu0 0.0
  %2608 = vmatpush1.msra.mxu0 0.0
  %2609 = vmatprep.subr.mxu0 0.0
  %2610 = vmatpush1.msra.mxu0 0.0
  %2611 = vmatprep.subr.mxu0 0.0
  %2612 = vmatpush1.msra.mxu0 %v2410
  %2613 = vmatprep.subr.mxu0 0.0
  %2614 = vmatpush1.msra.mxu0 %v2409
  %2615 = vmatprep.subr.mxu0 0.0
  %2616 = vmatpush2.msra.mxu0 0.0
  %2617 = vmatprep.subr.mxu0 0.0
  %2618 = vmatpush2.msra.mxu0 0.0
  %2619 = vmatprep.subr.mxu0 0.0
  %2620 = vmatpush2.msra.mxu0 0.0
  %2621 = vmatprep.subr.mxu0 0.0
  %2622 = vmatpush2.msra.mxu0 0.0
  %2623 = vmatprep.subr.mxu0 0.0
  %2624 = vmatpush2.msra.mxu0 0.0
  %2625 = vmatprep.subr.mxu0 0.0
  %2626 = vmatpush2.msra.mxu0 0.0
  %2627 = vmatprep.subr.mxu0 0.0
  %2628 = vmatpush2.msra.mxu0 0.0
  %2629 = vmatprep.subr.mxu0 0.0
  %2630 = vmatpush2.msra.mxu0 0.0
  %2631 = vmatprep.subr.mxu0 0.0
  %2632 = vmatpush2.msra.mxu0 0.0
  %2633 = vmatprep.subr.mxu0 0.0
  %2634 = vmatpush2.msra.mxu0 0.0
  %2635 = vmatprep.subr.mxu0 0.0
  %2636 = vmatpush2.msra.mxu0 0.0
  %2637 = vmatprep.subr.mxu0 0.0
  %2638 = vmatpush2.msra.mxu0 0.0
  %2639 = vmatprep.subr.mxu0 0.0
  %2640 = vmatpush2.msra.mxu0 0.0
  %2641 = vmatprep.subr.mxu0 0.0
  %2642 = vmatpush2.msra.mxu0 0.0
  %2643 = vmatprep.subr.mxu0 0.0
  %2644 = vmatpush2.msra.mxu0 0.0
  %2645 = vmatprep.subr.mxu0 0.0
  %2646 = vmatpush2.msra.mxu0 0.0
  %2647 = vmatprep.mubr.f32.mxu0 0.0
  %2648 = vmatmul.mubr.f32.gmra.mxu0 %v2441
  %v2649 = vpop.f32.mrf.mxu0
  %v2650 = vadd.f32 %v2438, %v2649
  %v2651 = vpop.f32.mrf.mxu0
  %2652 = vdwg.mxu0
  %2653 = vmatprep.subr.mxu0 0.0
  %2654 = vmatpush1.msra.mxu0 0.0
  %2655 = vmatprep.subr.mxu0 0.0
  %2656 = vmatpush1.msra.mxu0 0.0
  %2657 = vmatprep.subr.mxu0 0.0
  %2658 = vmatpush1.msra.mxu0 0.0
  %2659 = vmatprep.subr.mxu0 0.0
  %2660 = vmatpush1.msra.mxu0 0.0
  %2661 = vmatprep.subr.mxu0 0.0
  %2662 = vmatpush1.msra.mxu0 0.0
  %2663 = vmatprep.subr.mxu0 0.0
  %2664 = vmatpush1.msra.mxu0 0.0
  %2665 = vmatprep.subr.mxu0 0.0
  %2666 = vmatpush1.msra.mxu0 0.0
  %2667 = vmatprep.subr.mxu0 0.0
  %2668 = vmatpush1.msra.mxu0 0.0
  %2669 = vmatprep.subr.mxu0 0.0
  %2670 = vmatpush1.msra.mxu0 0.0
  %2671 = vmatprep.subr.mxu0 0.0
  %2672 = vmatpush1.msra.mxu0 0.0
  %2673 = vmatprep.subr.mxu0 0.0
  %2674 = vmatpush1.msra.mxu0 0.0
  %2675 = vmatprep.subr.mxu0 0.0
  %2676 = vmatpush1.msra.mxu0 0.0
  %2677 = vmatprep.subr.mxu0 0.0
  %2678 = vmatpush1.msra.mxu0 0.0
  %2679 = vmatprep.subr.mxu0 0.0
  %2680 = vmatpush1.msra.mxu0 0.0
  %2681 = vmatprep.subr.mxu0 0.0
  %2682 = vmatpush1.msra.mxu0 %v2412
  %2683 = vmatprep.subr.mxu0 0.0
  %2684 = vmatpush1.msra.mxu0 %v2411
  %2685 = vmatprep.subr.mxu0 0.0
  %2686 = vmatpush2.msra.mxu0 0.0
  %2687 = vmatprep.subr.mxu0 0.0
  %2688 = vmatpush2.msra.mxu0 0.0
  %2689 = vmatprep.subr.mxu0 0.0
  %2690 = vmatpush2.msra.mxu0 0.0
  %2691 = vmatprep.subr.mxu0 0.0
  %2692 = vmatpush2.msra.mxu0 0.0
  %2693 = vmatprep.subr.mxu0 0.0
  %2694 = vmatpush2.msra.mxu0 0.0
  %2695 = vmatprep.subr.mxu0 0.0
  %2696 = vmatpush2.msra.mxu0 0.0
  %2697 = vmatprep.subr.mxu0 0.0
  %2698 = vmatpush2.msra.mxu0 0.0
  %2699 = vmatprep.subr.mxu0 0.0
  %2700 = vmatpush2.msra.mxu0 0.0
  %2701 = vmatprep.subr.mxu0 0.0
  %2702 = vmatpush2.msra.mxu0 0.0
  %2703 = vmatprep.subr.mxu0 0.0
  %2704 = vmatpush2.msra.mxu0 0.0
  %2705 = vmatprep.subr.mxu0 0.0
  %2706 = vmatpush2.msra.mxu0 0.0
  %2707 = vmatprep.subr.mxu0 0.0
  %2708 = vmatpush2.msra.mxu0 0.0
  %2709 = vmatprep.subr.mxu0 0.0
  %2710 = vmatpush2.msra.mxu0 0.0
  %2711 = vmatprep.subr.mxu0 0.0
  %2712 = vmatpush2.msra.mxu0 0.0
  %2713 = vmatprep.subr.mxu0 0.0
  %2714 = vmatpush2.msra.mxu0 0.0
  %2715 = vmatprep.subr.mxu0 0.0
  %2716 = vmatpush2.msra.mxu0 0.0
  %2717 = vmatprep.mubr.f32.mxu0 0.0
  %2718 = vmatmul.mubr.f32.gmra.mxu0 %v2441
  %v2719 = vpop.f32.mrf.mxu0
  %v2720 = vadd.f32 %v2438, %v2719
  %v2721 = vpop.f32.mrf.mxu0
  %2722 = vdwg.mxu0
  %2723 = vmatprep.subr.mxu0 0.0
  %2724 = vmatpush1.msra.mxu0 0.0
  %2725 = vmatprep.subr.mxu0 0.0
  %2726 = vmatpush1.msra.mxu0 0.0
  %2727 = vmatprep.subr.mxu0 0.0
  %2728 = vmatpush1.msra.mxu0 0.0
  %2729 = vmatprep.subr.mxu0 0.0
  %2730 = vmatpush1.msra.mxu0 0.0
  %2731 = vmatprep.subr.mxu0 0.0
  %2732 = vmatpush1.msra.mxu0 0.0
  %2733 = vmatprep.subr.mxu0 0.0
  %2734 = vmatpush1.msra.mxu0 0.0
  %2735 = vmatprep.subr.mxu0 0.0
  %2736 = vmatpush1.msra.mxu0 0.0
  %2737 = vmatprep.subr.mxu0 0.0
  %2738 = vmatpush1.msra.mxu0 0.0
  %2739 = vmatprep.subr.mxu0 0.0
  %2740 = vmatpush1.msra.mxu0 0.0
  %2741 = vmatprep.subr.mxu0 0.0
  %2742 = vmatpush1.msra.mxu0 0.0
  %2743 = vmatprep.subr.mxu0 0.0
  %2744 = vmatpush1.msra.mxu0 0.0
  %2745 = vmatprep.subr.mxu0 0.0
  %2746 = vmatpush1.msra.mxu0 0.0
  %2747 = vmatprep.subr.mxu0 0.0
  %2748 = vmatpush1.msra.mxu0 0.0
  %2749 = vmatprep.subr.mxu0 0.0
  %2750 = vmatpush1.msra.mxu0 0.0
  %2751 = vmatprep.subr.mxu0 0.0
  %2752 = vmatpush1.msra.mxu0 %v2414
  %2753 = vmatprep.subr.mxu0 0.0
  %2754 = vmatpush1.msra.mxu0 %v2413
  %2755 = vmatprep.subr.mxu0 0.0
  %2756 = vmatpush2.msra.mxu0 0.0
  %2757 = vmatprep.subr.mxu0 0.0
  %2758 = vmatpush2.msra.mxu0 0.0
  %2759 = vmatprep.subr.mxu0 0.0
  %2760 = vmatpush2.msra.mxu0 0.0
  %2761 = vmatprep.subr.mxu0 0.0
  %2762 = vmatpush2.msra.mxu0 0.0
  %2763 = vmatprep.subr.mxu0 0.0
  %2764 = vmatpush2.msra.mxu0 0.0
  %2765 = vmatprep.subr.mxu0 0.0
  %2766 = vmatpush2.msra.mxu0 0.0
  %2767 = vmatprep.subr.mxu0 0.0
  %2768 = vmatpush2.msra.mxu0 0.0
  %2769 = vmatprep.subr.mxu0 0.0
  %2770 = vmatpush2.msra.mxu0 0.0
  %2771 = vmatprep.subr.mxu0 0.0
  %2772 = vmatpush2.msra.mxu0 0.0
  %2773 = vmatprep.subr.mxu0 0.0
  %2774 = vmatpush2.msra.mxu0 0.0
  %2775 = vmatprep.subr.mxu0 0.0
  %2776 = vmatpush2.msra.mxu0 0.0
  %2777 = vmatprep.subr.mxu0 0.0
  %2778 = vmatpush2.msra.mxu0 0.0
  %2779 = vmatprep.subr.mxu0 0.0
  %2780 = vmatpush2.msra.mxu0 0.0
  %2781 = vmatprep.subr.mxu0 0.0
  %2782 = vmatpush2.msra.mxu0 0.0
  %2783 = vmatprep.subr.mxu0 0.0
  %2784 = vmatpush2.msra.mxu0 0.0
  %2785 = vmatprep.subr.mxu0 0.0
  %2786 = vmatpush2.msra.mxu0 0.0
  %2787 = vmatprep.mubr.f32.mxu0 0.0
  %2788 = vmatmul.mubr.f32.gmra.mxu0 %v2441
  %v2789 = vpop.f32.mrf.mxu0
  %v2790 = vadd.f32 %v2438, %v2789
  %v2791 = vpop.f32.mrf.mxu0
  %2792 = vdwg.mxu0
  %2793 = vmatprep.subr.mxu0 0.0
  %2794 = vmatpush1.msra.mxu0 0.0
  %2795 = vmatprep.subr.mxu0 0.0
  %2796 = vmatpush1.msra.mxu0 0.0
  %2797 = vmatprep.subr.mxu0 0.0
  %2798 = vmatpush1.msra.mxu0 0.0
  %2799 = vmatprep.subr.mxu0 0.0
  %2800 = vmatpush1.msra.mxu0 0.0
  %2801 = vmatprep.subr.mxu0 0.0
  %2802 = vmatpush1.msra.mxu0 0.0
  %2803 = vmatprep.subr.mxu0 0.0
  %2804 = vmatpush1.msra.mxu0 0.0
  %2805 = vmatprep.subr.mxu0 0.0
  %2806 = vmatpush1.msra.mxu0 0.0
  %2807 = vmatprep.subr.mxu0 0.0
  %2808 = vmatpush1.msra.mxu0 0.0
  %2809 = vmatprep.subr.mxu0 0.0
  %2810 = vmatpush1.msra.mxu0 0.0
  %2811 = vmatprep.subr.mxu0 0.0
  %2812 = vmatpush1.msra.mxu0 0.0
  %2813 = vmatprep.subr.mxu0 0.0
  %2814 = vmatpush1.msra.mxu0 0.0
  %2815 = vmatprep.subr.mxu0 0.0
  %2816 = vmatpush1.msra.mxu0 0.0
  %2817 = vmatprep.subr.mxu0 0.0
  %2818 = vmatpush1.msra.mxu0 0.0
  %2819 = vmatprep.subr.mxu0 0.0
  %2820 = vmatpush1.msra.mxu0 0.0
  %2821 = vmatprep.subr.mxu0 0.0
  %2822 = vmatpush1.msra.mxu0 %v2416
  %2823 = vmatprep.subr.mxu0 0.0
  %2824 = vmatpush1.msra.mxu0 %v2415
  %2825 = vmatprep.subr.mxu0 0.0
  %2826 = vmatpush2.msra.mxu0 0.0
  %2827 = vmatprep.subr.mxu0 0.0
  %2828 = vmatpush2.msra.mxu0 0.0
  %2829 = vmatprep.subr.mxu0 0.0
  %2830 = vmatpush2.msra.mxu0 0.0
  %2831 = vmatprep.subr.mxu0 0.0
  %2832 = vmatpush2.msra.mxu0 0.0
  %2833 = vmatprep.subr.mxu0 0.0
  %2834 = vmatpush2.msra.mxu0 0.0
  %2835 = vmatprep.subr.mxu0 0.0
  %2836 = vmatpush2.msra.mxu0 0.0
  %2837 = vmatprep.subr.mxu0 0.0
  %2838 = vmatpush2.msra.mxu0 0.0
  %2839 = vmatprep.subr.mxu0 0.0
  %2840 = vmatpush2.msra.mxu0 0.0
  %2841 = vmatprep.subr.mxu0 0.0
  %2842 = vmatpush2.msra.mxu0 0.0
  %2843 = vmatprep.subr.mxu0 0.0
  %2844 = vmatpush2.msra.mxu0 0.0
  %2845 = vmatprep.subr.mxu0 0.0
  %2846 = vmatpush2.msra.mxu0 0.0
  %2847 = vmatprep.subr.mxu0 0.0
  %2848 = vmatpush2.msra.mxu0 0.0
  %2849 = vmatprep.subr.mxu0 0.0
  %2850 = vmatpush2.msra.mxu0 0.0
  %2851 = vmatprep.subr.mxu0 0.0
  %2852 = vmatpush2.msra.mxu0 0.0
  %2853 = vmatprep.subr.mxu0 0.0
  %2854 = vmatpush2.msra.mxu0 0.0
  %2855 = vmatprep.subr.mxu0 0.0
  %2856 = vmatpush2.msra.mxu0 0.0
  %2857 = vmatprep.mubr.f32.mxu0 0.0
  %2858 = vmatmul.mubr.f32.gmra.mxu0 %v2441
  %v2859 = vpop.f32.mrf.mxu0
  %v2860 = vadd.f32 %v2438, %v2859
  %v2861 = vpop.f32.mrf.mxu0
  %2862 = vdwg.mxu0
  %2863 = vmatprep.subr.mxu0 0.0
  %2864 = vmatpush1.msra.mxu0 0.0
  %2865 = vmatprep.subr.mxu0 0.0
  %2866 = vmatpush1.msra.mxu0 0.0
  %2867 = vmatprep.subr.mxu0 0.0
  %2868 = vmatpush1.msra.mxu0 0.0
  %2869 = vmatprep.subr.mxu0 0.0
  %2870 = vmatpush1.msra.mxu0 0.0
  %2871 = vmatprep.subr.mxu0 0.0
  %2872 = vmatpush1.msra.mxu0 0.0
  %2873 = vmatprep.subr.mxu0 0.0
  %2874 = vmatpush1.msra.mxu0 0.0
  %2875 = vmatprep.subr.mxu0 0.0
  %2876 = vmatpush1.msra.mxu0 0.0
  %2877 = vmatprep.subr.mxu0 0.0
  %2878 = vmatpush1.msra.mxu0 0.0
  %2879 = vmatprep.subr.mxu0 0.0
  %2880 = vmatpush1.msra.mxu0 0.0
  %2881 = vmatprep.subr.mxu0 0.0
  %2882 = vmatpush1.msra.mxu0 0.0
  %2883 = vmatprep.subr.mxu0 0.0
  %2884 = vmatpush1.msra.mxu0 0.0
  %2885 = vmatprep.subr.mxu0 0.0
  %2886 = vmatpush1.msra.mxu0 0.0
  %2887 = vmatprep.subr.mxu0 0.0
  %2888 = vmatpush1.msra.mxu0 0.0
  %2889 = vmatprep.subr.mxu0 0.0
  %2890 = vmatpush1.msra.mxu0 0.0
  %2891 = vmatprep.subr.mxu0 0.0
  %2892 = vmatpush1.msra.mxu0 %v2418
  %2893 = vmatprep.subr.mxu0 0.0
  %2894 = vmatpush1.msra.mxu0 %v2417
  %2895 = vmatprep.subr.mxu0 0.0
  %2896 = vmatpush2.msra.mxu0 0.0
  %2897 = vmatprep.subr.mxu0 0.0
  %2898 = vmatpush2.msra.mxu0 0.0
  %2899 = vmatprep.subr.mxu0 0.0
  %2900 = vmatpush2.msra.mxu0 0.0
  %2901 = vmatprep.subr.mxu0 0.0
  %2902 = vmatpush2.msra.mxu0 0.0
  %2903 = vmatprep.subr.mxu0 0.0
  %2904 = vmatpush2.msra.mxu0 0.0
  %2905 = vmatprep.subr.mxu0 0.0
  %2906 = vmatpush2.msra.mxu0 0.0
  %2907 = vmatprep.subr.mxu0 0.0
  %2908 = vmatpush2.msra.mxu0 0.0
  %2909 = vmatprep.subr.mxu0 0.0
  %2910 = vmatpush2.msra.mxu0 0.0
  %2911 = vmatprep.subr.mxu0 0.0
  %2912 = vmatpush2.msra.mxu0 0.0
  %2913 = vmatprep.subr.mxu0 0.0
  %2914 = vmatpush2.msra.mxu0 0.0
  %2915 = vmatprep.subr.mxu0 0.0
  %2916 = vmatpush2.msra.mxu0 0.0
  %2917 = vmatprep.subr.mxu0 0.0
  %2918 = vmatpush2.msra.mxu0 0.0
  %2919 = vmatprep.subr.mxu0 0.0
  %2920 = vmatpush2.msra.mxu0 0.0
  %2921 = vmatprep.subr.mxu0 0.0
  %2922 = vmatpush2.msra.mxu0 0.0
  %2923 = vmatprep.subr.mxu0 0.0
  %2924 = vmatpush2.msra.mxu0 0.0
  %2925 = vmatprep.subr.mxu0 0.0
  %2926 = vmatpush2.msra.mxu0 0.0
  %2927 = vmatprep.mubr.f32.mxu0 0.0
  %2928 = vmatmul.mubr.f32.gmra.mxu0 %v2441
  %v2929 = vpop.f32.mrf.mxu0
  %v2930 = vadd.f32 %v2438, %v2929
  %v2931 = vpop.f32.mrf.mxu0
  %2932 = vdwg.mxu0
  %2933 = vmatprep.subr.mxu0 0.0
  %2934 = vmatpush1.msra.mxu0 0.0
  %2935 = vmatprep.subr.mxu0 0.0
  %2936 = vmatpush1.msra.mxu0 0.0
  %2937 = vmatprep.subr.mxu0 0.0
  %2938 = vmatpush1.msra.mxu0 0.0
  %2939 = vmatprep.subr.mxu0 0.0
  %2940 = vmatpush1.msra.mxu0 0.0
  %2941 = vmatprep.subr.mxu0 0.0
  %2942 = vmatpush1.msra.mxu0 0.0
  %2943 = vmatprep.subr.mxu0 0.0
  %2944 = vmatpush1.msra.mxu0 0.0
  %2945 = vmatprep.subr.mxu0 0.0
  %2946 = vmatpush1.msra.mxu0 0.0
  %2947 = vmatprep.subr.mxu0 0.0
  %2948 = vmatpush1.msra.mxu0 0.0
  %2949 = vmatprep.subr.mxu0 0.0
  %2950 = vmatpush1.msra.mxu0 0.0
  %2951 = vmatprep.subr.mxu0 0.0
  %2952 = vmatpush1.msra.mxu0 0.0
  %2953 = vmatprep.subr.mxu0 0.0
  %2954 = vmatpush1.msra.mxu0 0.0
  %2955 = vmatprep.subr.mxu0 0.0
  %2956 = vmatpush1.msra.mxu0 0.0
  %2957 = vmatprep.subr.mxu0 0.0
  %2958 = vmatpush1.msra.mxu0 0.0
  %2959 = vmatprep.subr.mxu0 0.0
  %2960 = vmatpush1.msra.mxu0 0.0
  %2961 = vmatprep.subr.mxu0 0.0
  %2962 = vmatpush1.msra.mxu0 %v2420
  %2963 = vmatprep.subr.mxu0 0.0
  %2964 = vmatpush1.msra.mxu0 %v2419
  %2965 = vmatprep.subr.mxu0 0.0
  %2966 = vmatpush2.msra.mxu0 0.0
  %2967 = vmatprep.subr.mxu0 0.0
  %2968 = vmatpush2.msra.mxu0 0.0
  %2969 = vmatprep.subr.mxu0 0.0
  %2970 = vmatpush2.msra.mxu0 0.0
  %2971 = vmatprep.subr.mxu0 0.0
  %2972 = vmatpush2.msra.mxu0 0.0
  %2973 = vmatprep.subr.mxu0 0.0
  %2974 = vmatpush2.msra.mxu0 0.0
  %2975 = vmatprep.subr.mxu0 0.0
  %2976 = vmatpush2.msra.mxu0 0.0
  %2977 = vmatprep.subr.mxu0 0.0
  %2978 = vmatpush2.msra.mxu0 0.0
  %2979 = vmatprep.subr.mxu0 0.0
  %2980 = vmatpush2.msra.mxu0 0.0
  %2981 = vmatprep.subr.mxu0 0.0
  %2982 = vmatpush2.msra.mxu0 0.0
  %2983 = vmatprep.subr.mxu0 0.0
  %2984 = vmatpush2.msra.mxu0 0.0
  %2985 = vmatprep.subr.mxu0 0.0
  %2986 = vmatpush2.msra.mxu0 0.0
  %2987 = vmatprep.subr.mxu0 0.0
  %2988 = vmatpush2.msra.mxu0 0.0
  %2989 = vmatprep.subr.mxu0 0.0
  %2990 = vmatpush2.msra.mxu0 0.0
  %2991 = vmatprep.subr.mxu0 0.0
  %2992 = vmatpush2.msra.mxu0 0.0
  %2993 = vmatprep.subr.mxu0 0.0
  %2994 = vmatpush2.msra.mxu0 0.0
  %2995 = vmatprep.subr.mxu0 0.0
  %2996 = vmatpush2.msra.mxu0 0.0
  %2997 = vmatprep.mubr.f32.mxu0 0.0
  %2998 = vmatmul.mubr.f32.gmra.mxu0 %v2441
  %v2999 = vpop.f32.mrf.mxu0
  %v3000 = vadd.f32 %v2438, %v2999
  %v3001 = vpop.f32.mrf.mxu0
  %3002 = vdwg.mxu0
  %3003 = vmatprep.subr.mxu0 0.0
  %3004 = vmatpush1.msra.mxu0 0.0
  %3005 = vmatprep.subr.mxu0 0.0
  %3006 = vmatpush1.msra.mxu0 0.0
  %3007 = vmatprep.subr.mxu0 0.0
  %3008 = vmatpush1.msra.mxu0 0.0
  %3009 = vmatprep.subr.mxu0 0.0
  %3010 = vmatpush1.msra.mxu0 0.0
  %3011 = vmatprep.subr.mxu0 0.0
  %3012 = vmatpush1.msra.mxu0 0.0
  %3013 = vmatprep.subr.mxu0 0.0
  %3014 = vmatpush1.msra.mxu0 0.0
  %3015 = vmatprep.subr.mxu0 0.0
  %3016 = vmatpush1.msra.mxu0 0.0
  %3017 = vmatprep.subr.mxu0 0.0
  %3018 = vmatpush1.msra.mxu0 0.0
  %3019 = vmatprep.subr.mxu0 0.0
  %3020 = vmatpush1.msra.mxu0 0.0
  %3021 = vmatprep.subr.mxu0 0.0
  %3022 = vmatpush1.msra.mxu0 0.0
  %3023 = vmatprep.subr.mxu0 0.0
  %3024 = vmatpush1.msra.mxu0 0.0
  %3025 = vmatprep.subr.mxu0 0.0
  %3026 = vmatpush1.msra.mxu0 0.0
  %3027 = vmatprep.subr.mxu0 0.0
  %3028 = vmatpush1.msra.mxu0 0.0
  %3029 = vmatprep.subr.mxu0 0.0
  %3030 = vmatpush1.msra.mxu0 0.0
  %3031 = vmatprep.subr.mxu0 0.0
  %3032 = vmatpush1.msra.mxu0 %v2422
  %3033 = vmatprep.subr.mxu0 0.0
  %3034 = vmatpush1.msra.mxu0 %v2421
  %3035 = vmatprep.subr.mxu0 0.0
  %3036 = vmatpush2.msra.mxu0 0.0
  %3037 = vmatprep.subr.mxu0 0.0
  %3038 = vmatpush2.msra.mxu0 0.0
  %3039 = vmatprep.subr.mxu0 0.0
  %3040 = vmatpush2.msra.mxu0 0.0
  %3041 = vmatprep.subr.mxu0 0.0
  %3042 = vmatpush2.msra.mxu0 0.0
  %3043 = vmatprep.subr.mxu0 0.0
  %3044 = vmatpush2.msra.mxu0 0.0
  %3045 = vmatprep.subr.mxu0 0.0
  %3046 = vmatpush2.msra.mxu0 0.0
  %3047 = vmatprep.subr.mxu0 0.0
  %3048 = vmatpush2.msra.mxu0 0.0
  %3049 = vmatprep.subr.mxu0 0.0
  %3050 = vmatpush2.msra.mxu0 0.0
  %3051 = vmatprep.subr.mxu0 0.0
  %3052 = vmatpush2.msra.mxu0 0.0
  %3053 = vmatprep.subr.mxu0 0.0
  %3054 = vmatpush2.msra.mxu0 0.0
  %3055 = vmatprep.subr.mxu0 0.0
  %3056 = vmatpush2.msra.mxu0 0.0
  %3057 = vmatprep.subr.mxu0 0.0
  %3058 = vmatpush2.msra.mxu0 0.0
  %3059 = vmatprep.subr.mxu0 0.0
  %3060 = vmatpush2.msra.mxu0 0.0
  %3061 = vmatprep.subr.mxu0 0.0
  %3062 = vmatpush2.msra.mxu0 0.0
  %3063 = vmatprep.subr.mxu0 0.0
  %3064 = vmatpush2.msra.mxu0 0.0
  %3065 = vmatprep.subr.mxu0 0.0
  %3066 = vmatpush2.msra.mxu0 0.0
  %3067 = vmatprep.mubr.f32.mxu0 0.0
  %3068 = vmatmul.mubr.f32.gmra.mxu0 %v2441
  %v3069 = vpop.f32.mrf.mxu0
  %v3070 = vadd.f32 %v2438, %v3069
  %v3071 = vpop.f32.mrf.mxu0
  %3072 = vdwg.mxu0
  %3073 = vmatprep.subr.mxu0 0.0
  %3074 = vmatpush1.msra.mxu0 0.0
  %3075 = vmatprep.subr.mxu0 0.0
  %3076 = vmatpush1.msra.mxu0 0.0
  %3077 = vmatprep.subr.mxu0 0.0
  %3078 = vmatpush1.msra.mxu0 0.0
  %3079 = vmatprep.subr.mxu0 0.0
  %3080 = vmatpush1.msra.mxu0 0.0
  %3081 = vmatprep.subr.mxu0 0.0
  %3082 = vmatpush1.msra.mxu0 0.0
  %3083 = vmatprep.subr.mxu0 0.0
  %3084 = vmatpush1.msra.mxu0 0.0
  %3085 = vmatprep.subr.mxu0 0.0
  %3086 = vmatpush1.msra.mxu0 0.0
  %3087 = vmatprep.subr.mxu0 0.0
  %3088 = vmatpush1.msra.mxu0 0.0
  %3089 = vmatprep.subr.mxu0 0.0
  %3090 = vmatpush1.msra.mxu0 0.0
  %3091 = vmatprep.subr.mxu0 0.0
  %3092 = vmatpush1.msra.mxu0 0.0
  %3093 = vmatprep.subr.mxu0 0.0
  %3094 = vmatpush1.msra.mxu0 0.0
  %3095 = vmatprep.subr.mxu0 0.0
  %3096 = vmatpush1.msra.mxu0 0.0
  %3097 = vmatprep.subr.mxu0 0.0
  %3098 = vmatpush1.msra.mxu0 0.0
  %3099 = vmatprep.subr.mxu0 0.0
  %3100 = vmatpush1.msra.mxu0 0.0
  %3101 = vmatprep.subr.mxu0 0.0
  %3102 = vmatpush1.msra.mxu0 %v2424
  %3103 = vmatprep.subr.mxu0 0.0
  %3104 = vmatpush1.msra.mxu0 %v2423
  %3105 = vmatprep.subr.mxu0 0.0
  %3106 = vmatpush2.msra.mxu0 0.0
  %3107 = vmatprep.subr.mxu0 0.0
  %3108 = vmatpush2.msra.mxu0 0.0
  %3109 = vmatprep.subr.mxu0 0.0
  %3110 = vmatpush2.msra.mxu0 0.0
  %3111 = vmatprep.subr.mxu0 0.0
  %3112 = vmatpush2.msra.mxu0 0.0
  %3113 = vmatprep.subr.mxu0 0.0
  %3114 = vmatpush2.msra.mxu0 0.0
  %3115 = vmatprep.subr.mxu0 0.0
  %3116 = vmatpush2.msra.mxu0 0.0
  %3117 = vmatprep.subr.mxu0 0.0
  %3118 = vmatpush2.msra.mxu0 0.0
  %3119 = vmatprep.subr.mxu0 0.0
  %3120 = vmatpush2.msra.mxu0 0.0
  %3121 = vmatprep.subr.mxu0 0.0
  %3122 = vmatpush2.msra.mxu0 0.0
  %3123 = vmatprep.subr.mxu0 0.0
  %3124 = vmatpush2.msra.mxu0 0.0
  %3125 = vmatprep.subr.mxu0 0.0
  %3126 = vmatpush2.msra.mxu0 0.0
  %3127 = vmatprep.subr.mxu0 0.0
  %3128 = vmatpush2.msra.mxu0 0.0
  %3129 = vmatprep.subr.mxu0 0.0
  %3130 = vmatpush2.msra.mxu0 0.0
  %3131 = vmatprep.subr.mxu0 0.0
  %3132 = vmatpush2.msra.mxu0 0.0
  %3133 = vmatprep.subr.mxu0 0.0
  %3134 = vmatpush2.msra.mxu0 0.0
  %3135 = vmatprep.subr.mxu0 0.0
  %3136 = vmatpush2.msra.mxu0 0.0
  %3137 = vmatprep.mubr.f32.mxu0 0.0
  %3138 = vmatmul.mubr.f32.gmra.mxu0 %v2441
  %v3139 = vpop.f32.mrf.mxu0
  %v3140 = vadd.f32 %v2438, %v3139
  %v3141 = vpop.f32.mrf.mxu0
  %3142 = vdwg.mxu0
  %3143 = vmatprep.subr.mxu0 0.0
  %3144 = vmatpush1.msra.mxu0 0.0
  %3145 = vmatprep.subr.mxu0 0.0
  %3146 = vmatpush1.msra.mxu0 0.0
  %3147 = vmatprep.subr.mxu0 0.0
  %3148 = vmatpush1.msra.mxu0 0.0
  %3149 = vmatprep.subr.mxu0 0.0
  %3150 = vmatpush1.msra.mxu0 0.0
  %3151 = vmatprep.subr.mxu0 0.0
  %3152 = vmatpush1.msra.mxu0 0.0
  %3153 = vmatprep.subr.mxu0 0.0
  %3154 = vmatpush1.msra.mxu0 0.0
  %3155 = vmatprep.subr.mxu0 0.0
  %3156 = vmatpush1.msra.mxu0 0.0
  %3157 = vmatprep.subr.mxu0 0.0
  %3158 = vmatpush1.msra.mxu0 0.0
  %3159 = vmatprep.subr.mxu0 0.0
  %3160 = vmatpush1.msra.mxu0 0.0
  %3161 = vmatprep.subr.mxu0 0.0
  %3162 = vmatpush1.msra.mxu0 0.0
  %3163 = vmatprep.subr.mxu0 0.0
  %3164 = vmatpush1.msra.mxu0 0.0
  %3165 = vmatprep.subr.mxu0 0.0
  %3166 = vmatpush1.msra.mxu0 0.0
  %3167 = vmatprep.subr.mxu0 0.0
  %3168 = vmatpush1.msra.mxu0 0.0
  %3169 = vmatprep.subr.mxu0 0.0
  %3170 = vmatpush1.msra.mxu0 0.0
  %3171 = vmatprep.subr.mxu0 0.0
  %3172 = vmatpush1.msra.mxu0 %v2426
  %3173 = vmatprep.subr.mxu0 0.0
  %3174 = vmatpush1.msra.mxu0 %v2425
  %3175 = vmatprep.subr.mxu0 0.0
  %3176 = vmatpush2.msra.mxu0 0.0
  %3177 = vmatprep.subr.mxu0 0.0
  %3178 = vmatpush2.msra.mxu0 0.0
  %3179 = vmatprep.subr.mxu0 0.0
  %3180 = vmatpush2.msra.mxu0 0.0
  %3181 = vmatprep.subr.mxu0 0.0
  %3182 = vmatpush2.msra.mxu0 0.0
  %3183 = vmatprep.subr.mxu0 0.0
  %3184 = vmatpush2.msra.mxu0 0.0
  %3185 = vmatprep.subr.mxu0 0.0
  %3186 = vmatpush2.msra.mxu0 0.0
  %3187 = vmatprep.subr.mxu0 0.0
  %3188 = vmatpush2.msra.mxu0 0.0
  %3189 = vmatprep.subr.mxu0 0.0
  %3190 = vmatpush2.msra.mxu0 0.0
  %3191 = vmatprep.subr.mxu0 0.0
  %3192 = vmatpush2.msra.mxu0 0.0
  %3193 = vmatprep.subr.mxu0 0.0
  %3194 = vmatpush2.msra.mxu0 0.0
  %3195 = vmatprep.subr.mxu0 0.0
  %3196 = vmatpush2.msra.mxu0 0.0
  %3197 = vmatprep.subr.mxu0 0.0
  %3198 = vmatpush2.msra.mxu0 0.0
  %3199 = vmatprep.subr.mxu0 0.0
  %3200 = vmatpush2.msra.mxu0 0.0
  %3201 = vmatprep.subr.mxu0 0.0
  %3202 = vmatpush2.msra.mxu0 0.0
  %3203 = vmatprep.subr.mxu0 0.0
  %3204 = vmatpush2.msra.mxu0 0.0
  %3205 = vmatprep.subr.mxu0 0.0
  %3206 = vmatpush2.msra.mxu0 0.0
  %3207 = vmatprep.mubr.f32.mxu0 0.0
  %3208 = vmatmul.mubr.f32.gmra.mxu0 %v2441
  %v3209 = vpop.f32.mrf.mxu0
  %v3210 = vadd.f32 %v2438, %v3209
  %v3211 = vpop.f32.mrf.mxu0
  %3212 = vdwg.mxu0
  %3213 = vmatprep.subr.mxu0 0.0
  %3214 = vmatpush1.msra.mxu0 0.0
  %3215 = vmatprep.subr.mxu0 0.0
  %3216 = vmatpush1.msra.mxu0 0.0
  %3217 = vmatprep.subr.mxu0 0.0
  %3218 = vmatpush1.msra.mxu0 0.0
  %3219 = vmatprep.subr.mxu0 0.0
  %3220 = vmatpush1.msra.mxu0 0.0
  %3221 = vmatprep.subr.mxu0 0.0
  %3222 = vmatpush1.msra.mxu0 0.0
  %3223 = vmatprep.subr.mxu0 0.0
  %3224 = vmatpush1.msra.mxu0 0.0
  %3225 = vmatprep.subr.mxu0 0.0
  %3226 = vmatpush1.msra.mxu0 0.0
  %3227 = vmatprep.subr.mxu0 0.0
  %3228 = vmatpush1.msra.mxu0 0.0
  %3229 = vmatprep.subr.mxu0 0.0
  %3230 = vmatpush1.msra.mxu0 0.0
  %3231 = vmatprep.subr.mxu0 0.0
  %3232 = vmatpush1.msra.mxu0 0.0
  %3233 = vmatprep.subr.mxu0 0.0
  %3234 = vmatpush1.msra.mxu0 0.0
  %3235 = vmatprep.subr.mxu0 0.0
  %3236 = vmatpush1.msra.mxu0 0.0
  %3237 = vmatprep.subr.mxu0 0.0
  %3238 = vmatpush1.msra.mxu0 0.0
  %3239 = vmatprep.subr.mxu0 0.0
  %3240 = vmatpush1.msra.mxu0 0.0
  %3241 = vmatprep.subr.mxu0 0.0
  %3242 = vmatpush1.msra.mxu0 %v2428
  %3243 = vmatprep.subr.mxu0 0.0
  %3244 = vmatpush1.msra.mxu0 %v2427
  %3245 = vmatprep.subr.mxu0 0.0
  %3246 = vmatpush2.msra.mxu0 0.0
  %3247 = vmatprep.subr.mxu0 0.0
  %3248 = vmatpush2.msra.mxu0 0.0
  %3249 = vmatprep.subr.mxu0 0.0
  %3250 = vmatpush2.msra.mxu0 0.0
  %3251 = vmatprep.subr.mxu0 0.0
  %3252 = vmatpush2.msra.mxu0 0.0
  %3253 = vmatprep.subr.mxu0 0.0
  %3254 = vmatpush2.msra.mxu0 0.0
  %3255 = vmatprep.subr.mxu0 0.0
  %3256 = vmatpush2.msra.mxu0 0.0
  %3257 = vmatprep.subr.mxu0 0.0
  %3258 = vmatpush2.msra.mxu0 0.0
  %3259 = vmatprep.subr.mxu0 0.0
  %3260 = vmatpush2.msra.mxu0 0.0
  %3261 = vmatprep.subr.mxu0 0.0
  %3262 = vmatpush2.msra.mxu0 0.0
  %3263 = vmatprep.subr.mxu0 0.0
  %3264 = vmatpush2.msra.mxu0 0.0
  %3265 = vmatprep.subr.mxu0 0.0
  %3266 = vmatpush2.msra.mxu0 0.0
  %3267 = vmatprep.subr.mxu0 0.0
  %3268 = vmatpush2.msra.mxu0 0.0
  %3269 = vmatprep.subr.mxu0 0.0
  %3270 = vmatpush2.msra.mxu0 0.0
  %3271 = vmatprep.subr.mxu0 0.0
  %3272 = vmatpush2.msra.mxu0 0.0
  %3273 = vmatprep.subr.mxu0 0.0
  %3274 = vmatpush2.msra.mxu0 0.0
  %3275 = vmatprep.subr.mxu0 0.0
  %3276 = vmatpush2.msra.mxu0 0.0
  %3277 = vmatprep.mubr.f32.mxu0 0.0
  %3278 = vmatmul.mubr.f32.gmra.mxu0 %v2441
  %v3279 = vpop.f32.mrf.mxu0
  %v3280 = vadd.f32 %v2438, %v3279
  %v3281 = vpop.f32.mrf.mxu0
  %3282 = vdwg.mxu0
  %3283 = vmatprep.subr.mxu0 0.0
  %3284 = vmatpush1.msra.mxu0 0.0
  %3285 = vmatprep.subr.mxu0 0.0
  %3286 = vmatpush1.msra.mxu0 0.0
  %3287 = vmatprep.subr.mxu0 0.0
  %3288 = vmatpush1.msra.mxu0 0.0
  %3289 = vmatprep.subr.mxu0 0.0
  %3290 = vmatpush1.msra.mxu0 0.0
  %3291 = vmatprep.subr.mxu0 0.0
  %3292 = vmatpush1.msra.mxu0 0.0
  %3293 = vmatprep.subr.mxu0 0.0
  %3294 = vmatpush1.msra.mxu0 0.0
  %3295 = vmatprep.subr.mxu0 0.0
  %3296 = vmatpush1.msra.mxu0 0.0
  %3297 = vmatprep.subr.mxu0 0.0
  %3298 = vmatpush1.msra.mxu0 0.0
  %3299 = vmatprep.subr.mxu0 0.0
  %3300 = vmatpush1.msra.mxu0 0.0
  %3301 = vmatprep.subr.mxu0 0.0
  %3302 = vmatpush1.msra.mxu0 0.0
  %3303 = vmatprep.subr.mxu0 0.0
  %3304 = vmatpush1.msra.mxu0 0.0
  %3305 = vmatprep.subr.mxu0 0.0
  %3306 = vmatpush1.msra.mxu0 0.0
  %3307 = vmatprep.subr.mxu0 0.0
  %3308 = vmatpush1.msra.mxu0 0.0
  %3309 = vmatprep.subr.mxu0 0.0
  %3310 = vmatpush1.msra.mxu0 0.0
  %3311 = vmatprep.subr.mxu0 0.0
  %3312 = vmatpush1.msra.mxu0 %v2430
  %3313 = vmatprep.subr.mxu0 0.0
  %3314 = vmatpush1.msra.mxu0 %v2429
  %3315 = vmatprep.subr.mxu0 0.0
  %3316 = vmatpush2.msra.mxu0 0.0
  %3317 = vmatprep.subr.mxu0 0.0
  %3318 = vmatpush2.msra.mxu0 0.0
  %3319 = vmatprep.subr.mxu0 0.0
  %3320 = vmatpush2.msra.mxu0 0.0
  %3321 = vmatprep.subr.mxu0 0.0
  %3322 = vmatpush2.msra.mxu0 0.0
  %3323 = vmatprep.subr.mxu0 0.0
  %3324 = vmatpush2.msra.mxu0 0.0
  %3325 = vmatprep.subr.mxu0 0.0
  %3326 = vmatpush2.msra.mxu0 0.0
  %3327 = vmatprep.subr.mxu0 0.0
  %3328 = vmatpush2.msra.mxu0 0.0
  %3329 = vmatprep.subr.mxu0 0.0
  %3330 = vmatpush2.msra.mxu0 0.0
  %3331 = vmatprep.subr.mxu0 0.0
  %3332 = vmatpush2.msra.mxu0 0.0
  %3333 = vmatprep.subr.mxu0 0.0
  %3334 = vmatpush2.msra.mxu0 0.0
  %3335 = vmatprep.subr.mxu0 0.0
  %3336 = vmatpush2.msra.mxu0 0.0
  %3337 = vmatprep.subr.mxu0 0.0
  %3338 = vmatpush2.msra.mxu0 0.0
  %3339 = vmatprep.subr.mxu0 0.0
  %3340 = vmatpush2.msra.mxu0 0.0
  %3341 = vmatprep.subr.mxu0 0.0
  %3342 = vmatpush2.msra.mxu0 0.0
  %3343 = vmatprep.subr.mxu0 0.0
  %3344 = vmatpush2.msra.mxu0 0.0
  %3345 = vmatprep.subr.mxu0 0.0
  %3346 = vmatpush2.msra.mxu0 0.0
  %3347 = vmatprep.mubr.f32.mxu0 0.0
  %3348 = vmatmul.mubr.f32.gmra.mxu0 %v2441
  %v3349 = vpop.f32.mrf.mxu0
  %v3350 = vadd.f32 %v2438, %v3349
  %v3351 = vpop.f32.mrf.mxu0
  %3352 = vdwg.mxu0
  %3353 = vmatprep.subr.mxu0 0.0
  %3354 = vmatpush1.msra.mxu0 0.0
  %3355 = vmatprep.subr.mxu0 0.0
  %3356 = vmatpush1.msra.mxu0 0.0
  %3357 = vmatprep.subr.mxu0 0.0
  %3358 = vmatpush1.msra.mxu0 0.0
  %3359 = vmatprep.subr.mxu0 0.0
  %3360 = vmatpush1.msra.mxu0 0.0
  %3361 = vmatprep.subr.mxu0 0.0
  %3362 = vmatpush1.msra.mxu0 0.0
  %3363 = vmatprep.subr.mxu0 0.0
  %3364 = vmatpush1.msra.mxu0 0.0
  %3365 = vmatprep.subr.mxu0 0.0
  %3366 = vmatpush1.msra.mxu0 0.0
  %3367 = vmatprep.subr.mxu0 0.0
  %3368 = vmatpush1.msra.mxu0 0.0
  %3369 = vmatprep.subr.mxu0 0.0
  %3370 = vmatpush1.msra.mxu0 0.0
  %3371 = vmatprep.subr.mxu0 0.0
  %3372 = vmatpush1.msra.mxu0 0.0
  %3373 = vmatprep.subr.mxu0 0.0
  %3374 = vmatpush1.msra.mxu0 0.0
  %3375 = vmatprep.subr.mxu0 0.0
  %3376 = vmatpush1.msra.mxu0 0.0
  %3377 = vmatprep.subr.mxu0 0.0
  %3378 = vmatpush1.msra.mxu0 0.0
  %3379 = vmatprep.subr.mxu0 0.0
  %3380 = vmatpush1.msra.mxu0 0.0
  %3381 = vmatprep.subr.mxu0 0.0
  %3382 = vmatpush1.msra.mxu0 %v2432
  %3383 = vmatprep.subr.mxu0 0.0
  %3384 = vmatpush1.msra.mxu0 %v2431
  %3385 = vmatprep.subr.mxu0 0.0
  %3386 = vmatpush2.msra.mxu0 0.0
  %3387 = vmatprep.subr.mxu0 0.0
  %3388 = vmatpush2.msra.mxu0 0.0
  %3389 = vmatprep.subr.mxu0 0.0
  %3390 = vmatpush2.msra.mxu0 0.0
  %3391 = vmatprep.subr.mxu0 0.0
  %3392 = vmatpush2.msra.mxu0 0.0
  %3393 = vmatprep.subr.mxu0 0.0
  %3394 = vmatpush2.msra.mxu0 0.0
  %3395 = vmatprep.subr.mxu0 0.0
  %3396 = vmatpush2.msra.mxu0 0.0
  %3397 = vmatprep.subr.mxu0 0.0
  %3398 = vmatpush2.msra.mxu0 0.0
  %3399 = vmatprep.subr.mxu0 0.0
  %3400 = vmatpush2.msra.mxu0 0.0
  %3401 = vmatprep.subr.mxu0 0.0
  %3402 = vmatpush2.msra.mxu0 0.0
  %3403 = vmatprep.subr.mxu0 0.0
  %3404 = vmatpush2.msra.mxu0 0.0
  %3405 = vmatprep.subr.mxu0 0.0
  %3406 = vmatpush2.msra.mxu0 0.0
  %3407 = vmatprep.subr.mxu0 0.0
  %3408 = vmatpush2.msra.mxu0 0.0
  %3409 = vmatprep.subr.mxu0 0.0
  %3410 = vmatpush2.msra.mxu0 0.0
  %3411 = vmatprep.subr.mxu0 0.0
  %3412 = vmatpush2.msra.mxu0 0.0
  %3413 = vmatprep.subr.mxu0 0.0
  %3414 = vmatpush2.msra.mxu0 0.0
  %3415 = vmatprep.subr.mxu0 0.0
  %3416 = vmatpush2.msra.mxu0 0.0
  %3417 = vmatprep.mubr.f32.mxu0 0.0
  %3418 = vmatmul.mubr.f32.gmra.mxu0 %v2441
  %v3419 = vpop.f32.mrf.mxu0
  %v3420 = vadd.f32 %v2438, %v3419
  %v3421 = vpop.f32.mrf.mxu0
  %3422 = vdwg.mxu0
  %3423 = vmatprep.subr.mxu0 0.0
  %3424 = vmatpush1.msra.mxu0 0.0
  %3425 = vmatprep.subr.mxu0 0.0
  %3426 = vmatpush1.msra.mxu0 0.0
  %3427 = vmatprep.subr.mxu0 0.0
  %3428 = vmatpush1.msra.mxu0 0.0
  %3429 = vmatprep.subr.mxu0 0.0
  %3430 = vmatpush1.msra.mxu0 0.0
  %3431 = vmatprep.subr.mxu0 0.0
  %3432 = vmatpush1.msra.mxu0 0.0
  %3433 = vmatprep.subr.mxu0 0.0
  %3434 = vmatpush1.msra.mxu0 0.0
  %3435 = vmatprep.subr.mxu0 0.0
  %3436 = vmatpush1.msra.mxu0 0.0
  %3437 = vmatprep.subr.mxu0 0.0
  %3438 = vmatpush1.msra.mxu0 0.0
  %3439 = vmatprep.subr.mxu0 0.0
  %3440 = vmatpush1.msra.mxu0 0.0
  %3441 = vmatprep.subr.mxu0 0.0
  %3442 = vmatpush1.msra.mxu0 0.0
  %3443 = vmatprep.subr.mxu0 0.0
  %3444 = vmatpush1.msra.mxu0 0.0
  %3445 = vmatprep.subr.mxu0 0.0
  %3446 = vmatpush1.msra.mxu0 0.0
  %3447 = vmatprep.subr.mxu0 0.0
  %3448 = vmatpush1.msra.mxu0 0.0
  %3449 = vmatprep.subr.mxu0 0.0
  %3450 = vmatpush1.msra.mxu0 0.0
  %3451 = vmatprep.subr.mxu0 0.0
  %3452 = vmatpush1.msra.mxu0 %v2434
  %3453 = vmatprep.subr.mxu0 0.0
  %3454 = vmatpush1.msra.mxu0 %v2433
  %3455 = vmatprep.subr.mxu0 0.0
  %3456 = vmatpush2.msra.mxu0 0.0
  %3457 = vmatprep.subr.mxu0 0.0
  %3458 = vmatpush2.msra.mxu0 0.0
  %3459 = vmatprep.subr.mxu0 0.0
  %3460 = vmatpush2.msra.mxu0 0.0
  %3461 = vmatprep.subr.mxu0 0.0
  %3462 = vmatpush2.msra.mxu0 0.0
  %3463 = vmatprep.subr.mxu0 0.0
  %3464 = vmatpush2.msra.mxu0 0.0
  %3465 = vmatprep.subr.mxu0 0.0
  %3466 = vmatpush2.msra.mxu0 0.0
  %3467 = vmatprep.subr.mxu0 0.0
  %3468 = vmatpush2.msra.mxu0 0.0
  %3469 = vmatprep.subr.mxu0 0.0
  %3470 = vmatpush2.msra.mxu0 0.0
  %3471 = vmatprep.subr.mxu0 0.0
  %3472 = vmatpush2.msra.mxu0 0.0
  %3473 = vmatprep.subr.mxu0 0.0
  %3474 = vmatpush2.msra.mxu0 0.0
  %3475 = vmatprep.subr.mxu0 0.0
  %3476 = vmatpush2.msra.mxu0 0.0
  %3477 = vmatprep.subr.mxu0 0.0
  %3478 = vmatpush2.msra.mxu0 0.0
  %3479 = vmatprep.subr.mxu0 0.0
  %3480 = vmatpush2.msra.mxu0 0.0
  %3481 = vmatprep.subr.mxu0 0.0
  %3482 = vmatpush2.msra.mxu0 0.0
  %3483 = vmatprep.subr.mxu0 0.0
  %3484 = vmatpush2.msra.mxu0 0.0
  %3485 = vmatprep.subr.mxu0 0.0
  %3486 = vmatpush2.msra.mxu0 0.0
  %3487 = vmatprep.mubr.f32.mxu0 0.0
  %3488 = vmatmul.mubr.f32.gmra.mxu0 %v2441
  %v3489 = vpop.f32.mrf.mxu0
  %v3490 = vadd.f32 %v2438, %v3489
  %v3491 = vpop.f32.mrf.mxu0
  %3492 = vdwg.mxu0
  %3493 = vmatprep.subr.mxu0 0.0
  %3494 = vmatpush1.msra.mxu0 0.0
  %3495 = vmatprep.subr.mxu0 0.0
  %3496 = vmatpush1.msra.mxu0 0.0
  %3497 = vmatprep.subr.mxu0 0.0
  %3498 = vmatpush1.msra.mxu0 0.0
  %3499 = vmatprep.subr.mxu0 0.0
  %3500 = vmatpush1.msra.mxu0 0.0
  %3501 = vmatprep.subr.mxu0 0.0
  %3502 = vmatpush1.msra.mxu0 0.0
  %3503 = vmatprep.subr.mxu0 0.0
  %3504 = vmatpush1.msra.mxu0 0.0
  %3505 = vmatprep.subr.mxu0 0.0
  %3506 = vmatpush1.msra.mxu0 0.0
  %3507 = vmatprep.subr.mxu0 0.0
  %3508 = vmatpush1.msra.mxu0 0.0
  %3509 = vmatprep.subr.mxu0 0.0
  %3510 = vmatpush1.msra.mxu0 0.0
  %3511 = vmatprep.subr.mxu0 0.0
  %3512 = vmatpush1.msra.mxu0 0.0
  %3513 = vmatprep.subr.mxu0 0.0
  %3514 = vmatpush1.msra.mxu0 0.0
  %3515 = vmatprep.subr.mxu0 0.0
  %3516 = vmatpush1.msra.mxu0 0.0
  %3517 = vmatprep.subr.mxu0 0.0
  %3518 = vmatpush1.msra.mxu0 0.0
  %3519 = vmatprep.subr.mxu0 0.0
  %3520 = vmatpush1.msra.mxu0 0.0
  %3521 = vmatprep.subr.mxu0 0.0
  %3522 = vmatpush1.msra.mxu0 %v2436
  %3523 = vmatprep.subr.mxu0 0.0
  %3524 = vmatpush1.msra.mxu0 %v2435
  %3525 = vmatprep.subr.mxu0 0.0
  %3526 = vmatpush2.msra.mxu0 0.0
  %3527 = vmatprep.subr.mxu0 0.0
  %3528 = vmatpush2.msra.mxu0 0.0
  %3529 = vmatprep.subr.mxu0 0.0
  %3530 = vmatpush2.msra.mxu0 0.0
  %3531 = vmatprep.subr.mxu0 0.0
  %3532 = vmatpush2.msra.mxu0 0.0
  %3533 = vmatprep.subr.mxu0 0.0
  %3534 = vmatpush2.msra.mxu0 0.0
  %3535 = vmatprep.subr.mxu0 0.0
  %3536 = vmatpush2.msra.mxu0 0.0
  %3537 = vmatprep.subr.mxu0 0.0
  %3538 = vmatpush2.msra.mxu0 0.0
  %3539 = vmatprep.subr.mxu0 0.0
  %3540 = vmatpush2.msra.mxu0 0.0
  %3541 = vmatprep.subr.mxu0 0.0
  %3542 = vmatpush2.msra.mxu0 0.0
  %3543 = vmatprep.subr.mxu0 0.0
  %3544 = vmatpush2.msra.mxu0 0.0
  %3545 = vmatprep.subr.mxu0 0.0
  %3546 = vmatpush2.msra.mxu0 0.0
  %3547 = vmatprep.subr.mxu0 0.0
  %3548 = vmatpush2.msra.mxu0 0.0
  %3549 = vmatprep.subr.mxu0 0.0
  %3550 = vmatpush2.msra.mxu0 0.0
  %3551 = vmatprep.subr.mxu0 0.0
  %3552 = vmatpush2.msra.mxu0 0.0
  %3553 = vmatprep.subr.mxu0 0.0
  %3554 = vmatpush2.msra.mxu0 0.0
  %3555 = vmatprep.subr.mxu0 0.0
  %3556 = vmatpush2.msra.mxu0 0.0
  %3557 = vmatprep.mubr.f32.mxu0 0.0
  %3558 = vmatmul.mubr.f32.gmra.mxu0 %v2441
  %v3559 = vpop.f32.mrf.mxu0
  %v3560 = vadd.f32 %v2438, %v3559
  %v3561 = vpop.f32.mrf.mxu0
  %3562 = vdwg.mxu0
  %3563 = vst.msk [vmem:[%s7] sm:$0xff] %vm44, %v2510
  %3564 = vst.msk [vmem:[%s7 + $0x8] sm:$0xff] %vm44, %v2580
  %3565 = vst.msk [vmem:[%s7 + $0x10] sm:$0xff] %vm44, %v2650
  %3566 = vst.msk [vmem:[%s7 + $0x18] sm:$0xff] %vm44, %v2720
  %3567 = vst.msk [vmem:[%s7 + $0x20] sm:$0xff] %vm44, %v2790
  %3568 = vst.msk [vmem:[%s7 + $0x28] sm:$0xff] %vm44, %v2860
  %3569 = vst.msk [vmem:[%s7 + $0x30] sm:$0xff] %vm44, %v2930
  %3570 = vst.msk [vmem:[%s7 + $0x38] sm:$0xff] %vm44, %v3000
  %3571 = vst.msk [vmem:[%s7 + $0x40] sm:$0xff] %vm44, %v3070
  %3572 = vst.msk [vmem:[%s7 + $0x48] sm:$0xff] %vm44, %v3140
  %3573 = vst.msk [vmem:[%s7 + $0x50] sm:$0xff] %vm44, %v3210
  %3574 = vst.msk [vmem:[%s7 + $0x58] sm:$0xff] %vm44, %v3280
  %3575 = vst.msk [vmem:[%s7 + $0x60] sm:$0xff] %vm44, %v3350
  %3576 = vst.msk [vmem:[%s7 + $0x68] sm:$0xff] %vm44, %v3420
  %3577 = vst.msk [vmem:[%s7 + $0x70] sm:$0xff] %vm44, %v3490
  %3578 = vst.msk [vmem:[%s7 + $0x78] sm:$0xff] %vm44, %v3560
  // Predicated region
  $region30: #{mixer_forward.2} parent=0 // pred_check
    _
  $region31: #{mixer_forward.2} parent=0 // pred_check_branch
    %3580 = sbr.rel (0) target = $region33
  $region32: #{mixer_forward.2} parent=0 // pred_region
    _
  $region33: #{mixer_forward.2} parent=0 // pred_fallthru
    _
  // Predicated region
  $region34: #{mixer_forward.2} parent=0 // pred_check
    _
  $region35: #{mixer_forward.2} parent=0 // pred_check_branch
    %3582 = sbr.rel (0) target = $region37
  $region36: #{mixer_forward.2} parent=0 // pred_region
    _
  $region37: #{mixer_forward.2} parent=0 // pred_fallthru
    _

// kernel: mixer_forward.3
$region0: #{mixer_forward.3}
  #allocation0 [shape = 'u32[]', space=smem, size = 0x4, offset = 0x4, fixed_abs, tag = 'smem constant byte address 0x4 - core index']
  #allocation1 [shape = 'u32[144,128]{1,0:T(1,128)}', space=vmem, size = 0x12000, scoped, tag = 'internal scratch']
  %s0 = inlined_call_operand.vmem [shape: f32[16,8,32], index: 0, kind: input, shape index: {}]
  %s1 = inlined_call_operand.vmem [shape: f32[16,8,32], index: 1, kind: input, shape index: {}]
  %s2 = inlined_call_operand.vmem [shape: f32[1,32], index: 2, kind: input, shape index: {}]
  %s3 = inlined_call_operand.vmem [shape: f32[1,32], index: 3, kind: input, shape index: {}]
  %s4 = inlined_call_operand.vmem [shape: f32[16,8], index: 4, kind: input, shape index: {}]
  %s5 = inlined_call_operand.vmem [shape: f32[16,32], index: 5, kind: input, shape index: {}]
  %s6 = inlined_call_operand.vmem [shape: f32[8,16], index: 6, kind: input, shape index: {}]
  %s7 = inlined_call_operand.vmem [shape: f32[8,32], index: 7, kind: input, shape index: {}]
  %s8 = inlined_call_operand.vmem [shape: f32[64,32], index: 8, kind: input, shape index: {}]
  %s9 = inlined_call_operand.vmem [shape: f32[1,64], index: 9, kind: input, shape index: {}]
  %s10 = inlined_call_operand.vmem [shape: f32[32,64], index: 10, kind: input, shape index: {}]
  %s11 = inlined_call_operand.vmem [shape: f32[1,32], index: 11, kind: input, shape index: {}]
  %s12 = inlined_call_operand.hbm [shape: f32[16,8,32], index: 12, kind: output, shape index: {}]
  %s13 = sld [smem:[#allocation0]]
  $region58: #{mixer_forward.3} parent=0
    _
  %s15 = ssub.s32 1, %s13
  %s16 = scalar_select 0, %s15, %s13
  $region1: #{mixer_forward.3} parent=0
    #allocation2 [shape = 'u8[65536]{0}', space=vmem, size = 0x10000, scoped, tag = 'output window, operand 0, single buffered']
    #allocation3 [shape = 's32[1]{0}', space=sflag, size = 0x4, scoped, tag = 'scoped memory for mixer_forward.3']
    %17 = vsyncpa [#allocation3], 0
    // Predicated region
    $region2: #{mixer_forward.3} parent=1 // pred_check
      _
    $region3: #{mixer_forward.3} parent=1 // pred_check_branch
      %19 = sbr.rel (0) target = $region5
    $region4: #{mixer_forward.3} parent=1 // pred_region
      _
    $region5: #{mixer_forward.3} parent=1 // pred_fallthru
      _
    // Predicated region
    $region6: #{mixer_forward.3} parent=1 // pred_check
      _
    $region7: #{mixer_forward.3} parent=1 // pred_check_branch
      %21 = sbr.rel (0) target = $region9
    $region8: #{mixer_forward.3} parent=1 // pred_region
      _
    $region9: #{mixer_forward.3} parent=1 // pred_fallthru
      _
    // Predicated region
    $region10: #{mixer_forward.3} parent=1 // pred_check
      _
    $region11: #{mixer_forward.3} parent=1 // pred_check_branch
      %23 = sbr.rel (0) target = $region13
    $region12: #{mixer_forward.3} parent=1 // pred_region
      _
    $region13: #{mixer_forward.3} parent=1 // pred_fallthru
      _
    // Predicated region
    $region14: #{mixer_forward.3} parent=1 // pred_check
      _
    $region15: #{mixer_forward.3} parent=1 // pred_check_branch
      %25 = sbr.rel (0) target = $region17
    $region16: #{mixer_forward.3} parent=1 // pred_region
      _
    $region17: #{mixer_forward.3} parent=1 // pred_fallthru
      _
    // Predicated region
    $region18: #{mixer_forward.3} parent=1 // pred_check
      _
    $region19: #{mixer_forward.3} parent=1 // pred_check_branch
      %27 = sbr.rel (0) target = $region21
    $region20: #{mixer_forward.3} parent=1 // pred_region
      _
    $region21: #{mixer_forward.3} parent=1 // pred_fallthru
      _
    // Predicated region
    $region22: #{mixer_forward.3} parent=1 // pred_check
      _
    $region23: #{mixer_forward.3} parent=1 // pred_check_branch
      %29 = sbr.rel (0) target = $region25
    $region24: #{mixer_forward.3} parent=1 // pred_region
      _
    $region25: #{mixer_forward.3} parent=1 // pred_fallthru
      _
    // Predicated region
    $region26: #{mixer_forward.3} parent=1 // pred_check
      _
    $region27: #{mixer_forward.3} parent=1 // pred_check_branch
      %31 = sbr.rel (0) target = $region29
    $region28: #{mixer_forward.3} parent=1 // pred_region
      _
    $region29: #{mixer_forward.3} parent=1 // pred_fallthru
      _
    // Predicated region
    $region30: #{mixer_forward.3} parent=1 // pred_check
      _
    $region31: #{mixer_forward.3} parent=1 // pred_check_branch
      %33 = sbr.rel (0) target = $region33
    $region32: #{mixer_forward.3} parent=1 // pred_region
      _
    $region33: #{mixer_forward.3} parent=1 // pred_fallthru
      _
    // Predicated region
    $region34: #{mixer_forward.3} parent=1 // pred_check
      _
    $region35: #{mixer_forward.3} parent=1 // pred_check_branch
      %35 = sbr.rel (0) target = $region37
    $region36: #{mixer_forward.3} parent=1 // pred_region
      _
    $region37: #{mixer_forward.3} parent=1 // pred_fallthru
      _
    // Predicated region
    $region38: #{mixer_forward.3} parent=1 // pred_check
      _
    $region39: #{mixer_forward.3} parent=1 // pred_check_branch
      %37 = sbr.rel (0) target = $region41
    $region40: #{mixer_forward.3} parent=1 // pred_region
      _
    $region41: #{mixer_forward.3} parent=1 // pred_fallthru
      _
    // Predicated region
    $region42: #{mixer_forward.3} parent=1 // pred_check
      _
    $region43: #{mixer_forward.3} parent=1 // pred_check_branch
      %39 = sbr.rel (0) target = $region45
    $region44: #{mixer_forward.3} parent=1 // pred_region
      _
    $region45: #{mixer_forward.3} parent=1 // pred_fallthru
      _
    // Predicated region
    $region46: #{mixer_forward.3} parent=1 // pred_check
      _
    $region47: #{mixer_forward.3} parent=1 // pred_check_branch
      %41 = sbr.rel (0) target = $region49
    $region48: #{mixer_forward.3} parent=1 // pred_region
      _
    $region49: #{mixer_forward.3} parent=1 // pred_fallthru
      _
    %v42 = vld [vmem:[%s0] sm:$0xff]
    %v43 = vld [vmem:[%s0 + $0x8] sm:$0xff]
    %v44 = vld [vmem:[%s0 + $0x10] sm:$0xff]
    %v45 = vld [vmem:[%s0 + $0x18] sm:$0xff]
    %v46 = vld [vmem:[%s0 + $0x20] sm:$0xff]
    %v47 = vld [vmem:[%s0 + $0x28] sm:$0xff]
    %v48 = vld [vmem:[%s0 + $0x30] sm:$0xff]
    %v49 = vld [vmem:[%s0 + $0x38] sm:$0xff]
    %v50 = vld [vmem:[%s0 + $0x40] sm:$0xff]
    %v51 = vld [vmem:[%s0 + $0x48] sm:$0xff]
    %v52 = vld [vmem:[%s0 + $0x50] sm:$0xff]
    %v53 = vld [vmem:[%s0 + $0x58] sm:$0xff]
    %v54 = vld [vmem:[%s0 + $0x60] sm:$0xff]
    %v55 = vld [vmem:[%s0 + $0x68] sm:$0xff]
    %v56 = vld [vmem:[%s0 + $0x70] sm:$0xff]
    %v57 = vld [vmem:[%s0 + $0x78] sm:$0xff]
    %v58 = vld [vmem:[%s1] sm:$0xff]
    %v59 = vld [vmem:[%s1 + $0x8] sm:$0xff]
    %v60 = vld [vmem:[%s1 + $0x10] sm:$0xff]
    %v61 = vld [vmem:[%s1 + $0x18] sm:$0xff]
    %v62 = vld [vmem:[%s1 + $0x20] sm:$0xff]
    %v63 = vld [vmem:[%s1 + $0x28] sm:$0xff]
    %v64 = vld [vmem:[%s1 + $0x30] sm:$0xff]
    %v65 = vld [vmem:[%s1 + $0x38] sm:$0xff]
    %v66 = vld [vmem:[%s1 + $0x40] sm:$0xff]
    %v67 = vld [vmem:[%s1 + $0x48] sm:$0xff]
    %v68 = vld [vmem:[%s1 + $0x50] sm:$0xff]
    %v69 = vld [vmem:[%s1 + $0x58] sm:$0xff]
    %v70 = vld [vmem:[%s1 + $0x60] sm:$0xff]
    %v71 = vld [vmem:[%s1 + $0x68] sm:$0xff]
    %v72 = vld [vmem:[%s1 + $0x70] sm:$0xff]
    %v73 = vld [vmem:[%s1 + $0x78] sm:$0xff]
    %v74 = vld [vmem:[%s4] sm:$0xff]
    %v75 = vld [vmem:[%s4 + $0x8] sm:$0xff]
    %v76 = vld [vmem:[%s5] sm:$0xff]
    %v77 = vld [vmem:[%s5 + $0x8] sm:$0xff]
    %vm78 = vcmask 64512
    %v80 = vsel %vm78, %v74, 0
    %v83 = vsel %vm78, %v75, 0
    %85 = vmatprep.subr.mxu0 0.0
    %86 = vmatpush1.msra.mxu0 0.0
    %87 = vmatprep.subr.mxu0 0.0
    %88 = vmatpush1.msra.mxu0 0.0
    %89 = vmatprep.subr.mxu0 0.0
    %90 = vmatpush1.msra.mxu0 0.0
    %91 = vmatprep.subr.mxu0 0.0
    %92 = vmatpush1.msra.mxu0 0.0
    %93 = vmatprep.subr.mxu0 0.0
    %94 = vmatpush1.msra.mxu0 0.0
    %95 = vmatprep.subr.mxu0 0.0
    %96 = vmatpush1.msra.mxu0 0.0
    %97 = vmatprep.subr.mxu0 0.0
    %98 = vmatpush1.msra.mxu0 0.0
    %99 = vmatprep.subr.mxu0 0.0
    %100 = vmatpush1.msra.mxu0 0.0
    %101 = vmatprep.subr.mxu0 0.0
    %102 = vmatpush1.msra.mxu0 0.0
    %103 = vmatprep.subr.mxu0 0.0
    %104 = vmatpush1.msra.mxu0 0.0
    %105 = vmatprep.subr.mxu0 0.0
    %106 = vmatpush1.msra.mxu0 0.0
    %107 = vmatprep.subr.mxu0 0.0
    %108 = vmatpush1.msra.mxu0 0.0
    %109 = vmatprep.subr.mxu0 0.0
    %110 = vmatpush1.msra.mxu0 0.0
    %111 = vmatprep.subr.mxu0 0.0
    %112 = vmatpush1.msra.mxu0 0.0
    %113 = vmatprep.subr.mxu0 0.0
    %114 = vmatpush1.msra.mxu0 0.0
    %115 = vmatprep.subr.mxu0 0.0
    %116 = vmatpush1.msra.mxu0 %v58
    %117 = vmatprep.subr.mxu0 0.0
    %118 = vmatpush2.msra.mxu0 0.0
    %119 = vmatprep.subr.mxu0 0.0
    %120 = vmatpush2.msra.mxu0 0.0
    %121 = vmatprep.subr.mxu0 0.0
    %122 = vmatpush2.msra.mxu0 0.0
    %123 = vmatprep.subr.mxu0 0.0
    %124 = vmatpush2.msra.mxu0 0.0
    %125 = vmatprep.subr.mxu0 0.0
    %126 = vmatpush2.msra.mxu0 0.0
    %127 = vmatprep.subr.mxu0 0.0
    %128 = vmatpush2.msra.mxu0 0.0
    %129 = vmatprep.subr.mxu0 0.0
    %130 = vmatpush2.msra.mxu0 0.0
    %131 = vmatprep.subr.mxu0 0.0
    %132 = vmatpush2.msra.mxu0 0.0
    %133 = vmatprep.subr.mxu0 0.0
    %134 = vmatpush2.msra.mxu0 0.0
    %135 = vmatprep.subr.mxu0 0.0
    %136 = vmatpush2.msra.mxu0 0.0
    %137 = vmatprep.subr.mxu0 0.0
    %138 = vmatpush2.msra.mxu0 0.0
    %139 = vmatprep.subr.mxu0 0.0
    %140 = vmatpush2.msra.mxu0 0.0
    %141 = vmatprep.subr.mxu0 0.0
    %142 = vmatpush2.msra.mxu0 0.0
    %143 = vmatprep.subr.mxu0 0.0
    %144 = vmatpush2.msra.mxu0 0.0
    %145 = vmatprep.subr.mxu0 0.0
    %146 = vmatpush2.msra.mxu0 0.0
    %147 = vmatprep.subr.mxu0 0.0
    %148 = vmatpush2.msra.mxu0 0.0
    %149 = vmatprep.mubr.f32.mxu0 0.0
    %150 = vmatmul.mubr.f32.gmra.mxu0 %v80
    %v151 = vpop.f32.mrf.mxu0
    %v152 = vadd.f32 %v76, %v151
    %v153 = vpop.f32.mrf.mxu0
    %154 = vmatprep.mubr.f32.mxu0 0.0
    %155 = vmatmul.mubr.f32.gmra.mxu0 %v83
    %v156 = vpop.f32.mrf.mxu0
    %v157 = vadd.f32 %v77, %v156
    %v158 = vpop.f32.mrf.mxu0
    %159 = vdwg.mxu0
    %160 = vmatprep.subr.mxu0 0.0
    %161 = vmatpush1.msra.mxu0 0.0
    %162 = vmatprep.subr.mxu0 0.0
    %163 = vmatpush1.msra.mxu0 0.0
    %164 = vmatprep.subr.mxu0 0.0
    %165 = vmatpush1.msra.mxu0 0.0
    %166 = vmatprep.subr.mxu0 0.0
    %167 = vmatpush1.msra.mxu0 0.0
    %168 = vmatprep.subr.mxu0 0.0
    %169 = vmatpush1.msra.mxu0 0.0
    %170 = vmatprep.subr.mxu0 0.0
    %171 = vmatpush1.msra.mxu0 0.0
    %172 = vmatprep.subr.mxu0 0.0
    %173 = vmatpush1.msra.mxu0 0.0
    %174 = vmatprep.subr.mxu0 0.0
    %175 = vmatpush1.msra.mxu0 0.0
    %176 = vmatprep.subr.mxu0 0.0
    %177 = vmatpush1.msra.mxu0 0.0
    %178 = vmatprep.subr.mxu0 0.0
    %179 = vmatpush1.msra.mxu0 0.0
    %180 = vmatprep.subr.mxu0 0.0
    %181 = vmatpush1.msra.mxu0 0.0
    %182 = vmatprep.subr.mxu0 0.0
    %183 = vmatpush1.msra.mxu0 0.0
    %184 = vmatprep.subr.mxu0 0.0
    %185 = vmatpush1.msra.mxu0 0.0
    %186 = vmatprep.subr.mxu0 0.0
    %187 = vmatpush1.msra.mxu0 0.0
    %188 = vmatprep.subr.mxu0 0.0
    %189 = vmatpush1.msra.mxu0 0.0
    %190 = vmatprep.subr.mxu0 0.0
    %191 = vmatpush1.msra.mxu0 %v59
    %192 = vmatprep.subr.mxu0 0.0
    %193 = vmatpush2.msra.mxu0 0.0
    %194 = vmatprep.subr.mxu0 0.0
    %195 = vmatpush2.msra.mxu0 0.0
    %196 = vmatprep.subr.mxu0 0.0
    %197 = vmatpush2.msra.mxu0 0.0
    %198 = vmatprep.subr.mxu0 0.0
    %199 = vmatpush2.msra.mxu0 0.0
    %200 = vmatprep.subr.mxu0 0.0
    %201 = vmatpush2.msra.mxu0 0.0
    %202 = vmatprep.subr.mxu0 0.0
    %203 = vmatpush2.msra.mxu0 0.0
    %204 = vmatprep.subr.mxu0 0.0
    %205 = vmatpush2.msra.mxu0 0.0
    %206 = vmatprep.subr.mxu0 0.0
    %207 = vmatpush2.msra.mxu0 0.0
    %208 = vmatprep.subr.mxu0 0.0
    %209 = vmatpush2.msra.mxu0 0.0
    %210 = vmatprep.subr.mxu0 0.0
    %211 = vmatpush2.msra.mxu0 0.0
    %212 = vmatprep.subr.mxu0 0.0
    %213 = vmatpush2.msra.mxu0 0.0
    %214 = vmatprep.subr.mxu0 0.0
    %215 = vmatpush2.msra.mxu0 0.0
    %216 = vmatprep.subr.mxu0 0.0
    %217 = vmatpush2.msra.mxu0 0.0
    %218 = vmatprep.subr.mxu0 0.0
    %219 = vmatpush2.msra.mxu0 0.0
    %220 = vmatprep.subr.mxu0 0.0
    %221 = vmatpush2.msra.mxu0 0.0
    %222 = vmatprep.subr.mxu0 0.0
    %223 = vmatpush2.msra.mxu0 0.0
    %224 = vmatprep.mubr.f32.mxu0 0.0
    %225 = vmatmul.mubr.f32.gmra.mxu0 %v80
    %v226 = vpop.f32.mrf.mxu0
    %v227 = vadd.f32 %v76, %v226
    %v228 = vpop.f32.mrf.mxu0
    %229 = vmatprep.mubr.f32.mxu0 0.0
    %230 = vmatmul.mubr.f32.gmra.mxu0 %v83
    %v231 = vpop.f32.mrf.mxu0
    %v232 = vadd.f32 %v77, %v231
    %v233 = vpop.f32.mrf.mxu0
    %234 = vdwg.mxu0
    %235 = vmatprep.subr.mxu0 0.0
    %236 = vmatpush1.msra.mxu0 0.0
    %237 = vmatprep.subr.mxu0 0.0
    %238 = vmatpush1.msra.mxu0 0.0
    %239 = vmatprep.subr.mxu0 0.0
    %240 = vmatpush1.msra.mxu0 0.0
    %241 = vmatprep.subr.mxu0 0.0
    %242 = vmatpush1.msra.mxu0 0.0
    %243 = vmatprep.subr.mxu0 0.0
    %244 = vmatpush1.msra.mxu0 0.0
    %245 = vmatprep.subr.mxu0 0.0
    %246 = vmatpush1.msra.mxu0 0.0
    %247 = vmatprep.subr.mxu0 0.0
    %248 = vmatpush1.msra.mxu0 0.0
    %249 = vmatprep.subr.mxu0 0.0
    %250 = vmatpush1.msra.mxu0 0.0
    %251 = vmatprep.subr.mxu0 0.0
    %252 = vmatpush1.msra.mxu0 0.0
    %253 = vmatprep.subr.mxu0 0.0
    %254 = vmatpush1.msra.mxu0 0.0
    %255 = vmatprep.subr.mxu0 0.0
    %256 = vmatpush1.msra.mxu0 0.0
    %257 = vmatprep.subr.mxu0 0.0
    %258 = vmatpush1.msra.mxu0 0.0
    %259 = vmatprep.subr.mxu0 0.0
    %260 = vmatpush1.msra.mxu0 0.0
    %261 = vmatprep.subr.mxu0 0.0
    %262 = vmatpush1.msra.mxu0 0.0
    %263 = vmatprep.subr.mxu0 0.0
    %264 = vmatpush1.msra.mxu0 0.0
    %265 = vmatprep.subr.mxu0 0.0
    %266 = vmatpush1.msra.mxu0 %v60
    %267 = vmatprep.subr.mxu0 0.0
    %268 = vmatpush2.msra.mxu0 0.0
    %269 = vmatprep.subr.mxu0 0.0
    %270 = vmatpush2.msra.mxu0 0.0
    %271 = vmatprep.subr.mxu0 0.0
    %272 = vmatpush2.msra.mxu0 0.0
    %273 = vmatprep.subr.mxu0 0.0
    %274 = vmatpush2.msra.mxu0 0.0
    %275 = vmatprep.subr.mxu0 0.0
    %276 = vmatpush2.msra.mxu0 0.0
    %277 = vmatprep.subr.mxu0 0.0
    %278 = vmatpush2.msra.mxu0 0.0
    %279 = vmatprep.subr.mxu0 0.0
    %280 = vmatpush2.msra.mxu0 0.0
    %281 = vmatprep.subr.mxu0 0.0
    %282 = vmatpush2.msra.mxu0 0.0
    %283 = vmatprep.subr.mxu0 0.0
    %284 = vmatpush2.msra.mxu0 0.0
    %285 = vmatprep.subr.mxu0 0.0
    %286 = vmatpush2.msra.mxu0 0.0
    %287 = vmatprep.subr.mxu0 0.0
    %288 = vmatpush2.msra.mxu0 0.0
    %289 = vmatprep.subr.mxu0 0.0
    %290 = vmatpush2.msra.mxu0 0.0
    %291 = vmatprep.subr.mxu0 0.0
    %292 = vmatpush2.msra.mxu0 0.0
    %293 = vmatprep.subr.mxu0 0.0
    %294 = vmatpush2.msra.mxu0 0.0
    %295 = vmatprep.subr.mxu0 0.0
    %296 = vmatpush2.msra.mxu0 0.0
    %297 = vmatprep.subr.mxu0 0.0
    %298 = vmatpush2.msra.mxu0 0.0
    %299 = vmatprep.mubr.f32.mxu0 0.0
    %300 = vmatmul.mubr.f32.gmra.mxu0 %v80
    %v301 = vpop.f32.mrf.mxu0
    %v302 = vadd.f32 %v76, %v301
    %v303 = vpop.f32.mrf.mxu0
    %304 = vmatprep.mubr.f32.mxu0 0.0
    %305 = vmatmul.mubr.f32.gmra.mxu0 %v83
    %v306 = vpop.f32.mrf.mxu0
    %v307 = vadd.f32 %v77, %v306
    %v308 = vpop.f32.mrf.mxu0
    %309 = vdwg.mxu0
    %310 = vmatprep.subr.mxu0 0.0
    %311 = vmatpush1.msra.mxu0 0.0
    %312 = vmatprep.subr.mxu0 0.0
    %313 = vmatpush1.msra.mxu0 0.0
    %314 = vmatprep.subr.mxu0 0.0
    %315 = vmatpush1.msra.mxu0 0.0
    %316 = vmatprep.subr.mxu0 0.0
    %317 = vmatpush1.msra.mxu0 0.0
    %318 = vmatprep.subr.mxu0 0.0
    %319 = vmatpush1.msra.mxu0 0.0
    %320 = vmatprep.subr.mxu0 0.0
    %321 = vmatpush1.msra.mxu0 0.0
    %322 = vmatprep.subr.mxu0 0.0
    %323 = vmatpush1.msra.mxu0 0.0
    %324 = vmatprep.subr.mxu0 0.0
    %325 = vmatpush1.msra.mxu0 0.0
    %326 = vmatprep.subr.mxu0 0.0
    %327 = vmatpush1.msra.mxu0 0.0
    %328 = vmatprep.subr.mxu0 0.0
    %329 = vmatpush1.msra.mxu0 0.0
    %330 = vmatprep.subr.mxu0 0.0
    %331 = vmatpush1.msra.mxu0 0.0
    %332 = vmatprep.subr.mxu0 0.0
    %333 = vmatpush1.msra.mxu0 0.0
    %334 = vmatprep.subr.mxu0 0.0
    %335 = vmatpush1.msra.mxu0 0.0
    %336 = vmatprep.subr.mxu0 0.0
    %337 = vmatpush1.msra.mxu0 0.0
    %338 = vmatprep.subr.mxu0 0.0
    %339 = vmatpush1.msra.mxu0 0.0
    %340 = vmatprep.subr.mxu0 0.0
    %341 = vmatpush1.msra.mxu0 %v61
    %342 = vmatprep.subr.mxu0 0.0
    %343 = vmatpush2.msra.mxu0 0.0
    %344 = vmatprep.subr.mxu0 0.0
    %345 = vmatpush2.msra.mxu0 0.0
    %346 = vmatprep.subr.mxu0 0.0
    %347 = vmatpush2.msra.mxu0 0.0
    %348 = vmatprep.subr.mxu0 0.0
    %349 = vmatpush2.msra.mxu0 0.0
    %350 = vmatprep.subr.mxu0 0.0
    %351 = vmatpush2.msra.mxu0 0.0
    %352 = vmatprep.subr.mxu0 0.0
    %353 = vmatpush2.msra.mxu0 0.0
    %354 = vmatprep.subr.mxu0 0.0
    %355 = vmatpush2.msra.mxu0 0.0
    %356 = vmatprep.subr.mxu0 0.0
    %357 = vmatpush2.msra.mxu0 0.0
    %358 = vmatprep.subr.mxu0 0.0
    %359 = vmatpush2.msra.mxu0 0.0
    %360 = vmatprep.subr.mxu0 0.0
    %361 = vmatpush2.msra.mxu0 0.0
    %362 = vmatprep.subr.mxu0 0.0
    %363 = vmatpush2.msra.mxu0 0.0
    %364 = vmatprep.subr.mxu0 0.0
    %365 = vmatpush2.msra.mxu0 0.0
    %366 = vmatprep.subr.mxu0 0.0
    %367 = vmatpush2.msra.mxu0 0.0
    %368 = vmatprep.subr.mxu0 0.0
    %369 = vmatpush2.msra.mxu0 0.0
    %370 = vmatprep.subr.mxu0 0.0
    %371 = vmatpush2.msra.mxu0 0.0
    %372 = vmatprep.subr.mxu0 0.0
    %373 = vmatpush2.msra.mxu0 0.0
    %374 = vmatprep.mubr.f32.mxu0 0.0
    %375 = vmatmul.mubr.f32.gmra.mxu0 %v80
    %v376 = vpop.f32.mrf.mxu0
    %v377 = vadd.f32 %v76, %v376
    %v378 = vpop.f32.mrf.mxu0
    %379 = vmatprep.mubr.f32.mxu0 0.0
    %380 = vmatmul.mubr.f32.gmra.mxu0 %v83
    %v381 = vpop.f32.mrf.mxu0
    %v382 = vadd.f32 %v77, %v381
    %v383 = vpop.f32.mrf.mxu0
    %384 = vdwg.mxu0
    %385 = vmatprep.subr.mxu0 0.0
    %386 = vmatpush1.msra.mxu0 0.0
    %387 = vmatprep.subr.mxu0 0.0
    %388 = vmatpush1.msra.mxu0 0.0
    %389 = vmatprep.subr.mxu0 0.0
    %390 = vmatpush1.msra.mxu0 0.0
    %391 = vmatprep.subr.mxu0 0.0
    %392 = vmatpush1.msra.mxu0 0.0
    %393 = vmatprep.subr.mxu0 0.0
    %394 = vmatpush1.msra.mxu0 0.0
    %395 = vmatprep.subr.mxu0 0.0
    %396 = vmatpush1.msra.mxu0 0.0
    %397 = vmatprep.subr.mxu0 0.0
    %398 = vmatpush1.msra.mxu0 0.0
    %399 = vmatprep.subr.mxu0 0.0
    %400 = vmatpush1.msra.mxu0 0.0
    %401 = vmatprep.subr.mxu0 0.0
    %402 = vmatpush1.msra.mxu0 0.0
    %403 = vmatprep.subr.mxu0 0.0
    %404 = vmatpush1.msra.mxu0 0.0
    %405 = vmatprep.subr.mxu0 0.0
    %406 = vmatpush1.msra.mxu0 0.0
    %407 = vmatprep.subr.mxu0 0.0
    %408 = vmatpush1.msra.mxu0 0.0
    %409 = vmatprep.subr.mxu0 0.0
    %410 = vmatpush1.msra.mxu0 0.0
    %411 = vmatprep.subr.mxu0 0.0
    %412 = vmatpush1.msra.mxu0 0.0
    %413 = vmatprep.subr.mxu0 0.0
    %414 = vmatpush1.msra.mxu0 0.0
    %415 = vmatprep.subr.mxu0 0.0
    %416 = vmatpush1.msra.mxu0 %v62
    %417 = vmatprep.subr.mxu0 0.0
    %418 = vmatpush2.msra.mxu0 0.0
    %419 = vmatprep.subr.mxu0 0.0
    %420 = vmatpush2.msra.mxu0 0.0
    %421 = vmatprep.subr.mxu0 0.0
    %422 = vmatpush2.msra.mxu0 0.0
    %423 = vmatprep.subr.mxu0 0.0
    %424 = vmatpush2.msra.mxu0 0.0
    %425 = vmatprep.subr.mxu0 0.0
    %426 = vmatpush2.msra.mxu0 0.0
    %427 = vmatprep.subr.mxu0 0.0
    %428 = vmatpush2.msra.mxu0 0.0
    %429 = vmatprep.subr.mxu0 0.0
    %430 = vmatpush2.msra.mxu0 0.0
    %431 = vmatprep.subr.mxu0 0.0
    %432 = vmatpush2.msra.mxu0 0.0
    %433 = vmatprep.subr.mxu0 0.0
    %434 = vmatpush2.msra.mxu0 0.0
    %435 = vmatprep.subr.mxu0 0.0
    %436 = vmatpush2.msra.mxu0 0.0
    %437 = vmatprep.subr.mxu0 0.0
    %438 = vmatpush2.msra.mxu0 0.0
    %439 = vmatprep.subr.mxu0 0.0
    %440 = vmatpush2.msra.mxu0 0.0
    %441 = vmatprep.subr.mxu0 0.0
    %442 = vmatpush2.msra.mxu0 0.0
    %443 = vmatprep.subr.mxu0 0.0
    %444 = vmatpush2.msra.mxu0 0.0
    %445 = vmatprep.subr.mxu0 0.0
    %446 = vmatpush2.msra.mxu0 0.0
    %447 = vmatprep.subr.mxu0 0.0
    %448 = vmatpush2.msra.mxu0 0.0
    %449 = vmatprep.mubr.f32.mxu0 0.0
    %450 = vmatmul.mubr.f32.gmra.mxu0 %v80
    %v451 = vpop.f32.mrf.mxu0
    %v452 = vadd.f32 %v76, %v451
    %v453 = vpop.f32.mrf.mxu0
    %454 = vmatprep.mubr.f32.mxu0 0.0
    %455 = vmatmul.mubr.f32.gmra.mxu0 %v83
    %v456 = vpop.f32.mrf.mxu0
    %v457 = vadd.f32 %v77, %v456
    %v458 = vpop.f32.mrf.mxu0
    %459 = vdwg.mxu0
    %460 = vmatprep.subr.mxu0 0.0
    %461 = vmatpush1.msra.mxu0 0.0
    %462 = vmatprep.subr.mxu0 0.0
    %463 = vmatpush1.msra.mxu0 0.0
    %464 = vmatprep.subr.mxu0 0.0
    %465 = vmatpush1.msra.mxu0 0.0
    %466 = vmatprep.subr.mxu0 0.0
    %467 = vmatpush1.msra.mxu0 0.0
    %468 = vmatprep.subr.mxu0 0.0
    %469 = vmatpush1.msra.mxu0 0.0
    %470 = vmatprep.subr.mxu0 0.0
    %471 = vmatpush1.msra.mxu0 0.0
    %472 = vmatprep.subr.mxu0 0.0
    %473 = vmatpush1.msra.mxu0 0.0
    %474 = vmatprep.subr.mxu0 0.0
    %475 = vmatpush1.msra.mxu0 0.0
    %476 = vmatprep.subr.mxu0 0.0
    %477 = vmatpush1.msra.mxu0 0.0
    %478 = vmatprep.subr.mxu0 0.0
    %479 = vmatpush1.msra.mxu0 0.0
    %480 = vmatprep.subr.mxu0 0.0
    %481 = vmatpush1.msra.mxu0 0.0
    %482 = vmatprep.subr.mxu0 0.0
    %483 = vmatpush1.msra.mxu0 0.0
    %484 = vmatprep.subr.mxu0 0.0
    %485 = vmatpush1.msra.mxu0 0.0
    %486 = vmatprep.subr.mxu0 0.0
    %487 = vmatpush1.msra.mxu0 0.0
    %488 = vmatprep.subr.mxu0 0.0
    %489 = vmatpush1.msra.mxu0 0.0
    %490 = vmatprep.subr.mxu0 0.0
    %491 = vmatpush1.msra.mxu0 %v63
    %492 = vmatprep.subr.mxu0 0.0
    %493 = vmatpush2.msra.mxu0 0.0
    %494 = vmatprep.subr.mxu0 0.0
    %495 = vmatpush2.msra.mxu0 0.0
    %496 = vmatprep.subr.mxu0 0.0
    %497 = vmatpush2.msra.mxu0 0.0
    %498 = vmatprep.subr.mxu0 0.0
    %499 = vmatpush2.msra.mxu0 0.0
    %500 = vmatprep.subr.mxu0 0.0
    %501 = vmatpush2.msra.mxu0 0.0
    %502 = vmatprep.subr.mxu0 0.0
    %503 = vmatpush2.msra.mxu0 0.0
    %504 = vmatprep.subr.mxu0 0.0
    %505 = vmatpush2.msra.mxu0 0.0
    %506 = vmatprep.subr.mxu0 0.0
    %507 = vmatpush2.msra.mxu0 0.0
    %508 = vmatprep.subr.mxu0 0.0
    %509 = vmatpush2.msra.mxu0 0.0
    %510 = vmatprep.subr.mxu0 0.0
    %511 = vmatpush2.msra.mxu0 0.0
    %512 = vmatprep.subr.mxu0 0.0
    %513 = vmatpush2.msra.mxu0 0.0
    %514 = vmatprep.subr.mxu0 0.0
    %515 = vmatpush2.msra.mxu0 0.0
    %516 = vmatprep.subr.mxu0 0.0
    %517 = vmatpush2.msra.mxu0 0.0
    %518 = vmatprep.subr.mxu0 0.0
    %519 = vmatpush2.msra.mxu0 0.0
    %520 = vmatprep.subr.mxu0 0.0
    %521 = vmatpush2.msra.mxu0 0.0
    %522 = vmatprep.subr.mxu0 0.0
    %523 = vmatpush2.msra.mxu0 0.0
    %524 = vmatprep.mubr.f32.mxu0 0.0
    %525 = vmatmul.mubr.f32.gmra.mxu0 %v80
    %v526 = vpop.f32.mrf.mxu0
    %v527 = vadd.f32 %v76, %v526
    %v528 = vpop.f32.mrf.mxu0
    %529 = vmatprep.mubr.f32.mxu0 0.0
    %530 = vmatmul.mubr.f32.gmra.mxu0 %v83
    %v531 = vpop.f32.mrf.mxu0
    %v532 = vadd.f32 %v77, %v531
    %v533 = vpop.f32.mrf.mxu0
    %534 = vdwg.mxu0
    %535 = vmatprep.subr.mxu0 0.0
    %536 = vmatpush1.msra.mxu0 0.0
    %537 = vmatprep.subr.mxu0 0.0
    %538 = vmatpush1.msra.mxu0 0.0
    %539 = vmatprep.subr.mxu0 0.0
    %540 = vmatpush1.msra.mxu0 0.0
    %541 = vmatprep.subr.mxu0 0.0
    %542 = vmatpush1.msra.mxu0 0.0
    %543 = vmatprep.subr.mxu0 0.0
    %544 = vmatpush1.msra.mxu0 0.0
    %545 = vmatprep.subr.mxu0 0.0
    %546 = vmatpush1.msra.mxu0 0.0
    %547 = vmatprep.subr.mxu0 0.0
    %548 = vmatpush1.msra.mxu0 0.0
    %549 = vmatprep.subr.mxu0 0.0
    %550 = vmatpush1.msra.mxu0 0.0
    %551 = vmatprep.subr.mxu0 0.0
    %552 = vmatpush1.msra.mxu0 0.0
    %553 = vmatprep.subr.mxu0 0.0
    %554 = vmatpush1.msra.mxu0 0.0
    %555 = vmatprep.subr.mxu0 0.0
    %556 = vmatpush1.msra.mxu0 0.0
    %557 = vmatprep.subr.mxu0 0.0
    %558 = vmatpush1.msra.mxu0 0.0
    %559 = vmatprep.subr.mxu0 0.0
    %560 = vmatpush1.msra.mxu0 0.0
    %561 = vmatprep.subr.mxu0 0.0
    %562 = vmatpush1.msra.mxu0 0.0
    %563 = vmatprep.subr.mxu0 0.0
    %564 = vmatpush1.msra.mxu0 0.0
    %565 = vmatprep.subr.mxu0 0.0
    %566 = vmatpush1.msra.mxu0 %v64
    %567 = vmatprep.subr.mxu0 0.0
    %568 = vmatpush2.msra.mxu0 0.0
    %569 = vmatprep.subr.mxu0 0.0
    %570 = vmatpush2.msra.mxu0 0.0
    %571 = vmatprep.subr.mxu0 0.0
    %572 = vmatpush2.msra.mxu0 0.0
    %573 = vmatprep.subr.mxu0 0.0
    %574 = vmatpush2.msra.mxu0 0.0
    %575 = vmatprep.subr.mxu0 0.0
    %576 = vmatpush2.msra.mxu0 0.0
    %577 = vmatprep.subr.mxu0 0.0
    %578 = vmatpush2.msra.mxu0 0.0
    %579 = vmatprep.subr.mxu0 0.0
    %580 = vmatpush2.msra.mxu0 0.0
    %581 = vmatprep.subr.mxu0 0.0
    %582 = vmatpush2.msra.mxu0 0.0
    %583 = vmatprep.subr.mxu0 0.0
    %584 = vmatpush2.msra.mxu0 0.0
    %585 = vmatprep.subr.mxu0 0.0
    %586 = vmatpush2.msra.mxu0 0.0
    %587 = vmatprep.subr.mxu0 0.0
    %588 = vmatpush2.msra.mxu0 0.0
    %589 = vmatprep.subr.mxu0 0.0
    %590 = vmatpush2.msra.mxu0 0.0
    %591 = vmatprep.subr.mxu0 0.0
    %592 = vmatpush2.msra.mxu0 0.0
    %593 = vmatprep.subr.mxu0 0.0
    %594 = vmatpush2.msra.mxu0 0.0
    %595 = vmatprep.subr.mxu0 0.0
    %596 = vmatpush2.msra.mxu0 0.0
    %597 = vmatprep.subr.mxu0 0.0
    %598 = vmatpush2.msra.mxu0 0.0
    %599 = vmatprep.mubr.f32.mxu0 0.0
    %600 = vmatmul.mubr.f32.gmra.mxu0 %v80
    %v601 = vpop.f32.mrf.mxu0
    %v602 = vadd.f32 %v76, %v601
    %v603 = vpop.f32.mrf.mxu0
    %604 = vmatprep.mubr.f32.mxu0 0.0
    %605 = vmatmul.mubr.f32.gmra.mxu0 %v83
    %v606 = vpop.f32.mrf.mxu0
    %v607 = vadd.f32 %v77, %v606
    %v608 = vpop.f32.mrf.mxu0
    %609 = vdwg.mxu0
    %610 = vmatprep.subr.mxu0 0.0
    %611 = vmatpush1.msra.mxu0 0.0
    %612 = vmatprep.subr.mxu0 0.0
    %613 = vmatpush1.msra.mxu0 0.0
    %614 = vmatprep.subr.mxu0 0.0
    %615 = vmatpush1.msra.mxu0 0.0
    %616 = vmatprep.subr.mxu0 0.0
    %617 = vmatpush1.msra.mxu0 0.0
    %618 = vmatprep.subr.mxu0 0.0
    %619 = vmatpush1.msra.mxu0 0.0
    %620 = vmatprep.subr.mxu0 0.0
    %621 = vmatpush1.msra.mxu0 0.0
    %622 = vmatprep.subr.mxu0 0.0
    %623 = vmatpush1.msra.mxu0 0.0
    %624 = vmatprep.subr.mxu0 0.0
    %625 = vmatpush1.msra.mxu0 0.0
    %626 = vmatprep.subr.mxu0 0.0
    %627 = vmatpush1.msra.mxu0 0.0
    %628 = vmatprep.subr.mxu0 0.0
    %629 = vmatpush1.msra.mxu0 0.0
    %630 = vmatprep.subr.mxu0 0.0
    %631 = vmatpush1.msra.mxu0 0.0
    %632 = vmatprep.subr.mxu0 0.0
    %633 = vmatpush1.msra.mxu0 0.0
    %634 = vmatprep.subr.mxu0 0.0
    %635 = vmatpush1.msra.mxu0 0.0
    %636 = vmatprep.subr.mxu0 0.0
    %637 = vmatpush1.msra.mxu0 0.0
    %638 = vmatprep.subr.mxu0 0.0
    %639 = vmatpush1.msra.mxu0 0.0
    %640 = vmatprep.subr.mxu0 0.0
    %641 = vmatpush1.msra.mxu0 %v65
    %642 = vmatprep.subr.mxu0 0.0
    %643 = vmatpush2.msra.mxu0 0.0
    %644 = vmatprep.subr.mxu0 0.0
    %645 = vmatpush2.msra.mxu0 0.0
    %646 = vmatprep.subr.mxu0 0.0
    %647 = vmatpush2.msra.mxu0 0.0
    %648 = vmatprep.subr.mxu0 0.0
    %649 = vmatpush2.msra.mxu0 0.0
    %650 = vmatprep.subr.mxu0 0.0
    %651 = vmatpush2.msra.mxu0 0.0
    %652 = vmatprep.subr.mxu0 0.0
    %653 = vmatpush2.msra.mxu0 0.0
    %654 = vmatprep.subr.mxu0 0.0
    %655 = vmatpush2.msra.mxu0 0.0
    %656 = vmatprep.subr.mxu0 0.0
    %657 = vmatpush2.msra.mxu0 0.0
    %658 = vmatprep.subr.mxu0 0.0
    %659 = vmatpush2.msra.mxu0 0.0
    %660 = vmatprep.subr.mxu0 0.0
    %661 = vmatpush2.msra.mxu0 0.0
    %662 = vmatprep.subr.mxu0 0.0
    %663 = vmatpush2.msra.mxu0 0.0
    %664 = vmatprep.subr.mxu0 0.0
    %665 = vmatpush2.msra.mxu0 0.0
    %666 = vmatprep.subr.mxu0 0.0
    %667 = vmatpush2.msra.mxu0 0.0
    %668 = vmatprep.subr.mxu0 0.0
    %669 = vmatpush2.msra.mxu0 0.0
    %670 = vmatprep.subr.mxu0 0.0
    %671 = vmatpush2.msra.mxu0 0.0
    %672 = vmatprep.subr.mxu0 0.0
    %673 = vmatpush2.msra.mxu0 0.0
    %674 = vmatprep.mubr.f32.mxu0 0.0
    %675 = vmatmul.mubr.f32.gmra.mxu0 %v80
    %v676 = vpop.f32.mrf.mxu0
    %v677 = vadd.f32 %v76, %v676
    %v678 = vpop.f32.mrf.mxu0
    %679 = vmatprep.mubr.f32.mxu0 0.0
    %680 = vmatmul.mubr.f32.gmra.mxu0 %v83
    %v681 = vpop.f32.mrf.mxu0
    %v682 = vadd.f32 %v77, %v681
    %v683 = vpop.f32.mrf.mxu0
    %684 = vdwg.mxu0
    %685 = vmatprep.subr.mxu0 0.0
    %686 = vmatpush1.msra.mxu0 0.0
    %687 = vmatprep.subr.mxu0 0.0
    %688 = vmatpush1.msra.mxu0 0.0
    %689 = vmatprep.subr.mxu0 0.0
    %690 = vmatpush1.msra.mxu0 0.0
    %691 = vmatprep.subr.mxu0 0.0
    %692 = vmatpush1.msra.mxu0 0.0
    %693 = vmatprep.subr.mxu0 0.0
    %694 = vmatpush1.msra.mxu0 0.0
    %695 = vmatprep.subr.mxu0 0.0
    %696 = vmatpush1.msra.mxu0 0.0
    %697 = vmatprep.subr.mxu0 0.0
    %698 = vmatpush1.msra.mxu0 0.0
    %699 = vmatprep.subr.mxu0 0.0
    %700 = vmatpush1.msra.mxu0 0.0
    %701 = vmatprep.subr.mxu0 0.0
    %702 = vmatpush1.msra.mxu0 0.0
    %703 = vmatprep.subr.mxu0 0.0
    %704 = vmatpush1.msra.mxu0 0.0
    %705 = vmatprep.subr.mxu0 0.0
    %706 = vmatpush1.msra.mxu0 0.0
    %707 = vmatprep.subr.mxu0 0.0
    %708 = vmatpush1.msra.mxu0 0.0
    %709 = vmatprep.subr.mxu0 0.0
    %710 = vmatpush1.msra.mxu0 0.0
    %711 = vmatprep.subr.mxu0 0.0
    %712 = vmatpush1.msra.mxu0 0.0
    %713 = vmatprep.subr.mxu0 0.0
    %714 = vmatpush1.msra.mxu0 0.0
    %715 = vmatprep.subr.mxu0 0.0
    %716 = vmatpush1.msra.mxu0 %v66
    %717 = vmatprep.subr.mxu0 0.0
    %718 = vmatpush2.msra.mxu0 0.0
    %719 = vmatprep.subr.mxu0 0.0
    %720 = vmatpush2.msra.mxu0 0.0
    %721 = vmatprep.subr.mxu0 0.0
    %722 = vmatpush2.msra.mxu0 0.0
    %723 = vmatprep.subr.mxu0 0.0
    %724 = vmatpush2.msra.mxu0 0.0
    %725 = vmatprep.subr.mxu0 0.0
    %726 = vmatpush2.msra.mxu0 0.0
    %727 = vmatprep.subr.mxu0 0.0
    %728 = vmatpush2.msra.mxu0 0.0
    %729 = vmatprep.subr.mxu0 0.0
    %730 = vmatpush2.msra.mxu0 0.0
    %731 = vmatprep.subr.mxu0 0.0
    %732 = vmatpush2.msra.mxu0 0.0
    %733 = vmatprep.subr.mxu0 0.0
    %734 = vmatpush2.msra.mxu0 0.0
    %735 = vmatprep.subr.mxu0 0.0
    %736 = vmatpush2.msra.mxu0 0.0
    %737 = vmatprep.subr.mxu0 0.0
    %738 = vmatpush2.msra.mxu0 0.0
    %739 = vmatprep.subr.mxu0 0.0
    %740 = vmatpush2.msra.mxu0 0.0
    %741 = vmatprep.subr.mxu0 0.0
    %742 = vmatpush2.msra.mxu0 0.0
    %743 = vmatprep.subr.mxu0 0.0
    %744 = vmatpush2.msra.mxu0 0.0
    %745 = vmatprep.subr.mxu0 0.0
    %746 = vmatpush2.msra.mxu0 0.0
    %747 = vmatprep.subr.mxu0 0.0
    %748 = vmatpush2.msra.mxu0 0.0
    %749 = vmatprep.mubr.f32.mxu0 0.0
    %750 = vmatmul.mubr.f32.gmra.mxu0 %v80
    %v751 = vpop.f32.mrf.mxu0
    %v752 = vadd.f32 %v76, %v751
    %v753 = vpop.f32.mrf.mxu0
    %754 = vmatprep.mubr.f32.mxu0 0.0
    %755 = vmatmul.mubr.f32.gmra.mxu0 %v83
    %v756 = vpop.f32.mrf.mxu0
    %v757 = vadd.f32 %v77, %v756
    %v758 = vpop.f32.mrf.mxu0
    %759 = vdwg.mxu0
    %760 = vmatprep.subr.mxu0 0.0
    %761 = vmatpush1.msra.mxu0 0.0
    %762 = vmatprep.subr.mxu0 0.0
    %763 = vmatpush1.msra.mxu0 0.0
    %764 = vmatprep.subr.mxu0 0.0
    %765 = vmatpush1.msra.mxu0 0.0
    %766 = vmatprep.subr.mxu0 0.0
    %767 = vmatpush1.msra.mxu0 0.0
    %768 = vmatprep.subr.mxu0 0.0
    %769 = vmatpush1.msra.mxu0 0.0
    %770 = vmatprep.subr.mxu0 0.0
    %771 = vmatpush1.msra.mxu0 0.0
    %772 = vmatprep.subr.mxu0 0.0
    %773 = vmatpush1.msra.mxu0 0.0
    %774 = vmatprep.subr.mxu0 0.0
    %775 = vmatpush1.msra.mxu0 0.0
    %776 = vmatprep.subr.mxu0 0.0
    %777 = vmatpush1.msra.mxu0 0.0
    %778 = vmatprep.subr.mxu0 0.0
    %779 = vmatpush1.msra.mxu0 0.0
    %780 = vmatprep.subr.mxu0 0.0
    %781 = vmatpush1.msra.mxu0 0.0
    %782 = vmatprep.subr.mxu0 0.0
    %783 = vmatpush1.msra.mxu0 0.0
    %784 = vmatprep.subr.mxu0 0.0
    %785 = vmatpush1.msra.mxu0 0.0
    %786 = vmatprep.subr.mxu0 0.0
    %787 = vmatpush1.msra.mxu0 0.0
    %788 = vmatprep.subr.mxu0 0.0
    %789 = vmatpush1.msra.mxu0 0.0
    %790 = vmatprep.subr.mxu0 0.0
    %791 = vmatpush1.msra.mxu0 %v67
    %792 = vmatprep.subr.mxu0 0.0
    %793 = vmatpush2.msra.mxu0 0.0
    %794 = vmatprep.subr.mxu0 0.0
    %795 = vmatpush2.msra.mxu0 0.0
    %796 = vmatprep.subr.mxu0 0.0
    %797 = vmatpush2.msra.mxu0 0.0
    %798 = vmatprep.subr.mxu0 0.0
    %799 = vmatpush2.msra.mxu0 0.0
    %800 = vmatprep.subr.mxu0 0.0
    %801 = vmatpush2.msra.mxu0 0.0
    %802 = vmatprep.subr.mxu0 0.0
    %803 = vmatpush2.msra.mxu0 0.0
    %804 = vmatprep.subr.mxu0 0.0
    %805 = vmatpush2.msra.mxu0 0.0
    %806 = vmatprep.subr.mxu0 0.0
    %807 = vmatpush2.msra.mxu0 0.0
    %808 = vmatprep.subr.mxu0 0.0
    %809 = vmatpush2.msra.mxu0 0.0
    %810 = vmatprep.subr.mxu0 0.0
    %811 = vmatpush2.msra.mxu0 0.0
    %812 = vmatprep.subr.mxu0 0.0
    %813 = vmatpush2.msra.mxu0 0.0
    %814 = vmatprep.subr.mxu0 0.0
    %815 = vmatpush2.msra.mxu0 0.0
    %816 = vmatprep.subr.mxu0 0.0
    %817 = vmatpush2.msra.mxu0 0.0
    %818 = vmatprep.subr.mxu0 0.0
    %819 = vmatpush2.msra.mxu0 0.0
    %820 = vmatprep.subr.mxu0 0.0
    %821 = vmatpush2.msra.mxu0 0.0
    %822 = vmatprep.subr.mxu0 0.0
    %823 = vmatpush2.msra.mxu0 0.0
    %824 = vmatprep.mubr.f32.mxu0 0.0
    %825 = vmatmul.mubr.f32.gmra.mxu0 %v80
    %v826 = vpop.f32.mrf.mxu0
    %v827 = vadd.f32 %v76, %v826
    %v828 = vpop.f32.mrf.mxu0
    %829 = vmatprep.mubr.f32.mxu0 0.0
    %830 = vmatmul.mubr.f32.gmra.mxu0 %v83
    %v831 = vpop.f32.mrf.mxu0
    %v832 = vadd.f32 %v77, %v831
    %v833 = vpop.f32.mrf.mxu0
    %834 = vdwg.mxu0
    %835 = vmatprep.subr.mxu0 0.0
    %836 = vmatpush1.msra.mxu0 0.0
    %837 = vmatprep.subr.mxu0 0.0
    %838 = vmatpush1.msra.mxu0 0.0
    %839 = vmatprep.subr.mxu0 0.0
    %840 = vmatpush1.msra.mxu0 0.0
    %841 = vmatprep.subr.mxu0 0.0
    %842 = vmatpush1.msra.mxu0 0.0
    %843 = vmatprep.subr.mxu0 0.0
    %844 = vmatpush1.msra.mxu0 0.0
    %845 = vmatprep.subr.mxu0 0.0
    %846 = vmatpush1.msra.mxu0 0.0
    %847 = vmatprep.subr.mxu0 0.0
    %848 = vmatpush1.msra.mxu0 0.0
    %849 = vmatprep.subr.mxu0 0.0
    %850 = vmatpush1.msra.mxu0 0.0
    %851 = vmatprep.subr.mxu0 0.0
    %852 = vmatpush1.msra.mxu0 0.0
    %853 = vmatprep.subr.mxu0 0.0
    %854 = vmatpush1.msra.mxu0 0.0
    %855 = vmatprep.subr.mxu0 0.0
    %856 = vmatpush1.msra.mxu0 0.0
    %857 = vmatprep.subr.mxu0 0.0
    %858 = vmatpush1.msra.mxu0 0.0
    %859 = vmatprep.subr.mxu0 0.0
    %860 = vmatpush1.msra.mxu0 0.0
    %861 = vmatprep.subr.mxu0 0.0
    %862 = vmatpush1.msra.mxu0 0.0
    %863 = vmatprep.subr.mxu0 0.0
    %864 = vmatpush1.msra.mxu0 0.0
    %865 = vmatprep.subr.mxu0 0.0
    %866 = vmatpush1.msra.mxu0 %v68
    %867 = vmatprep.subr.mxu0 0.0
    %868 = vmatpush2.msra.mxu0 0.0
    %869 = vmatprep.subr.mxu0 0.0
    %870 = vmatpush2.msra.mxu0 0.0
    %871 = vmatprep.subr.mxu0 0.0
    %872 = vmatpush2.msra.mxu0 0.0
    %873 = vmatprep.subr.mxu0 0.0
    %874 = vmatpush2.msra.mxu0 0.0
    %875 = vmatprep.subr.mxu0 0.0
    %876 = vmatpush2.msra.mxu0 0.0
    %877 = vmatprep.subr.mxu0 0.0
    %878 = vmatpush2.msra.mxu0 0.0
    %879 = vmatprep.subr.mxu0 0.0
    %880 = vmatpush2.msra.mxu0 0.0
    %881 = vmatprep.subr.mxu0 0.0
    %882 = vmatpush2.msra.mxu0 0.0
    %883 = vmatprep.subr.mxu0 0.0
    %884 = vmatpush2.msra.mxu0 0.0
    %885 = vmatprep.subr.mxu0 0.0
    %886 = vmatpush2.msra.mxu0 0.0
    %887 = vmatprep.subr.mxu0 0.0
    %888 = vmatpush2.msra.mxu0 0.0
    %889 = vmatprep.subr.mxu0 0.0
    %890 = vmatpush2.msra.mxu0 0.0
    %891 = vmatprep.subr.mxu0 0.0
    %892 = vmatpush2.msra.mxu0 0.0
    %893 = vmatprep.subr.mxu0 0.0
    %894 = vmatpush2.msra.mxu0 0.0
    %895 = vmatprep.subr.mxu0 0.0
    %896 = vmatpush2.msra.mxu0 0.0
    %897 = vmatprep.subr.mxu0 0.0
    %898 = vmatpush2.msra.mxu0 0.0
    %899 = vmatprep.mubr.f32.mxu0 0.0
    %900 = vmatmul.mubr.f32.gmra.mxu0 %v80
    %v901 = vpop.f32.mrf.mxu0
    %v902 = vadd.f32 %v76, %v901
    %v903 = vpop.f32.mrf.mxu0
    %904 = vmatprep.mubr.f32.mxu0 0.0
    %905 = vmatmul.mubr.f32.gmra.mxu0 %v83
    %v906 = vpop.f32.mrf.mxu0
    %v907 = vadd.f32 %v77, %v906
    %v908 = vpop.f32.mrf.mxu0
    %909 = vdwg.mxu0
    %910 = vmatprep.subr.mxu0 0.0
    %911 = vmatpush1.msra.mxu0 0.0
    %912 = vmatprep.subr.mxu0 0.0
    %913 = vmatpush1.msra.mxu0 0.0
    %914 = vmatprep.subr.mxu0 0.0
    %915 = vmatpush1.msra.mxu0 0.0
    %916 = vmatprep.subr.mxu0 0.0
    %917 = vmatpush1.msra.mxu0 0.0
    %918 = vmatprep.subr.mxu0 0.0
    %919 = vmatpush1.msra.mxu0 0.0
    %920 = vmatprep.subr.mxu0 0.0
    %921 = vmatpush1.msra.mxu0 0.0
    %922 = vmatprep.subr.mxu0 0.0
    %923 = vmatpush1.msra.mxu0 0.0
    %924 = vmatprep.subr.mxu0 0.0
    %925 = vmatpush1.msra.mxu0 0.0
    %926 = vmatprep.subr.mxu0 0.0
    %927 = vmatpush1.msra.mxu0 0.0
    %928 = vmatprep.subr.mxu0 0.0
    %929 = vmatpush1.msra.mxu0 0.0
    %930 = vmatprep.subr.mxu0 0.0
    %931 = vmatpush1.msra.mxu0 0.0
    %932 = vmatprep.subr.mxu0 0.0
    %933 = vmatpush1.msra.mxu0 0.0
    %934 = vmatprep.subr.mxu0 0.0
    %935 = vmatpush1.msra.mxu0 0.0
    %936 = vmatprep.subr.mxu0 0.0
    %937 = vmatpush1.msra.mxu0 0.0
    %938 = vmatprep.subr.mxu0 0.0
    %939 = vmatpush1.msra.mxu0 0.0
    %940 = vmatprep.subr.mxu0 0.0
    %941 = vmatpush1.msra.mxu0 %v69
    %942 = vmatprep.subr.mxu0 0.0
    %943 = vmatpush2.msra.mxu0 0.0
    %944 = vmatprep.subr.mxu0 0.0
    %945 = vmatpush2.msra.mxu0 0.0
    %946 = vmatprep.subr.mxu0 0.0
    %947 = vmatpush2.msra.mxu0 0.0
    %948 = vmatprep.subr.mxu0 0.0
    %949 = vmatpush2.msra.mxu0 0.0
    %950 = vmatprep.subr.mxu0 0.0
    %951 = vmatpush2.msra.mxu0 0.0
    %952 = vmatprep.subr.mxu0 0.0
    %953 = vmatpush2.msra.mxu0 0.0
    %954 = vmatprep.subr.mxu0 0.0
    %955 = vmatpush2.msra.mxu0 0.0
    %956 = vmatprep.subr.mxu0 0.0
    %957 = vmatpush2.msra.mxu0 0.0
    %958 = vmatprep.subr.mxu0 0.0
    %959 = vmatpush2.msra.mxu0 0.0
    %960 = vmatprep.subr.mxu0 0.0
    %961 = vmatpush2.msra.mxu0 0.0
    %962 = vmatprep.subr.mxu0 0.0
    %963 = vmatpush2.msra.mxu0 0.0
    %964 = vmatprep.subr.mxu0 0.0
    %965 = vmatpush2.msra.mxu0 0.0
    %966 = vmatprep.subr.mxu0 0.0
    %967 = vmatpush2.msra.mxu0 0.0
    %968 = vmatprep.subr.mxu0 0.0
    %969 = vmatpush2.msra.mxu0 0.0
    %970 = vmatprep.subr.mxu0 0.0
    %971 = vmatpush2.msra.mxu0 0.0
    %972 = vmatprep.subr.mxu0 0.0
    %973 = vmatpush2.msra.mxu0 0.0
    %974 = vmatprep.mubr.f32.mxu0 0.0
    %975 = vmatmul.mubr.f32.gmra.mxu0 %v80
    %v976 = vpop.f32.mrf.mxu0
    %v977 = vadd.f32 %v76, %v976
    %v978 = vpop.f32.mrf.mxu0
    %979 = vmatprep.mubr.f32.mxu0 0.0
    %980 = vmatmul.mubr.f32.gmra.mxu0 %v83
    %v981 = vpop.f32.mrf.mxu0
    %v982 = vadd.f32 %v77, %v981
    %v983 = vpop.f32.mrf.mxu0
    %984 = vdwg.mxu0
    %985 = vmatprep.subr.mxu0 0.0
    %986 = vmatpush1.msra.mxu0 0.0
    %987 = vmatprep.subr.mxu0 0.0
    %988 = vmatpush1.msra.mxu0 0.0
    %989 = vmatprep.subr.mxu0 0.0
    %990 = vmatpush1.msra.mxu0 0.0
    %991 = vmatprep.subr.mxu0 0.0
    %992 = vmatpush1.msra.mxu0 0.0
    %993 = vmatprep.subr.mxu0 0.0
    %994 = vmatpush1.msra.mxu0 0.0
    %995 = vmatprep.subr.mxu0 0.0
    %996 = vmatpush1.msra.mxu0 0.0
    %997 = vmatprep.subr.mxu0 0.0
    %998 = vmatpush1.msra.mxu0 0.0
    %999 = vmatprep.subr.mxu0 0.0
    %1000 = vmatpush1.msra.mxu0 0.0
    %1001 = vmatprep.subr.mxu0 0.0
    %1002 = vmatpush1.msra.mxu0 0.0
    %1003 = vmatprep.subr.mxu0 0.0
    %1004 = vmatpush1.msra.mxu0 0.0
    %1005 = vmatprep.subr.mxu0 0.0
    %1006 = vmatpush1.msra.mxu0 0.0
    %1007 = vmatprep.subr.mxu0 0.0
    %1008 = vmatpush1.msra.mxu0 0.0
    %1009 = vmatprep.subr.mxu0 0.0
    %1010 = vmatpush1.msra.mxu0 0.0
    %1011 = vmatprep.subr.mxu0 0.0
    %1012 = vmatpush1.msra.mxu0 0.0
    %1013 = vmatprep.subr.mxu0 0.0
    %1014 = vmatpush1.msra.mxu0 0.0
    %1015 = vmatprep.subr.mxu0 0.0
    %1016 = vmatpush1.msra.mxu0 %v70
    %1017 = vmatprep.subr.mxu0 0.0
    %1018 = vmatpush2.msra.mxu0 0.0
    %1019 = vmatprep.subr.mxu0 0.0
    %1020 = vmatpush2.msra.mxu0 0.0
    %1021 = vmatprep.subr.mxu0 0.0
    %1022 = vmatpush2.msra.mxu0 0.0
    %1023 = vmatprep.subr.mxu0 0.0
    %1024 = vmatpush2.msra.mxu0 0.0
    %1025 = vmatprep.subr.mxu0 0.0
    %1026 = vmatpush2.msra.mxu0 0.0
    %1027 = vmatprep.subr.mxu0 0.0
    %1028 = vmatpush2.msra.mxu0 0.0
    %1029 = vmatprep.subr.mxu0 0.0
    %1030 = vmatpush2.msra.mxu0 0.0
    %1031 = vmatprep.subr.mxu0 0.0
    %1032 = vmatpush2.msra.mxu0 0.0
    %1033 = vmatprep.subr.mxu0 0.0
    %1034 = vmatpush2.msra.mxu0 0.0
    %1035 = vmatprep.subr.mxu0 0.0
    %1036 = vmatpush2.msra.mxu0 0.0
    %1037 = vmatprep.subr.mxu0 0.0
    %1038 = vmatpush2.msra.mxu0 0.0
    %1039 = vmatprep.subr.mxu0 0.0
    %1040 = vmatpush2.msra.mxu0 0.0
    %1041 = vmatprep.subr.mxu0 0.0
    %1042 = vmatpush2.msra.mxu0 0.0
    %1043 = vmatprep.subr.mxu0 0.0
    %1044 = vmatpush2.msra.mxu0 0.0
    %1045 = vmatprep.subr.mxu0 0.0
    %1046 = vmatpush2.msra.mxu0 0.0
    %1047 = vmatprep.subr.mxu0 0.0
    %1048 = vmatpush2.msra.mxu0 0.0
    %1049 = vmatprep.mubr.f32.mxu0 0.0
    %1050 = vmatmul.mubr.f32.gmra.mxu0 %v80
    %v1051 = vpop.f32.mrf.mxu0
    %v1052 = vadd.f32 %v76, %v1051
    %v1053 = vpop.f32.mrf.mxu0
    %1054 = vmatprep.mubr.f32.mxu0 0.0
    %1055 = vmatmul.mubr.f32.gmra.mxu0 %v83
    %v1056 = vpop.f32.mrf.mxu0
    %v1057 = vadd.f32 %v77, %v1056
    %v1058 = vpop.f32.mrf.mxu0
    %1059 = vdwg.mxu0
    %1060 = vmatprep.subr.mxu0 0.0
    %1061 = vmatpush1.msra.mxu0 0.0
    %1062 = vmatprep.subr.mxu0 0.0
    %1063 = vmatpush1.msra.mxu0 0.0
    %1064 = vmatprep.subr.mxu0 0.0
    %1065 = vmatpush1.msra.mxu0 0.0
    %1066 = vmatprep.subr.mxu0 0.0
    %1067 = vmatpush1.msra.mxu0 0.0
    %1068 = vmatprep.subr.mxu0 0.0
    %1069 = vmatpush1.msra.mxu0 0.0
    %1070 = vmatprep.subr.mxu0 0.0
    %1071 = vmatpush1.msra.mxu0 0.0
    %1072 = vmatprep.subr.mxu0 0.0
    %1073 = vmatpush1.msra.mxu0 0.0
    %1074 = vmatprep.subr.mxu0 0.0
    %1075 = vmatpush1.msra.mxu0 0.0
    %1076 = vmatprep.subr.mxu0 0.0
    %1077 = vmatpush1.msra.mxu0 0.0
    %1078 = vmatprep.subr.mxu0 0.0
    %1079 = vmatpush1.msra.mxu0 0.0
    %1080 = vmatprep.subr.mxu0 0.0
    %1081 = vmatpush1.msra.mxu0 0.0
    %1082 = vmatprep.subr.mxu0 0.0
    %1083 = vmatpush1.msra.mxu0 0.0
    %1084 = vmatprep.subr.mxu0 0.0
    %1085 = vmatpush1.msra.mxu0 0.0
    %1086 = vmatprep.subr.mxu0 0.0
    %1087 = vmatpush1.msra.mxu0 0.0
    %1088 = vmatprep.subr.mxu0 0.0
    %1089 = vmatpush1.msra.mxu0 0.0
    %1090 = vmatprep.subr.mxu0 0.0
    %1091 = vmatpush1.msra.mxu0 %v71
    %1092 = vmatprep.subr.mxu0 0.0
    %1093 = vmatpush2.msra.mxu0 0.0
    %1094 = vmatprep.subr.mxu0 0.0
    %1095 = vmatpush2.msra.mxu0 0.0
    %1096 = vmatprep.subr.mxu0 0.0
    %1097 = vmatpush2.msra.mxu0 0.0
    %1098 = vmatprep.subr.mxu0 0.0
    %1099 = vmatpush2.msra.mxu0 0.0
    %1100 = vmatprep.subr.mxu0 0.0
    %1101 = vmatpush2.msra.mxu0 0.0
    %1102 = vmatprep.subr.mxu0 0.0
    %1103 = vmatpush2.msra.mxu0 0.0
    %1104 = vmatprep.subr.mxu0 0.0
    %1105 = vmatpush2.msra.mxu0 0.0
    %1106 = vmatprep.subr.mxu0 0.0
    %1107 = vmatpush2.msra.mxu0 0.0
    %1108 = vmatprep.subr.mxu0 0.0
    %1109 = vmatpush2.msra.mxu0 0.0
    %1110 = vmatprep.subr.mxu0 0.0
    %1111 = vmatpush2.msra.mxu0 0.0
    %1112 = vmatprep.subr.mxu0 0.0
    %1113 = vmatpush2.msra.mxu0 0.0
    %1114 = vmatprep.subr.mxu0 0.0
    %1115 = vmatpush2.msra.mxu0 0.0
    %1116 = vmatprep.subr.mxu0 0.0
    %1117 = vmatpush2.msra.mxu0 0.0
    %1118 = vmatprep.subr.mxu0 0.0
    %1119 = vmatpush2.msra.mxu0 0.0
    %1120 = vmatprep.subr.mxu0 0.0
    %1121 = vmatpush2.msra.mxu0 0.0
    %1122 = vmatprep.subr.mxu0 0.0
    %1123 = vmatpush2.msra.mxu0 0.0
    %1124 = vmatprep.mubr.f32.mxu0 0.0
    %1125 = vmatmul.mubr.f32.gmra.mxu0 %v80
    %v1126 = vpop.f32.mrf.mxu0
    %v1127 = vadd.f32 %v76, %v1126
    %v1128 = vpop.f32.mrf.mxu0
    %1129 = vmatprep.mubr.f32.mxu0 0.0
    %1130 = vmatmul.mubr.f32.gmra.mxu0 %v83
    %v1131 = vpop.f32.mrf.mxu0
    %v1132 = vadd.f32 %v77, %v1131
    %v1133 = vpop.f32.mrf.mxu0
    %1134 = vdwg.mxu0
    %1135 = vmatprep.subr.mxu0 0.0
    %1136 = vmatpush1.msra.mxu0 0.0
    %1137 = vmatprep.subr.mxu0 0.0
    %1138 = vmatpush1.msra.mxu0 0.0
    %1139 = vmatprep.subr.mxu0 0.0
    %1140 = vmatpush1.msra.mxu0 0.0
    %1141 = vmatprep.subr.mxu0 0.0
    %1142 = vmatpush1.msra.mxu0 0.0
    %1143 = vmatprep.subr.mxu0 0.0
    %1144 = vmatpush1.msra.mxu0 0.0
    %1145 = vmatprep.subr.mxu0 0.0
    %1146 = vmatpush1.msra.mxu0 0.0
    %1147 = vmatprep.subr.mxu0 0.0
    %1148 = vmatpush1.msra.mxu0 0.0
    %1149 = vmatprep.subr.mxu0 0.0
    %1150 = vmatpush1.msra.mxu0 0.0
    %1151 = vmatprep.subr.mxu0 0.0
    %1152 = vmatpush1.msra.mxu0 0.0
    %1153 = vmatprep.subr.mxu0 0.0
    %1154 = vmatpush1.msra.mxu0 0.0
    %1155 = vmatprep.subr.mxu0 0.0
    %1156 = vmatpush1.msra.mxu0 0.0
    %1157 = vmatprep.subr.mxu0 0.0
    %1158 = vmatpush1.msra.mxu0 0.0
    %1159 = vmatprep.subr.mxu0 0.0
    %1160 = vmatpush1.msra.mxu0 0.0
    %1161 = vmatprep.subr.mxu0 0.0
    %1162 = vmatpush1.msra.mxu0 0.0
    %1163 = vmatprep.subr.mxu0 0.0
    %1164 = vmatpush1.msra.mxu0 0.0
    %1165 = vmatprep.subr.mxu0 0.0
    %1166 = vmatpush1.msra.mxu0 %v72
    %1167 = vmatprep.subr.mxu0 0.0
    %1168 = vmatpush2.msra.mxu0 0.0
    %1169 = vmatprep.subr.mxu0 0.0
    %1170 = vmatpush2.msra.mxu0 0.0
    %1171 = vmatprep.subr.mxu0 0.0
    %1172 = vmatpush2.msra.mxu0 0.0
    %1173 = vmatprep.subr.mxu0 0.0
    %1174 = vmatpush2.msra.mxu0 0.0
    %1175 = vmatprep.subr.mxu0 0.0
    %1176 = vmatpush2.msra.mxu0 0.0
    %1177 = vmatprep.subr.mxu0 0.0
    %1178 = vmatpush2.msra.mxu0 0.0
    %1179 = vmatprep.subr.mxu0 0.0
    %1180 = vmatpush2.msra.mxu0 0.0
    %1181 = vmatprep.subr.mxu0 0.0
    %1182 = vmatpush2.msra.mxu0 0.0
    %1183 = vmatprep.subr.mxu0 0.0
    %1184 = vmatpush2.msra.mxu0 0.0
    %1185 = vmatprep.subr.mxu0 0.0
    %1186 = vmatpush2.msra.mxu0 0.0
    %1187 = vmatprep.subr.mxu0 0.0
    %1188 = vmatpush2.msra.mxu0 0.0
    %1189 = vmatprep.subr.mxu0 0.0
    %1190 = vmatpush2.msra.mxu0 0.0
    %1191 = vmatprep.subr.mxu0 0.0
    %1192 = vmatpush2.msra.mxu0 0.0
    %1193 = vmatprep.subr.mxu0 0.0
    %1194 = vmatpush2.msra.mxu0 0.0
    %1195 = vmatprep.subr.mxu0 0.0
    %1196 = vmatpush2.msra.mxu0 0.0
    %1197 = vmatprep.subr.mxu0 0.0
    %1198 = vmatpush2.msra.mxu0 0.0
    %1199 = vmatprep.mubr.f32.mxu0 0.0
    %1200 = vmatmul.mubr.f32.gmra.mxu0 %v80
    %v1201 = vpop.f32.mrf.mxu0
    %v1202 = vadd.f32 %v76, %v1201
    %v1203 = vpop.f32.mrf.mxu0
    %1204 = vmatprep.mubr.f32.mxu0 0.0
    %1205 = vmatmul.mubr.f32.gmra.mxu0 %v83
    %v1206 = vpop.f32.mrf.mxu0
    %v1207 = vadd.f32 %v77, %v1206
    %v1208 = vpop.f32.mrf.mxu0
    %1209 = vdwg.mxu0
    %1210 = vmatprep.subr.mxu0 0.0
    %1211 = vmatpush1.msra.mxu0 0.0
    %1212 = vmatprep.subr.mxu0 0.0
    %1213 = vmatpush1.msra.mxu0 0.0
    %1214 = vmatprep.subr.mxu0 0.0
    %1215 = vmatpush1.msra.mxu0 0.0
    %1216 = vmatprep.subr.mxu0 0.0
    %1217 = vmatpush1.msra.mxu0 0.0
    %1218 = vmatprep.subr.mxu0 0.0
    %1219 = vmatpush1.msra.mxu0 0.0
    %1220 = vmatprep.subr.mxu0 0.0
    %1221 = vmatpush1.msra.mxu0 0.0
    %1222 = vmatprep.subr.mxu0 0.0
    %1223 = vmatpush1.msra.mxu0 0.0
    %1224 = vmatprep.subr.mxu0 0.0
    %1225 = vmatpush1.msra.mxu0 0.0
    %1226 = vmatprep.subr.mxu0 0.0
    %1227 = vmatpush1.msra.mxu0 0.0
    %1228 = vmatprep.subr.mxu0 0.0
    %1229 = vmatpush1.msra.mxu0 0.0
    %1230 = vmatprep.subr.mxu0 0.0
    %1231 = vmatpush1.msra.mxu0 0.0
    %1232 = vmatprep.subr.mxu0 0.0
    %1233 = vmatpush1.msra.mxu0 0.0
    %1234 = vmatprep.subr.mxu0 0.0
    %1235 = vmatpush1.msra.mxu0 0.0
    %1236 = vmatprep.subr.mxu0 0.0
    %1237 = vmatpush1.msra.mxu0 0.0
    %1238 = vmatprep.subr.mxu0 0.0
    %1239 = vmatpush1.msra.mxu0 0.0
    %1240 = vmatprep.subr.mxu0 0.0
    %1241 = vmatpush1.msra.mxu0 %v73
    %1242 = vmatprep.subr.mxu0 0.0
    %1243 = vmatpush2.msra.mxu0 0.0
    %1244 = vmatprep.subr.mxu0 0.0
    %1245 = vmatpush2.msra.mxu0 0.0
    %1246 = vmatprep.subr.mxu0 0.0
    %1247 = vmatpush2.msra.mxu0 0.0
    %1248 = vmatprep.subr.mxu0 0.0
    %1249 = vmatpush2.msra.mxu0 0.0
    %1250 = vmatprep.subr.mxu0 0.0
    %1251 = vmatpush2.msra.mxu0 0.0
    %1252 = vmatprep.subr.mxu0 0.0
    %1253 = vmatpush2.msra.mxu0 0.0
    %1254 = vmatprep.subr.mxu0 0.0
    %1255 = vmatpush2.msra.mxu0 0.0
    %1256 = vmatprep.subr.mxu0 0.0
    %1257 = vmatpush2.msra.mxu0 0.0
    %1258 = vmatprep.subr.mxu0 0.0
    %1259 = vmatpush2.msra.mxu0 0.0
    %1260 = vmatprep.subr.mxu0 0.0
    %1261 = vmatpush2.msra.mxu0 0.0
    %1262 = vmatprep.subr.mxu0 0.0
    %1263 = vmatpush2.msra.mxu0 0.0
    %1264 = vmatprep.subr.mxu0 0.0
    %1265 = vmatpush2.msra.mxu0 0.0
    %1266 = vmatprep.subr.mxu0 0.0
    %1267 = vmatpush2.msra.mxu0 0.0
    %1268 = vmatprep.subr.mxu0 0.0
    %1269 = vmatpush2.msra.mxu0 0.0
    %1270 = vmatprep.subr.mxu0 0.0
    %1271 = vmatpush2.msra.mxu0 0.0
    %1272 = vmatprep.subr.mxu0 0.0
    %1273 = vmatpush2.msra.mxu0 0.0
    %1274 = vmatprep.mubr.f32.mxu0 0.0
    %1275 = vmatmul.mubr.f32.gmra.mxu0 %v80
    %v1276 = vpop.f32.mrf.mxu0
    %v1277 = vadd.f32 %v76, %v1276
    %v1278 = vpop.f32.mrf.mxu0
    %1279 = vmatprep.mubr.f32.mxu0 0.0
    %1280 = vmatmul.mubr.f32.gmra.mxu0 %v83
    %v1281 = vpop.f32.mrf.mxu0
    %v1282 = vadd.f32 %v77, %v1281
    %v1283 = vpop.f32.mrf.mxu0
    %1284 = vdwg.mxu0
    %v1285 = vmul.f32 %v152, 0.5
    %v1286 = vmul.f32 %v157, 0.5
    %v1287 = vmul.f32 %v227, 0.5
    %v1288 = vmul.f32 %v232, 0.5
    %v1289 = vmul.f32 %v302, 0.5
    %v1290 = vmul.f32 %v307, 0.5
    %v1291 = vmul.f32 %v377, 0.5
    %v1292 = vmul.f32 %v382, 0.5
    %v1293 = vmul.f32 %v452, 0.5
    %v1294 = vmul.f32 %v457, 0.5
    %v1295 = vmul.f32 %v527, 0.5
    %v1296 = vmul.f32 %v532, 0.5
    %v1297 = vmul.f32 %v602, 0.5
    %v1298 = vmul.f32 %v607, 0.5
    %v1299 = vmul.f32 %v677, 0.5
    %v1300 = vmul.f32 %v682, 0.5
    %v1301 = vmul.f32 %v752, 0.5
    %v1302 = vmul.f32 %v757, 0.5
    %v1303 = vmul.f32 %v827, 0.5
    %v1304 = vmul.f32 %v832, 0.5
    %v1305 = vmul.f32 %v902, 0.5
    %v1306 = vmul.f32 %v907, 0.5
    %v1307 = vmul.f32 %v977, 0.5
    %v1308 = vmul.f32 %v982, 0.5
    %v1309 = vmul.f32 %v1052, 0.5
    %v1310 = vmul.f32 %v1057, 0.5
    %v1311 = vmul.f32 %v1127, 0.5
    %v1312 = vmul.f32 %v1132, 0.5
    %v1313 = vmul.f32 %v1202, 0.5
    %v1314 = vmul.f32 %v1207, 0.5
    %v1315 = vmul.f32 %v1277, 0.5
    %v1316 = vmul.f32 %v1282, 0.5
    %v1317 = vmul.f32 %v152, 0.70710677
    %v1318 = vmul.f32 %v157, 0.70710677
    %v1319 = vmul.f32 %v227, 0.70710677
    %v1320 = vmul.f32 %v232, 0.70710677
    %v1321 = vmul.f32 %v302, 0.70710677
    %v1322 = vmul.f32 %v307, 0.70710677
    %v1323 = vmul.f32 %v377, 0.70710677
    %v1324 = vmul.f32 %v382, 0.70710677
    %v1325 = vmul.f32 %v452, 0.70710677
    %v1326 = vmul.f32 %v457, 0.70710677
    %v1327 = vmul.f32 %v527, 0.70710677
    %v1328 = vmul.f32 %v532, 0.70710677
    %v1329 = vmul.f32 %v602, 0.70710677
    %v1330 = vmul.f32 %v607, 0.70710677
    %v1331 = vmul.f32 %v677, 0.70710677
    %v1332 = vmul.f32 %v682, 0.70710677
    %v1333 = vmul.f32 %v752, 0.70710677
    %v1334 = vmul.f32 %v757, 0.70710677
    %v1335 = vmul.f32 %v827, 0.70710677
    %v1336 = vmul.f32 %v832, 0.70710677
    %v1337 = vmul.f32 %v902, 0.70710677
    %v1338 = vmul.f32 %v907, 0.70710677
    %v1339 = vmul.f32 %v977, 0.70710677
    %v1340 = vmul.f32 %v982, 0.70710677
    %v1341 = vmul.f32 %v1052, 0.70710677
    %v1342 = vmul.f32 %v1057, 0.70710677
    %v1343 = vmul.f32 %v1127, 0.70710677
    %v1344 = vmul.f32 %v1132, 0.70710677
    %v1345 = vmul.f32 %v1202, 0.70710677
    %v1346 = vmul.f32 %v1207, 0.70710677
    %v1347 = vmul.f32 %v1277, 0.70710677
    %v1348 = vmul.f32 %v1282, 0.70710677
    %v1349 = vand.u32 2147483647, %v1317
    %v1350 = vand.u32 2147483647, %v1318
    %v1351 = vand.u32 2147483647, %v1319
    %v1352 = vand.u32 2147483647, %v1320
    %v1353 = vand.u32 2147483647, %v1321
    %v1354 = vand.u32 2147483647, %v1322
    %v1355 = vand.u32 2147483647, %v1323
    %v1356 = vand.u32 2147483647, %v1324
    %v1357 = vand.u32 2147483647, %v1325
    %v1358 = vand.u32 2147483647, %v1326
    %v1359 = vand.u32 2147483647, %v1327
    %v1360 = vand.u32 2147483647, %v1328
    %v1361 = vand.u32 2147483647, %v1329
    %v1362 = vand.u32 2147483647, %v1330
    %v1363 = vand.u32 2147483647, %v1331
    %v1364 = vand.u32 2147483647, %v1332
    %v1365 = vand.u32 2147483647, %v1333
    %v1366 = vand.u32 2147483647, %v1334
    %v1367 = vand.u32 2147483647, %v1335
    %v1368 = vand.u32 2147483647, %v1336
    %v1369 = vand.u32 2147483647, %v1337
    %v1370 = vand.u32 2147483647, %v1338
    %v1371 = vand.u32 2147483647, %v1339
    %v1372 = vand.u32 2147483647, %v1340
    %v1373 = vand.u32 2147483647, %v1341
    %v1374 = vand.u32 2147483647, %v1342
    %v1375 = vand.u32 2147483647, %v1343
    %v1376 = vand.u32 2147483647, %v1344
    %v1377 = vand.u32 2147483647, %v1345
    %v1378 = vand.u32 2147483647, %v1346
    %v1379 = vand.u32 2147483647, %v1347
    %v1380 = vand.u32 2147483647, %v1348
    %v1381 = vmul.f32 %v1349, 0.3275911
    %v1382 = vmul.f32 %v1350, 0.3275911
    %v1383 = vmul.f32 %v1351, 0.3275911
    %v1384 = vmul.f32 %v1352, 0.3275911
    %v1385 = vmul.f32 %v1353, 0.3275911
    %v1386 = vmul.f32 %v1354, 0.3275911
    %v1387 = vmul.f32 %v1355, 0.3275911
    %v1388 = vmul.f32 %v1356, 0.3275911
    %v1389 = vmul.f32 %v1357, 0.3275911
    %v1390 = vmul.f32 %v1358, 0.3275911
    %v1391 = vmul.f32 %v1359, 0.3275911
    %v1392 = vmul.f32 %v1360, 0.3275911
    %v1393 = vmul.f32 %v1361, 0.3275911
    %v1394 = vmul.f32 %v1362, 0.3275911
    %v1395 = vmul.f32 %v1363, 0.3275911
    %v1396 = vmul.f32 %v1364, 0.3275911
    %v1397 = vmul.f32 %v1365, 0.3275911
    %v1398 = vmul.f32 %v1366, 0.3275911
    %v1399 = vmul.f32 %v1367, 0.3275911
    %v1400 = vmul.f32 %v1368, 0.3275911
    %v1401 = vmul.f32 %v1369, 0.3275911
    %v1402 = vmul.f32 %v1370, 0.3275911
    %v1403 = vmul.f32 %v1371, 0.3275911
    %v1404 = vmul.f32 %v1372, 0.3275911
    %v1405 = vmul.f32 %v1373, 0.3275911
    %v1406 = vmul.f32 %v1374, 0.3275911
    %v1407 = vmul.f32 %v1375, 0.3275911
    %v1408 = vmul.f32 %v1376, 0.3275911
    %v1409 = vmul.f32 %v1377, 0.3275911
    %v1410 = vmul.f32 %v1378, 0.3275911
    %v1411 = vmul.f32 %v1379, 0.3275911
    %v1412 = vmul.f32 %v1380, 0.3275911
    %v1413 = vadd.f32 %v1381, 1.0
    %v1414 = vadd.f32 %v1382, 1.0
    %v1415 = vadd.f32 %v1383, 1.0
    %v1416 = vadd.f32 %v1384, 1.0
    %v1417 = vadd.f32 %v1385, 1.0
    %v1418 = vadd.f32 %v1386, 1.0
    %v1419 = vadd.f32 %v1387, 1.0
    %v1420 = vadd.f32 %v1388, 1.0
    %v1421 = vadd.f32 %v1389, 1.0
    %v1422 = vadd.f32 %v1390, 1.0
    %v1423 = vadd.f32 %v1391, 1.0
    %v1424 = vadd.f32 %v1392, 1.0
    %v1425 = vadd.f32 %v1393, 1.0
    %v1426 = vadd.f32 %v1394, 1.0
    %v1427 = vadd.f32 %v1395, 1.0
    %v1428 = vadd.f32 %v1396, 1.0
    %v1429 = vadd.f32 %v1397, 1.0
    %v1430 = vadd.f32 %v1398, 1.0
    %v1431 = vadd.f32 %v1399, 1.0
    %v1432 = vadd.f32 %v1400, 1.0
    %v1433 = vadd.f32 %v1401, 1.0
    %v1434 = vadd.f32 %v1402, 1.0
    %v1435 = vadd.f32 %v1403, 1.0
    %v1436 = vadd.f32 %v1404, 1.0
    %v1437 = vadd.f32 %v1405, 1.0
    %v1438 = vadd.f32 %v1406, 1.0
    %v1439 = vadd.f32 %v1407, 1.0
    %v1440 = vadd.f32 %v1408, 1.0
    %v1441 = vadd.f32 %v1409, 1.0
    %v1442 = vadd.f32 %v1410, 1.0
    %v1443 = vadd.f32 %v1411, 1.0
    %v1444 = vadd.f32 %v1412, 1.0
    %v1445 = vrcp.pop %v1413
    %v1446 = vrcp.pop %v1414
    %v1447 = vrcp.pop %v1415
    %v1448 = vrcp.pop %v1416
    %v1449 = vrcp.pop %v1417
    %v1450 = vrcp.pop %v1418
    %v1451 = vrcp.pop %v1419
    %v1452 = vrcp.pop %v1420
    %v1453 = vrcp.pop %v1421
    %v1454 = vrcp.pop %v1422
    %v1455 = vrcp.pop %v1423
    %v1456 = vrcp.pop %v1424
    %v1457 = vrcp.pop %v1425
    %v1458 = vrcp.pop %v1426
    %v1459 = vrcp.pop %v1427
    %v1460 = vrcp.pop %v1428
    %v1461 = vrcp.pop %v1429
    %v1462 = vrcp.pop %v1430
    %v1463 = vrcp.pop %v1431
    %v1464 = vrcp.pop %v1432
    %v1465 = vrcp.pop %v1433
    %v1466 = vrcp.pop %v1434
    %v1467 = vrcp.pop %v1435
    %v1468 = vrcp.pop %v1436
    %v1469 = vrcp.pop %v1437
    %v1470 = vrcp.pop %v1438
    %v1471 = vrcp.pop %v1439
    %v1472 = vrcp.pop %v1440
    %v1473 = vrcp.pop %v1441
    %v1474 = vrcp.pop %v1442
    %v1475 = vrcp.pop %v1443
    %v1476 = vrcp.pop %v1444
    %v1477 = vmul.f32 %v1413, %v1445
    %v1478 = vmul.f32 %v1414, %v1446
    %v1479 = vmul.f32 %v1415, %v1447
    %v1480 = vmul.f32 %v1416, %v1448
    %v1481 = vmul.f32 %v1417, %v1449
    %v1482 = vmul.f32 %v1418, %v1450
    %v1483 = vmul.f32 %v1419, %v1451
    %v1484 = vmul.f32 %v1420, %v1452
    %v1485 = vmul.f32 %v1421, %v1453
    %v1486 = vmul.f32 %v1422, %v1454
    %v1487 = vmul.f32 %v1423, %v1455
    %v1488 = vmul.f32 %v1424, %v1456
    %v1489 = vmul.f32 %v1425, %v1457
    %v1490 = vmul.f32 %v1426, %v1458
    %v1491 = vmul.f32 %v1427, %v1459
    %v1492 = vmul.f32 %v1428, %v1460
    %v1493 = vmul.f32 %v1429, %v1461
    %v1494 = vmul.f32 %v1430, %v1462
    %v1495 = vmul.f32 %v1431, %v1463
    %v1496 = vmul.f32 %v1432, %v1464
    %v1497 = vmul.f32 %v1433, %v1465
    %v1498 = vmul.f32 %v1434, %v1466
    %v1499 = vmul.f32 %v1435, %v1467
    %v1500 = vmul.f32 %v1436, %v1468
    %v1501 = vmul.f32 %v1437, %v1469
    %v1502 = vmul.f32 %v1438, %v1470
    %v1503 = vmul.f32 %v1439, %v1471
    %v1504 = vmul.f32 %v1440, %v1472
    %v1505 = vmul.f32 %v1441, %v1473
    %v1506 = vmul.f32 %v1442, %v1474
    %v1507 = vmul.f32 %v1443, %v1475
    %v1508 = vmul.f32 %v1444, %v1476
    %v1509 = vsub.f32 2.0, %v1477
    %v1510 = vsub.f32 2.0, %v1478
    %v1511 = vsub.f32 2.0, %v1479
    %v1512 = vsub.f32 2.0, %v1480
    %v1513 = vsub.f32 2.0, %v1481
    %v1514 = vsub.f32 2.0, %v1482
    %v1515 = vsub.f32 2.0, %v1483
    %v1516 = vsub.f32 2.0, %v1484
    %v1517 = vsub.f32 2.0, %v1485
    %v1518 = vsub.f32 2.0, %v1486
    %v1519 = vsub.f32 2.0, %v1487
    %v1520 = vsub.f32 2.0, %v1488
    %v1521 = vsub.f32 2.0, %v1489
    %v1522 = vsub.f32 2.0, %v1490
    %v1523 = vsub.f32 2.0, %v1491
    %v1524 = vsub.f32 2.0, %v1492
    %v1525 = vsub.f32 2.0, %v1493
    %v1526 = vsub.f32 2.0, %v1494
    %v1527 = vsub.f32 2.0, %v1495
    %v1528 = vsub.f32 2.0, %v1496
    %v1529 = vsub.f32 2.0, %v1497
    %v1530 = vsub.f32 2.0, %v1498
    %v1531 = vsub.f32 2.0, %v1499
    %v1532 = vsub.f32 2.0, %v1500
    %v1533 = vsub.f32 2.0, %v1501
    %v1534 = vsub.f32 2.0, %v1502
    %v1535 = vsub.f32 2.0, %v1503
    %v1536 = vsub.f32 2.0, %v1504
    %v1537 = vsub.f32 2.0, %v1505
    %v1538 = vsub.f32 2.0, %v1506
    %v1539 = vsub.f32 2.0, %v1507
    %v1540 = vsub.f32 2.0, %v1508
    %v1541 = vmul.f32 %v1445, %v1509
    %v1542 = vmul.f32 %v1446, %v1510
    %v1543 = vmul.f32 %v1447, %v1511
    %v1544 = vmul.f32 %v1448, %v1512
    %v1545 = vmul.f32 %v1449, %v1513
    %v1546 = vmul.f32 %v1450, %v1514
    %v1547 = vmul.f32 %v1451, %v1515
    %v1548 = vmul.f32 %v1452, %v1516
    %v1549 = vmul.f32 %v1453, %v1517
    %v1550 = vmul.f32 %v1454, %v1518
    %v1551 = vmul.f32 %v1455, %v1519
    %v1552 = vmul.f32 %v1456, %v1520
    %v1553 = vmul.f32 %v1457, %v1521
    %v1554 = vmul.f32 %v1458, %v1522
    %v1555 = vmul.f32 %v1459, %v1523
    %v1556 = vmul.f32 %v1460, %v1524
    %v1557 = vmul.f32 %v1461, %v1525
    %v1558 = vmul.f32 %v1462, %v1526
    %v1559 = vmul.f32 %v1463, %v1527
    %v1560 = vmul.f32 %v1464, %v1528
    %v1561 = vmul.f32 %v1465, %v1529
    %v1562 = vmul.f32 %v1466, %v1530
    %v1563 = vmul.f32 %v1467, %v1531
    %v1564 = vmul.f32 %v1468, %v1532
    %v1565 = vmul.f32 %v1469, %v1533
    %v1566 = vmul.f32 %v1470, %v1534
    %v1567 = vmul.f32 %v1471, %v1535
    %v1568 = vmul.f32 %v1472, %v1536
    %v1569 = vmul.f32 %v1473, %v1537
    %v1570 = vmul.f32 %v1474, %v1538
    %v1571 = vmul.f32 %v1475, %v1539
    %v1572 = vmul.f32 %v1476, %v1540
    %v1573 = vmul.f32 %v1541, 1.0614054
    %v1574 = vmul.f32 %v1542, 1.0614054
    %v1575 = vmul.f32 %v1543, 1.0614054
    %v1576 = vmul.f32 %v1544, 1.0614054
    %v1577 = vmul.f32 %v1545, 1.0614054
    %v1578 = vmul.f32 %v1546, 1.0614054
    %v1579 = vmul.f32 %v1547, 1.0614054
    %v1580 = vmul.f32 %v1548, 1.0614054
    %v1581 = vmul.f32 %v1549, 1.0614054
    %v1582 = vmul.f32 %v1550, 1.0614054
    %v1583 = vmul.f32 %v1551, 1.0614054
    %v1584 = vmul.f32 %v1552, 1.0614054
    %v1585 = vmul.f32 %v1553, 1.0614054
    %v1586 = vmul.f32 %v1554, 1.0614054
    %v1587 = vmul.f32 %v1555, 1.0614054
    %v1588 = vmul.f32 %v1556, 1.0614054
    %v1589 = vmul.f32 %v1557, 1.0614054
    %v1590 = vmul.f32 %v1558, 1.0614054
    %v1591 = vmul.f32 %v1559, 1.0614054
    %v1592 = vmul.f32 %v1560, 1.0614054
    %v1593 = vmul.f32 %v1561, 1.0614054
    %v1594 = vmul.f32 %v1562, 1.0614054
    %v1595 = vmul.f32 %v1563, 1.0614054
    %v1596 = vmul.f32 %v1564, 1.0614054
    %v1597 = vmul.f32 %v1565, 1.0614054
    %v1598 = vmul.f32 %v1566, 1.0614054
    %v1599 = vmul.f32 %v1567, 1.0614054
    %v1600 = vmul.f32 %v1568, 1.0614054
    %v1601 = vmul.f32 %v1569, 1.0614054
    %v1602 = vmul.f32 %v1570, 1.0614054
    %v1603 = vmul.f32 %v1571, 1.0614054
    %v1604 = vmul.f32 %v1572, 1.0614054
    %v1605 = vadd.f32 %v1573, -1.4531521
    %v1606 = vadd.f32 %v1574, -1.4531521
    %v1607 = vadd.f32 %v1575, -1.4531521
    %v1608 = vadd.f32 %v1576, -1.4531521
    %v1609 = vadd.f32 %v1577, -1.4531521
    %v1610 = vadd.f32 %v1578, -1.4531521
    %v1611 = vadd.f32 %v1579, -1.4531521
    %v1612 = vadd.f32 %v1580, -1.4531521
    %v1613 = vadd.f32 %v1581, -1.4531521
    %v1614 = vadd.f32 %v1582, -1.4531521
    %v1615 = vadd.f32 %v1583, -1.4531521
    %v1616 = vadd.f32 %v1584, -1.4531521
    %v1617 = vadd.f32 %v1585, -1.4531521
    %v1618 = vadd.f32 %v1586, -1.4531521
    %v1619 = vadd.f32 %v1587, -1.4531521
    %v1620 = vadd.f32 %v1588, -1.4531521
    %v1621 = vadd.f32 %v1589, -1.4531521
    %v1622 = vadd.f32 %v1590, -1.4531521
    %v1623 = vadd.f32 %v1591, -1.4531521
    %v1624 = vadd.f32 %v1592, -1.4531521
    %v1625 = vadd.f32 %v1593, -1.4531521
    %v1626 = vadd.f32 %v1594, -1.4531521
    %v1627 = vadd.f32 %v1595, -1.4531521
    %v1628 = vadd.f32 %v1596, -1.4531521
    %v1629 = vadd.f32 %v1597, -1.4531521
    %v1630 = vadd.f32 %v1598, -1.4531521
    %v1631 = vadd.f32 %v1599, -1.4531521
    %v1632 = vadd.f32 %v1600, -1.4531521
    %v1633 = vadd.f32 %v1601, -1.4531521
    %v1634 = vadd.f32 %v1602, -1.4531521
    %v1635 = vadd.f32 %v1603, -1.4531521
    %v1636 = vadd.f32 %v1604, -1.4531521
    %v1637 = vmul.f32 %v1605, %v1541
    %v1638 = vmul.f32 %v1606, %v1542
    %v1639 = vmul.f32 %v1607, %v1543
    %v1640 = vmul.f32 %v1608, %v1544
    %v1641 = vmul.f32 %v1609, %v1545
    %v1642 = vmul.f32 %v1610, %v1546
    %v1643 = vmul.f32 %v1611, %v1547
    %v1644 = vmul.f32 %v1612, %v1548
    %v1645 = vmul.f32 %v1613, %v1549
    %v1646 = vmul.f32 %v1614, %v1550
    %v1647 = vmul.f32 %v1615, %v1551
    %v1648 = vmul.f32 %v1616, %v1552
    %v1649 = vmul.f32 %v1617, %v1553
    %v1650 = vmul.f32 %v1618, %v1554
    %v1651 = vmul.f32 %v1619, %v1555
    %v1652 = vmul.f32 %v1620, %v1556
    %v1653 = vmul.f32 %v1621, %v1557
    %v1654 = vmul.f32 %v1622, %v1558
    %v1655 = vmul.f32 %v1623, %v1559
    %v1656 = vmul.f32 %v1624, %v1560
    %v1657 = vmul.f32 %v1625, %v1561
    %v1658 = vmul.f32 %v1626, %v1562
    %v1659 = vmul.f32 %v1627, %v1563
    %v1660 = vmul.f32 %v1628, %v1564
    %v1661 = vmul.f32 %v1629, %v1565
    %v1662 = vmul.f32 %v1630, %v1566
    %v1663 = vmul.f32 %v1631, %v1567
    %v1664 = vmul.f32 %v1632, %v1568
    %v1665 = vmul.f32 %v1633, %v1569
    %v1666 = vmul.f32 %v1634, %v1570
    %v1667 = vmul.f32 %v1635, %v1571
    %v1668 = vmul.f32 %v1636, %v1572
    %v1669 = vadd.f32 %v1637, 1.4214138
    %v1670 = vadd.f32 %v1638, 1.4214138
    %v1671 = vadd.f32 %v1639, 1.4214138
    %v1672 = vadd.f32 %v1640, 1.4214138
    %v1673 = vadd.f32 %v1641, 1.4214138
    %v1674 = vadd.f32 %v1642, 1.4214138
    %v1675 = vadd.f32 %v1643, 1.4214138
    %v1676 = vadd.f32 %v1644, 1.4214138
    %v1677 = vadd.f32 %v1645, 1.4214138
    %v1678 = vadd.f32 %v1646, 1.4214138
    %v1679 = vadd.f32 %v1647, 1.4214138
    %v1680 = vadd.f32 %v1648, 1.4214138
    %v1681 = vadd.f32 %v1649, 1.4214138
    %v1682 = vadd.f32 %v1650, 1.4214138
    %v1683 = vadd.f32 %v1651, 1.4214138
    %v1684 = vadd.f32 %v1652, 1.4214138
    %v1685 = vadd.f32 %v1653, 1.4214138
    %v1686 = vadd.f32 %v1654, 1.4214138
    %v1687 = vadd.f32 %v1655, 1.4214138
    %v1688 = vadd.f32 %v1656, 1.4214138
    %v1689 = vadd.f32 %v1657, 1.4214138
    %v1690 = vadd.f32 %v1658, 1.4214138
    %v1691 = vadd.f32 %v1659, 1.4214138
    %v1692 = vadd.f32 %v1660, 1.4214138
    %v1693 = vadd.f32 %v1661, 1.4214138
    %v1694 = vadd.f32 %v1662, 1.4214138
    %v1695 = vadd.f32 %v1663, 1.4214138
    %v1696 = vadd.f32 %v1664, 1.4214138
    %v1697 = vadd.f32 %v1665, 1.4214138
    %v1698 = vadd.f32 %v1666, 1.4214138
    %v1699 = vadd.f32 %v1667, 1.4214138
    %v1700 = vadd.f32 %v1668, 1.4214138
    %v1701 = vmul.f32 %v1669, %v1541
    %v1702 = vmul.f32 %v1670, %v1542
    %v1703 = vmul.f32 %v1671, %v1543
    %v1704 = vmul.f32 %v1672, %v1544
    %v1705 = vmul.f32 %v1673, %v1545
    %v1706 = vmul.f32 %v1674, %v1546
    %v1707 = vmul.f32 %v1675, %v1547
    %v1708 = vmul.f32 %v1676, %v1548
    %v1709 = vmul.f32 %v1677, %v1549
    %v1710 = vmul.f32 %v1678, %v1550
    %v1711 = vmul.f32 %v1679, %v1551
    %v1712 = vmul.f32 %v1680, %v1552
    %v1713 = vmul.f32 %v1681, %v1553
    %v1714 = vmul.f32 %v1682, %v1554
    %v1715 = vmul.f32 %v1683, %v1555
    %v1716 = vmul.f32 %v1684, %v1556
    %v1717 = vmul.f32 %v1685, %v1557
    %v1718 = vmul.f32 %v1686, %v1558
    %v1719 = vmul.f32 %v1687, %v1559
    %v1720 = vmul.f32 %v1688, %v1560
    %v1721 = vmul.f32 %v1689, %v1561
    %v1722 = vmul.f32 %v1690, %v1562
    %v1723 = vmul.f32 %v1691, %v1563
    %v1724 = vmul.f32 %v1692, %v1564
    %v1725 = vmul.f32 %v1693, %v1565
    %v1726 = vmul.f32 %v1694, %v1566
    %v1727 = vmul.f32 %v1695, %v1567
    %v1728 = vmul.f32 %v1696, %v1568
    %v1729 = vmul.f32 %v1697, %v1569
    %v1730 = vmul.f32 %v1698, %v1570
    %v1731 = vmul.f32 %v1699, %v1571
    %v1732 = vmul.f32 %v1700, %v1572
    %v1733 = vadd.f32 %v1701, -0.28449672
    %v1734 = vadd.f32 %v1702, -0.28449672
    %v1735 = vadd.f32 %v1703, -0.28449672
    %v1736 = vadd.f32 %v1704, -0.28449672
    %v1737 = vadd.f32 %v1705, -0.28449672
    %v1738 = vadd.f32 %v1706, -0.28449672
    %v1739 = vadd.f32 %v1707, -0.28449672
    %v1740 = vadd.f32 %v1708, -0.28449672
    %v1741 = vadd.f32 %v1709, -0.28449672
    %v1742 = vadd.f32 %v1710, -0.28449672
    %v1743 = vadd.f32 %v1711, -0.28449672
    %v1744 = vadd.f32 %v1712, -0.28449672
    %v1745 = vadd.f32 %v1713, -0.28449672
    %v1746 = vadd.f32 %v1714, -0.28449672
    %v1747 = vadd.f32 %v1715, -0.28449672
    %v1748 = vadd.f32 %v1716, -0.28449672
    %v1749 = vadd.f32 %v1717, -0.28449672
    %v1750 = vadd.f32 %v1718, -0.28449672
    %v1751 = vadd.f32 %v1719, -0.28449672
    %v1752 = vadd.f32 %v1720, -0.28449672
    %v1753 = vadd.f32 %v1721, -0.28449672
    %v1754 = vadd.f32 %v1722, -0.28449672
    %v1755 = vadd.f32 %v1723, -0.28449672
    %v1756 = vadd.f32 %v1724, -0.28449672
    %v1757 = vadd.f32 %v1725, -0.28449672
    %v1758 = vadd.f32 %v1726, -0.28449672
    %v1759 = vadd.f32 %v1727, -0.28449672
    %v1760 = vadd.f32 %v1728, -0.28449672
    %v1761 = vadd.f32 %v1729, -0.28449672
    %v1762 = vadd.f32 %v1730, -0.28449672
    %v1763 = vadd.f32 %v1731, -0.28449672
    %v1764 = vadd.f32 %v1732, -0.28449672
    %v1765 = vmul.f32 %v1733, %v1541
    %v1766 = vmul.f32 %v1734, %v1542
    %v1767 = vmul.f32 %v1735, %v1543
    %v1768 = vmul.f32 %v1736, %v1544
    %v1769 = vmul.f32 %v1737, %v1545
    %v1770 = vmul.f32 %v1738, %v1546
    %v1771 = vmul.f32 %v1739, %v1547
    %v1772 = vmul.f32 %v1740, %v1548
    %v1773 = vmul.f32 %v1741, %v1549
    %v1774 = vmul.f32 %v1742, %v1550
    %v1775 = vmul.f32 %v1743, %v1551
    %v1776 = vmul.f32 %v1744, %v1552
    %v1777 = vmul.f32 %v1745, %v1553
    %v1778 = vmul.f32 %v1746, %v1554
    %v1779 = vmul.f32 %v1747, %v1555
    %v1780 = vmul.f32 %v1748, %v1556
    %v1781 = vmul.f32 %v1749, %v1557
    %v1782 = vmul.f32 %v1750, %v1558
    %v1783 = vmul.f32 %v1751, %v1559
    %v1784 = vmul.f32 %v1752, %v1560
    %v1785 = vmul.f32 %v1753, %v1561
    %v1786 = vmul.f32 %v1754, %v1562
    %v1787 = vmul.f32 %v1755, %v1563
    %v1788 = vmul.f32 %v1756, %v1564
    %v1789 = vmul.f32 %v1757, %v1565
    %v1790 = vmul.f32 %v1758, %v1566
    %v1791 = vmul.f32 %v1759, %v1567
    %v1792 = vmul.f32 %v1760, %v1568
    %v1793 = vmul.f32 %v1761, %v1569
    %v1794 = vmul.f32 %v1762, %v1570
    %v1795 = vmul.f32 %v1763, %v1571
    %v1796 = vmul.f32 %v1764, %v1572
    %v1797 = vadd.f32 %v1765, 0.2548296
    %v1798 = vadd.f32 %v1766, 0.2548296
    %v1799 = vadd.f32 %v1767, 0.2548296
    %v1800 = vadd.f32 %v1768, 0.2548296
    %v1801 = vadd.f32 %v1769, 0.2548296
    %v1802 = vadd.f32 %v1770, 0.2548296
    %v1803 = vadd.f32 %v1771, 0.2548296
    %v1804 = vadd.f32 %v1772, 0.2548296
    %v1805 = vadd.f32 %v1773, 0.2548296
    %v1806 = vadd.f32 %v1774, 0.2548296
    %v1807 = vadd.f32 %v1775, 0.2548296
    %v1808 = vadd.f32 %v1776, 0.2548296
    %v1809 = vadd.f32 %v1777, 0.2548296
    %v1810 = vadd.f32 %v1778, 0.2548296
    %v1811 = vadd.f32 %v1779, 0.2548296
    %v1812 = vadd.f32 %v1780, 0.2548296
    %v1813 = vadd.f32 %v1781, 0.2548296
    %v1814 = vadd.f32 %v1782, 0.2548296
    %v1815 = vadd.f32 %v1783, 0.2548296
    %v1816 = vadd.f32 %v1784, 0.2548296
    %v1817 = vadd.f32 %v1785, 0.2548296
    %v1818 = vadd.f32 %v1786, 0.2548296
    %v1819 = vadd.f32 %v1787, 0.2548296
    %v1820 = vadd.f32 %v1788, 0.2548296
    %v1821 = vadd.f32 %v1789, 0.2548296
    %v1822 = vadd.f32 %v1790, 0.2548296
    %v1823 = vadd.f32 %v1791, 0.2548296
    %v1824 = vadd.f32 %v1792, 0.2548296
    %v1825 = vadd.f32 %v1793, 0.2548296
    %v1826 = vadd.f32 %v1794, 0.2548296
    %v1827 = vadd.f32 %v1795, 0.2548296
    %v1828 = vadd.f32 %v1796, 0.2548296
    %v1829 = vmul.f32 %v1797, %v1541
    %v1830 = vmul.f32 %v1798, %v1542
    %v1831 = vmul.f32 %v1799, %v1543
    %v1832 = vmul.f32 %v1800, %v1544
    %v1833 = vmul.f32 %v1801, %v1545
    %v1834 = vmul.f32 %v1802, %v1546
    %v1835 = vmul.f32 %v1803, %v1547
    %v1836 = vmul.f32 %v1804, %v1548
    %v1837 = vmul.f32 %v1805, %v1549
    %v1838 = vmul.f32 %v1806, %v1550
    %v1839 = vmul.f32 %v1807, %v1551
    %v1840 = vmul.f32 %v1808, %v1552
    %v1841 = vmul.f32 %v1809, %v1553
    %v1842 = vmul.f32 %v1810, %v1554
    %v1843 = vmul.f32 %v1811, %v1555
    %v1844 = vmul.f32 %v1812, %v1556
    %v1845 = vmul.f32 %v1813, %v1557
    %v1846 = vmul.f32 %v1814, %v1558
    %v1847 = vmul.f32 %v1815, %v1559
    %v1848 = vmul.f32 %v1816, %v1560
    %v1849 = vmul.f32 %v1817, %v1561
    %v1850 = vmul.f32 %v1818, %v1562
    %v1851 = vmul.f32 %v1819, %v1563
    %v1852 = vmul.f32 %v1820, %v1564
    %v1853 = vmul.f32 %v1821, %v1565
    %v1854 = vmul.f32 %v1822, %v1566
    %v1855 = vmul.f32 %v1823, %v1567
    %v1856 = vmul.f32 %v1824, %v1568
    %v1857 = vmul.f32 %v1825, %v1569
    %v1858 = vmul.f32 %v1826, %v1570
    %v1859 = vmul.f32 %v1827, %v1571
    %v1860 = vmul.f32 %v1828, %v1572
    %v1861 = vsub.f32 0.0, %v1349
    %v1862 = vsub.f32 0.0, %v1350
    %v1863 = vsub.f32 0.0, %v1351
    %v1864 = vsub.f32 0.0, %v1352
    %v1865 = vsub.f32 0.0, %v1353
    %v1866 = vsub.f32 0.0, %v1354
    %v1867 = vsub.f32 0.0, %v1355
    %v1868 = vsub.f32 0.0, %v1356
    %v1869 = vsub.f32 0.0, %v1357
    %v1870 = vsub.f32 0.0, %v1358
    %v1871 = vsub.f32 0.0, %v1359
    %v1872 = vsub.f32 0.0, %v1360
    %v1873 = vsub.f32 0.0, %v1361
    %v1874 = vsub.f32 0.0, %v1362
    %v1875 = vsub.f32 0.0, %v1363
    %v1876 = vsub.f32 0.0, %v1364
    %v1877 = vsub.f32 0.0, %v1365
    %v1878 = vsub.f32 0.0, %v1366
    %v1879 = vsub.f32 0.0, %v1367
    %v1880 = vsub.f32 0.0, %v1368
    %v1881 = vsub.f32 0.0, %v1369
    %v1882 = vsub.f32 0.0, %v1370
    %v1883 = vsub.f32 0.0, %v1371
    %v1884 = vsub.f32 0.0, %v1372
    %v1885 = vsub.f32 0.0, %v1373
    %v1886 = vsub.f32 0.0, %v1374
    %v1887 = vsub.f32 0.0, %v1375
    %v1888 = vsub.f32 0.0, %v1376
    %v1889 = vsub.f32 0.0, %v1377
    %v1890 = vsub.f32 0.0, %v1378
    %v1891 = vsub.f32 0.0, %v1379
    %v1892 = vsub.f32 0.0, %v1380
    %v1893 = vmul.f32 %v1861, %v1349
    %v1894 = vmul.f32 %v1862, %v1350
    %v1895 = vmul.f32 %v1863, %v1351
    %v1896 = vmul.f32 %v1864, %v1352
    %v1897 = vmul.f32 %v1865, %v1353
    %v1898 = vmul.f32 %v1866, %v1354
    %v1899 = vmul.f32 %v1867, %v1355
    %v1900 = vmul.f32 %v1868, %v1356
    %v1901 = vmul.f32 %v1869, %v1357
    %v1902 = vmul.f32 %v1870, %v1358
    %v1903 = vmul.f32 %v1871, %v1359
    %v1904 = vmul.f32 %v1872, %v1360
    %v1905 = vmul.f32 %v1873, %v1361
    %v1906 = vmul.f32 %v1874, %v1362
    %v1907 = vmul.f32 %v1875, %v1363
    %v1908 = vmul.f32 %v1876, %v1364
    %v1909 = vmul.f32 %v1877, %v1365
    %v1910 = vmul.f32 %v1878, %v1366
    %v1911 = vmul.f32 %v1879, %v1367
    %v1912 = vmul.f32 %v1880, %v1368
    %v1913 = vmul.f32 %v1881, %v1369
    %v1914 = vmul.f32 %v1882, %v1370
    %v1915 = vmul.f32 %v1883, %v1371
    %v1916 = vmul.f32 %v1884, %v1372
    %v1917 = vmul.f32 %v1885, %v1373
    %v1918 = vmul.f32 %v1886, %v1374
    %v1919 = vmul.f32 %v1887, %v1375
    %v1920 = vmul.f32 %v1888, %v1376
    %v1921 = vmul.f32 %v1889, %v1377
    %v1922 = vmul.f32 %v1890, %v1378
    %v1923 = vmul.f32 %v1891, %v1379
    %v1924 = vmul.f32 %v1892, %v1380
    %v1925 = vmul.f32 %v1893, 1.442695
    %v1926 = vpow.pop %v1925
    %v1927 = vmul.f32 %v1894, 1.442695
    %v1928 = vpow.pop %v1927
    %v1929 = vmul.f32 %v1895, 1.442695
    %v1930 = vpow.pop %v1929
    %v1931 = vmul.f32 %v1896, 1.442695
    %v1932 = vpow.pop %v1931
    %v1933 = vmul.f32 %v1897, 1.442695
    %v1934 = vpow.pop %v1933
    %v1935 = vmul.f32 %v1898, 1.442695
    %v1936 = vpow.pop %v1935
    %v1937 = vmul.f32 %v1899, 1.442695
    %v1938 = vpow.pop %v1937
    %v1939 = vmul.f32 %v1900, 1.442695
    %v1940 = vpow.pop %v1939
    %v1941 = vmul.f32 %v1901, 1.442695
    %v1942 = vpow.pop %v1941
    %v1943 = vmul.f32 %v1902, 1.442695
    %v1944 = vpow.pop %v1943
    %v1945 = vmul.f32 %v1903, 1.442695
    %v1946 = vpow.pop %v1945
    %v1947 = vmul.f32 %v1904, 1.442695
    %v1948 = vpow.pop %v1947
    %v1949 = vmul.f32 %v1905, 1.442695
    %v1950 = vpow.pop %v1949
    %v1951 = vmul.f32 %v1906, 1.442695
    %v1952 = vpow.pop %v1951
    %v1953 = vmul.f32 %v1907, 1.442695
    %v1954 = vpow.pop %v1953
    %v1955 = vmul.f32 %v1908, 1.442695
    %v1956 = vpow.pop %v1955
    %v1957 = vmul.f32 %v1909, 1.442695
    %v1958 = vpow.pop %v1957
    %v1959 = vmul.f32 %v1910, 1.442695
    %v1960 = vpow.pop %v1959
    %v1961 = vmul.f32 %v1911, 1.442695
    %v1962 = vpow.pop %v1961
    %v1963 = vmul.f32 %v1912, 1.442695
    %v1964 = vpow.pop %v1963
    %v1965 = vmul.f32 %v1913, 1.442695
    %v1966 = vpow.pop %v1965
    %v1967 = vmul.f32 %v1914, 1.442695
    %v1968 = vpow.pop %v1967
    %v1969 = vmul.f32 %v1915, 1.442695
    %v1970 = vpow.pop %v1969
    %v1971 = vmul.f32 %v1916, 1.442695
    %v1972 = vpow.pop %v1971
    %v1973 = vmul.f32 %v1917, 1.442695
    %v1974 = vpow.pop %v1973
    %v1975 = vmul.f32 %v1918, 1.442695
    %v1976 = vpow.pop %v1975
    %v1977 = vmul.f32 %v1919, 1.442695
    %v1978 = vpow.pop %v1977
    %v1979 = vmul.f32 %v1920, 1.442695
    %v1980 = vpow.pop %v1979
    %v1981 = vmul.f32 %v1921, 1.442695
    %v1982 = vpow.pop %v1981
    %v1983 = vmul.f32 %v1922, 1.442695
    %v1984 = vpow.pop %v1983
    %v1985 = vmul.f32 %v1923, 1.442695
    %v1986 = vpow.pop %v1985
    %v1987 = vmul.f32 %v1924, 1.442695
    %v1988 = vpow.pop %v1987
    %v1989 = vmul.f32 %v1829, %v1926
    %v1990 = vmul.f32 %v1830, %v1928
    %v1991 = vmul.f32 %v1831, %v1930
    %v1992 = vmul.f32 %v1832, %v1932
    %v1993 = vmul.f32 %v1833, %v1934
    %v1994 = vmul.f32 %v1834, %v1936
    %v1995 = vmul.f32 %v1835, %v1938
    %v1996 = vmul.f32 %v1836, %v1940
    %v1997 = vmul.f32 %v1837, %v1942
    %v1998 = vmul.f32 %v1838, %v1944
    %v1999 = vmul.f32 %v1839, %v1946
    %v2000 = vmul.f32 %v1840, %v1948
    %v2001 = vmul.f32 %v1841, %v1950
    %v2002 = vmul.f32 %v1842, %v1952
    %v2003 = vmul.f32 %v1843, %v1954
    %v2004 = vmul.f32 %v1844, %v1956
    %v2005 = vmul.f32 %v1845, %v1958
    %v2006 = vmul.f32 %v1846, %v1960
    %v2007 = vmul.f32 %v1847, %v1962
    %v2008 = vmul.f32 %v1848, %v1964
    %v2009 = vmul.f32 %v1849, %v1966
    %v2010 = vmul.f32 %v1850, %v1968
    %v2011 = vmul.f32 %v1851, %v1970
    %v2012 = vmul.f32 %v1852, %v1972
    %v2013 = vmul.f32 %v1853, %v1974
    %v2014 = vmul.f32 %v1854, %v1976
    %v2015 = vmul.f32 %v1855, %v1978
    %v2016 = vmul.f32 %v1856, %v1980
    %v2017 = vmul.f32 %v1857, %v1982
    %v2018 = vmul.f32 %v1858, %v1984
    %v2019 = vmul.f32 %v1859, %v1986
    %v2020 = vmul.f32 %v1860, %v1988
    %v2021 = vsub.f32 1.0, %v1989
    %v2022 = vsub.f32 1.0, %v1990
    %v2023 = vsub.f32 1.0, %v1991
    %v2024 = vsub.f32 1.0, %v1992
    %v2025 = vsub.f32 1.0, %v1993
    %v2026 = vsub.f32 1.0, %v1994
    %v2027 = vsub.f32 1.0, %v1995
    %v2028 = vsub.f32 1.0, %v1996
    %v2029 = vsub.f32 1.0, %v1997
    %v2030 = vsub.f32 1.0, %v1998
    %v2031 = vsub.f32 1.0, %v1999
    %v2032 = vsub.f32 1.0, %v2000
    %v2033 = vsub.f32 1.0, %v2001
    %v2034 = vsub.f32 1.0, %v2002
    %v2035 = vsub.f32 1.0, %v2003
    %v2036 = vsub.f32 1.0, %v2004
    %v2037 = vsub.f32 1.0, %v2005
    %v2038 = vsub.f32 1.0, %v2006
    %v2039 = vsub.f32 1.0, %v2007
    %v2040 = vsub.f32 1.0, %v2008
    %v2041 = vsub.f32 1.0, %v2009
    %v2042 = vsub.f32 1.0, %v2010
    %v2043 = vsub.f32 1.0, %v2011
    %v2044 = vsub.f32 1.0, %v2012
    %v2045 = vsub.f32 1.0, %v2013
    %v2046 = vsub.f32 1.0, %v2014
    %v2047 = vsub.f32 1.0, %v2015
    %v2048 = vsub.f32 1.0, %v2016
    %v2049 = vsub.f32 1.0, %v2017
    %v2050 = vsub.f32 1.0, %v2018
    %v2051 = vsub.f32 1.0, %v2019
    %v2052 = vsub.f32 1.0, %v2020
    %vm2053 = vcmp.ge.f32.partialorder %v1317, 0.0
    %vm2054 = vcmp.ge.f32.partialorder %v1318, 0.0
    %vm2055 = vcmp.ge.f32.partialorder %v1319, 0.0
    %vm2056 = vcmp.ge.f32.partialorder %v1320, 0.0
    %vm2057 = vcmp.ge.f32.partialorder %v1321, 0.0
    %vm2058 = vcmp.ge.f32.partialorder %v1322, 0.0
    %vm2059 = vcmp.ge.f32.partialorder %v1323, 0.0
    %vm2060 = vcmp.ge.f32.partialorder %v1324, 0.0
    %vm2061 = vcmp.ge.f32.partialorder %v1325, 0.0
    %vm2062 = vcmp.ge.f32.partialorder %v1326, 0.0
    %vm2063 = vcmp.ge.f32.partialorder %v1327, 0.0
    %vm2064 = vcmp.ge.f32.partialorder %v1328, 0.0
    %vm2065 = vcmp.ge.f32.partialorder %v1329, 0.0
    %vm2066 = vcmp.ge.f32.partialorder %v1330, 0.0
    %vm2067 = vcmp.ge.f32.partialorder %v1331, 0.0
    %vm2068 = vcmp.ge.f32.partialorder %v1332, 0.0
    %vm2069 = vcmp.ge.f32.partialorder %v1333, 0.0
    %vm2070 = vcmp.ge.f32.partialorder %v1334, 0.0
    %vm2071 = vcmp.ge.f32.partialorder %v1335, 0.0
    %vm2072 = vcmp.ge.f32.partialorder %v1336, 0.0
    %vm2073 = vcmp.ge.f32.partialorder %v1337, 0.0
    %vm2074 = vcmp.ge.f32.partialorder %v1338, 0.0
    %vm2075 = vcmp.ge.f32.partialorder %v1339, 0.0
    %vm2076 = vcmp.ge.f32.partialorder %v1340, 0.0
    %vm2077 = vcmp.ge.f32.partialorder %v1341, 0.0
    %vm2078 = vcmp.ge.f32.partialorder %v1342, 0.0
    %vm2079 = vcmp.ge.f32.partialorder %v1343, 0.0
    %vm2080 = vcmp.ge.f32.partialorder %v1344, 0.0
    %vm2081 = vcmp.ge.f32.partialorder %v1345, 0.0
    %vm2082 = vcmp.ge.f32.partialorder %v1346, 0.0
    %vm2083 = vcmp.ge.f32.partialorder %v1347, 0.0
    %vm2084 = vcmp.ge.f32.partialorder %v1348, 0.0
    %v2085 = vsub.f32 0.0, %v2021
    %v2086 = vsub.f32 0.0, %v2022
    %v2087 = vsub.f32 0.0, %v2023
    %v2088 = vsub.f32 0.0, %v2024
    %v2089 = vsub.f32 0.0, %v2025
    %v2090 = vsub.f32 0.0, %v2026
    %v2091 = vsub.f32 0.0, %v2027
    %v2092 = vsub.f32 0.0, %v2028
    %v2093 = vsub.f32 0.0, %v2029
    %v2094 = vsub.f32 0.0, %v2030
    %v2095 = vsub.f32 0.0, %v2031
    %v2096 = vsub.f32 0.0, %v2032
    %v2097 = vsub.f32 0.0, %v2033
    %v2098 = vsub.f32 0.0, %v2034
    %v2099 = vsub.f32 0.0, %v2035
    %v2100 = vsub.f32 0.0, %v2036
    %v2101 = vsub.f32 0.0, %v2037
    %v2102 = vsub.f32 0.0, %v2038
    %v2103 = vsub.f32 0.0, %v2039
    %v2104 = vsub.f32 0.0, %v2040
    %v2105 = vsub.f32 0.0, %v2041
    %v2106 = vsub.f32 0.0, %v2042
    %v2107 = vsub.f32 0.0, %v2043
    %v2108 = vsub.f32 0.0, %v2044
    %v2109 = vsub.f32 0.0, %v2045
    %v2110 = vsub.f32 0.0, %v2046
    %v2111 = vsub.f32 0.0, %v2047
    %v2112 = vsub.f32 0.0, %v2048
    %v2113 = vsub.f32 0.0, %v2049
    %v2114 = vsub.f32 0.0, %v2050
    %v2115 = vsub.f32 0.0, %v2051
    %v2116 = vsub.f32 0.0, %v2052
    %v2117 = vsel %vm2053, %v2021, %v2085
    %v2118 = vsel %vm2054, %v2022, %v2086
    %v2119 = vsel %vm2055, %v2023, %v2087
    %v2120 = vsel %vm2056, %v2024, %v2088
    %v2121 = vsel %vm2057, %v2025, %v2089
    %v2122 = vsel %vm2058, %v2026, %v2090
    %v2123 = vsel %vm2059, %v2027, %v2091
    %v2124 = vsel %vm2060, %v2028, %v2092
    %v2125 = vsel %vm2061, %v2029, %v2093
    %v2126 = vsel %vm2062, %v2030, %v2094
    %v2127 = vsel %vm2063, %v2031, %v2095
    %v2128 = vsel %vm2064, %v2032, %v2096
    %v2129 = vsel %vm2065, %v2033, %v2097
    %v2130 = vsel %vm2066, %v2034, %v2098
    %v2131 = vsel %vm2067, %v2035, %v2099
    %v2132 = vsel %vm2068, %v2036, %v2100
    %v2133 = vsel %vm2069, %v2037, %v2101
    %v2134 = vsel %vm2070, %v2038, %v2102
    %v2135 = vsel %vm2071, %v2039, %v2103
    %v2136 = vsel %vm2072, %v2040, %v2104
    %v2137 = vsel %vm2073, %v2041, %v2105
    %v2138 = vsel %vm2074, %v2042, %v2106
    %v2139 = vsel %vm2075, %v2043, %v2107
    %v2140 = vsel %vm2076, %v2044, %v2108
    %v2141 = vsel %vm2077, %v2045, %v2109
    %v2142 = vsel %vm2078, %v2046, %v2110
    %v2143 = vsel %vm2079, %v2047, %v2111
    %v2144 = vsel %vm2080, %v2048, %v2112
    %v2145 = vsel %vm2081, %v2049, %v2113
    %v2146 = vsel %vm2082, %v2050, %v2114
    %v2147 = vsel %vm2083, %v2051, %v2115
    %v2148 = vsel %vm2084, %v2052, %v2116
    %v2149 = vadd.f32 %v2117, 1.0
    %v2150 = vadd.f32 %v2118, 1.0
    %v2151 = vadd.f32 %v2119, 1.0
    %v2152 = vadd.f32 %v2120, 1.0
    %v2153 = vadd.f32 %v2121, 1.0
    %v2154 = vadd.f32 %v2122, 1.0
    %v2155 = vadd.f32 %v2123, 1.0
    %v2156 = vadd.f32 %v2124, 1.0
    %v2157 = vadd.f32 %v2125, 1.0
    %v2158 = vadd.f32 %v2126, 1.0
    %v2159 = vadd.f32 %v2127, 1.0
    %v2160 = vadd.f32 %v2128, 1.0
    %v2161 = vadd.f32 %v2129, 1.0
    %v2162 = vadd.f32 %v2130, 1.0
    %v2163 = vadd.f32 %v2131, 1.0
    %v2164 = vadd.f32 %v2132, 1.0
    %v2165 = vadd.f32 %v2133, 1.0
    %v2166 = vadd.f32 %v2134, 1.0
    %v2167 = vadd.f32 %v2135, 1.0
    %v2168 = vadd.f32 %v2136, 1.0
    %v2169 = vadd.f32 %v2137, 1.0
    %v2170 = vadd.f32 %v2138, 1.0
    %v2171 = vadd.f32 %v2139, 1.0
    %v2172 = vadd.f32 %v2140, 1.0
    %v2173 = vadd.f32 %v2141, 1.0
    %v2174 = vadd.f32 %v2142, 1.0
    %v2175 = vadd.f32 %v2143, 1.0
    %v2176 = vadd.f32 %v2144, 1.0
    %v2177 = vadd.f32 %v2145, 1.0
    %v2178 = vadd.f32 %v2146, 1.0
    %v2179 = vadd.f32 %v2147, 1.0
    %v2180 = vadd.f32 %v2148, 1.0
    %v2181 = vmul.f32 %v1285, %v2149
    %v2182 = vmul.f32 %v1286, %v2150
    %v2183 = vmul.f32 %v1287, %v2151
    %v2184 = vmul.f32 %v1288, %v2152
    %v2185 = vmul.f32 %v1289, %v2153
    %v2186 = vmul.f32 %v1290, %v2154
    %v2187 = vmul.f32 %v1291, %v2155
    %v2188 = vmul.f32 %v1292, %v2156
    %v2189 = vmul.f32 %v1293, %v2157
    %v2190 = vmul.f32 %v1294, %v2158
    %v2191 = vmul.f32 %v1295, %v2159
    %v2192 = vmul.f32 %v1296, %v2160
    %v2193 = vmul.f32 %v1297, %v2161
    %v2194 = vmul.f32 %v1298, %v2162
    %v2195 = vmul.f32 %v1299, %v2163
    %v2196 = vmul.f32 %v1300, %v2164
    %v2197 = vmul.f32 %v1301, %v2165
    %v2198 = vmul.f32 %v1302, %v2166
    %v2199 = vmul.f32 %v1303, %v2167
    %v2200 = vmul.f32 %v1304, %v2168
    %v2201 = vmul.f32 %v1305, %v2169
    %v2202 = vmul.f32 %v1306, %v2170
    %v2203 = vmul.f32 %v1307, %v2171
    %v2204 = vmul.f32 %v1308, %v2172
    %v2205 = vmul.f32 %v1309, %v2173
    %v2206 = vmul.f32 %v1310, %v2174
    %v2207 = vmul.f32 %v1311, %v2175
    %v2208 = vmul.f32 %v1312, %v2176
    %v2209 = vmul.f32 %v1313, %v2177
    %v2210 = vmul.f32 %v1314, %v2178
    %v2211 = vmul.f32 %v1315, %v2179
    %v2212 = vmul.f32 %v1316, %v2180
    %v2213 = vld [vmem:[%s6] sm:$0xff]
    %v2214 = vld [vmem:[%s7] sm:$0xff]
    %vm2215 = vcmask 130048
    %v2217 = vsel %vm2215, %v2213, 0
    %2219 = vmatprep.subr.mxu0 0.0
    %2220 = vmatpush1.msra.mxu0 0.0
    %2221 = vmatprep.subr.mxu0 0.0
    %2222 = vmatpush1.msra.mxu0 0.0
    %2223 = vmatprep.subr.mxu0 0.0
    %2224 = vmatpush1.msra.mxu0 0.0
    %2225 = vmatprep.subr.mxu0 0.0
    %2226 = vmatpush1.msra.mxu0 0.0
    %2227 = vmatprep.subr.mxu0 0.0
    %2228 = vmatpush1.msra.mxu0 0.0
    %2229 = vmatprep.subr.mxu0 0.0
    %2230 = vmatpush1.msra.mxu0 0.0
    %2231 = vmatprep.subr.mxu0 0.0
    %2232 = vmatpush1.msra.mxu0 0.0
    %2233 = vmatprep.subr.mxu0 0.0
    %2234 = vmatpush1.msra.mxu0 0.0
    %2235 = vmatprep.subr.mxu0 0.0
    %2236 = vmatpush1.msra.mxu0 0.0
    %2237 = vmatprep.subr.mxu0 0.0
    %2238 = vmatpush1.msra.mxu0 0.0
    %2239 = vmatprep.subr.mxu0 0.0
    %2240 = vmatpush1.msra.mxu0 0.0
    %2241 = vmatprep.subr.mxu0 0.0
    %2242 = vmatpush1.msra.mxu0 0.0
    %2243 = vmatprep.subr.mxu0 0.0
    %2244 = vmatpush1.msra.mxu0 0.0
    %2245 = vmatprep.subr.mxu0 0.0
    %2246 = vmatpush1.msra.mxu0 0.0
    %2247 = vmatprep.subr.mxu0 0.0
    %2248 = vmatpush1.msra.mxu0 %v2182
    %2249 = vmatprep.subr.mxu0 0.0
    %2250 = vmatpush1.msra.mxu0 %v2181
    %2251 = vmatprep.subr.mxu0 0.0
    %2252 = vmatpush2.msra.mxu0 0.0
    %2253 = vmatprep.subr.mxu0 0.0
    %2254 = vmatpush2.msra.mxu0 0.0
    %2255 = vmatprep.subr.mxu0 0.0
    %2256 = vmatpush2.msra.mxu0 0.0
    %2257 = vmatprep.subr.mxu0 0.0
    %2258 = vmatpush2.msra.mxu0 0.0
    %2259 = vmatprep.subr.mxu0 0.0
    %2260 = vmatpush2.msra.mxu0 0.0
    %2261 = vmatprep.subr.mxu0 0.0
    %2262 = vmatpush2.msra.mxu0 0.0
    %2263 = vmatprep.subr.mxu0 0.0
    %2264 = vmatpush2.msra.mxu0 0.0
    %2265 = vmatprep.subr.mxu0 0.0
    %2266 = vmatpush2.msra.mxu0 0.0
    %2267 = vmatprep.subr.mxu0 0.0
    %2268 = vmatpush2.msra.mxu0 0.0
    %2269 = vmatprep.subr.mxu0 0.0
    %2270 = vmatpush2.msra.mxu0 0.0
    %2271 = vmatprep.subr.mxu0 0.0
    %2272 = vmatpush2.msra.mxu0 0.0
    %2273 = vmatprep.subr.mxu0 0.0
    %2274 = vmatpush2.msra.mxu0 0.0
    %2275 = vmatprep.subr.mxu0 0.0
    %2276 = vmatpush2.msra.mxu0 0.0
    %2277 = vmatprep.subr.mxu0 0.0
    %2278 = vmatpush2.msra.mxu0 0.0
    %2279 = vmatprep.subr.mxu0 0.0
    %2280 = vmatpush2.msra.mxu0 0.0
    %2281 = vmatprep.subr.mxu0 0.0
    %2282 = vmatpush2.msra.mxu0 0.0
    %2283 = vmatprep.mubr.f32.mxu0 0.0
    %2284 = vmatmul.mubr.f32.gmra.mxu0 %v2217
    %v2285 = vpop.f32.mrf.mxu0
    %v2286 = vadd.f32 %v2214, %v2285
    %v2287 = vpop.f32.mrf.mxu0
    %2288 = vdwg.mxu0
    %2289 = vmatprep.subr.mxu0 0.0
    %2290 = vmatpush1.msra.mxu0 0.0
    %2291 = vmatprep.subr.mxu0 0.0
    %2292 = vmatpush1.msra.mxu0 0.0
    %2293 = vmatprep.subr.mxu0 0.0
    %2294 = vmatpush1.msra.mxu0 0.0
    %2295 = vmatprep.subr.mxu0 0.0
    %2296 = vmatpush1.msra.mxu0 0.0
    %2297 = vmatprep.subr.mxu0 0.0
    %2298 = vmatpush1.msra.mxu0 0.0
    %2299 = vmatprep.subr.mxu0 0.0
    %2300 = vmatpush1.msra.mxu0 0.0
    %2301 = vmatprep.subr.mxu0 0.0
    %2302 = vmatpush1.msra.mxu0 0.0
    %2303 = vmatprep.subr.mxu0 0.0
    %2304 = vmatpush1.msra.mxu0 0.0
    %2305 = vmatprep.subr.mxu0 0.0
    %2306 = vmatpush1.msra.mxu0 0.0
    %2307 = vmatprep.subr.mxu0 0.0
    %2308 = vmatpush1.msra.mxu0 0.0
    %2309 = vmatprep.subr.mxu0 0.0
    %2310 = vmatpush1.msra.mxu0 0.0
    %2311 = vmatprep.subr.mxu0 0.0
    %2312 = vmatpush1.msra.mxu0 0.0
    %2313 = vmatprep.subr.mxu0 0.0
    %2314 = vmatpush1.msra.mxu0 0.0
    %2315 = vmatprep.subr.mxu0 0.0
    %2316 = vmatpush1.msra.mxu0 0.0
    %2317 = vmatprep.subr.mxu0 0.0
    %2318 = vmatpush1.msra.mxu0 %v2184
    %2319 = vmatprep.subr.mxu0 0.0
    %2320 = vmatpush1.msra.mxu0 %v2183
    %2321 = vmatprep.subr.mxu0 0.0
    %2322 = vmatpush2.msra.mxu0 0.0
    %2323 = vmatprep.subr.mxu0 0.0
    %2324 = vmatpush2.msra.mxu0 0.0
    %2325 = vmatprep.subr.mxu0 0.0
    %2326 = vmatpush2.msra.mxu0 0.0
    %2327 = vmatprep.subr.mxu0 0.0
    %2328 = vmatpush2.msra.mxu0 0.0
    %2329 = vmatprep.subr.mxu0 0.0
    %2330 = vmatpush2.msra.mxu0 0.0
    %2331 = vmatprep.subr.mxu0 0.0
    %2332 = vmatpush2.msra.mxu0 0.0
    %2333 = vmatprep.subr.mxu0 0.0
    %2334 = vmatpush2.msra.mxu0 0.0
    %2335 = vmatprep.subr.mxu0 0.0
    %2336 = vmatpush2.msra.mxu0 0.0
    %2337 = vmatprep.subr.mxu0 0.0
    %2338 = vmatpush2.msra.mxu0 0.0
    %2339 = vmatprep.subr.mxu0 0.0
    %2340 = vmatpush2.msra.mxu0 0.0
    %2341 = vmatprep.subr.mxu0 0.0
    %2342 = vmatpush2.msra.mxu0 0.0
    %2343 = vmatprep.subr.mxu0 0.0
    %2344 = vmatpush2.msra.mxu0 0.0
    %2345 = vmatprep.subr.mxu0 0.0
    %2346 = vmatpush2.msra.mxu0 0.0
    %2347 = vmatprep.subr.mxu0 0.0
    %2348 = vmatpush2.msra.mxu0 0.0
    %2349 = vmatprep.subr.mxu0 0.0
    %2350 = vmatpush2.msra.mxu0 0.0
    %2351 = vmatprep.subr.mxu0 0.0
    %2352 = vmatpush2.msra.mxu0 0.0
    %2353 = vmatprep.mubr.f32.mxu0 0.0
    %2354 = vmatmul.mubr.f32.gmra.mxu0 %v2217
    %v2355 = vpop.f32.mrf.mxu0
    %v2356 = vadd.f32 %v2214, %v2355
    %v2357 = vpop.f32.mrf.mxu0
    %2358 = vdwg.mxu0
    %2359 = vmatprep.subr.mxu0 0.0
    %2360 = vmatpush1.msra.mxu0 0.0
    %2361 = vmatprep.subr.mxu0 0.0
    %2362 = vmatpush1.msra.mxu0 0.0
    %2363 = vmatprep.subr.mxu0 0.0
    %2364 = vmatpush1.msra.mxu0 0.0
    %2365 = vmatprep.subr.mxu0 0.0
    %2366 = vmatpush1.msra.mxu0 0.0
    %2367 = vmatprep.subr.mxu0 0.0
    %2368 = vmatpush1.msra.mxu0 0.0
    %2369 = vmatprep.subr.mxu0 0.0
    %2370 = vmatpush1.msra.mxu0 0.0
    %2371 = vmatprep.subr.mxu0 0.0
    %2372 = vmatpush1.msra.mxu0 0.0
    %2373 = vmatprep.subr.mxu0 0.0
    %2374 = vmatpush1.msra.mxu0 0.0
    %2375 = vmatprep.subr.mxu0 0.0
    %2376 = vmatpush1.msra.mxu0 0.0
    %2377 = vmatprep.subr.mxu0 0.0
    %2378 = vmatpush1.msra.mxu0 0.0
    %2379 = vmatprep.subr.mxu0 0.0
    %2380 = vmatpush1.msra.mxu0 0.0
    %2381 = vmatprep.subr.mxu0 0.0
    %2382 = vmatpush1.msra.mxu0 0.0
    %2383 = vmatprep.subr.mxu0 0.0
    %2384 = vmatpush1.msra.mxu0 0.0
    %2385 = vmatprep.subr.mxu0 0.0
    %2386 = vmatpush1.msra.mxu0 0.0
    %2387 = vmatprep.subr.mxu0 0.0
    %2388 = vmatpush1.msra.mxu0 %v2186
    %2389 = vmatprep.subr.mxu0 0.0
    %2390 = vmatpush1.msra.mxu0 %v2185
    %2391 = vmatprep.subr.mxu0 0.0
    %2392 = vmatpush2.msra.mxu0 0.0
    %2393 = vmatprep.subr.mxu0 0.0
    %2394 = vmatpush2.msra.mxu0 0.0
    %2395 = vmatprep.subr.mxu0 0.0
    %2396 = vmatpush2.msra.mxu0 0.0
    %2397 = vmatprep.subr.mxu0 0.0
    %2398 = vmatpush2.msra.mxu0 0.0
    %2399 = vmatprep.subr.mxu0 0.0
    %2400 = vmatpush2.msra.mxu0 0.0
    %2401 = vmatprep.subr.mxu0 0.0
    %2402 = vmatpush2.msra.mxu0 0.0
    %2403 = vmatprep.subr.mxu0 0.0
    %2404 = vmatpush2.msra.mxu0 0.0
    %2405 = vmatprep.subr.mxu0 0.0
    %2406 = vmatpush2.msra.mxu0 0.0
    %2407 = vmatprep.subr.mxu0 0.0
    %2408 = vmatpush2.msra.mxu0 0.0
    %2409 = vmatprep.subr.mxu0 0.0
    %2410 = vmatpush2.msra.mxu0 0.0
    %2411 = vmatprep.subr.mxu0 0.0
    %2412 = vmatpush2.msra.mxu0 0.0
    %2413 = vmatprep.subr.mxu0 0.0
    %2414 = vmatpush2.msra.mxu0 0.0
    %2415 = vmatprep.subr.mxu0 0.0
    %2416 = vmatpush2.msra.mxu0 0.0
    %2417 = vmatprep.subr.mxu0 0.0
    %2418 = vmatpush2.msra.mxu0 0.0
    %2419 = vmatprep.subr.mxu0 0.0
    %2420 = vmatpush2.msra.mxu0 0.0
    %2421 = vmatprep.subr.mxu0 0.0
    %2422 = vmatpush2.msra.mxu0 0.0
    %2423 = vmatprep.mubr.f32.mxu0 0.0
    %2424 = vmatmul.mubr.f32.gmra.mxu0 %v2217
    %v2425 = vpop.f32.mrf.mxu0
    %v2426 = vadd.f32 %v2214, %v2425
    %v2427 = vpop.f32.mrf.mxu0
    %2428 = vdwg.mxu0
    %2429 = vmatprep.subr.mxu0 0.0
    %2430 = vmatpush1.msra.mxu0 0.0
    %2431 = vmatprep.subr.mxu0 0.0
    %2432 = vmatpush1.msra.mxu0 0.0
    %2433 = vmatprep.subr.mxu0 0.0
    %2434 = vmatpush1.msra.mxu0 0.0
    %2435 = vmatprep.subr.mxu0 0.0
    %2436 = vmatpush1.msra.mxu0 0.0
    %2437 = vmatprep.subr.mxu0 0.0
    %2438 = vmatpush1.msra.mxu0 0.0
    %2439 = vmatprep.subr.mxu0 0.0
    %2440 = vmatpush1.msra.mxu0 0.0
    %2441 = vmatprep.subr.mxu0 0.0
    %2442 = vmatpush1.msra.mxu0 0.0
    %2443 = vmatprep.subr.mxu0 0.0
    %2444 = vmatpush1.msra.mxu0 0.0
    %2445 = vmatprep.subr.mxu0 0.0
    %2446 = vmatpush1.msra.mxu0 0.0
    %2447 = vmatprep.subr.mxu0 0.0
    %2448 = vmatpush1.msra.mxu0 0.0
    %2449 = vmatprep.subr.mxu0 0.0
    %2450 = vmatpush1.msra.mxu0 0.0
    %2451 = vmatprep.subr.mxu0 0.0
    %2452 = vmatpush1.msra.mxu0 0.0
    %2453 = vmatprep.subr.mxu0 0.0
    %2454 = vmatpush1.msra.mxu0 0.0
    %2455 = vmatprep.subr.mxu0 0.0
    %2456 = vmatpush1.msra.mxu0 0.0
    %2457 = vmatprep.subr.mxu0 0.0
    %2458 = vmatpush1.msra.mxu0 %v2188
    %2459 = vmatprep.subr.mxu0 0.0
    %2460 = vmatpush1.msra.mxu0 %v2187
    %2461 = vmatprep.subr.mxu0 0.0
    %2462 = vmatpush2.msra.mxu0 0.0
    %2463 = vmatprep.subr.mxu0 0.0
    %2464 = vmatpush2.msra.mxu0 0.0
    %2465 = vmatprep.subr.mxu0 0.0
    %2466 = vmatpush2.msra.mxu0 0.0
    %2467 = vmatprep.subr.mxu0 0.0
    %2468 = vmatpush2.msra.mxu0 0.0
    %2469 = vmatprep.subr.mxu0 0.0
    %2470 = vmatpush2.msra.mxu0 0.0
    %2471 = vmatprep.subr.mxu0 0.0
    %2472 = vmatpush2.msra.mxu0 0.0
    %2473 = vmatprep.subr.mxu0 0.0
    %2474 = vmatpush2.msra.mxu0 0.0
    %2475 = vmatprep.subr.mxu0 0.0
    %2476 = vmatpush2.msra.mxu0 0.0
    %2477 = vmatprep.subr.mxu0 0.0
    %2478 = vmatpush2.msra.mxu0 0.0
    %2479 = vmatprep.subr.mxu0 0.0
    %2480 = vmatpush2.msra.mxu0 0.0
    %2481 = vmatprep.subr.mxu0 0.0
    %2482 = vmatpush2.msra.mxu0 0.0
    %2483 = vmatprep.subr.mxu0 0.0
    %2484 = vmatpush2.msra.mxu0 0.0
    %2485 = vmatprep.subr.mxu0 0.0
    %2486 = vmatpush2.msra.mxu0 0.0
    %2487 = vmatprep.subr.mxu0 0.0
    %2488 = vmatpush2.msra.mxu0 0.0
    %2489 = vmatprep.subr.mxu0 0.0
    %2490 = vmatpush2.msra.mxu0 0.0
    %2491 = vmatprep.subr.mxu0 0.0
    %2492 = vmatpush2.msra.mxu0 0.0
    %2493 = vmatprep.mubr.f32.mxu0 0.0
    %2494 = vmatmul.mubr.f32.gmra.mxu0 %v2217
    %v2495 = vpop.f32.mrf.mxu0
    %v2496 = vadd.f32 %v2214, %v2495
    %v2497 = vpop.f32.mrf.mxu0
    %2498 = vdwg.mxu0
    %2499 = vmatprep.subr.mxu0 0.0
    %2500 = vmatpush1.msra.mxu0 0.0
    %2501 = vmatprep.subr.mxu0 0.0
    %2502 = vmatpush1.msra.mxu0 0.0
    %2503 = vmatprep.subr.mxu0 0.0
    %2504 = vmatpush1.msra.mxu0 0.0
    %2505 = vmatprep.subr.mxu0 0.0
    %2506 = vmatpush1.msra.mxu0 0.0
    %2507 = vmatprep.subr.mxu0 0.0
    %2508 = vmatpush1.msra.mxu0 0.0
    %2509 = vmatprep.subr.mxu0 0.0
    %2510 = vmatpush1.msra.mxu0 0.0
    %2511 = vmatprep.subr.mxu0 0.0
    %2512 = vmatpush1.msra.mxu0 0.0
    %2513 = vmatprep.subr.mxu0 0.0
    %2514 = vmatpush1.msra.mxu0 0.0
    %2515 = vmatprep.subr.mxu0 0.0
    %2516 = vmatpush1.msra.mxu0 0.0
    %2517 = vmatprep.subr.mxu0 0.0
    %2518 = vmatpush1.msra.mxu0 0.0
    %2519 = vmatprep.subr.mxu0 0.0
    %2520 = vmatpush1.msra.mxu0 0.0
    %2521 = vmatprep.subr.mxu0 0.0
    %2522 = vmatpush1.msra.mxu0 0.0
    %2523 = vmatprep.subr.mxu0 0.0
    %2524 = vmatpush1.msra.mxu0 0.0
    %2525 = vmatprep.subr.mxu0 0.0
    %2526 = vmatpush1.msra.mxu0 0.0
    %2527 = vmatprep.subr.mxu0 0.0
    %2528 = vmatpush1.msra.mxu0 %v2190
    %2529 = vmatprep.subr.mxu0 0.0
    %2530 = vmatpush1.msra.mxu0 %v2189
    %2531 = vmatprep.subr.mxu0 0.0
    %2532 = vmatpush2.msra.mxu0 0.0
    %2533 = vmatprep.subr.mxu0 0.0
    %2534 = vmatpush2.msra.mxu0 0.0
    %2535 = vmatprep.subr.mxu0 0.0
    %2536 = vmatpush2.msra.mxu0 0.0
    %2537 = vmatprep.subr.mxu0 0.0
    %2538 = vmatpush2.msra.mxu0 0.0
    %2539 = vmatprep.subr.mxu0 0.0
    %2540 = vmatpush2.msra.mxu0 0.0
    %2541 = vmatprep.subr.mxu0 0.0
    %2542 = vmatpush2.msra.mxu0 0.0
    %2543 = vmatprep.subr.mxu0 0.0
    %2544 = vmatpush2.msra.mxu0 0.0
    %2545 = vmatprep.subr.mxu0 0.0
    %2546 = vmatpush2.msra.mxu0 0.0
    %2547 = vmatprep.subr.mxu0 0.0
    %2548 = vmatpush2.msra.mxu0 0.0
    %2549 = vmatprep.subr.mxu0 0.0
    %2550 = vmatpush2.msra.mxu0 0.0
    %2551 = vmatprep.subr.mxu0 0.0
    %2552 = vmatpush2.msra.mxu0 0.0
    %2553 = vmatprep.subr.mxu0 0.0
    %2554 = vmatpush2.msra.mxu0 0.0
    %2555 = vmatprep.subr.mxu0 0.0
    %2556 = vmatpush2.msra.mxu0 0.0
    %2557 = vmatprep.subr.mxu0 0.0
    %2558 = vmatpush2.msra.mxu0 0.0
    %2559 = vmatprep.subr.mxu0 0.0
    %2560 = vmatpush2.msra.mxu0 0.0
    %2561 = vmatprep.subr.mxu0 0.0
    %2562 = vmatpush2.msra.mxu0 0.0
    %2563 = vmatprep.mubr.f32.mxu0 0.0
    %2564 = vmatmul.mubr.f32.gmra.mxu0 %v2217
    %v2565 = vpop.f32.mrf.mxu0
    %v2566 = vadd.f32 %v2214, %v2565
    %v2567 = vpop.f32.mrf.mxu0
    %2568 = vdwg.mxu0
    %2569 = vmatprep.subr.mxu0 0.0
    %2570 = vmatpush1.msra.mxu0 0.0
    %2571 = vmatprep.subr.mxu0 0.0
    %2572 = vmatpush1.msra.mxu0 0.0
    %2573 = vmatprep.subr.mxu0 0.0
    %2574 = vmatpush1.msra.mxu0 0.0
    %2575 = vmatprep.subr.mxu0 0.0
    %2576 = vmatpush1.msra.mxu0 0.0
    %2577 = vmatprep.subr.mxu0 0.0
    %2578 = vmatpush1.msra.mxu0 0.0
    %2579 = vmatprep.subr.mxu0 0.0
    %2580 = vmatpush1.msra.mxu0 0.0
    %2581 = vmatprep.subr.mxu0 0.0
    %2582 = vmatpush1.msra.mxu0 0.0
    %2583 = vmatprep.subr.mxu0 0.0
    %2584 = vmatpush1.msra.mxu0 0.0
    %2585 = vmatprep.subr.mxu0 0.0
    %2586 = vmatpush1.msra.mxu0 0.0
    %2587 = vmatprep.subr.mxu0 0.0
    %2588 = vmatpush1.msra.mxu0 0.0
    %2589 = vmatprep.subr.mxu0 0.0
    %2590 = vmatpush1.msra.mxu0 0.0
    %2591 = vmatprep.subr.mxu0 0.0
    %2592 = vmatpush1.msra.mxu0 0.0
    %2593 = vmatprep.subr.mxu0 0.0
    %2594 = vmatpush1.msra.mxu0 0.0
    %2595 = vmatprep.subr.mxu0 0.0
    %2596 = vmatpush1.msra.mxu0 0.0
    %2597 = vmatprep.subr.mxu0 0.0
    %2598 = vmatpush1.msra.mxu0 %v2192
    %2599 = vmatprep.subr.mxu0 0.0
    %2600 = vmatpush1.msra.mxu0 %v2191
    %2601 = vmatprep.subr.mxu0 0.0
    %2602 = vmatpush2.msra.mxu0 0.0
    %2603 = vmatprep.subr.mxu0 0.0
    %2604 = vmatpush2.msra.mxu0 0.0
    %2605 = vmatprep.subr.mxu0 0.0
    %2606 = vmatpush2.msra.mxu0 0.0
    %2607 = vmatprep.subr.mxu0 0.0
    %2608 = vmatpush2.msra.mxu0 0.0
    %2609 = vmatprep.subr.mxu0 0.0
    %2610 = vmatpush2.msra.mxu0 0.0
    %2611 = vmatprep.subr.mxu0 0.0
    %2612 = vmatpush2.msra.mxu0 0.0
    %2613 = vmatprep.subr.mxu0 0.0
    %2614 = vmatpush2.msra.mxu0 0.0
    %2615 = vmatprep.subr.mxu0 0.0
    %2616 = vmatpush2.msra.mxu0 0.0
    %2617 = vmatprep.subr.mxu0 0.0
    %2618 = vmatpush2.msra.mxu0 0.0
    %2619 = vmatprep.subr.mxu0 0.0
    %2620 = vmatpush2.msra.mxu0 0.0
    %2621 = vmatprep.subr.mxu0 0.0
    %2622 = vmatpush2.msra.mxu0 0.0
    %2623 = vmatprep.subr.mxu0 0.0
    %2624 = vmatpush2.msra.mxu0 0.0
    %2625 = vmatprep.subr.mxu0 0.0
    %2626 = vmatpush2.msra.mxu0 0.0
    %2627 = vmatprep.subr.mxu0 0.0
    %2628 = vmatpush2.msra.mxu0 0.0
    %2629 = vmatprep.subr.mxu0 0.0
    %2630 = vmatpush2.msra.mxu0 0.0
    %2631 = vmatprep.subr.mxu0 0.0
    %2632 = vmatpush2.msra.mxu0 0.0
    %2633 = vmatprep.mubr.f32.mxu0 0.0
    %2634 = vmatmul.mubr.f32.gmra.mxu0 %v2217
    %v2635 = vpop.f32.mrf.mxu0
    %v2636 = vadd.f32 %v2214, %v2635
    %v2637 = vpop.f32.mrf.mxu0
    %2638 = vdwg.mxu0
    %2639 = vmatprep.subr.mxu0 0.0
    %2640 = vmatpush1.msra.mxu0 0.0
    %2641 = vmatprep.subr.mxu0 0.0
    %2642 = vmatpush1.msra.mxu0 0.0
    %2643 = vmatprep.subr.mxu0 0.0
    %2644 = vmatpush1.msra.mxu0 0.0
    %2645 = vmatprep.subr.mxu0 0.0
    %2646 = vmatpush1.msra.mxu0 0.0
    %2647 = vmatprep.subr.mxu0 0.0
    %2648 = vmatpush1.msra.mxu0 0.0
    %2649 = vmatprep.subr.mxu0 0.0
    %2650 = vmatpush1.msra.mxu0 0.0
    %2651 = vmatprep.subr.mxu0 0.0
    %2652 = vmatpush1.msra.mxu0 0.0
    %2653 = vmatprep.subr.mxu0 0.0
    %2654 = vmatpush1.msra.mxu0 0.0
    %2655 = vmatprep.subr.mxu0 0.0
    %2656 = vmatpush1.msra.mxu0 0.0
    %2657 = vmatprep.subr.mxu0 0.0
    %2658 = vmatpush1.msra.mxu0 0.0
    %2659 = vmatprep.subr.mxu0 0.0
    %2660 = vmatpush1.msra.mxu0 0.0
    %2661 = vmatprep.subr.mxu0 0.0
    %2662 = vmatpush1.msra.mxu0 0.0
    %2663 = vmatprep.subr.mxu0 0.0
    %2664 = vmatpush1.msra.mxu0 0.0
    %2665 = vmatprep.subr.mxu0 0.0
    %2666 = vmatpush1.msra.mxu0 0.0
    %2667 = vmatprep.subr.mxu0 0.0
    %2668 = vmatpush1.msra.mxu0 %v2194
    %2669 = vmatprep.subr.mxu0 0.0
    %2670 = vmatpush1.msra.mxu0 %v2193
    %2671 = vmatprep.subr.mxu0 0.0
    %2672 = vmatpush2.msra.mxu0 0.0
    %2673 = vmatprep.subr.mxu0 0.0
    %2674 = vmatpush2.msra.mxu0 0.0
    %2675 = vmatprep.subr.mxu0 0.0
    %2676 = vmatpush2.msra.mxu0 0.0
    %2677 = vmatprep.subr.mxu0 0.0
    %2678 = vmatpush2.msra.mxu0 0.0
    %2679 = vmatprep.subr.mxu0 0.0
    %2680 = vmatpush2.msra.mxu0 0.0
    %2681 = vmatprep.subr.mxu0 0.0
    %2682 = vmatpush2.msra.mxu0 0.0
    %2683 = vmatprep.subr.mxu0 0.0
    %2684 = vmatpush2.msra.mxu0 0.0
    %2685 = vmatprep.subr.mxu0 0.0
    %2686 = vmatpush2.msra.mxu0 0.0
    %2687 = vmatprep.subr.mxu0 0.0
    %2688 = vmatpush2.msra.mxu0 0.0
    %2689 = vmatprep.subr.mxu0 0.0
    %2690 = vmatpush2.msra.mxu0 0.0
    %2691 = vmatprep.subr.mxu0 0.0
    %2692 = vmatpush2.msra.mxu0 0.0
    %2693 = vmatprep.subr.mxu0 0.0
    %2694 = vmatpush2.msra.mxu0 0.0
    %2695 = vmatprep.subr.mxu0 0.0
    %2696 = vmatpush2.msra.mxu0 0.0
    %2697 = vmatprep.subr.mxu0 0.0
    %2698 = vmatpush2.msra.mxu0 0.0
    %2699 = vmatprep.subr.mxu0 0.0
    %2700 = vmatpush2.msra.mxu0 0.0
    %2701 = vmatprep.subr.mxu0 0.0
    %2702 = vmatpush2.msra.mxu0 0.0
    %2703 = vmatprep.mubr.f32.mxu0 0.0
    %2704 = vmatmul.mubr.f32.gmra.mxu0 %v2217
    %v2705 = vpop.f32.mrf.mxu0
    %v2706 = vadd.f32 %v2214, %v2705
    %v2707 = vpop.f32.mrf.mxu0
    %2708 = vdwg.mxu0
    %2709 = vmatprep.subr.mxu0 0.0
    %2710 = vmatpush1.msra.mxu0 0.0
    %2711 = vmatprep.subr.mxu0 0.0
    %2712 = vmatpush1.msra.mxu0 0.0
    %2713 = vmatprep.subr.mxu0 0.0
    %2714 = vmatpush1.msra.mxu0 0.0
    %2715 = vmatprep.subr.mxu0 0.0
    %2716 = vmatpush1.msra.mxu0 0.0
    %2717 = vmatprep.subr.mxu0 0.0
    %2718 = vmatpush1.msra.mxu0 0.0
    %2719 = vmatprep.subr.mxu0 0.0
    %2720 = vmatpush1.msra.mxu0 0.0
    %2721 = vmatprep.subr.mxu0 0.0
    %2722 = vmatpush1.msra.mxu0 0.0
    %2723 = vmatprep.subr.mxu0 0.0
    %2724 = vmatpush1.msra.mxu0 0.0
    %2725 = vmatprep.subr.mxu0 0.0
    %2726 = vmatpush1.msra.mxu0 0.0
    %2727 = vmatprep.subr.mxu0 0.0
    %2728 = vmatpush1.msra.mxu0 0.0
    %2729 = vmatprep.subr.mxu0 0.0
    %2730 = vmatpush1.msra.mxu0 0.0
    %2731 = vmatprep.subr.mxu0 0.0
    %2732 = vmatpush1.msra.mxu0 0.0
    %2733 = vmatprep.subr.mxu0 0.0
    %2734 = vmatpush1.msra.mxu0 0.0
    %2735 = vmatprep.subr.mxu0 0.0
    %2736 = vmatpush1.msra.mxu0 0.0
    %2737 = vmatprep.subr.mxu0 0.0
    %2738 = vmatpush1.msra.mxu0 %v2196
    %2739 = vmatprep.subr.mxu0 0.0
    %2740 = vmatpush1.msra.mxu0 %v2195
    %2741 = vmatprep.subr.mxu0 0.0
    %2742 = vmatpush2.msra.mxu0 0.0
    %2743 = vmatprep.subr.mxu0 0.0
    %2744 = vmatpush2.msra.mxu0 0.0
    %2745 = vmatprep.subr.mxu0 0.0
    %2746 = vmatpush2.msra.mxu0 0.0
    %2747 = vmatprep.subr.mxu0 0.0
    %2748 = vmatpush2.msra.mxu0 0.0
    %2749 = vmatprep.subr.mxu0 0.0
    %2750 = vmatpush2.msra.mxu0 0.0
    %2751 = vmatprep.subr.mxu0 0.0
    %2752 = vmatpush2.msra.mxu0 0.0
    %2753 = vmatprep.subr.mxu0 0.0
    %2754 = vmatpush2.msra.mxu0 0.0
    %2755 = vmatprep.subr.mxu0 0.0
    %2756 = vmatpush2.msra.mxu0 0.0
    %2757 = vmatprep.subr.mxu0 0.0
    %2758 = vmatpush2.msra.mxu0 0.0
    %2759 = vmatprep.subr.mxu0 0.0
    %2760 = vmatpush2.msra.mxu0 0.0
    %2761 = vmatprep.subr.mxu0 0.0
    %2762 = vmatpush2.msra.mxu0 0.0
    %2763 = vmatprep.subr.mxu0 0.0
    %2764 = vmatpush2.msra.mxu0 0.0
    %2765 = vmatprep.subr.mxu0 0.0
    %2766 = vmatpush2.msra.mxu0 0.0
    %2767 = vmatprep.subr.mxu0 0.0
    %2768 = vmatpush2.msra.mxu0 0.0
    %2769 = vmatprep.subr.mxu0 0.0
    %2770 = vmatpush2.msra.mxu0 0.0
    %2771 = vmatprep.subr.mxu0 0.0
    %2772 = vmatpush2.msra.mxu0 0.0
    %2773 = vmatprep.mubr.f32.mxu0 0.0
    %2774 = vmatmul.mubr.f32.gmra.mxu0 %v2217
    %v2775 = vpop.f32.mrf.mxu0
    %v2776 = vadd.f32 %v2214, %v2775
    %v2777 = vpop.f32.mrf.mxu0
    %2778 = vdwg.mxu0
    %2779 = vmatprep.subr.mxu0 0.0
    %2780 = vmatpush1.msra.mxu0 0.0
    %2781 = vmatprep.subr.mxu0 0.0
    %2782 = vmatpush1.msra.mxu0 0.0
    %2783 = vmatprep.subr.mxu0 0.0
    %2784 = vmatpush1.msra.mxu0 0.0
    %2785 = vmatprep.subr.mxu0 0.0
    %2786 = vmatpush1.msra.mxu0 0.0
    %2787 = vmatprep.subr.mxu0 0.0
    %2788 = vmatpush1.msra.mxu0 0.0
    %2789 = vmatprep.subr.mxu0 0.0
    %2790 = vmatpush1.msra.mxu0 0.0
    %2791 = vmatprep.subr.mxu0 0.0
    %2792 = vmatpush1.msra.mxu0 0.0
    %2793 = vmatprep.subr.mxu0 0.0
    %2794 = vmatpush1.msra.mxu0 0.0
    %2795 = vmatprep.subr.mxu0 0.0
    %2796 = vmatpush1.msra.mxu0 0.0
    %2797 = vmatprep.subr.mxu0 0.0
    %2798 = vmatpush1.msra.mxu0 0.0
    %2799 = vmatprep.subr.mxu0 0.0
    %2800 = vmatpush1.msra.mxu0 0.0
    %2801 = vmatprep.subr.mxu0 0.0
    %2802 = vmatpush1.msra.mxu0 0.0
    %2803 = vmatprep.subr.mxu0 0.0
    %2804 = vmatpush1.msra.mxu0 0.0
    %2805 = vmatprep.subr.mxu0 0.0
    %2806 = vmatpush1.msra.mxu0 0.0
    %2807 = vmatprep.subr.mxu0 0.0
    %2808 = vmatpush1.msra.mxu0 %v2198
    %2809 = vmatprep.subr.mxu0 0.0
    %2810 = vmatpush1.msra.mxu0 %v2197
    %2811 = vmatprep.subr.mxu0 0.0
    %2812 = vmatpush2.msra.mxu0 0.0
    %2813 = vmatprep.subr.mxu0 0.0
    %2814 = vmatpush2.msra.mxu0 0.0
    %2815 = vmatprep.subr.mxu0 0.0
    %2816 = vmatpush2.msra.mxu0 0.0
    %2817 = vmatprep.subr.mxu0 0.0
    %2818 = vmatpush2.msra.mxu0 0.0
    %2819 = vmatprep.subr.mxu0 0.0
    %2820 = vmatpush2.msra.mxu0 0.0
    %2821 = vmatprep.subr.mxu0 0.0
    %2822 = vmatpush2.msra.mxu0 0.0
    %2823 = vmatprep.subr.mxu0 0.0
    %2824 = vmatpush2.msra.mxu0 0.0
    %2825 = vmatprep.subr.mxu0 0.0
    %2826 = vmatpush2.msra.mxu0 0.0
    %2827 = vmatprep.subr.mxu0 0.0
    %2828 = vmatpush2.msra.mxu0 0.0
    %2829 = vmatprep.subr.mxu0 0.0
    %2830 = vmatpush2.msra.mxu0 0.0
    %2831 = vmatprep.subr.mxu0 0.0
    %2832 = vmatpush2.msra.mxu0 0.0
    %2833 = vmatprep.subr.mxu0 0.0
    %2834 = vmatpush2.msra.mxu0 0.0
    %2835 = vmatprep.subr.mxu0 0.0
    %2836 = vmatpush2.msra.mxu0 0.0
    %2837 = vmatprep.subr.mxu0 0.0
    %2838 = vmatpush2.msra.mxu0 0.0
    %2839 = vmatprep.subr.mxu0 0.0
    %2840 = vmatpush2.msra.mxu0 0.0
    %2841 = vmatprep.subr.mxu0 0.0
    %2842 = vmatpush2.msra.mxu0 0.0
    %2843 = vmatprep.mubr.f32.mxu0 0.0
    %2844 = vmatmul.mubr.f32.gmra.mxu0 %v2217
    %v2845 = vpop.f32.mrf.mxu0
    %v2846 = vadd.f32 %v2214, %v2845
    %v2847 = vpop.f32.mrf.mxu0
    %2848 = vdwg.mxu0
    %2849 = vmatprep.subr.mxu0 0.0
    %2850 = vmatpush1.msra.mxu0 0.0
    %2851 = vmatprep.subr.mxu0 0.0
    %2852 = vmatpush1.msra.mxu0 0.0
    %2853 = vmatprep.subr.mxu0 0.0
    %2854 = vmatpush1.msra.mxu0 0.0
    %2855 = vmatprep.subr.mxu0 0.0
    %2856 = vmatpush1.msra.mxu0 0.0
    %2857 = vmatprep.subr.mxu0 0.0
    %2858 = vmatpush1.msra.mxu0 0.0
    %2859 = vmatprep.subr.mxu0 0.0
    %2860 = vmatpush1.msra.mxu0 0.0
    %2861 = vmatprep.subr.mxu0 0.0
    %2862 = vmatpush1.msra.mxu0 0.0
    %2863 = vmatprep.subr.mxu0 0.0
    %2864 = vmatpush1.msra.mxu0 0.0
    %2865 = vmatprep.subr.mxu0 0.0
    %2866 = vmatpush1.msra.mxu0 0.0
    %2867 = vmatprep.subr.mxu0 0.0
    %2868 = vmatpush1.msra.mxu0 0.0
    %2869 = vmatprep.subr.mxu0 0.0
    %2870 = vmatpush1.msra.mxu0 0.0
    %2871 = vmatprep.subr.mxu0 0.0
    %2872 = vmatpush1.msra.mxu0 0.0
    %2873 = vmatprep.subr.mxu0 0.0
    %2874 = vmatpush1.msra.mxu0 0.0
    %2875 = vmatprep.subr.mxu0 0.0
    %2876 = vmatpush1.msra.mxu0 0.0
    %2877 = vmatprep.subr.mxu0 0.0
    %2878 = vmatpush1.msra.mxu0 %v2200
    %2879 = vmatprep.subr.mxu0 0.0
    %2880 = vmatpush1.msra.mxu0 %v2199
    %2881 = vmatprep.subr.mxu0 0.0
    %2882 = vmatpush2.msra.mxu0 0.0
    %2883 = vmatprep.subr.mxu0 0.0
    %2884 = vmatpush2.msra.mxu0 0.0
    %2885 = vmatprep.subr.mxu0 0.0
    %2886 = vmatpush2.msra.mxu0 0.0
    %2887 = vmatprep.subr.mxu0 0.0
    %2888 = vmatpush2.msra.mxu0 0.0
    %2889 = vmatprep.subr.mxu0 0.0
    %2890 = vmatpush2.msra.mxu0 0.0
    %2891 = vmatprep.subr.mxu0 0.0
    %2892 = vmatpush2.msra.mxu0 0.0
    %2893 = vmatprep.subr.mxu0 0.0
    %2894 = vmatpush2.msra.mxu0 0.0
    %2895 = vmatprep.subr.mxu0 0.0
    %2896 = vmatpush2.msra.mxu0 0.0
    %2897 = vmatprep.subr.mxu0 0.0
    %2898 = vmatpush2.msra.mxu0 0.0
    %2899 = vmatprep.subr.mxu0 0.0
    %2900 = vmatpush2.msra.mxu0 0.0
    %2901 = vmatprep.subr.mxu0 0.0
    %2902 = vmatpush2.msra.mxu0 0.0
    %2903 = vmatprep.subr.mxu0 0.0
    %2904 = vmatpush2.msra.mxu0 0.0
    %2905 = vmatprep.subr.mxu0 0.0
    %2906 = vmatpush2.msra.mxu0 0.0
    %2907 = vmatprep.subr.mxu0 0.0
    %2908 = vmatpush2.msra.mxu0 0.0
    %2909 = vmatprep.subr.mxu0 0.0
    %2910 = vmatpush2.msra.mxu0 0.0
    %2911 = vmatprep.subr.mxu0 0.0
    %2912 = vmatpush2.msra.mxu0 0.0
    %2913 = vmatprep.mubr.f32.mxu0 0.0
    %2914 = vmatmul.mubr.f32.gmra.mxu0 %v2217
    %v2915 = vpop.f32.mrf.mxu0
    %v2916 = vadd.f32 %v2214, %v2915
    %v2917 = vpop.f32.mrf.mxu0
    %2918 = vdwg.mxu0
    %2919 = vmatprep.subr.mxu0 0.0
    %2920 = vmatpush1.msra.mxu0 0.0
    %2921 = vmatprep.subr.mxu0 0.0
    %2922 = vmatpush1.msra.mxu0 0.0
    %2923 = vmatprep.subr.mxu0 0.0
    %2924 = vmatpush1.msra.mxu0 0.0
    %2925 = vmatprep.subr.mxu0 0.0
    %2926 = vmatpush1.msra.mxu0 0.0
    %2927 = vmatprep.subr.mxu0 0.0
    %2928 = vmatpush1.msra.mxu0 0.0
    %2929 = vmatprep.subr.mxu0 0.0
    %2930 = vmatpush1.msra.mxu0 0.0
    %2931 = vmatprep.subr.mxu0 0.0
    %2932 = vmatpush1.msra.mxu0 0.0
    %2933 = vmatprep.subr.mxu0 0.0
    %2934 = vmatpush1.msra.mxu0 0.0
    %2935 = vmatprep.subr.mxu0 0.0
    %2936 = vmatpush1.msra.mxu0 0.0
    %2937 = vmatprep.subr.mxu0 0.0
    %2938 = vmatpush1.msra.mxu0 0.0
    %2939 = vmatprep.subr.mxu0 0.0
    %2940 = vmatpush1.msra.mxu0 0.0
    %2941 = vmatprep.subr.mxu0 0.0
    %2942 = vmatpush1.msra.mxu0 0.0
    %2943 = vmatprep.subr.mxu0 0.0
    %2944 = vmatpush1.msra.mxu0 0.0
    %2945 = vmatprep.subr.mxu0 0.0
    %2946 = vmatpush1.msra.mxu0 0.0
    %2947 = vmatprep.subr.mxu0 0.0
    %2948 = vmatpush1.msra.mxu0 %v2202
    %2949 = vmatprep.subr.mxu0 0.0
    %2950 = vmatpush1.msra.mxu0 %v2201
    %2951 = vmatprep.subr.mxu0 0.0
    %2952 = vmatpush2.msra.mxu0 0.0
    %2953 = vmatprep.subr.mxu0 0.0
    %2954 = vmatpush2.msra.mxu0 0.0
    %2955 = vmatprep.subr.mxu0 0.0
    %2956 = vmatpush2.msra.mxu0 0.0
    %2957 = vmatprep.subr.mxu0 0.0
    %2958 = vmatpush2.msra.mxu0 0.0
    %2959 = vmatprep.subr.mxu0 0.0
    %2960 = vmatpush2.msra.mxu0 0.0
    %2961 = vmatprep.subr.mxu0 0.0
    %2962 = vmatpush2.msra.mxu0 0.0
    %2963 = vmatprep.subr.mxu0 0.0
    %2964 = vmatpush2.msra.mxu0 0.0
    %2965 = vmatprep.subr.mxu0 0.0
    %2966 = vmatpush2.msra.mxu0 0.0
    %2967 = vmatprep.subr.mxu0 0.0
    %2968 = vmatpush2.msra.mxu0 0.0
    %2969 = vmatprep.subr.mxu0 0.0
    %2970 = vmatpush2.msra.mxu0 0.0
    %2971 = vmatprep.subr.mxu0 0.0
    %2972 = vmatpush2.msra.mxu0 0.0
    %2973 = vmatprep.subr.mxu0 0.0
    %2974 = vmatpush2.msra.mxu0 0.0
    %2975 = vmatprep.subr.mxu0 0.0
    %2976 = vmatpush2.msra.mxu0 0.0
    %2977 = vmatprep.subr.mxu0 0.0
    %2978 = vmatpush2.msra.mxu0 0.0
    %2979 = vmatprep.subr.mxu0 0.0
    %2980 = vmatpush2.msra.mxu0 0.0
    %2981 = vmatprep.subr.mxu0 0.0
    %2982 = vmatpush2.msra.mxu0 0.0
    %2983 = vmatprep.mubr.f32.mxu0 0.0
    %2984 = vmatmul.mubr.f32.gmra.mxu0 %v2217
    %v2985 = vpop.f32.mrf.mxu0
    %v2986 = vadd.f32 %v2214, %v2985
    %v2987 = vpop.f32.mrf.mxu0
    %2988 = vdwg.mxu0
    %2989 = vmatprep.subr.mxu0 0.0
    %2990 = vmatpush1.msra.mxu0 0.0
    %2991 = vmatprep.subr.mxu0 0.0
    %2992 = vmatpush1.msra.mxu0 0.0
    %2993 = vmatprep.subr.mxu0 0.0
    %2994 = vmatpush1.msra.mxu0 0.0
    %2995 = vmatprep.subr.mxu0 0.0
    %2996 = vmatpush1.msra.mxu0 0.0
    %2997 = vmatprep.subr.mxu0 0.0
    %2998 = vmatpush1.msra.mxu0 0.0
    %2999 = vmatprep.subr.mxu0 0.0
    %3000 = vmatpush1.msra.mxu0 0.0
    %3001 = vmatprep.subr.mxu0 0.0
    %3002 = vmatpush1.msra.mxu0 0.0
    %3003 = vmatprep.subr.mxu0 0.0
    %3004 = vmatpush1.msra.mxu0 0.0
    %3005 = vmatprep.subr.mxu0 0.0
    %3006 = vmatpush1.msra.mxu0 0.0
    %3007 = vmatprep.subr.mxu0 0.0
    %3008 = vmatpush1.msra.mxu0 0.0
    %3009 = vmatprep.subr.mxu0 0.0
    %3010 = vmatpush1.msra.mxu0 0.0
    %3011 = vmatprep.subr.mxu0 0.0
    %3012 = vmatpush1.msra.mxu0 0.0
    %3013 = vmatprep.subr.mxu0 0.0
    %3014 = vmatpush1.msra.mxu0 0.0
    %3015 = vmatprep.subr.mxu0 0.0
    %3016 = vmatpush1.msra.mxu0 0.0
    %3017 = vmatprep.subr.mxu0 0.0
    %3018 = vmatpush1.msra.mxu0 %v2204
    %3019 = vmatprep.subr.mxu0 0.0
    %3020 = vmatpush1.msra.mxu0 %v2203
    %3021 = vmatprep.subr.mxu0 0.0
    %3022 = vmatpush2.msra.mxu0 0.0
    %3023 = vmatprep.subr.mxu0 0.0
    %3024 = vmatpush2.msra.mxu0 0.0
    %3025 = vmatprep.subr.mxu0 0.0
    %3026 = vmatpush2.msra.mxu0 0.0
    %3027 = vmatprep.subr.mxu0 0.0
    %3028 = vmatpush2.msra.mxu0 0.0
    %3029 = vmatprep.subr.mxu0 0.0
    %3030 = vmatpush2.msra.mxu0 0.0
    %3031 = vmatprep.subr.mxu0 0.0
    %3032 = vmatpush2.msra.mxu0 0.0
    %3033 = vmatprep.subr.mxu0 0.0
    %3034 = vmatpush2.msra.mxu0 0.0
    %3035 = vmatprep.subr.mxu0 0.0
    %3036 = vmatpush2.msra.mxu0 0.0
    %3037 = vmatprep.subr.mxu0 0.0
    %3038 = vmatpush2.msra.mxu0 0.0
    %3039 = vmatprep.subr.mxu0 0.0
    %3040 = vmatpush2.msra.mxu0 0.0
    %3041 = vmatprep.subr.mxu0 0.0
    %3042 = vmatpush2.msra.mxu0 0.0
    %3043 = vmatprep.subr.mxu0 0.0
    %3044 = vmatpush2.msra.mxu0 0.0
    %3045 = vmatprep.subr.mxu0 0.0
    %3046 = vmatpush2.msra.mxu0 0.0
    %3047 = vmatprep.subr.mxu0 0.0
    %3048 = vmatpush2.msra.mxu0 0.0
    %3049 = vmatprep.subr.mxu0 0.0
    %3050 = vmatpush2.msra.mxu0 0.0
    %3051 = vmatprep.subr.mxu0 0.0
    %3052 = vmatpush2.msra.mxu0 0.0
    %3053 = vmatprep.mubr.f32.mxu0 0.0
    %3054 = vmatmul.mubr.f32.gmra.mxu0 %v2217
    %v3055 = vpop.f32.mrf.mxu0
    %v3056 = vadd.f32 %v2214, %v3055
    %v3057 = vpop.f32.mrf.mxu0
    %3058 = vdwg.mxu0
    %3059 = vmatprep.subr.mxu0 0.0
    %3060 = vmatpush1.msra.mxu0 0.0
    %3061 = vmatprep.subr.mxu0 0.0
    %3062 = vmatpush1.msra.mxu0 0.0
    %3063 = vmatprep.subr.mxu0 0.0
    %3064 = vmatpush1.msra.mxu0 0.0
    %3065 = vmatprep.subr.mxu0 0.0
    %3066 = vmatpush1.msra.mxu0 0.0
    %3067 = vmatprep.subr.mxu0 0.0
    %3068 = vmatpush1.msra.mxu0 0.0
    %3069 = vmatprep.subr.mxu0 0.0
    %3070 = vmatpush1.msra.mxu0 0.0
    %3071 = vmatprep.subr.mxu0 0.0
    %3072 = vmatpush1.msra.mxu0 0.0
    %3073 = vmatprep.subr.mxu0 0.0
    %3074 = vmatpush1.msra.mxu0 0.0
    %3075 = vmatprep.subr.mxu0 0.0
    %3076 = vmatpush1.msra.mxu0 0.0
    %3077 = vmatprep.subr.mxu0 0.0
    %3078 = vmatpush1.msra.mxu0 0.0
    %3079 = vmatprep.subr.mxu0 0.0
    %3080 = vmatpush1.msra.mxu0 0.0
    %3081 = vmatprep.subr.mxu0 0.0
    %3082 = vmatpush1.msra.mxu0 0.0
    %3083 = vmatprep.subr.mxu0 0.0
    %3084 = vmatpush1.msra.mxu0 0.0
    %3085 = vmatprep.subr.mxu0 0.0
    %3086 = vmatpush1.msra.mxu0 0.0
    %3087 = vmatprep.subr.mxu0 0.0
    %3088 = vmatpush1.msra.mxu0 %v2206
    %3089 = vmatprep.subr.mxu0 0.0
    %3090 = vmatpush1.msra.mxu0 %v2205
    %3091 = vmatprep.subr.mxu0 0.0
    %3092 = vmatpush2.msra.mxu0 0.0
    %3093 = vmatprep.subr.mxu0 0.0
    %3094 = vmatpush2.msra.mxu0 0.0
    %3095 = vmatprep.subr.mxu0 0.0
    %3096 = vmatpush2.msra.mxu0 0.0
    %3097 = vmatprep.subr.mxu0 0.0
    %3098 = vmatpush2.msra.mxu0 0.0
    %3099 = vmatprep.subr.mxu0 0.0
    %3100 = vmatpush2.msra.mxu0 0.0
    %3101 = vmatprep.subr.mxu0 0.0
    %3102 = vmatpush2.msra.mxu0 0.0
    %3103 = vmatprep.subr.mxu0 0.0
    %3104 = vmatpush2.msra.mxu0 0.0
    %3105 = vmatprep.subr.mxu0 0.0
    %3106 = vmatpush2.msra.mxu0 0.0
    %3107 = vmatprep.subr.mxu0 0.0
    %3108 = vmatpush2.msra.mxu0 0.0
    %3109 = vmatprep.subr.mxu0 0.0
    %3110 = vmatpush2.msra.mxu0 0.0
    %3111 = vmatprep.subr.mxu0 0.0
    %3112 = vmatpush2.msra.mxu0 0.0
    %3113 = vmatprep.subr.mxu0 0.0
    %3114 = vmatpush2.msra.mxu0 0.0
    %3115 = vmatprep.subr.mxu0 0.0
    %3116 = vmatpush2.msra.mxu0 0.0
    %3117 = vmatprep.subr.mxu0 0.0
    %3118 = vmatpush2.msra.mxu0 0.0
    %3119 = vmatprep.subr.mxu0 0.0
    %3120 = vmatpush2.msra.mxu0 0.0
    %3121 = vmatprep.subr.mxu0 0.0
    %3122 = vmatpush2.msra.mxu0 0.0
    %3123 = vmatprep.mubr.f32.mxu0 0.0
    %3124 = vmatmul.mubr.f32.gmra.mxu0 %v2217
    %v3125 = vpop.f32.mrf.mxu0
    %v3126 = vadd.f32 %v2214, %v3125
    %v3127 = vpop.f32.mrf.mxu0
    %3128 = vdwg.mxu0
    %3129 = vmatprep.subr.mxu0 0.0
    %3130 = vmatpush1.msra.mxu0 0.0
    %3131 = vmatprep.subr.mxu0 0.0
    %3132 = vmatpush1.msra.mxu0 0.0
    %3133 = vmatprep.subr.mxu0 0.0
    %3134 = vmatpush1.msra.mxu0 0.0
    %3135 = vmatprep.subr.mxu0 0.0
    %3136 = vmatpush1.msra.mxu0 0.0
    %3137 = vmatprep.subr.mxu0 0.0
    %3138 = vmatpush1.msra.mxu0 0.0
    %3139 = vmatprep.subr.mxu0 0.0
    %3140 = vmatpush1.msra.mxu0 0.0
    %3141 = vmatprep.subr.mxu0 0.0
    %3142 = vmatpush1.msra.mxu0 0.0
    %3143 = vmatprep.subr.mxu0 0.0
    %3144 = vmatpush1.msra.mxu0 0.0
    %3145 = vmatprep.subr.mxu0 0.0
    %3146 = vmatpush1.msra.mxu0 0.0
    %3147 = vmatprep.subr.mxu0 0.0
    %3148 = vmatpush1.msra.mxu0 0.0
    %3149 = vmatprep.subr.mxu0 0.0
    %3150 = vmatpush1.msra.mxu0 0.0
    %3151 = vmatprep.subr.mxu0 0.0
    %3152 = vmatpush1.msra.mxu0 0.0
    %3153 = vmatprep.subr.mxu0 0.0
    %3154 = vmatpush1.msra.mxu0 0.0
    %3155 = vmatprep.subr.mxu0 0.0
    %3156 = vmatpush1.msra.mxu0 0.0
    %3157 = vmatprep.subr.mxu0 0.0
    %3158 = vmatpush1.msra.mxu0 %v2208
    %3159 = vmatprep.subr.mxu0 0.0
    %3160 = vmatpush1.msra.mxu0 %v2207
    %3161 = vmatprep.subr.mxu0 0.0
    %3162 = vmatpush2.msra.mxu0 0.0
    %3163 = vmatprep.subr.mxu0 0.0
    %3164 = vmatpush2.msra.mxu0 0.0
    %3165 = vmatprep.subr.mxu0 0.0
    %3166 = vmatpush2.msra.mxu0 0.0
    %3167 = vmatprep.subr.mxu0 0.0
    %3168 = vmatpush2.msra.mxu0 0.0
    %3169 = vmatprep.subr.mxu0 0.0
    %3170 = vmatpush2.msra.mxu0 0.0
    %3171 = vmatprep.subr.mxu0 0.0
    %3172 = vmatpush2.msra.mxu0 0.0
    %3173 = vmatprep.subr.mxu0 0.0
    %3174 = vmatpush2.msra.mxu0 0.0
    %3175 = vmatprep.subr.mxu0 0.0
    %3176 = vmatpush2.msra.mxu0 0.0
    %3177 = vmatprep.subr.mxu0 0.0
    %3178 = vmatpush2.msra.mxu0 0.0
    %3179 = vmatprep.subr.mxu0 0.0
    %3180 = vmatpush2.msra.mxu0 0.0
    %3181 = vmatprep.subr.mxu0 0.0
    %3182 = vmatpush2.msra.mxu0 0.0
    %3183 = vmatprep.subr.mxu0 0.0
    %3184 = vmatpush2.msra.mxu0 0.0
    %3185 = vmatprep.subr.mxu0 0.0
    %3186 = vmatpush2.msra.mxu0 0.0
    %3187 = vmatprep.subr.mxu0 0.0
    %3188 = vmatpush2.msra.mxu0 0.0
    %3189 = vmatprep.subr.mxu0 0.0
    %3190 = vmatpush2.msra.mxu0 0.0
    %3191 = vmatprep.subr.mxu0 0.0
    %3192 = vmatpush2.msra.mxu0 0.0
    %3193 = vmatprep.mubr.f32.mxu0 0.0
    %3194 = vmatmul.mubr.f32.gmra.mxu0 %v2217
    %v3195 = vpop.f32.mrf.mxu0
    %v3196 = vadd.f32 %v2214, %v3195
    %v3197 = vpop.f32.mrf.mxu0
    %3198 = vdwg.mxu0
    %3199 = vmatprep.subr.mxu0 0.0
    %3200 = vmatpush1.msra.mxu0 0.0
    %3201 = vmatprep.subr.mxu0 0.0
    %3202 = vmatpush1.msra.mxu0 0.0
    %3203 = vmatprep.subr.mxu0 0.0
    %3204 = vmatpush1.msra.mxu0 0.0
    %3205 = vmatprep.subr.mxu0 0.0
    %3206 = vmatpush1.msra.mxu0 0.0
    %3207 = vmatprep.subr.mxu0 0.0
    %3208 = vmatpush1.msra.mxu0 0.0
    %3209 = vmatprep.subr.mxu0 0.0
    %3210 = vmatpush1.msra.mxu0 0.0
    %3211 = vmatprep.subr.mxu0 0.0
    %3212 = vmatpush1.msra.mxu0 0.0
    %3213 = vmatprep.subr.mxu0 0.0
    %3214 = vmatpush1.msra.mxu0 0.0
    %3215 = vmatprep.subr.mxu0 0.0
    %3216 = vmatpush1.msra.mxu0 0.0
    %3217 = vmatprep.subr.mxu0 0.0
    %3218 = vmatpush1.msra.mxu0 0.0
    %3219 = vmatprep.subr.mxu0 0.0
    %3220 = vmatpush1.msra.mxu0 0.0
    %3221 = vmatprep.subr.mxu0 0.0
    %3222 = vmatpush1.msra.mxu0 0.0
    %3223 = vmatprep.subr.mxu0 0.0
    %3224 = vmatpush1.msra.mxu0 0.0
    %3225 = vmatprep.subr.mxu0 0.0
    %3226 = vmatpush1.msra.mxu0 0.0
    %3227 = vmatprep.subr.mxu0 0.0
    %3228 = vmatpush1.msra.mxu0 %v2210
    %3229 = vmatprep.subr.mxu0 0.0
    %3230 = vmatpush1.msra.mxu0 %v2209
    %3231 = vmatprep.subr.mxu0 0.0
    %3232 = vmatpush2.msra.mxu0 0.0
    %3233 = vmatprep.subr.mxu0 0.0
    %3234 = vmatpush2.msra.mxu0 0.0
    %3235 = vmatprep.subr.mxu0 0.0
    %3236 = vmatpush2.msra.mxu0 0.0
    %3237 = vmatprep.subr.mxu0 0.0
    %3238 = vmatpush2.msra.mxu0 0.0
    %3239 = vmatprep.subr.mxu0 0.0
    %3240 = vmatpush2.msra.mxu0 0.0
    %3241 = vmatprep.subr.mxu0 0.0
    %3242 = vmatpush2.msra.mxu0 0.0
    %3243 = vmatprep.subr.mxu0 0.0
    %3244 = vmatpush2.msra.mxu0 0.0
    %3245 = vmatprep.subr.mxu0 0.0
    %3246 = vmatpush2.msra.mxu0 0.0
    %3247 = vmatprep.subr.mxu0 0.0
    %3248 = vmatpush2.msra.mxu0 0.0
    %3249 = vmatprep.subr.mxu0 0.0
    %3250 = vmatpush2.msra.mxu0 0.0
    %3251 = vmatprep.subr.mxu0 0.0
    %3252 = vmatpush2.msra.mxu0 0.0
    %3253 = vmatprep.subr.mxu0 0.0
    %3254 = vmatpush2.msra.mxu0 0.0
    %3255 = vmatprep.subr.mxu0 0.0
    %3256 = vmatpush2.msra.mxu0 0.0
    %3257 = vmatprep.subr.mxu0 0.0
    %3258 = vmatpush2.msra.mxu0 0.0
    %3259 = vmatprep.subr.mxu0 0.0
    %3260 = vmatpush2.msra.mxu0 0.0
    %3261 = vmatprep.subr.mxu0 0.0
    %3262 = vmatpush2.msra.mxu0 0.0
    %3263 = vmatprep.mubr.f32.mxu0 0.0
    %3264 = vmatmul.mubr.f32.gmra.mxu0 %v2217
    %v3265 = vpop.f32.mrf.mxu0
    %v3266 = vadd.f32 %v2214, %v3265
    %v3267 = vpop.f32.mrf.mxu0
    %3268 = vdwg.mxu0
    %3269 = vmatprep.subr.mxu0 0.0
    %3270 = vmatpush1.msra.mxu0 0.0
    %3271 = vmatprep.subr.mxu0 0.0
    %3272 = vmatpush1.msra.mxu0 0.0
    %3273 = vmatprep.subr.mxu0 0.0
    %3274 = vmatpush1.msra.mxu0 0.0
    %3275 = vmatprep.subr.mxu0 0.0
    %3276 = vmatpush1.msra.mxu0 0.0
    %3277 = vmatprep.subr.mxu0 0.0
    %3278 = vmatpush1.msra.mxu0 0.0
    %3279 = vmatprep.subr.mxu0 0.0
    %3280 = vmatpush1.msra.mxu0 0.0
    %3281 = vmatprep.subr.mxu0 0.0
    %3282 = vmatpush1.msra.mxu0 0.0
    %3283 = vmatprep.subr.mxu0 0.0
    %3284 = vmatpush1.msra.mxu0 0.0
    %3285 = vmatprep.subr.mxu0 0.0
    %3286 = vmatpush1.msra.mxu0 0.0
    %3287 = vmatprep.subr.mxu0 0.0
    %3288 = vmatpush1.msra.mxu0 0.0
    %3289 = vmatprep.subr.mxu0 0.0
    %3290 = vmatpush1.msra.mxu0 0.0
    %3291 = vmatprep.subr.mxu0 0.0
    %3292 = vmatpush1.msra.mxu0 0.0
    %3293 = vmatprep.subr.mxu0 0.0
    %3294 = vmatpush1.msra.mxu0 0.0
    %3295 = vmatprep.subr.mxu0 0.0
    %3296 = vmatpush1.msra.mxu0 0.0
    %3297 = vmatprep.subr.mxu0 0.0
    %3298 = vmatpush1.msra.mxu0 %v2212
    %3299 = vmatprep.subr.mxu0 0.0
    %3300 = vmatpush1.msra.mxu0 %v2211
    %3301 = vmatprep.subr.mxu0 0.0
    %3302 = vmatpush2.msra.mxu0 0.0
    %3303 = vmatprep.subr.mxu0 0.0
    %3304 = vmatpush2.msra.mxu0 0.0
    %3305 = vmatprep.subr.mxu0 0.0
    %3306 = vmatpush2.msra.mxu0 0.0
    %3307 = vmatprep.subr.mxu0 0.0
    %3308 = vmatpush2.msra.mxu0 0.0
    %3309 = vmatprep.subr.mxu0 0.0
    %3310 = vmatpush2.msra.mxu0 0.0
    %3311 = vmatprep.subr.mxu0 0.0
    %3312 = vmatpush2.msra.mxu0 0.0
    %3313 = vmatprep.subr.mxu0 0.0
    %3314 = vmatpush2.msra.mxu0 0.0
    %3315 = vmatprep.subr.mxu0 0.0
    %3316 = vmatpush2.msra.mxu0 0.0
    %3317 = vmatprep.subr.mxu0 0.0
    %3318 = vmatpush2.msra.mxu0 0.0
    %3319 = vmatprep.subr.mxu0 0.0
    %3320 = vmatpush2.msra.mxu0 0.0
    %3321 = vmatprep.subr.mxu0 0.0
    %3322 = vmatpush2.msra.mxu0 0.0
    %3323 = vmatprep.subr.mxu0 0.0
    %3324 = vmatpush2.msra.mxu0 0.0
    %3325 = vmatprep.subr.mxu0 0.0
    %3326 = vmatpush2.msra.mxu0 0.0
    %3327 = vmatprep.subr.mxu0 0.0
    %3328 = vmatpush2.msra.mxu0 0.0
    %3329 = vmatprep.subr.mxu0 0.0
    %3330 = vmatpush2.msra.mxu0 0.0
    %3331 = vmatprep.subr.mxu0 0.0
    %3332 = vmatpush2.msra.mxu0 0.0
    %3333 = vmatprep.mubr.f32.mxu0 0.0
    %3334 = vmatmul.mubr.f32.gmra.mxu0 %v2217
    %v3335 = vpop.f32.mrf.mxu0
    %v3336 = vadd.f32 %v2214, %v3335
    %v3337 = vpop.f32.mrf.mxu0
    %3338 = vdwg.mxu0
    %v3339 = vadd.f32 %v42, %v2286
    %v3340 = vadd.f32 %v43, %v2356
    %v3341 = vadd.f32 %v44, %v2426
    %v3342 = vadd.f32 %v45, %v2496
    %v3343 = vadd.f32 %v46, %v2566
    %v3344 = vadd.f32 %v47, %v2636
    %v3345 = vadd.f32 %v48, %v2706
    %v3346 = vadd.f32 %v49, %v2776
    %v3347 = vadd.f32 %v50, %v2846
    %v3348 = vadd.f32 %v51, %v2916
    %v3349 = vadd.f32 %v52, %v2986
    %v3350 = vadd.f32 %v53, %v3056
    %v3351 = vadd.f32 %v54, %v3126
    %v3352 = vadd.f32 %v55, %v3196
    %v3353 = vadd.f32 %v56, %v3266
    %v3354 = vadd.f32 %v57, %v3336
    %v3355 = vld [vmem:[%s2] sm:$0x1]
    %v3356 = vld [vmem:[%s3] sm:$0x1]
    %vm3357 = vcmask 261120
    %v3358 = vsel %vm3357, %v3339, 0.0
    %3359 = vadd.xlane.f32.xlu0 %v3358
    %v3360 = vpop.xlane.xlu0 %3359
    %v3361 = vsel %vm3357, %v3340, 0.0
    %3362 = vadd.xlane.f32.xlu0 %v3361
    %v3363 = vpop.xlane.xlu0 %3362
    %v3364 = vsel %vm3357, %v3341, 0.0
    %3365 = vadd.xlane.f32.xlu0 %v3364
    %v3366 = vpop.xlane.xlu0 %3365
    %v3367 = vsel %vm3357, %v3342, 0.0
    %3368 = vadd.xlane.f32.xlu0 %v3367
    %v3369 = vpop.xlane.xlu0 %3368
    %v3370 = vsel %vm3357, %v3343, 0.0
    %3371 = vadd.xlane.f32.xlu0 %v3370
    %v3372 = vpop.xlane.xlu0 %3371
    %v3373 = vsel %vm3357, %v3344, 0.0
    %3374 = vadd.xlane.f32.xlu0 %v3373
    %v3375 = vpop.xlane.xlu0 %3374
    %v3376 = vsel %vm3357, %v3345, 0.0
    %3377 = vadd.xlane.f32.xlu0 %v3376
    %v3378 = vpop.xlane.xlu0 %3377
    %v3379 = vsel %vm3357, %v3346, 0.0
    %3380 = vadd.xlane.f32.xlu0 %v3379
    %v3381 = vpop.xlane.xlu0 %3380
    %v3382 = vsel %vm3357, %v3347, 0.0
    %3383 = vadd.xlane.f32.xlu0 %v3382
    %v3384 = vpop.xlane.xlu0 %3383
    %v3385 = vsel %vm3357, %v3348, 0.0
    %3386 = vadd.xlane.f32.xlu0 %v3385
    %v3387 = vpop.xlane.xlu0 %3386
    %v3388 = vsel %vm3357, %v3349, 0.0
    %3389 = vadd.xlane.f32.xlu0 %v3388
    %v3390 = vpop.xlane.xlu0 %3389
    %v3391 = vsel %vm3357, %v3350, 0.0
    %3392 = vadd.xlane.f32.xlu0 %v3391
    %v3393 = vpop.xlane.xlu0 %3392
    %v3394 = vsel %vm3357, %v3351, 0.0
    %3395 = vadd.xlane.f32.xlu0 %v3394
    %v3396 = vpop.xlane.xlu0 %3395
    %v3397 = vsel %vm3357, %v3352, 0.0
    %3398 = vadd.xlane.f32.xlu0 %v3397
    %v3399 = vpop.xlane.xlu0 %3398
    %v3400 = vsel %vm3357, %v3353, 0.0
    %3401 = vadd.xlane.f32.xlu0 %v3400
    %v3402 = vpop.xlane.xlu0 %3401
    %v3403 = vsel %vm3357, %v3354, 0.0
    %3404 = vadd.xlane.f32.xlu0 %v3403
    %v3405 = vpop.xlane.xlu0 %3404
    %v3406 = vrcp.pop 32.0
    %v3407 = vmul.f32 %v3360, %v3406
    %v3408 = vmul.f32 %v3363, %v3406
    %v3409 = vmul.f32 %v3366, %v3406
    %v3410 = vmul.f32 %v3369, %v3406
    %v3411 = vmul.f32 %v3372, %v3406
    %v3412 = vmul.f32 %v3375, %v3406
    %v3413 = vmul.f32 %v3378, %v3406
    %v3414 = vmul.f32 %v3381, %v3406
    %v3415 = vmul.f32 %v3384, %v3406
    %v3416 = vmul.f32 %v3387, %v3406
    %v3417 = vmul.f32 %v3390, %v3406
    %v3418 = vmul.f32 %v3393, %v3406
    %v3419 = vmul.f32 %v3396, %v3406
    %v3420 = vmul.f32 %v3399, %v3406
    %v3421 = vmul.f32 %v3402, %v3406
    %v3422 = vmul.f32 %v3405, %v3406
    %v3423 = vsub.f32 %v3339, %v3407
    %v3424 = vsub.f32 %v3340, %v3408
    %v3425 = vsub.f32 %v3341, %v3409
    %v3426 = vsub.f32 %v3342, %v3410
    %v3427 = vsub.f32 %v3343, %v3411
    %v3428 = vsub.f32 %v3344, %v3412
    %v3429 = vsub.f32 %v3345, %v3413
    %v3430 = vsub.f32 %v3346, %v3414
    %v3431 = vsub.f32 %v3347, %v3415
    %v3432 = vsub.f32 %v3348, %v3416
    %v3433 = vsub.f32 %v3349, %v3417
    %v3434 = vsub.f32 %v3350, %v3418
    %v3435 = vsub.f32 %v3351, %v3419
    %v3436 = vsub.f32 %v3352, %v3420
    %v3437 = vsub.f32 %v3353, %v3421
    %v3438 = vsub.f32 %v3354, %v3422
    %v3439 = vmul.f32 %v3423, %v3423
    %v3440 = vmul.f32 %v3424, %v3424
    %v3441 = vmul.f32 %v3425, %v3425
    %v3442 = vmul.f32 %v3426, %v3426
    %v3443 = vmul.f32 %v3427, %v3427
    %v3444 = vmul.f32 %v3428, %v3428
    %v3445 = vmul.f32 %v3429, %v3429
    %v3446 = vmul.f32 %v3430, %v3430
    %v3447 = vmul.f32 %v3431, %v3431
    %v3448 = vmul.f32 %v3432, %v3432
    %v3449 = vmul.f32 %v3433, %v3433
    %v3450 = vmul.f32 %v3434, %v3434
    %v3451 = vmul.f32 %v3435, %v3435
    %v3452 = vmul.f32 %v3436, %v3436
    %v3453 = vmul.f32 %v3437, %v3437
    %v3454 = vmul.f32 %v3438, %v3438
    %v3455 = vsel %vm3357, %v3439, 0.0
    %3456 = vadd.xlane.f32.xlu0 %v3455
    %v3457 = vpop.xlane.xlu0 %3456
    %v3458 = vsel %vm3357, %v3440, 0.0
    %3459 = vadd.xlane.f32.xlu0 %v3458
    %v3460 = vpop.xlane.xlu0 %3459
    %v3461 = vsel %vm3357, %v3441, 0.0
    %3462 = vadd.xlane.f32.xlu0 %v3461
    %v3463 = vpop.xlane.xlu0 %3462
    %v3464 = vsel %vm3357, %v3442, 0.0
    %3465 = vadd.xlane.f32.xlu0 %v3464
    %v3466 = vpop.xlane.xlu0 %3465
    %v3467 = vsel %vm3357, %v3443, 0.0
    %3468 = vadd.xlane.f32.xlu0 %v3467
    %v3469 = vpop.xlane.xlu0 %3468
    %v3470 = vsel %vm3357, %v3444, 0.0
    %3471 = vadd.xlane.f32.xlu0 %v3470
    %v3472 = vpop.xlane.xlu0 %3471
    %v3473 = vsel %vm3357, %v3445, 0.0
    %3474 = vadd.xlane.f32.xlu0 %v3473
    %v3475 = vpop.xlane.xlu0 %3474
    %v3476 = vsel %vm3357, %v3446, 0.0
    %3477 = vadd.xlane.f32.xlu0 %v3476
    %v3478 = vpop.xlane.xlu0 %3477
    %v3479 = vsel %vm3357, %v3447, 0.0
    %3480 = vadd.xlane.f32.xlu0 %v3479
    %v3481 = vpop.xlane.xlu0 %3480
    %v3482 = vsel %vm3357, %v3448, 0.0
    %3483 = vadd.xlane.f32.xlu0 %v3482
    %v3484 = vpop.xlane.xlu0 %3483
    %v3485 = vsel %vm3357, %v3449, 0.0
    %3486 = vadd.xlane.f32.xlu0 %v3485
    %v3487 = vpop.xlane.xlu0 %3486
    %v3488 = vsel %vm3357, %v3450, 0.0
    %3489 = vadd.xlane.f32.xlu0 %v3488
    %v3490 = vpop.xlane.xlu0 %3489
    %v3491 = vsel %vm3357, %v3451, 0.0
    %3492 = vadd.xlane.f32.xlu0 %v3491
    %v3493 = vpop.xlane.xlu0 %3492
    %v3494 = vsel %vm3357, %v3452, 0.0
    %3495 = vadd.xlane.f32.xlu0 %v3494
    %v3496 = vpop.xlane.xlu0 %3495
    %v3497 = vsel %vm3357, %v3453, 0.0
    %3498 = vadd.xlane.f32.xlu0 %v3497
    %v3499 = vpop.xlane.xlu0 %3498
    %v3500 = vsel %vm3357, %v3454, 0.0
    %3501 = vadd.xlane.f32.xlu0 %v3500
    %v3502 = vpop.xlane.xlu0 %3501
    %v3503 = vmul.f32 %v3457, %v3406
    %v3504 = vmul.f32 %v3460, %v3406
    %v3505 = vmul.f32 %v3463, %v3406
    %v3506 = vmul.f32 %v3466, %v3406
    %v3507 = vmul.f32 %v3469, %v3406
    %v3508 = vmul.f32 %v3472, %v3406
    %v3509 = vmul.f32 %v3475, %v3406
    %v3510 = vmul.f32 %v3478, %v3406
    %v3511 = vmul.f32 %v3481, %v3406
    %v3512 = vmul.f32 %v3484, %v3406
    %v3513 = vmul.f32 %v3487, %v3406
    %v3514 = vmul.f32 %v3490, %v3406
    %v3515 = vmul.f32 %v3493, %v3406
    %v3516 = vmul.f32 %v3496, %v3406
    %v3517 = vmul.f32 %v3499, %v3406
    %v3518 = vmul.f32 %v3502, %v3406
    %v3519 = vadd.f32 %v3503, 1e-05
    %v3520 = vadd.f32 %v3504, 1e-05
    %v3521 = vadd.f32 %v3505, 1e-05
    %v3522 = vadd.f32 %v3506, 1e-05
    %v3523 = vadd.f32 %v3507, 1e-05
    %v3524 = vadd.f32 %v3508, 1e-05
    %v3525 = vadd.f32 %v3509, 1e-05
    %v3526 = vadd.f32 %v3510, 1e-05
    %v3527 = vadd.f32 %v3511, 1e-05
    %v3528 = vadd.f32 %v3512, 1e-05
    %v3529 = vadd.f32 %v3513, 1e-05
    %v3530 = vadd.f32 %v3514, 1e-05
    %v3531 = vadd.f32 %v3515, 1e-05
    %v3532 = vadd.f32 %v3516, 1e-05
    %v3533 = vadd.f32 %v3517, 1e-05
    %v3534 = vadd.f32 %v3518, 1e-05
    %v3535 = vrsqrt.pop %v3519
    %v3536 = vrsqrt.pop %v3520
    %v3537 = vrsqrt.pop %v3521
    %v3538 = vrsqrt.pop %v3522
    %v3539 = vrsqrt.pop %v3523
    %v3540 = vrsqrt.pop %v3524
    %v3541 = vrsqrt.pop %v3525
    %v3542 = vrsqrt.pop %v3526
    %v3543 = vrsqrt.pop %v3527
    %v3544 = vrsqrt.pop %v3528
    %v3545 = vrsqrt.pop %v3529
    %v3546 = vrsqrt.pop %v3530
    %v3547 = vrsqrt.pop %v3531
    %v3548 = vrsqrt.pop %v3532
    %v3549 = vrsqrt.pop %v3533
    %v3550 = vrsqrt.pop %v3534
    %v3551 = vmul.f32 %v3423, %v3535
    %v3552 = vmul.f32 %v3424, %v3536
    %v3553 = vmul.f32 %v3425, %v3537
    %v3554 = vmul.f32 %v3426, %v3538
    %v3555 = vmul.f32 %v3427, %v3539
    %v3556 = vmul.f32 %v3428, %v3540
    %v3557 = vmul.f32 %v3429, %v3541
    %v3558 = vmul.f32 %v3430, %v3542
    %v3559 = vmul.f32 %v3431, %v3543
    %v3560 = vmul.f32 %v3432, %v3544
    %v3561 = vmul.f32 %v3433, %v3545
    %v3562 = vmul.f32 %v3434, %v3546
    %v3563 = vmul.f32 %v3435, %v3547
    %v3564 = vmul.f32 %v3436, %v3548
    %v3565 = vmul.f32 %v3437, %v3549
    %v3566 = vmul.f32 %v3438, %v3550
    %v3568 = vlaneseq
    %v3569 = vshrl.u32 %v3568, 7
    %v3570 = vsub.s32 0, %v3569
    %v3571 = vrot.slane %v3355, %v3570
    %v3573 = vmul.f32 %v3551, %v3571
    %v3574 = vmul.f32 %v3552, %v3571
    %v3575 = vmul.f32 %v3553, %v3571
    %v3576 = vmul.f32 %v3554, %v3571
    %v3577 = vmul.f32 %v3555, %v3571
    %v3578 = vmul.f32 %v3556, %v3571
    %v3579 = vmul.f32 %v3557, %v3571
    %v3580 = vmul.f32 %v3558, %v3571
    %v3581 = vmul.f32 %v3559, %v3571
    %v3582 = vmul.f32 %v3560, %v3571
    %v3583 = vmul.f32 %v3561, %v3571
    %v3584 = vmul.f32 %v3562, %v3571
    %v3585 = vmul.f32 %v3563, %v3571
    %v3586 = vmul.f32 %v3564, %v3571
    %v3587 = vmul.f32 %v3565, %v3571
    %v3588 = vmul.f32 %v3566, %v3571
    %v3590 = vlaneseq
    %v3591 = vshrl.u32 %v3590, 7
    %v3592 = vsub.s32 0, %v3591
    %v3593 = vrot.slane %v3356, %v3592
    %v3595 = vadd.f32 %v3573, %v3593
    %v3596 = vadd.f32 %v3574, %v3593
    %v3597 = vadd.f32 %v3575, %v3593
    %v3598 = vadd.f32 %v3576, %v3593
    %v3599 = vadd.f32 %v3577, %v3593
    %v3600 = vadd.f32 %v3578, %v3593
    %v3601 = vadd.f32 %v3579, %v3593
    %v3602 = vadd.f32 %v3580, %v3593
    %v3603 = vadd.f32 %v3581, %v3593
    %v3604 = vadd.f32 %v3582, %v3593
    %v3605 = vadd.f32 %v3583, %v3593
    %v3606 = vadd.f32 %v3584, %v3593
    %v3607 = vadd.f32 %v3585, %v3593
    %v3608 = vadd.f32 %v3586, %v3593
    %v3609 = vadd.f32 %v3587, %v3593
    %v3610 = vadd.f32 %v3588, %v3593
    %v3611 = vld [vmem:[%s8] sm:$0xff]
    %v3612 = vld [vmem:[%s8 + $0x8] sm:$0xff]
    %v3613 = vld [vmem:[%s8 + $0x10] sm:$0xff]
    %v3614 = vld [vmem:[%s8 + $0x18] sm:$0xff]
    %v3615 = vld [vmem:[%s8 + $0x20] sm:$0xff]
    %v3616 = vld [vmem:[%s8 + $0x28] sm:$0xff]
    %v3617 = vld [vmem:[%s8 + $0x30] sm:$0xff]
    %v3618 = vld [vmem:[%s8 + $0x38] sm:$0xff]
    %v3619 = vld [vmem:[%s9] sm:$0x1]
    %v3621 = vlaneseq
    %v3622 = vshrl.u32 %v3621, 7
    %v3623 = vsub.s32 0, %v3622
    %v3624 = vrot.slane %v3619, %v3623
    %v3627 = vsel %vm3357, %v3595, 0
    %v3630 = vsel %vm3357, %v3611, 0
    %v3633 = vsel %vm3357, %v3612, 0
    %v3636 = vsel %vm3357, %v3613, 0
    %v3639 = vsel %vm3357, %v3614, 0
    %v3642 = vsel %vm3357, %v3615, 0
    %v3645 = vsel %vm3357, %v3616, 0
    %v3648 = vsel %vm3357, %v3617, 0
    %v3651 = vsel %vm3357, %v3618, 0
    %3653 = vmatprep.subr.mxu0 0.0
    %3654 = vmatpush1.xpose.msra.mxu0 0.0
    %3655 = vmatprep.subr.mxu0 0.0
    %3656 = vmatpush1.xpose.msra.mxu0 0.0
    %3657 = vmatprep.subr.mxu0 0.0
    %3658 = vmatpush1.xpose.msra.mxu0 0.0
    %3659 = vmatprep.subr.mxu0 0.0
    %3660 = vmatpush1.xpose.msra.mxu0 0.0
    %3661 = vmatprep.subr.mxu0 0.0
    %3662 = vmatpush1.xpose.msra.mxu0 0.0
    %3663 = vmatprep.subr.mxu0 0.0
    %3664 = vmatpush1.xpose.msra.mxu0 0.0
    %3665 = vmatprep.subr.mxu0 0.0
    %3666 = vmatpush1.xpose.msra.mxu0 0.0
    %3667 = vmatprep.subr.mxu0 0.0
    %3668 = vmatpush1.xpose.msra.mxu0 0.0
    %3669 = vmatprep.subr.mxu0 0.0
    %3670 = vmatpush1.xpose.msra.mxu0 %v3651
    %3671 = vmatprep.subr.mxu0 0.0
    %3672 = vmatpush1.xpose.msra.mxu0 %v3648
    %3673 = vmatprep.subr.mxu0 0.0
    %3674 = vmatpush1.xpose.msra.mxu0 %v3645
    %3675 = vmatprep.subr.mxu0 0.0
    %3676 = vmatpush1.xpose.msra.mxu0 %v3642
    %3677 = vmatprep.subr.mxu0 0.0
    %3678 = vmatpush1.xpose.msra.mxu0 %v3639
    %3679 = vmatprep.subr.mxu0 0.0
    %3680 = vmatpush1.xpose.msra.mxu0 %v3636
    %3681 = vmatprep.subr.mxu0 0.0
    %3682 = vmatpush1.xpose.msra.mxu0 %v3633
    %3683 = vmatprep.subr.mxu0 0.0
    %3684 = vmatpush1.xpose.msra.mxu0 %v3630
    %3685 = vmatprep.subr.mxu0 0.0
    %3686 = vmatpush2.xpose.msra.mxu0 0.0
    %3687 = vmatprep.subr.mxu0 0.0
    %3688 = vmatpush2.xpose.msra.mxu0 0.0
    %3689 = vmatprep.subr.mxu0 0.0
    %3690 = vmatpush2.xpose.msra.mxu0 0.0
    %3691 = vmatprep.subr.mxu0 0.0
    %3692 = vmatpush2.xpose.msra.mxu0 0.0
    %3693 = vmatprep.subr.mxu0 0.0
    %3694 = vmatpush2.xpose.msra.mxu0 0.0
    %3695 = vmatprep.subr.mxu0 0.0
    %3696 = vmatpush2.xpose.msra.mxu0 0.0
    %3697 = vmatprep.subr.mxu0 0.0
    %3698 = vmatpush2.xpose.msra.mxu0 0.0
    %3699 = vmatprep.subr.mxu0 0.0
    %3700 = vmatpush2.xpose.msra.mxu0 0.0
    %3701 = vmatprep.subr.mxu0 0.0
    %3702 = vmatpush2.xpose.msra.mxu0 0.0
    %3703 = vmatprep.subr.mxu0 0.0
    %3704 = vmatpush2.xpose.msra.mxu0 0.0
    %3705 = vmatprep.subr.mxu0 0.0
    %3706 = vmatpush2.xpose.msra.mxu0 0.0
    %3707 = vmatprep.subr.mxu0 0.0
    %3708 = vmatpush2.xpose.msra.mxu0 0.0
    %3709 = vmatprep.subr.mxu0 0.0
    %3710 = vmatpush2.xpose.msra.mxu0 0.0
    %3711 = vmatprep.subr.mxu0 0.0
    %3712 = vmatpush2.xpose.msra.mxu0 0.0
    %3713 = vmatprep.subr.mxu0 0.0
    %3714 = vmatpush2.xpose.msra.mxu0 0.0
    %3715 = vmatprep.subr.mxu0 0.0
    %3716 = vmatpush2.xpose.msra.mxu0 0.0
    %3717 = vmatprep.mubr.f32.mxu0 0.0
    %3718 = vmatmul.mubr.f32.gmra.mxu0 %v3627
    %v3719 = vpop.f32.mrf.mxu0
    %v3720 = vadd.f32 %v3624, %v3719
    %v3721 = vpop.f32.mrf.mxu0
    %3722 = vdwg.mxu0
    %v3724 = vsel %vm3357, %v3596, 0
    %3726 = vmatprep.subr.mxu0 0.0
    %3727 = vmatpush1.xpose.msra.mxu0 0.0
    %3728 = vmatprep.subr.mxu0 0.0
    %3729 = vmatpush1.xpose.msra.mxu0 0.0
    %3730 = vmatprep.subr.mxu0 0.0
    %3731 = vmatpush1.xpose.msra.mxu0 0.0
    %3732 = vmatprep.subr.mxu0 0.0
    %3733 = vmatpush1.xpose.msra.mxu0 0.0
    %3734 = vmatprep.subr.mxu0 0.0
    %3735 = vmatpush1.xpose.msra.mxu0 0.0
    %3736 = vmatprep.subr.mxu0 0.0
    %3737 = vmatpush1.xpose.msra.mxu0 0.0
    %3738 = vmatprep.subr.mxu0 0.0
    %3739 = vmatpush1.xpose.msra.mxu0 0.0
    %3740 = vmatprep.subr.mxu0 0.0
    %3741 = vmatpush1.xpose.msra.mxu0 0.0
    %3742 = vmatprep.subr.mxu0 0.0
    %3743 = vmatpush1.xpose.msra.mxu0 %v3651
    %3744 = vmatprep.subr.mxu0 0.0
    %3745 = vmatpush1.xpose.msra.mxu0 %v3648
    %3746 = vmatprep.subr.mxu0 0.0
    %3747 = vmatpush1.xpose.msra.mxu0 %v3645
    %3748 = vmatprep.subr.mxu0 0.0
    %3749 = vmatpush1.xpose.msra.mxu0 %v3642
    %3750 = vmatprep.subr.mxu0 0.0
    %3751 = vmatpush1.xpose.msra.mxu0 %v3639
    %3752 = vmatprep.subr.mxu0 0.0
    %3753 = vmatpush1.xpose.msra.mxu0 %v3636
    %3754 = vmatprep.subr.mxu0 0.0
    %3755 = vmatpush1.xpose.msra.mxu0 %v3633
    %3756 = vmatprep.subr.mxu0 0.0
    %3757 = vmatpush1.xpose.msra.mxu0 %v3630
    %3758 = vmatprep.subr.mxu0 0.0
    %3759 = vmatpush2.xpose.msra.mxu0 0.0
    %3760 = vmatprep.subr.mxu0 0.0
    %3761 = vmatpush2.xpose.msra.mxu0 0.0
    %3762 = vmatprep.subr.mxu0 0.0
    %3763 = vmatpush2.xpose.msra.mxu0 0.0
    %3764 = vmatprep.subr.mxu0 0.0
    %3765 = vmatpush2.xpose.msra.mxu0 0.0
    %3766 = vmatprep.subr.mxu0 0.0
    %3767 = vmatpush2.xpose.msra.mxu0 0.0
    %3768 = vmatprep.subr.mxu0 0.0
    %3769 = vmatpush2.xpose.msra.mxu0 0.0
    %3770 = vmatprep.subr.mxu0 0.0
    %3771 = vmatpush2.xpose.msra.mxu0 0.0
    %3772 = vmatprep.subr.mxu0 0.0
    %3773 = vmatpush2.xpose.msra.mxu0 0.0
    %3774 = vmatprep.subr.mxu0 0.0
    %3775 = vmatpush2.xpose.msra.mxu0 0.0
    %3776 = vmatprep.subr.mxu0 0.0
    %3777 = vmatpush2.xpose.msra.mxu0 0.0
    %3778 = vmatprep.subr.mxu0 0.0
    %3779 = vmatpush2.xpose.msra.mxu0 0.0
    %3780 = vmatprep.subr.mxu0 0.0
    %3781 = vmatpush2.xpose.msra.mxu0 0.0
    %3782 = vmatprep.subr.mxu0 0.0
    %3783 = vmatpush2.xpose.msra.mxu0 0.0
    %3784 = vmatprep.subr.mxu0 0.0
    %3785 = vmatpush2.xpose.msra.mxu0 0.0
    %3786 = vmatprep.subr.mxu0 0.0
    %3787 = vmatpush2.xpose.msra.mxu0 0.0
    %3788 = vmatprep.subr.mxu0 0.0
    %3789 = vmatpush2.xpose.msra.mxu0 0.0
    %3790 = vmatprep.mubr.f32.mxu0 0.0
    %3791 = vmatmul.mubr.f32.gmra.mxu0 %v3724
    %v3792 = vpop.f32.mrf.mxu0
    %v3793 = vadd.f32 %v3624, %v3792
    %v3794 = vpop.f32.mrf.mxu0
    %3795 = vdwg.mxu0
    %v3797 = vsel %vm3357, %v3597, 0
    %3799 = vmatprep.subr.mxu0 0.0
    %3800 = vmatpush1.xpose.msra.mxu0 0.0
    %3801 = vmatprep.subr.mxu0 0.0
    %3802 = vmatpush1.xpose.msra.mxu0 0.0
    %3803 = vmatprep.subr.mxu0 0.0
    %3804 = vmatpush1.xpose.msra.mxu0 0.0
    %3805 = vmatprep.subr.mxu0 0.0
    %3806 = vmatpush1.xpose.msra.mxu0 0.0
    %3807 = vmatprep.subr.mxu0 0.0
    %3808 = vmatpush1.xpose.msra.mxu0 0.0
    %3809 = vmatprep.subr.mxu0 0.0
    %3810 = vmatpush1.xpose.msra.mxu0 0.0
    %3811 = vmatprep.subr.mxu0 0.0
    %3812 = vmatpush1.xpose.msra.mxu0 0.0
    %3813 = vmatprep.subr.mxu0 0.0
    %3814 = vmatpush1.xpose.msra.mxu0 0.0
    %3815 = vmatprep.subr.mxu0 0.0
    %3816 = vmatpush1.xpose.msra.mxu0 %v3651
    %3817 = vmatprep.subr.mxu0 0.0
    %3818 = vmatpush1.xpose.msra.mxu0 %v3648
    %3819 = vmatprep.subr.mxu0 0.0
    %3820 = vmatpush1.xpose.msra.mxu0 %v3645
    %3821 = vmatprep.subr.mxu0 0.0
    %3822 = vmatpush1.xpose.msra.mxu0 %v3642
    %3823 = vmatprep.subr.mxu0 0.0
    %3824 = vmatpush1.xpose.msra.mxu0 %v3639
    %3825 = vmatprep.subr.mxu0 0.0
    %3826 = vmatpush1.xpose.msra.mxu0 %v3636
    %3827 = vmatprep.subr.mxu0 0.0
    %3828 = vmatpush1.xpose.msra.mxu0 %v3633
    %3829 = vmatprep.subr.mxu0 0.0
    %3830 = vmatpush1.xpose.msra.mxu0 %v3630
    %3831 = vmatprep.subr.mxu0 0.0
    %3832 = vmatpush2.xpose.msra.mxu0 0.0
    %3833 = vmatprep.subr.mxu0 0.0
    %3834 = vmatpush2.xpose.msra.mxu0 0.0
    %3835 = vmatprep.subr.mxu0 0.0
    %3836 = vmatpush2.xpose.msra.mxu0 0.0
    %3837 = vmatprep.subr.mxu0 0.0
    %3838 = vmatpush2.xpose.msra.mxu0 0.0
    %3839 = vmatprep.subr.mxu0 0.0
    %3840 = vmatpush2.xpose.msra.mxu0 0.0
    %3841 = vmatprep.subr.mxu0 0.0
    %3842 = vmatpush2.xpose.msra.mxu0 0.0
    %3843 = vmatprep.subr.mxu0 0.0
    %3844 = vmatpush2.xpose.msra.mxu0 0.0
    %3845 = vmatprep.subr.mxu0 0.0
    %3846 = vmatpush2.xpose.msra.mxu0 0.0
    %3847 = vmatprep.subr.mxu0 0.0
    %3848 = vmatpush2.xpose.msra.mxu0 0.0
    %3849 = vmatprep.subr.mxu0 0.0
    %3850 = vmatpush2.xpose.msra.mxu0 0.0
    %3851 = vmatprep.subr.mxu0 0.0
    %3852 = vmatpush2.xpose.msra.mxu0 0.0
    %3853 = vmatprep.subr.mxu0 0.0
    %3854 = vmatpush2.xpose.msra.mxu0 0.0
    %3855 = vmatprep.subr.mxu0 0.0
    %3856 = vmatpush2.xpose.msra.mxu0 0.0
    %3857 = vmatprep.subr.mxu0 0.0
    %3858 = vmatpush2.xpose.msra.mxu0 0.0
    %3859 = vmatprep.subr.mxu0 0.0
    %3860 = vmatpush2.xpose.msra.mxu0 0.0
    %3861 = vmatprep.subr.mxu0 0.0
    %3862 = vmatpush2.xpose.msra.mxu0 0.0
    %3863 = vmatprep.mubr.f32.mxu0 0.0
    %3864 = vmatmul.mubr.f32.gmra.mxu0 %v3797
    %v3865 = vpop.f32.mrf.mxu0
    %v3866 = vadd.f32 %v3624, %v3865
    %v3867 = vpop.f32.mrf.mxu0
    %3868 = vdwg.mxu0
    %v3870 = vsel %vm3357, %v3598, 0
    %3872 = vmatprep.subr.mxu0 0.0
    %3873 = vmatpush1.xpose.msra.mxu0 0.0
    %3874 = vmatprep.subr.mxu0 0.0
    %3875 = vmatpush1.xpose.msra.mxu0 0.0
    %3876 = vmatprep.subr.mxu0 0.0
    %3877 = vmatpush1.xpose.msra.mxu0 0.0
    %3878 = vmatprep.subr.mxu0 0.0
    %3879 = vmatpush1.xpose.msra.mxu0 0.0
    %3880 = vmatprep.subr.mxu0 0.0
    %3881 = vmatpush1.xpose.msra.mxu0 0.0
    %3882 = vmatprep.subr.mxu0 0.0
    %3883 = vmatpush1.xpose.msra.mxu0 0.0
    %3884 = vmatprep.subr.mxu0 0.0
    %3885 = vmatpush1.xpose.msra.mxu0 0.0
    %3886 = vmatprep.subr.mxu0 0.0
    %3887 = vmatpush1.xpose.msra.mxu0 0.0
    %3888 = vmatprep.subr.mxu0 0.0
    %3889 = vmatpush1.xpose.msra.mxu0 %v3651
    %3890 = vmatprep.subr.mxu0 0.0
    %3891 = vmatpush1.xpose.msra.mxu0 %v3648
    %3892 = vmatprep.subr.mxu0 0.0
    %3893 = vmatpush1.xpose.msra.mxu0 %v3645
    %3894 = vmatprep.subr.mxu0 0.0
    %3895 = vmatpush1.xpose.msra.mxu0 %v3642
    %3896 = vmatprep.subr.mxu0 0.0
    %3897 = vmatpush1.xpose.msra.mxu0 %v3639
    %3898 = vmatprep.subr.mxu0 0.0
    %3899 = vmatpush1.xpose.msra.mxu0 %v3636
    %3900 = vmatprep.subr.mxu0 0.0
    %3901 = vmatpush1.xpose.msra.mxu0 %v3633
    %3902 = vmatprep.subr.mxu0 0.0
    %3903 = vmatpush1.xpose.msra.mxu0 %v3630
    %3904 = vmatprep.subr.mxu0 0.0
    %3905 = vmatpush2.xpose.msra.mxu0 0.0
    %3906 = vmatprep.subr.mxu0 0.0
    %3907 = vmatpush2.xpose.msra.mxu0 0.0
    %3908 = vmatprep.subr.mxu0 0.0
    %3909 = vmatpush2.xpose.msra.mxu0 0.0
    %3910 = vmatprep.subr.mxu0 0.0
    %3911 = vmatpush2.xpose.msra.mxu0 0.0
    %3912 = vmatprep.subr.mxu0 0.0
    %3913 = vmatpush2.xpose.msra.mxu0 0.0
    %3914 = vmatprep.subr.mxu0 0.0
    %3915 = vmatpush2.xpose.msra.mxu0 0.0
    %3916 = vmatprep.subr.mxu0 0.0
    %3917 = vmatpush2.xpose.msra.mxu0 0.0
    %3918 = vmatprep.subr.mxu0 0.0
    %3919 = vmatpush2.xpose.msra.mxu0 0.0
    %3920 = vmatprep.subr.mxu0 0.0
    %3921 = vmatpush2.xpose.msra.mxu0 0.0
    %3922 = vmatprep.subr.mxu0 0.0
    %3923 = vmatpush2.xpose.msra.mxu0 0.0
    %3924 = vmatprep.subr.mxu0 0.0
    %3925 = vmatpush2.xpose.msra.mxu0 0.0
    %3926 = vmatprep.subr.mxu0 0.0
    %3927 = vmatpush2.xpose.msra.mxu0 0.0
    %3928 = vmatprep.subr.mxu0 0.0
    %3929 = vmatpush2.xpose.msra.mxu0 0.0
    %3930 = vmatprep.subr.mxu0 0.0
    %3931 = vmatpush2.xpose.msra.mxu0 0.0
    %3932 = vmatprep.subr.mxu0 0.0
    %3933 = vmatpush2.xpose.msra.mxu0 0.0
    %3934 = vmatprep.subr.mxu0 0.0
    %3935 = vmatpush2.xpose.msra.mxu0 0.0
    %3936 = vmatprep.mubr.f32.mxu0 0.0
    %3937 = vmatmul.mubr.f32.gmra.mxu0 %v3870
    %v3938 = vpop.f32.mrf.mxu0
    %v3939 = vadd.f32 %v3624, %v3938
    %v3940 = vpop.f32.mrf.mxu0
    %3941 = vdwg.mxu0
    %v3943 = vsel %vm3357, %v3599, 0
    %3945 = vmatprep.subr.mxu0 0.0
    %3946 = vmatpush1.xpose.msra.mxu0 0.0
    %3947 = vmatprep.subr.mxu0 0.0
    %3948 = vmatpush1.xpose.msra.mxu0 0.0
    %3949 = vmatprep.subr.mxu0 0.0
    %3950 = vmatpush1.xpose.msra.mxu0 0.0
    %3951 = vmatprep.subr.mxu0 0.0
    %3952 = vmatpush1.xpose.msra.mxu0 0.0
    %3953 = vmatprep.subr.mxu0 0.0
    %3954 = vmatpush1.xpose.msra.mxu0 0.0
    %3955 = vmatprep.subr.mxu0 0.0
    %3956 = vmatpush1.xpose.msra.mxu0 0.0
    %3957 = vmatprep.subr.mxu0 0.0
    %3958 = vmatpush1.xpose.msra.mxu0 0.0
    %3959 = vmatprep.subr.mxu0 0.0
    %3960 = vmatpush1.xpose.msra.mxu0 0.0
    %3961 = vmatprep.subr.mxu0 0.0
    %3962 = vmatpush1.xpose.msra.mxu0 %v3651
    %3963 = vmatprep.subr.mxu0 0.0
    %3964 = vmatpush1.xpose.msra.mxu0 %v3648
    %3965 = vmatprep.subr.mxu0 0.0
    %3966 = vmatpush1.xpose.msra.mxu0 %v3645
    %3967 = vmatprep.subr.mxu0 0.0
    %3968 = vmatpush1.xpose.msra.mxu0 %v3642
    %3969 = vmatprep.subr.mxu0 0.0
    %3970 = vmatpush1.xpose.msra.mxu0 %v3639
    %3971 = vmatprep.subr.mxu0 0.0
    %3972 = vmatpush1.xpose.msra.mxu0 %v3636
    %3973 = vmatprep.subr.mxu0 0.0
    %3974 = vmatpush1.xpose.msra.mxu0 %v3633
    %3975 = vmatprep.subr.mxu0 0.0
    %3976 = vmatpush1.xpose.msra.mxu0 %v3630
    %3977 = vmatprep.subr.mxu0 0.0
    %3978 = vmatpush2.xpose.msra.mxu0 0.0
    %3979 = vmatprep.subr.mxu0 0.0
    %3980 = vmatpush2.xpose.msra.mxu0 0.0
    %3981 = vmatprep.subr.mxu0 0.0
    %3982 = vmatpush2.xpose.msra.mxu0 0.0
    %3983 = vmatprep.subr.mxu0 0.0
    %3984 = vmatpush2.xpose.msra.mxu0 0.0
    %3985 = vmatprep.subr.mxu0 0.0
    %3986 = vmatpush2.xpose.msra.mxu0 0.0
    %3987 = vmatprep.subr.mxu0 0.0
    %3988 = vmatpush2.xpose.msra.mxu0 0.0
    %3989 = vmatprep.subr.mxu0 0.0
    %3990 = vmatpush2.xpose.msra.mxu0 0.0
    %3991 = vmatprep.subr.mxu0 0.0
    %3992 = vmatpush2.xpose.msra.mxu0 0.0
    %3993 = vmatprep.subr.mxu0 0.0
    %3994 = vmatpush2.xpose.msra.mxu0 0.0
    %3995 = vmatprep.subr.mxu0 0.0
    %3996 = vmatpush2.xpose.msra.mxu0 0.0
    %3997 = vmatprep.subr.mxu0 0.0
    %3998 = vmatpush2.xpose.msra.mxu0 0.0
    %3999 = vmatprep.subr.mxu0 0.0
    %4000 = vmatpush2.xpose.msra.mxu0 0.0
    %4001 = vmatprep.subr.mxu0 0.0
    %4002 = vmatpush2.xpose.msra.mxu0 0.0
    %4003 = vmatprep.subr.mxu0 0.0
    %4004 = vmatpush2.xpose.msra.mxu0 0.0
    %4005 = vmatprep.subr.mxu0 0.0
    %4006 = vmatpush2.xpose.msra.mxu0 0.0
    %4007 = vmatprep.subr.mxu0 0.0
    %4008 = vmatpush2.xpose.msra.mxu0 0.0
    %4009 = vmatprep.mubr.f32.mxu0 0.0
    %4010 = vmatmul.mubr.f32.gmra.mxu0 %v3943
    %v4011 = vpop.f32.mrf.mxu0
    %v4012 = vadd.f32 %v3624, %v4011
    %v4013 = vpop.f32.mrf.mxu0
    %4014 = vdwg.mxu0
    %v4016 = vsel %vm3357, %v3600, 0
    %4018 = vmatprep.subr.mxu0 0.0
    %4019 = vmatpush1.xpose.msra.mxu0 0.0
    %4020 = vmatprep.subr.mxu0 0.0
    %4021 = vmatpush1.xpose.msra.mxu0 0.0
    %4022 = vmatprep.subr.mxu0 0.0
    %4023 = vmatpush1.xpose.msra.mxu0 0.0
    %4024 = vmatprep.subr.mxu0 0.0
    %4025 = vmatpush1.xpose.msra.mxu0 0.0
    %4026 = vmatprep.subr.mxu0 0.0
    %4027 = vmatpush1.xpose.msra.mxu0 0.0
    %4028 = vmatprep.subr.mxu0 0.0
    %4029 = vmatpush1.xpose.msra.mxu0 0.0
    %4030 = vmatprep.subr.mxu0 0.0
    %4031 = vmatpush1.xpose.msra.mxu0 0.0
    %4032 = vmatprep.subr.mxu0 0.0
    %4033 = vmatpush1.xpose.msra.mxu0 0.0
    %4034 = vmatprep.subr.mxu0 0.0
    %4035 = vmatpush1.xpose.msra.mxu0 %v3651
    %4036 = vmatprep.subr.mxu0 0.0
    %4037 = vmatpush1.xpose.msra.mxu0 %v3648
    %4038 = vmatprep.subr.mxu0 0.0
    %4039 = vmatpush1.xpose.msra.mxu0 %v3645
    %4040 = vmatprep.subr.mxu0 0.0
    %4041 = vmatpush1.xpose.msra.mxu0 %v3642
    %4042 = vmatprep.subr.mxu0 0.0
    %4043 = vmatpush1.xpose.msra.mxu0 %v3639
    %4044 = vmatprep.subr.mxu0 0.0
    %4045 = vmatpush1.xpose.msra.mxu0 %v3636
    %4046 = vmatprep.subr.mxu0 0.0
    %4047 = vmatpush1.xpose.msra.mxu0 %v3633
    %4048 = vmatprep.subr.mxu0 0.0
    %4049 = vmatpush1.xpose.msra.mxu0 %v3630
    %4050 = vmatprep.subr.mxu0 0.0
    %4051 = vmatpush2.xpose.msra.mxu0 0.0
    %4052 = vmatprep.subr.mxu0 0.0
    %4053 = vmatpush2.xpose.msra.mxu0 0.0
    %4054 = vmatprep.subr.mxu0 0.0
    %4055 = vmatpush2.xpose.msra.mxu0 0.0
    %4056 = vmatprep.subr.mxu0 0.0
    %4057 = vmatpush2.xpose.msra.mxu0 0.0
    %4058 = vmatprep.subr.mxu0 0.0
    %4059 = vmatpush2.xpose.msra.mxu0 0.0
    %4060 = vmatprep.subr.mxu0 0.0
    %4061 = vmatpush2.xpose.msra.mxu0 0.0
    %4062 = vmatprep.subr.mxu0 0.0
    %4063 = vmatpush2.xpose.msra.mxu0 0.0
    %4064 = vmatprep.subr.mxu0 0.0
    %4065 = vmatpush2.xpose.msra.mxu0 0.0
    %4066 = vmatprep.subr.mxu0 0.0
    %4067 = vmatpush2.xpose.msra.mxu0 0.0
    %4068 = vmatprep.subr.mxu0 0.0
    %4069 = vmatpush2.xpose.msra.mxu0 0.0
    %4070 = vmatprep.subr.mxu0 0.0
    %4071 = vmatpush2.xpose.msra.mxu0 0.0
    %4072 = vmatprep.subr.mxu0 0.0
    %4073 = vmatpush2.xpose.msra.mxu0 0.0
    %4074 = vmatprep.subr.mxu0 0.0
    %4075 = vmatpush2.xpose.msra.mxu0 0.0
    %4076 = vmatprep.subr.mxu0 0.0
    %4077 = vmatpush2.xpose.msra.mxu0 0.0
    %4078 = vmatprep.subr.mxu0 0.0
    %4079 = vmatpush2.xpose.msra.mxu0 0.0
    %4080 = vmatprep.subr.mxu0 0.0
    %4081 = vmatpush2.xpose.msra.mxu0 0.0
    %4082 = vmatprep.mubr.f32.mxu0 0.0
    %4083 = vmatmul.mubr.f32.gmra.mxu0 %v4016
    %v4084 = vpop.f32.mrf.mxu0
    %v4085 = vadd.f32 %v3624, %v4084
    %v4086 = vpop.f32.mrf.mxu0
    %4087 = vdwg.mxu0
    %v4089 = vsel %vm3357, %v3601, 0
    %4091 = vmatprep.subr.mxu0 0.0
    %4092 = vmatpush1.xpose.msra.mxu0 0.0
    %4093 = vmatprep.subr.mxu0 0.0
    %4094 = vmatpush1.xpose.msra.mxu0 0.0
    %4095 = vmatprep.subr.mxu0 0.0
    %4096 = vmatpush1.xpose.msra.mxu0 0.0
    %4097 = vmatprep.subr.mxu0 0.0
    %4098 = vmatpush1.xpose.msra.mxu0 0.0
    %4099 = vmatprep.subr.mxu0 0.0
    %4100 = vmatpush1.xpose.msra.mxu0 0.0
    %4101 = vmatprep.subr.mxu0 0.0
    %4102 = vmatpush1.xpose.msra.mxu0 0.0
    %4103 = vmatprep.subr.mxu0 0.0
    %4104 = vmatpush1.xpose.msra.mxu0 0.0
    %4105 = vmatprep.subr.mxu0 0.0
    %4106 = vmatpush1.xpose.msra.mxu0 0.0
    %4107 = vmatprep.subr.mxu0 0.0
    %4108 = vmatpush1.xpose.msra.mxu0 %v3651
    %4109 = vmatprep.subr.mxu0 0.0
    %4110 = vmatpush1.xpose.msra.mxu0 %v3648
    %4111 = vmatprep.subr.mxu0 0.0
    %4112 = vmatpush1.xpose.msra.mxu0 %v3645
    %4113 = vmatprep.subr.mxu0 0.0
    %4114 = vmatpush1.xpose.msra.mxu0 %v3642
    %4115 = vmatprep.subr.mxu0 0.0
    %4116 = vmatpush1.xpose.msra.mxu0 %v3639
    %4117 = vmatprep.subr.mxu0 0.0
    %4118 = vmatpush1.xpose.msra.mxu0 %v3636
    %4119 = vmatprep.subr.mxu0 0.0
    %4120 = vmatpush1.xpose.msra.mxu0 %v3633
    %4121 = vmatprep.subr.mxu0 0.0
    %4122 = vmatpush1.xpose.msra.mxu0 %v3630
    %4123 = vmatprep.subr.mxu0 0.0
    %4124 = vmatpush2.xpose.msra.mxu0 0.0
    %4125 = vmatprep.subr.mxu0 0.0
    %4126 = vmatpush2.xpose.msra.mxu0 0.0
    %4127 = vmatprep.subr.mxu0 0.0
    %4128 = vmatpush2.xpose.msra.mxu0 0.0
    %4129 = vmatprep.subr.mxu0 0.0
    %4130 = vmatpush2.xpose.msra.mxu0 0.0
    %4131 = vmatprep.subr.mxu0 0.0
    %4132 = vmatpush2.xpose.msra.mxu0 0.0
    %4133 = vmatprep.subr.mxu0 0.0
    %4134 = vmatpush2.xpose.msra.mxu0 0.0
    %4135 = vmatprep.subr.mxu0 0.0
    %4136 = vmatpush2.xpose.msra.mxu0 0.0
    %4137 = vmatprep.subr.mxu0 0.0
    %4138 = vmatpush2.xpose.msra.mxu0 0.0
    %4139 = vmatprep.subr.mxu0 0.0
    %4140 = vmatpush2.xpose.msra.mxu0 0.0
    %4141 = vmatprep.subr.mxu0 0.0
    %4142 = vmatpush2.xpose.msra.mxu0 0.0
    %4143 = vmatprep.subr.mxu0 0.0
    %4144 = vmatpush2.xpose.msra.mxu0 0.0
    %4145 = vmatprep.subr.mxu0 0.0
    %4146 = vmatpush2.xpose.msra.mxu0 0.0
    %4147 = vmatprep.subr.mxu0 0.0
    %4148 = vmatpush2.xpose.msra.mxu0 0.0
    %4149 = vmatprep.subr.mxu0 0.0
    %4150 = vmatpush2.xpose.msra.mxu0 0.0
    %4151 = vmatprep.subr.mxu0 0.0
    %4152 = vmatpush2.xpose.msra.mxu0 0.0
    %4153 = vmatprep.subr.mxu0 0.0
    %4154 = vmatpush2.xpose.msra.mxu0 0.0
    %4155 = vmatprep.mubr.f32.mxu0 0.0
    %4156 = vmatmul.mubr.f32.gmra.mxu0 %v4089
    %v4157 = vpop.f32.mrf.mxu0
    %v4158 = vadd.f32 %v3624, %v4157
    %v4159 = vpop.f32.mrf.mxu0
    %4160 = vdwg.mxu0
    %v4162 = vsel %vm3357, %v3602, 0
    %4164 = vmatprep.subr.mxu0 0.0
    %4165 = vmatpush1.xpose.msra.mxu0 0.0
    %4166 = vmatprep.subr.mxu0 0.0
    %4167 = vmatpush1.xpose.msra.mxu0 0.0
    %4168 = vmatprep.subr.mxu0 0.0
    %4169 = vmatpush1.xpose.msra.mxu0 0.0
    %4170 = vmatprep.subr.mxu0 0.0
    %4171 = vmatpush1.xpose.msra.mxu0 0.0
    %4172 = vmatprep.subr.mxu0 0.0
    %4173 = vmatpush1.xpose.msra.mxu0 0.0
    %4174 = vmatprep.subr.mxu0 0.0
    %4175 = vmatpush1.xpose.msra.mxu0 0.0
    %4176 = vmatprep.subr.mxu0 0.0
    %4177 = vmatpush1.xpose.msra.mxu0 0.0
    %4178 = vmatprep.subr.mxu0 0.0
    %4179 = vmatpush1.xpose.msra.mxu0 0.0
    %4180 = vmatprep.subr.mxu0 0.0
    %4181 = vmatpush1.xpose.msra.mxu0 %v3651
    %4182 = vmatprep.subr.mxu0 0.0
    %4183 = vmatpush1.xpose.msra.mxu0 %v3648
    %4184 = vmatprep.subr.mxu0 0.0
    %4185 = vmatpush1.xpose.msra.mxu0 %v3645
    %4186 = vmatprep.subr.mxu0 0.0
    %4187 = vmatpush1.xpose.msra.mxu0 %v3642
    %4188 = vmatprep.subr.mxu0 0.0
    %4189 = vmatpush1.xpose.msra.mxu0 %v3639
    %4190 = vmatprep.subr.mxu0 0.0
    %4191 = vmatpush1.xpose.msra.mxu0 %v3636
    %4192 = vmatprep.subr.mxu0 0.0
    %4193 = vmatpush1.xpose.msra.mxu0 %v3633
    %4194 = vmatprep.subr.mxu0 0.0
    %4195 = vmatpush1.xpose.msra.mxu0 %v3630
    %4196 = vmatprep.subr.mxu0 0.0
    %4197 = vmatpush2.xpose.msra.mxu0 0.0
    %4198 = vmatprep.subr.mxu0 0.0
    %4199 = vmatpush2.xpose.msra.mxu0 0.0
    %4200 = vmatprep.subr.mxu0 0.0
    %4201 = vmatpush2.xpose.msra.mxu0 0.0
    %4202 = vmatprep.subr.mxu0 0.0
    %4203 = vmatpush2.xpose.msra.mxu0 0.0
    %4204 = vmatprep.subr.mxu0 0.0
    %4205 = vmatpush2.xpose.msra.mxu0 0.0
    %4206 = vmatprep.subr.mxu0 0.0
    %4207 = vmatpush2.xpose.msra.mxu0 0.0
    %4208 = vmatprep.subr.mxu0 0.0
    %4209 = vmatpush2.xpose.msra.mxu0 0.0
    %4210 = vmatprep.subr.mxu0 0.0
    %4211 = vmatpush2.xpose.msra.mxu0 0.0
    %4212 = vmatprep.subr.mxu0 0.0
    %4213 = vmatpush2.xpose.msra.mxu0 0.0
    %4214 = vmatprep.subr.mxu0 0.0
    %4215 = vmatpush2.xpose.msra.mxu0 0.0
    %4216 = vmatprep.subr.mxu0 0.0
    %4217 = vmatpush2.xpose.msra.mxu0 0.0
    %4218 = vmatprep.subr.mxu0 0.0
    %4219 = vmatpush2.xpose.msra.mxu0 0.0
    %4220 = vmatprep.subr.mxu0 0.0
    %4221 = vmatpush2.xpose.msra.mxu0 0.0
    %4222 = vmatprep.subr.mxu0 0.0
    %4223 = vmatpush2.xpose.msra.mxu0 0.0
    %4224 = vmatprep.subr.mxu0 0.0
    %4225 = vmatpush2.xpose.msra.mxu0 0.0
    %4226 = vmatprep.subr.mxu0 0.0
    %4227 = vmatpush2.xpose.msra.mxu0 0.0
    %4228 = vmatprep.mubr.f32.mxu0 0.0
    %4229 = vmatmul.mubr.f32.gmra.mxu0 %v4162
    %v4230 = vpop.f32.mrf.mxu0
    %v4231 = vadd.f32 %v3624, %v4230
    %v4232 = vpop.f32.mrf.mxu0
    %4233 = vdwg.mxu0
    %v4235 = vsel %vm3357, %v3603, 0
    %4237 = vmatprep.subr.mxu0 0.0
    %4238 = vmatpush1.xpose.msra.mxu0 0.0
    %4239 = vmatprep.subr.mxu0 0.0
    %4240 = vmatpush1.xpose.msra.mxu0 0.0
    %4241 = vmatprep.subr.mxu0 0.0
    %4242 = vmatpush1.xpose.msra.mxu0 0.0
    %4243 = vmatprep.subr.mxu0 0.0
    %4244 = vmatpush1.xpose.msra.mxu0 0.0
    %4245 = vmatprep.subr.mxu0 0.0
    %4246 = vmatpush1.xpose.msra.mxu0 0.0
    %4247 = vmatprep.subr.mxu0 0.0
    %4248 = vmatpush1.xpose.msra.mxu0 0.0
    %4249 = vmatprep.subr.mxu0 0.0
    %4250 = vmatpush1.xpose.msra.mxu0 0.0
    %4251 = vmatprep.subr.mxu0 0.0
    %4252 = vmatpush1.xpose.msra.mxu0 0.0
    %4253 = vmatprep.subr.mxu0 0.0
    %4254 = vmatpush1.xpose.msra.mxu0 %v3651
    %4255 = vmatprep.subr.mxu0 0.0
    %4256 = vmatpush1.xpose.msra.mxu0 %v3648
    %4257 = vmatprep.subr.mxu0 0.0
    %4258 = vmatpush1.xpose.msra.mxu0 %v3645
    %4259 = vmatprep.subr.mxu0 0.0
    %4260 = vmatpush1.xpose.msra.mxu0 %v3642
    %4261 = vmatprep.subr.mxu0 0.0
    %4262 = vmatpush1.xpose.msra.mxu0 %v3639
    %4263 = vmatprep.subr.mxu0 0.0
    %4264 = vmatpush1.xpose.msra.mxu0 %v3636
    %4265 = vmatprep.subr.mxu0 0.0
    %4266 = vmatpush1.xpose.msra.mxu0 %v3633
    %4267 = vmatprep.subr.mxu0 0.0
    %4268 = vmatpush1.xpose.msra.mxu0 %v3630
    %4269 = vmatprep.subr.mxu0 0.0
    %4270 = vmatpush2.xpose.msra.mxu0 0.0
    %4271 = vmatprep.subr.mxu0 0.0
    %4272 = vmatpush2.xpose.msra.mxu0 0.0
    %4273 = vmatprep.subr.mxu0 0.0
    %4274 = vmatpush2.xpose.msra.mxu0 0.0
    %4275 = vmatprep.subr.mxu0 0.0
    %4276 = vmatpush2.xpose.msra.mxu0 0.0
    %4277 = vmatprep.subr.mxu0 0.0
    %4278 = vmatpush2.xpose.msra.mxu0 0.0
    %4279 = vmatprep.subr.mxu0 0.0
    %4280 = vmatpush2.xpose.msra.mxu0 0.0
    %4281 = vmatprep.subr.mxu0 0.0
    %4282 = vmatpush2.xpose.msra.mxu0 0.0
    %4283 = vmatprep.subr.mxu0 0.0
    %4284 = vmatpush2.xpose.msra.mxu0 0.0
    %4285 = vmatprep.subr.mxu0 0.0
    %4286 = vmatpush2.xpose.msra.mxu0 0.0
    %4287 = vmatprep.subr.mxu0 0.0
    %4288 = vmatpush2.xpose.msra.mxu0 0.0
    %4289 = vmatprep.subr.mxu0 0.0
    %4290 = vmatpush2.xpose.msra.mxu0 0.0
    %4291 = vmatprep.subr.mxu0 0.0
    %4292 = vmatpush2.xpose.msra.mxu0 0.0
    %4293 = vmatprep.subr.mxu0 0.0
    %4294 = vmatpush2.xpose.msra.mxu0 0.0
    %4295 = vmatprep.subr.mxu0 0.0
    %4296 = vmatpush2.xpose.msra.mxu0 0.0
    %4297 = vmatprep.subr.mxu0 0.0
    %4298 = vmatpush2.xpose.msra.mxu0 0.0
    %4299 = vmatprep.subr.mxu0 0.0
    %4300 = vmatpush2.xpose.msra.mxu0 0.0
    %4301 = vmatprep.mubr.f32.mxu0 0.0
    %4302 = vmatmul.mubr.f32.gmra.mxu0 %v4235
    %v4303 = vpop.f32.mrf.mxu0
    %v4304 = vadd.f32 %v3624, %v4303
    %v4305 = vpop.f32.mrf.mxu0
    %4306 = vdwg.mxu0
    %v4308 = vsel %vm3357, %v3604, 0
    %4310 = vmatprep.subr.mxu0 0.0
    %4311 = vmatpush1.xpose.msra.mxu0 0.0
    %4312 = vmatprep.subr.mxu0 0.0
    %4313 = vmatpush1.xpose.msra.mxu0 0.0
    %4314 = vmatprep.subr.mxu0 0.0
    %4315 = vmatpush1.xpose.msra.mxu0 0.0
    %4316 = vmatprep.subr.mxu0 0.0
    %4317 = vmatpush1.xpose.msra.mxu0 0.0
    %4318 = vmatprep.subr.mxu0 0.0
    %4319 = vmatpush1.xpose.msra.mxu0 0.0
    %4320 = vmatprep.subr.mxu0 0.0
    %4321 = vmatpush1.xpose.msra.mxu0 0.0
    %4322 = vmatprep.subr.mxu0 0.0
    %4323 = vmatpush1.xpose.msra.mxu0 0.0
    %4324 = vmatprep.subr.mxu0 0.0
    %4325 = vmatpush1.xpose.msra.mxu0 0.0
    %4326 = vmatprep.subr.mxu0 0.0
    %4327 = vmatpush1.xpose.msra.mxu0 %v3651
    %4328 = vmatprep.subr.mxu0 0.0
    %4329 = vmatpush1.xpose.msra.mxu0 %v3648
    %4330 = vmatprep.subr.mxu0 0.0
    %4331 = vmatpush1.xpose.msra.mxu0 %v3645
    %4332 = vmatprep.subr.mxu0 0.0
    %4333 = vmatpush1.xpose.msra.mxu0 %v3642
    %4334 = vmatprep.subr.mxu0 0.0
    %4335 = vmatpush1.xpose.msra.mxu0 %v3639
    %4336 = vmatprep.subr.mxu0 0.0
    %4337 = vmatpush1.xpose.msra.mxu0 %v3636
    %4338 = vmatprep.subr.mxu0 0.0
    %4339 = vmatpush1.xpose.msra.mxu0 %v3633
    %4340 = vmatprep.subr.mxu0 0.0
    %4341 = vmatpush1.xpose.msra.mxu0 %v3630
    %4342 = vmatprep.subr.mxu0 0.0
    %4343 = vmatpush2.xpose.msra.mxu0 0.0
    %4344 = vmatprep.subr.mxu0 0.0
    %4345 = vmatpush2.xpose.msra.mxu0 0.0
    %4346 = vmatprep.subr.mxu0 0.0
    %4347 = vmatpush2.xpose.msra.mxu0 0.0
    %4348 = vmatprep.subr.mxu0 0.0
    %4349 = vmatpush2.xpose.msra.mxu0 0.0
    %4350 = vmatprep.subr.mxu0 0.0
    %4351 = vmatpush2.xpose.msra.mxu0 0.0
    %4352 = vmatprep.subr.mxu0 0.0
    %4353 = vmatpush2.xpose.msra.mxu0 0.0
    %4354 = vmatprep.subr.mxu0 0.0
    %4355 = vmatpush2.xpose.msra.mxu0 0.0
    %4356 = vmatprep.subr.mxu0 0.0
    %4357 = vmatpush2.xpose.msra.mxu0 0.0
    %4358 = vmatprep.subr.mxu0 0.0
    %4359 = vmatpush2.xpose.msra.mxu0 0.0
    %4360 = vmatprep.subr.mxu0 0.0
    %4361 = vmatpush2.xpose.msra.mxu0 0.0
    %4362 = vmatprep.subr.mxu0 0.0
    %4363 = vmatpush2.xpose.msra.mxu0 0.0
    %4364 = vmatprep.subr.mxu0 0.0
    %4365 = vmatpush2.xpose.msra.mxu0 0.0
    %4366 = vmatprep.subr.mxu0 0.0
    %4367 = vmatpush2.xpose.msra.mxu0 0.0
    %4368 = vmatprep.subr.mxu0 0.0
    %4369 = vmatpush2.xpose.msra.mxu0 0.0
    %4370 = vmatprep.subr.mxu0 0.0
    %4371 = vmatpush2.xpose.msra.mxu0 0.0
    %4372 = vmatprep.subr.mxu0 0.0
    %4373 = vmatpush2.xpose.msra.mxu0 0.0
    %4374 = vmatprep.mubr.f32.mxu0 0.0
    %4375 = vmatmul.mubr.f32.gmra.mxu0 %v4308
    %v4376 = vpop.f32.mrf.mxu0
    %v4377 = vadd.f32 %v3624, %v4376
    %v4378 = vpop.f32.mrf.mxu0
    %4379 = vdwg.mxu0
    %v4381 = vsel %vm3357, %v3605, 0
    %4383 = vmatprep.subr.mxu0 0.0
    %4384 = vmatpush1.xpose.msra.mxu0 0.0
    %4385 = vmatprep.subr.mxu0 0.0
    %4386 = vmatpush1.xpose.msra.mxu0 0.0
    %4387 = vmatprep.subr.mxu0 0.0
    %4388 = vmatpush1.xpose.msra.mxu0 0.0
    %4389 = vmatprep.subr.mxu0 0.0
    %4390 = vmatpush1.xpose.msra.mxu0 0.0
    %4391 = vmatprep.subr.mxu0 0.0
    %4392 = vmatpush1.xpose.msra.mxu0 0.0
    %4393 = vmatprep.subr.mxu0 0.0
    %4394 = vmatpush1.xpose.msra.mxu0 0.0
    %4395 = vmatprep.subr.mxu0 0.0
    %4396 = vmatpush1.xpose.msra.mxu0 0.0
    %4397 = vmatprep.subr.mxu0 0.0
    %4398 = vmatpush1.xpose.msra.mxu0 0.0
    %4399 = vmatprep.subr.mxu0 0.0
    %4400 = vmatpush1.xpose.msra.mxu0 %v3651
    %4401 = vmatprep.subr.mxu0 0.0
    %4402 = vmatpush1.xpose.msra.mxu0 %v3648
    %4403 = vmatprep.subr.mxu0 0.0
    %4404 = vmatpush1.xpose.msra.mxu0 %v3645
    %4405 = vmatprep.subr.mxu0 0.0
    %4406 = vmatpush1.xpose.msra.mxu0 %v3642
    %4407 = vmatprep.subr.mxu0 0.0
    %4408 = vmatpush1.xpose.msra.mxu0 %v3639
    %4409 = vmatprep.subr.mxu0 0.0
    %4410 = vmatpush1.xpose.msra.mxu0 %v3636
    %4411 = vmatprep.subr.mxu0 0.0
    %4412 = vmatpush1.xpose.msra.mxu0 %v3633
    %4413 = vmatprep.subr.mxu0 0.0
    %4414 = vmatpush1.xpose.msra.mxu0 %v3630
    %4415 = vmatprep.subr.mxu0 0.0
    %4416 = vmatpush2.xpose.msra.mxu0 0.0
    %4417 = vmatprep.subr.mxu0 0.0
    %4418 = vmatpush2.xpose.msra.mxu0 0.0
    %4419 = vmatprep.subr.mxu0 0.0
    %4420 = vmatpush2.xpose.msra.mxu0 0.0
    %4421 = vmatprep.subr.mxu0 0.0
    %4422 = vmatpush2.xpose.msra.mxu0 0.0
    %4423 = vmatprep.subr.mxu0 0.0
    %4424 = vmatpush2.xpose.msra.mxu0 0.0
    %4425 = vmatprep.subr.mxu0 0.0
    %4426 = vmatpush2.xpose.msra.mxu0 0.0
    %4427 = vmatprep.subr.mxu0 0.0
    %4428 = vmatpush2.xpose.msra.mxu0 0.0
    %4429 = vmatprep.subr.mxu0 0.0
    %4430 = vmatpush2.xpose.msra.mxu0 0.0
    %4431 = vmatprep.subr.mxu0 0.0
    %4432 = vmatpush2.xpose.msra.mxu0 0.0
    %4433 = vmatprep.subr.mxu0 0.0
    %4434 = vmatpush2.xpose.msra.mxu0 0.0
    %4435 = vmatprep.subr.mxu0 0.0
    %4436 = vmatpush2.xpose.msra.mxu0 0.0
    %4437 = vmatprep.subr.mxu0 0.0
    %4438 = vmatpush2.xpose.msra.mxu0 0.0
    %4439 = vmatprep.subr.mxu0 0.0
    %4440 = vmatpush2.xpose.msra.mxu0 0.0
    %4441 = vmatprep.subr.mxu0 0.0
    %4442 = vmatpush2.xpose.msra.mxu0 0.0
    %4443 = vmatprep.subr.mxu0 0.0
    %4444 = vmatpush2.xpose.msra.mxu0 0.0
    %4445 = vmatprep.subr.mxu0 0.0
    %4446 = vmatpush2.xpose.msra.mxu0 0.0
    %4447 = vmatprep.mubr.f32.mxu0 0.0
    %4448 = vmatmul.mubr.f32.gmra.mxu0 %v4381
    %v4449 = vpop.f32.mrf.mxu0
    %v4450 = vadd.f32 %v3624, %v4449
    %v4451 = vpop.f32.mrf.mxu0
    %4452 = vdwg.mxu0
    %v4454 = vsel %vm3357, %v3606, 0
    %4456 = vmatprep.subr.mxu0 0.0
    %4457 = vmatpush1.xpose.msra.mxu0 0.0
    %4458 = vmatprep.subr.mxu0 0.0
    %4459 = vmatpush1.xpose.msra.mxu0 0.0
    %4460 = vmatprep.subr.mxu0 0.0
    %4461 = vmatpush1.xpose.msra.mxu0 0.0
    %4462 = vmatprep.subr.mxu0 0.0
    %4463 = vmatpush1.xpose.msra.mxu0 0.0
    %4464 = vmatprep.subr.mxu0 0.0
    %4465 = vmatpush1.xpose.msra.mxu0 0.0
    %4466 = vmatprep.subr.mxu0 0.0
    %4467 = vmatpush1.xpose.msra.mxu0 0.0
    %4468 = vmatprep.subr.mxu0 0.0
    %4469 = vmatpush1.xpose.msra.mxu0 0.0
    %4470 = vmatprep.subr.mxu0 0.0
    %4471 = vmatpush1.xpose.msra.mxu0 0.0
    %4472 = vmatprep.subr.mxu0 0.0
    %4473 = vmatpush1.xpose.msra.mxu0 %v3651
    %4474 = vmatprep.subr.mxu0 0.0
    %4475 = vmatpush1.xpose.msra.mxu0 %v3648
    %4476 = vmatprep.subr.mxu0 0.0
    %4477 = vmatpush1.xpose.msra.mxu0 %v3645
    %4478 = vmatprep.subr.mxu0 0.0
    %4479 = vmatpush1.xpose.msra.mxu0 %v3642
    %4480 = vmatprep.subr.mxu0 0.0
    %4481 = vmatpush1.xpose.msra.mxu0 %v3639
    %4482 = vmatprep.subr.mxu0 0.0
    %4483 = vmatpush1.xpose.msra.mxu0 %v3636
    %4484 = vmatprep.subr.mxu0 0.0
    %4485 = vmatpush1.xpose.msra.mxu0 %v3633
    %4486 = vmatprep.subr.mxu0 0.0
    %4487 = vmatpush1.xpose.msra.mxu0 %v3630
    %4488 = vmatprep.subr.mxu0 0.0
    %4489 = vmatpush2.xpose.msra.mxu0 0.0
    %4490 = vmatprep.subr.mxu0 0.0
    %4491 = vmatpush2.xpose.msra.mxu0 0.0
    %4492 = vmatprep.subr.mxu0 0.0
    %4493 = vmatpush2.xpose.msra.mxu0 0.0
    %4494 = vmatprep.subr.mxu0 0.0
    %4495 = vmatpush2.xpose.msra.mxu0 0.0
    %4496 = vmatprep.subr.mxu0 0.0
    %4497 = vmatpush2.xpose.msra.mxu0 0.0
    %4498 = vmatprep.subr.mxu0 0.0
    %4499 = vmatpush2.xpose.msra.mxu0 0.0
    %4500 = vmatprep.subr.mxu0 0.0
    %4501 = vmatpush2.xpose.msra.mxu0 0.0
    %4502 = vmatprep.subr.mxu0 0.0
    %4503 = vmatpush2.xpose.msra.mxu0 0.0
    %4504 = vmatprep.subr.mxu0 0.0
    %4505 = vmatpush2.xpose.msra.mxu0 0.0
    %4506 = vmatprep.subr.mxu0 0.0
    %4507 = vmatpush2.xpose.msra.mxu0 0.0
    %4508 = vmatprep.subr.mxu0 0.0
    %4509 = vmatpush2.xpose.msra.mxu0 0.0
    %4510 = vmatprep.subr.mxu0 0.0
    %4511 = vmatpush2.xpose.msra.mxu0 0.0
    %4512 = vmatprep.subr.mxu0 0.0
    %4513 = vmatpush2.xpose.msra.mxu0 0.0
    %4514 = vmatprep.subr.mxu0 0.0
    %4515 = vmatpush2.xpose.msra.mxu0 0.0
    %4516 = vmatprep.subr.mxu0 0.0
    %4517 = vmatpush2.xpose.msra.mxu0 0.0
    %4518 = vmatprep.subr.mxu0 0.0
    %4519 = vmatpush2.xpose.msra.mxu0 0.0
    %4520 = vmatprep.mubr.f32.mxu0 0.0
    %4521 = vmatmul.mubr.f32.gmra.mxu0 %v4454
    %v4522 = vpop.f32.mrf.mxu0
    %v4523 = vadd.f32 %v3624, %v4522
    %v4524 = vpop.f32.mrf.mxu0
    %4525 = vdwg.mxu0
    %v4527 = vsel %vm3357, %v3607, 0
    %4529 = vmatprep.subr.mxu0 0.0
    %4530 = vmatpush1.xpose.msra.mxu0 0.0
    %4531 = vmatprep.subr.mxu0 0.0
    %4532 = vmatpush1.xpose.msra.mxu0 0.0
    %4533 = vmatprep.subr.mxu0 0.0
    %4534 = vmatpush1.xpose.msra.mxu0 0.0
    %4535 = vmatprep.subr.mxu0 0.0
    %4536 = vmatpush1.xpose.msra.mxu0 0.0
    %4537 = vmatprep.subr.mxu0 0.0
    %4538 = vmatpush1.xpose.msra.mxu0 0.0
    %4539 = vmatprep.subr.mxu0 0.0
    %4540 = vmatpush1.xpose.msra.mxu0 0.0
    %4541 = vmatprep.subr.mxu0 0.0
    %4542 = vmatpush1.xpose.msra.mxu0 0.0
    %4543 = vmatprep.subr.mxu0 0.0
    %4544 = vmatpush1.xpose.msra.mxu0 0.0
    %4545 = vmatprep.subr.mxu0 0.0
    %4546 = vmatpush1.xpose.msra.mxu0 %v3651
    %4547 = vmatprep.subr.mxu0 0.0
    %4548 = vmatpush1.xpose.msra.mxu0 %v3648
    %4549 = vmatprep.subr.mxu0 0.0
    %4550 = vmatpush1.xpose.msra.mxu0 %v3645
    %4551 = vmatprep.subr.mxu0 0.0
    %4552 = vmatpush1.xpose.msra.mxu0 %v3642
    %4553 = vmatprep.subr.mxu0 0.0
    %4554 = vmatpush1.xpose.msra.mxu0 %v3639
    %4555 = vmatprep.subr.mxu0 0.0
    %4556 = vmatpush1.xpose.msra.mxu0 %v3636
    %4557 = vmatprep.subr.mxu0 0.0
    %4558 = vmatpush1.xpose.msra.mxu0 %v3633
    %4559 = vmatprep.subr.mxu0 0.0
    %4560 = vmatpush1.xpose.msra.mxu0 %v3630
    %4561 = vmatprep.subr.mxu0 0.0
    %4562 = vmatpush2.xpose.msra.mxu0 0.0
    %4563 = vmatprep.subr.mxu0 0.0
    %4564 = vmatpush2.xpose.msra.mxu0 0.0
    %4565 = vmatprep.subr.mxu0 0.0
    %4566 = vmatpush2.xpose.msra.mxu0 0.0
    %4567 = vmatprep.subr.mxu0 0.0
    %4568 = vmatpush2.xpose.msra.mxu0 0.0
    %4569 = vmatprep.subr.mxu0 0.0
    %4570 = vmatpush2.xpose.msra.mxu0 0.0
    %4571 = vmatprep.subr.mxu0 0.0
    %4572 = vmatpush2.xpose.msra.mxu0 0.0
    %4573 = vmatprep.subr.mxu0 0.0
    %4574 = vmatpush2.xpose.msra.mxu0 0.0
    %4575 = vmatprep.subr.mxu0 0.0
    %4576 = vmatpush2.xpose.msra.mxu0 0.0
    %4577 = vmatprep.subr.mxu0 0.0
    %4578 = vmatpush2.xpose.msra.mxu0 0.0
    %4579 = vmatprep.subr.mxu0 0.0
    %4580 = vmatpush2.xpose.msra.mxu0 0.0
    %4581 = vmatprep.subr.mxu0 0.0
    %4582 = vmatpush2.xpose.msra.mxu0 0.0
    %4583 = vmatprep.subr.mxu0 0.0
    %4584 = vmatpush2.xpose.msra.mxu0 0.0
    %4585 = vmatprep.subr.mxu0 0.0
    %4586 = vmatpush2.xpose.msra.mxu0 0.0
    %4587 = vmatprep.subr.mxu0 0.0
    %4588 = vmatpush2.xpose.msra.mxu0 0.0
    %4589 = vmatprep.subr.mxu0 0.0
    %4590 = vmatpush2.xpose.msra.mxu0 0.0
    %4591 = vmatprep.subr.mxu0 0.0
    %4592 = vmatpush2.xpose.msra.mxu0 0.0
    %4593 = vmatprep.mubr.f32.mxu0 0.0
    %4594 = vmatmul.mubr.f32.gmra.mxu0 %v4527
    %v4595 = vpop.f32.mrf.mxu0
    %v4596 = vadd.f32 %v3624, %v4595
    %v4597 = vpop.f32.mrf.mxu0
    %4598 = vdwg.mxu0
    %v4600 = vsel %vm3357, %v3608, 0
    %4602 = vmatprep.subr.mxu0 0.0
    %4603 = vmatpush1.xpose.msra.mxu0 0.0
    %4604 = vmatprep.subr.mxu0 0.0
    %4605 = vmatpush1.xpose.msra.mxu0 0.0
    %4606 = vmatprep.subr.mxu0 0.0
    %4607 = vmatpush1.xpose.msra.mxu0 0.0
    %4608 = vmatprep.subr.mxu0 0.0
    %4609 = vmatpush1.xpose.msra.mxu0 0.0
    %4610 = vmatprep.subr.mxu0 0.0
    %4611 = vmatpush1.xpose.msra.mxu0 0.0
    %4612 = vmatprep.subr.mxu0 0.0
    %4613 = vmatpush1.xpose.msra.mxu0 0.0
    %4614 = vmatprep.subr.mxu0 0.0
    %4615 = vmatpush1.xpose.msra.mxu0 0.0
    %4616 = vmatprep.subr.mxu0 0.0
    %4617 = vmatpush1.xpose.msra.mxu0 0.0
    %4618 = vmatprep.subr.mxu0 0.0
    %4619 = vmatpush1.xpose.msra.mxu0 %v3651
    %4620 = vmatprep.subr.mxu0 0.0
    %4621 = vmatpush1.xpose.msra.mxu0 %v3648
    %4622 = vmatprep.subr.mxu0 0.0
    %4623 = vmatpush1.xpose.msra.mxu0 %v3645
    %4624 = vmatprep.subr.mxu0 0.0
    %4625 = vmatpush1.xpose.msra.mxu0 %v3642
    %4626 = vmatprep.subr.mxu0 0.0
    %4627 = vmatpush1.xpose.msra.mxu0 %v3639
    %4628 = vmatprep.subr.mxu0 0.0
    %4629 = vmatpush1.xpose.msra.mxu0 %v3636
    %4630 = vmatprep.subr.mxu0 0.0
    %4631 = vmatpush1.xpose.msra.mxu0 %v3633
    %4632 = vmatprep.subr.mxu0 0.0
    %4633 = vmatpush1.xpose.msra.mxu0 %v3630
    %4634 = vmatprep.subr.mxu0 0.0
    %4635 = vmatpush2.xpose.msra.mxu0 0.0
    %4636 = vmatprep.subr.mxu0 0.0
    %4637 = vmatpush2.xpose.msra.mxu0 0.0
    %4638 = vmatprep.subr.mxu0 0.0
    %4639 = vmatpush2.xpose.msra.mxu0 0.0
    %4640 = vmatprep.subr.mxu0 0.0
    %4641 = vmatpush2.xpose.msra.mxu0 0.0
    %4642 = vmatprep.subr.mxu0 0.0
    %4643 = vmatpush2.xpose.msra.mxu0 0.0
    %4644 = vmatprep.subr.mxu0 0.0
    %4645 = vmatpush2.xpose.msra.mxu0 0.0
    %4646 = vmatprep.subr.mxu0 0.0
    %4647 = vmatpush2.xpose.msra.mxu0 0.0
    %4648 = vmatprep.subr.mxu0 0.0
    %4649 = vmatpush2.xpose.msra.mxu0 0.0
    %4650 = vmatprep.subr.mxu0 0.0
    %4651 = vmatpush2.xpose.msra.mxu0 0.0
    %4652 = vmatprep.subr.mxu0 0.0
    %4653 = vmatpush2.xpose.msra.mxu0 0.0
    %4654 = vmatprep.subr.mxu0 0.0
    %4655 = vmatpush2.xpose.msra.mxu0 0.0
    %4656 = vmatprep.subr.mxu0 0.0
    %4657 = vmatpush2.xpose.msra.mxu0 0.0
    %4658 = vmatprep.subr.mxu0 0.0
    %4659 = vmatpush2.xpose.msra.mxu0 0.0
    %4660 = vmatprep.subr.mxu0 0.0
    %4661 = vmatpush2.xpose.msra.mxu0 0.0
    %4662 = vmatprep.subr.mxu0 0.0
    %4663 = vmatpush2.xpose.msra.mxu0 0.0
    %4664 = vmatprep.subr.mxu0 0.0
    %4665 = vmatpush2.xpose.msra.mxu0 0.0
    %4666 = vmatprep.mubr.f32.mxu0 0.0
    %4667 = vmatmul.mubr.f32.gmra.mxu0 %v4600
    %v4668 = vpop.f32.mrf.mxu0
    %v4669 = vadd.f32 %v3624, %v4668
    %v4670 = vpop.f32.mrf.mxu0
    %4671 = vdwg.mxu0
    %v4673 = vsel %vm3357, %v3609, 0
    %4675 = vmatprep.subr.mxu0 0.0
    %4676 = vmatpush1.xpose.msra.mxu0 0.0
    %4677 = vmatprep.subr.mxu0 0.0
    %4678 = vmatpush1.xpose.msra.mxu0 0.0
    %4679 = vmatprep.subr.mxu0 0.0
    %4680 = vmatpush1.xpose.msra.mxu0 0.0
    %4681 = vmatprep.subr.mxu0 0.0
    %4682 = vmatpush1.xpose.msra.mxu0 0.0
    %4683 = vmatprep.subr.mxu0 0.0
    %4684 = vmatpush1.xpose.msra.mxu0 0.0
    %4685 = vmatprep.subr.mxu0 0.0
    %4686 = vmatpush1.xpose.msra.mxu0 0.0
    %4687 = vmatprep.subr.mxu0 0.0
    %4688 = vmatpush1.xpose.msra.mxu0 0.0
    %4689 = vmatprep.subr.mxu0 0.0
    %4690 = vmatpush1.xpose.msra.mxu0 0.0
    %4691 = vmatprep.subr.mxu0 0.0
    %4692 = vmatpush1.xpose.msra.mxu0 %v3651
    %4693 = vmatprep.subr.mxu0 0.0
    %4694 = vmatpush1.xpose.msra.mxu0 %v3648
    %4695 = vmatprep.subr.mxu0 0.0
    %4696 = vmatpush1.xpose.msra.mxu0 %v3645
    %4697 = vmatprep.subr.mxu0 0.0
    %4698 = vmatpush1.xpose.msra.mxu0 %v3642
    %4699 = vmatprep.subr.mxu0 0.0
    %4700 = vmatpush1.xpose.msra.mxu0 %v3639
    %4701 = vmatprep.subr.mxu0 0.0
    %4702 = vmatpush1.xpose.msra.mxu0 %v3636
    %4703 = vmatprep.subr.mxu0 0.0
    %4704 = vmatpush1.xpose.msra.mxu0 %v3633
    %4705 = vmatprep.subr.mxu0 0.0
    %4706 = vmatpush1.xpose.msra.mxu0 %v3630
    %4707 = vmatprep.subr.mxu0 0.0
    %4708 = vmatpush2.xpose.msra.mxu0 0.0
    %4709 = vmatprep.subr.mxu0 0.0
    %4710 = vmatpush2.xpose.msra.mxu0 0.0
    %4711 = vmatprep.subr.mxu0 0.0
    %4712 = vmatpush2.xpose.msra.mxu0 0.0
    %4713 = vmatprep.subr.mxu0 0.0
    %4714 = vmatpush2.xpose.msra.mxu0 0.0
    %4715 = vmatprep.subr.mxu0 0.0
    %4716 = vmatpush2.xpose.msra.mxu0 0.0
    %4717 = vmatprep.subr.mxu0 0.0
    %4718 = vmatpush2.xpose.msra.mxu0 0.0
    %4719 = vmatprep.subr.mxu0 0.0
    %4720 = vmatpush2.xpose.msra.mxu0 0.0
    %4721 = vmatprep.subr.mxu0 0.0
    %4722 = vmatpush2.xpose.msra.mxu0 0.0
    %4723 = vmatprep.subr.mxu0 0.0
    %4724 = vmatpush2.xpose.msra.mxu0 0.0
    %4725 = vmatprep.subr.mxu0 0.0
    %4726 = vmatpush2.xpose.msra.mxu0 0.0
    %4727 = vmatprep.subr.mxu0 0.0
    %4728 = vmatpush2.xpose.msra.mxu0 0.0
    %4729 = vmatprep.subr.mxu0 0.0
    %4730 = vmatpush2.xpose.msra.mxu0 0.0
    %4731 = vmatprep.subr.mxu0 0.0
    %4732 = vmatpush2.xpose.msra.mxu0 0.0
    %4733 = vmatprep.subr.mxu0 0.0
    %4734 = vmatpush2.xpose.msra.mxu0 0.0
    %4735 = vmatprep.subr.mxu0 0.0
    %4736 = vmatpush2.xpose.msra.mxu0 0.0
    %4737 = vmatprep.subr.mxu0 0.0
    %4738 = vmatpush2.xpose.msra.mxu0 0.0
    %4739 = vmatprep.mubr.f32.mxu0 0.0
    %4740 = vmatmul.mubr.f32.gmra.mxu0 %v4673
    %v4741 = vpop.f32.mrf.mxu0
    %v4742 = vadd.f32 %v3624, %v4741
    %v4743 = vpop.f32.mrf.mxu0
    %4744 = vdwg.mxu0
    %v4746 = vsel %vm3357, %v3610, 0
    %4748 = vmatprep.subr.mxu0 0.0
    %4749 = vmatpush1.xpose.msra.mxu0 0.0
    %4750 = vmatprep.subr.mxu0 0.0
    %4751 = vmatpush1.xpose.msra.mxu0 0.0
    %4752 = vmatprep.subr.mxu0 0.0
    %4753 = vmatpush1.xpose.msra.mxu0 0.0
    %4754 = vmatprep.subr.mxu0 0.0
    %4755 = vmatpush1.xpose.msra.mxu0 0.0
    %4756 = vmatprep.subr.mxu0 0.0
    %4757 = vmatpush1.xpose.msra.mxu0 0.0
    %4758 = vmatprep.subr.mxu0 0.0
    %4759 = vmatpush1.xpose.msra.mxu0 0.0
    %4760 = vmatprep.subr.mxu0 0.0
    %4761 = vmatpush1.xpose.msra.mxu0 0.0
    %4762 = vmatprep.subr.mxu0 0.0
    %4763 = vmatpush1.xpose.msra.mxu0 0.0
    %4764 = vmatprep.subr.mxu0 0.0
    %4765 = vmatpush1.xpose.msra.mxu0 %v3651
    %4766 = vmatprep.subr.mxu0 0.0
    %4767 = vmatpush1.xpose.msra.mxu0 %v3648
    %4768 = vmatprep.subr.mxu0 0.0
    %4769 = vmatpush1.xpose.msra.mxu0 %v3645
    %4770 = vmatprep.subr.mxu0 0.0
    %4771 = vmatpush1.xpose.msra.mxu0 %v3642
    %4772 = vmatprep.subr.mxu0 0.0
    %4773 = vmatpush1.xpose.msra.mxu0 %v3639
    %4774 = vmatprep.subr.mxu0 0.0
    %4775 = vmatpush1.xpose.msra.mxu0 %v3636
    %4776 = vmatprep.subr.mxu0 0.0
    %4777 = vmatpush1.xpose.msra.mxu0 %v3633
    %4778 = vmatprep.subr.mxu0 0.0
    %4779 = vmatpush1.xpose.msra.mxu0 %v3630
    %4780 = vmatprep.subr.mxu0 0.0
    %4781 = vmatpush2.xpose.msra.mxu0 0.0
    %4782 = vmatprep.subr.mxu0 0.0
    %4783 = vmatpush2.xpose.msra.mxu0 0.0
    %4784 = vmatprep.subr.mxu0 0.0
    %4785 = vmatpush2.xpose.msra.mxu0 0.0
    %4786 = vmatprep.subr.mxu0 0.0
    %4787 = vmatpush2.xpose.msra.mxu0 0.0
    %4788 = vmatprep.subr.mxu0 0.0
    %4789 = vmatpush2.xpose.msra.mxu0 0.0
    %4790 = vmatprep.subr.mxu0 0.0
    %4791 = vmatpush2.xpose.msra.mxu0 0.0
    %4792 = vmatprep.subr.mxu0 0.0
    %4793 = vmatpush2.xpose.msra.mxu0 0.0
    %4794 = vmatprep.subr.mxu0 0.0
    %4795 = vmatpush2.xpose.msra.mxu0 0.0
    %4796 = vmatprep.subr.mxu0 0.0
    %4797 = vmatpush2.xpose.msra.mxu0 0.0
    %4798 = vmatprep.subr.mxu0 0.0
    %4799 = vmatpush2.xpose.msra.mxu0 0.0
    %4800 = vmatprep.subr.mxu0 0.0
    %4801 = vmatpush2.xpose.msra.mxu0 0.0
    %4802 = vmatprep.subr.mxu0 0.0
    %4803 = vmatpush2.xpose.msra.mxu0 0.0
    %4804 = vmatprep.subr.mxu0 0.0
    %4805 = vmatpush2.xpose.msra.mxu0 0.0
    %4806 = vmatprep.subr.mxu0 0.0
    %4807 = vmatpush2.xpose.msra.mxu0 0.0
    %4808 = vmatprep.subr.mxu0 0.0
    %4809 = vmatpush2.xpose.msra.mxu0 0.0
    %4810 = vmatprep.subr.mxu0 0.0
    %4811 = vmatpush2.xpose.msra.mxu0 0.0
    %4812 = vmatprep.mubr.f32.mxu0 0.0
    %4813 = vmatmul.mubr.f32.gmra.mxu0 %v4746
    %v4814 = vpop.f32.mrf.mxu0
    %v4815 = vadd.f32 %v3624, %v4814
    %v4816 = vpop.f32.mrf.mxu0
    %4817 = vdwg.mxu0
    %v4818 = vmul.f32 %v3720, 0.5
    %v4819 = vmul.f32 %v3793, 0.5
    %v4820 = vmul.f32 %v3866, 0.5
    %v4821 = vmul.f32 %v3939, 0.5
    %v4822 = vmul.f32 %v4012, 0.5
    %v4823 = vmul.f32 %v4085, 0.5
    %v4824 = vmul.f32 %v4158, 0.5
    %v4825 = vmul.f32 %v4231, 0.5
    %v4826 = vmul.f32 %v4304, 0.5
    %v4827 = vmul.f32 %v4377, 0.5
    %v4828 = vmul.f32 %v4450, 0.5
    %v4829 = vmul.f32 %v4523, 0.5
    %v4830 = vmul.f32 %v4596, 0.5
    %v4831 = vmul.f32 %v4669, 0.5
    %v4832 = vmul.f32 %v4742, 0.5
    %v4833 = vmul.f32 %v4815, 0.5
    %v4834 = vmul.f32 %v3720, 0.70710677
    %v4835 = vmul.f32 %v3793, 0.70710677
    %v4836 = vmul.f32 %v3866, 0.70710677
    %v4837 = vmul.f32 %v3939, 0.70710677
    %v4838 = vmul.f32 %v4012, 0.70710677
    %v4839 = vmul.f32 %v4085, 0.70710677
    %v4840 = vmul.f32 %v4158, 0.70710677
    %v4841 = vmul.f32 %v4231, 0.70710677
    %v4842 = vmul.f32 %v4304, 0.70710677
    %v4843 = vmul.f32 %v4377, 0.70710677
    %v4844 = vmul.f32 %v4450, 0.70710677
    %v4845 = vmul.f32 %v4523, 0.70710677
    %v4846 = vmul.f32 %v4596, 0.70710677
    %v4847 = vmul.f32 %v4669, 0.70710677
    %v4848 = vmul.f32 %v4742, 0.70710677
    %v4849 = vmul.f32 %v4815, 0.70710677
    %v4850 = vand.u32 2147483647, %v4834
    %v4851 = vand.u32 2147483647, %v4835
    %v4852 = vand.u32 2147483647, %v4836
    %v4853 = vand.u32 2147483647, %v4837
    %v4854 = vand.u32 2147483647, %v4838
    %v4855 = vand.u32 2147483647, %v4839
    %v4856 = vand.u32 2147483647, %v4840
    %v4857 = vand.u32 2147483647, %v4841
    %v4858 = vand.u32 2147483647, %v4842
    %v4859 = vand.u32 2147483647, %v4843
    %v4860 = vand.u32 2147483647, %v4844
    %v4861 = vand.u32 2147483647, %v4845
    %v4862 = vand.u32 2147483647, %v4846
    %v4863 = vand.u32 2147483647, %v4847
    %v4864 = vand.u32 2147483647, %v4848
    %v4865 = vand.u32 2147483647, %v4849
    %v4866 = vmul.f32 %v4850, 0.3275911
    %v4867 = vmul.f32 %v4851, 0.3275911
    %v4868 = vmul.f32 %v4852, 0.3275911
    %v4869 = vmul.f32 %v4853, 0.3275911
    %v4870 = vmul.f32 %v4854, 0.3275911
    %v4871 = vmul.f32 %v4855, 0.3275911
    %v4872 = vmul.f32 %v4856, 0.3275911
    %v4873 = vmul.f32 %v4857, 0.3275911
    %v4874 = vmul.f32 %v4858, 0.3275911
    %v4875 = vmul.f32 %v4859, 0.3275911
    %v4876 = vmul.f32 %v4860, 0.3275911
    %v4877 = vmul.f32 %v4861, 0.3275911
    %v4878 = vmul.f32 %v4862, 0.3275911
    %v4879 = vmul.f32 %v4863, 0.3275911
    %v4880 = vmul.f32 %v4864, 0.3275911
    %v4881 = vmul.f32 %v4865, 0.3275911
    %v4882 = vadd.f32 %v4866, 1.0
    %v4883 = vadd.f32 %v4867, 1.0
    %v4884 = vadd.f32 %v4868, 1.0
    %v4885 = vadd.f32 %v4869, 1.0
    %v4886 = vadd.f32 %v4870, 1.0
    %v4887 = vadd.f32 %v4871, 1.0
    %v4888 = vadd.f32 %v4872, 1.0
    %v4889 = vadd.f32 %v4873, 1.0
    %v4890 = vadd.f32 %v4874, 1.0
    %v4891 = vadd.f32 %v4875, 1.0
    %v4892 = vadd.f32 %v4876, 1.0
    %v4893 = vadd.f32 %v4877, 1.0
    %v4894 = vadd.f32 %v4878, 1.0
    %v4895 = vadd.f32 %v4879, 1.0
    %v4896 = vadd.f32 %v4880, 1.0
    %v4897 = vadd.f32 %v4881, 1.0
    %v4898 = vrcp.pop %v4882
    %v4899 = vrcp.pop %v4883
    %v4900 = vrcp.pop %v4884
    %v4901 = vrcp.pop %v4885
    %v4902 = vrcp.pop %v4886
    %v4903 = vrcp.pop %v4887
    %v4904 = vrcp.pop %v4888
    %v4905 = vrcp.pop %v4889
    %v4906 = vrcp.pop %v4890
    %v4907 = vrcp.pop %v4891
    %v4908 = vrcp.pop %v4892
    %v4909 = vrcp.pop %v4893
    %v4910 = vrcp.pop %v4894
    %v4911 = vrcp.pop %v4895
    %v4912 = vrcp.pop %v4896
    %v4913 = vrcp.pop %v4897
    %v4914 = vmul.f32 %v4882, %v4898
    %v4915 = vmul.f32 %v4883, %v4899
    %v4916 = vmul.f32 %v4884, %v4900
    %v4917 = vmul.f32 %v4885, %v4901
    %v4918 = vmul.f32 %v4886, %v4902
    %v4919 = vmul.f32 %v4887, %v4903
    %v4920 = vmul.f32 %v4888, %v4904
    %v4921 = vmul.f32 %v4889, %v4905
    %v4922 = vmul.f32 %v4890, %v4906
    %v4923 = vmul.f32 %v4891, %v4907
    %v4924 = vmul.f32 %v4892, %v4908
    %v4925 = vmul.f32 %v4893, %v4909
    %v4926 = vmul.f32 %v4894, %v4910
    %v4927 = vmul.f32 %v4895, %v4911
    %v4928 = vmul.f32 %v4896, %v4912
    %v4929 = vmul.f32 %v4897, %v4913
    %v4930 = vsub.f32 2.0, %v4914
    %v4931 = vsub.f32 2.0, %v4915
    %v4932 = vsub.f32 2.0, %v4916
    %v4933 = vsub.f32 2.0, %v4917
    %v4934 = vsub.f32 2.0, %v4918
    %v4935 = vsub.f32 2.0, %v4919
    %v4936 = vsub.f32 2.0, %v4920
    %v4937 = vsub.f32 2.0, %v4921
    %v4938 = vsub.f32 2.0, %v4922
    %v4939 = vsub.f32 2.0, %v4923
    %v4940 = vsub.f32 2.0, %v4924
    %v4941 = vsub.f32 2.0, %v4925
    %v4942 = vsub.f32 2.0, %v4926
    %v4943 = vsub.f32 2.0, %v4927
    %v4944 = vsub.f32 2.0, %v4928
    %v4945 = vsub.f32 2.0, %v4929
    %v4946 = vmul.f32 %v4898, %v4930
    %v4947 = vmul.f32 %v4899, %v4931
    %v4948 = vmul.f32 %v4900, %v4932
    %v4949 = vmul.f32 %v4901, %v4933
    %v4950 = vmul.f32 %v4902, %v4934
    %v4951 = vmul.f32 %v4903, %v4935
    %v4952 = vmul.f32 %v4904, %v4936
    %v4953 = vmul.f32 %v4905, %v4937
    %v4954 = vmul.f32 %v4906, %v4938
    %v4955 = vmul.f32 %v4907, %v4939
    %v4956 = vmul.f32 %v4908, %v4940
    %v4957 = vmul.f32 %v4909, %v4941
    %v4958 = vmul.f32 %v4910, %v4942
    %v4959 = vmul.f32 %v4911, %v4943
    %v4960 = vmul.f32 %v4912, %v4944
    %v4961 = vmul.f32 %v4913, %v4945
    %v4962 = vmul.f32 %v4946, 1.0614054
    %v4963 = vmul.f32 %v4947, 1.0614054
    %v4964 = vmul.f32 %v4948, 1.0614054
    %v4965 = vmul.f32 %v4949, 1.0614054
    %v4966 = vmul.f32 %v4950, 1.0614054
    %v4967 = vmul.f32 %v4951, 1.0614054
    %v4968 = vmul.f32 %v4952, 1.0614054
    %v4969 = vmul.f32 %v4953, 1.0614054
    %v4970 = vmul.f32 %v4954, 1.0614054
    %v4971 = vmul.f32 %v4955, 1.0614054
    %v4972 = vmul.f32 %v4956, 1.0614054
    %v4973 = vmul.f32 %v4957, 1.0614054
    %v4974 = vmul.f32 %v4958, 1.0614054
    %v4975 = vmul.f32 %v4959, 1.0614054
    %v4976 = vmul.f32 %v4960, 1.0614054
    %v4977 = vmul.f32 %v4961, 1.0614054
    %v4978 = vadd.f32 %v4962, -1.4531521
    %v4979 = vadd.f32 %v4963, -1.4531521
    %v4980 = vadd.f32 %v4964, -1.4531521
    %v4981 = vadd.f32 %v4965, -1.4531521
    %v4982 = vadd.f32 %v4966, -1.4531521
    %v4983 = vadd.f32 %v4967, -1.4531521
    %v4984 = vadd.f32 %v4968, -1.4531521
    %v4985 = vadd.f32 %v4969, -1.4531521
    %v4986 = vadd.f32 %v4970, -1.4531521
    %v4987 = vadd.f32 %v4971, -1.4531521
    %v4988 = vadd.f32 %v4972, -1.4531521
    %v4989 = vadd.f32 %v4973, -1.4531521
    %v4990 = vadd.f32 %v4974, -1.4531521
    %v4991 = vadd.f32 %v4975, -1.4531521
    %v4992 = vadd.f32 %v4976, -1.4531521
    %v4993 = vadd.f32 %v4977, -1.4531521
    %v4994 = vmul.f32 %v4978, %v4946
    %v4995 = vmul.f32 %v4979, %v4947
    %v4996 = vmul.f32 %v4980, %v4948
    %v4997 = vmul.f32 %v4981, %v4949
    %v4998 = vmul.f32 %v4982, %v4950
    %v4999 = vmul.f32 %v4983, %v4951
    %v5000 = vmul.f32 %v4984, %v4952
    %v5001 = vmul.f32 %v4985, %v4953
    %v5002 = vmul.f32 %v4986, %v4954
    %v5003 = vmul.f32 %v4987, %v4955
    %v5004 = vmul.f32 %v4988, %v4956
    %v5005 = vmul.f32 %v4989, %v4957
    %v5006 = vmul.f32 %v4990, %v4958
    %v5007 = vmul.f32 %v4991, %v4959
    %v5008 = vmul.f32 %v4992, %v4960
    %v5009 = vmul.f32 %v4993, %v4961
    %v5010 = vadd.f32 %v4994, 1.4214138
    %v5011 = vadd.f32 %v4995, 1.4214138
    %v5012 = vadd.f32 %v4996, 1.4214138
    %v5013 = vadd.f32 %v4997, 1.4214138
    %v5014 = vadd.f32 %v4998, 1.4214138
    %v5015 = vadd.f32 %v4999, 1.4214138
    %v5016 = vadd.f32 %v5000, 1.4214138
    %v5017 = vadd.f32 %v5001, 1.4214138
    %v5018 = vadd.f32 %v5002, 1.4214138
    %v5019 = vadd.f32 %v5003, 1.4214138
    %v5020 = vadd.f32 %v5004, 1.4214138
    %v5021 = vadd.f32 %v5005, 1.4214138
    %v5022 = vadd.f32 %v5006, 1.4214138
    %v5023 = vadd.f32 %v5007, 1.4214138
    %v5024 = vadd.f32 %v5008, 1.4214138
    %v5025 = vadd.f32 %v5009, 1.4214138
    %v5026 = vmul.f32 %v5010, %v4946
    %v5027 = vmul.f32 %v5011, %v4947
    %v5028 = vmul.f32 %v5012, %v4948
    %v5029 = vmul.f32 %v5013, %v4949
    %v5030 = vmul.f32 %v5014, %v4950
    %v5031 = vmul.f32 %v5015, %v4951
    %v5032 = vmul.f32 %v5016, %v4952
    %v5033 = vmul.f32 %v5017, %v4953
    %v5034 = vmul.f32 %v5018, %v4954
    %v5035 = vmul.f32 %v5019, %v4955
    %v5036 = vmul.f32 %v5020, %v4956
    %v5037 = vmul.f32 %v5021, %v4957
    %v5038 = vmul.f32 %v5022, %v4958
    %v5039 = vmul.f32 %v5023, %v4959
    %v5040 = vmul.f32 %v5024, %v4960
    %v5041 = vmul.f32 %v5025, %v4961
    %v5042 = vadd.f32 %v5026, -0.28449672
    %v5043 = vadd.f32 %v5027, -0.28449672
    %v5044 = vadd.f32 %v5028, -0.28449672
    %v5045 = vadd.f32 %v5029, -0.28449672
    %v5046 = vadd.f32 %v5030, -0.28449672
    %v5047 = vadd.f32 %v5031, -0.28449672
    %v5048 = vadd.f32 %v5032, -0.28449672
    %v5049 = vadd.f32 %v5033, -0.28449672
    %v5050 = vadd.f32 %v5034, -0.28449672
    %v5051 = vadd.f32 %v5035, -0.28449672
    %v5052 = vadd.f32 %v5036, -0.28449672
    %v5053 = vadd.f32 %v5037, -0.28449672
    %v5054 = vadd.f32 %v5038, -0.28449672
    %v5055 = vadd.f32 %v5039, -0.28449672
    %v5056 = vadd.f32 %v5040, -0.28449672
    %v5057 = vadd.f32 %v5041, -0.28449672
    %v5058 = vmul.f32 %v5042, %v4946
    %v5059 = vmul.f32 %v5043, %v4947
    %v5060 = vmul.f32 %v5044, %v4948
    %v5061 = vmul.f32 %v5045, %v4949
    %v5062 = vmul.f32 %v5046, %v4950
    %v5063 = vmul.f32 %v5047, %v4951
    %v5064 = vmul.f32 %v5048, %v4952
    %v5065 = vmul.f32 %v5049, %v4953
    %v5066 = vmul.f32 %v5050, %v4954
    %v5067 = vmul.f32 %v5051, %v4955
    %v5068 = vmul.f32 %v5052, %v4956
    %v5069 = vmul.f32 %v5053, %v4957
    %v5070 = vmul.f32 %v5054, %v4958
    %v5071 = vmul.f32 %v5055, %v4959
    %v5072 = vmul.f32 %v5056, %v4960
    %v5073 = vmul.f32 %v5057, %v4961
    %v5074 = vadd.f32 %v5058, 0.2548296
    %v5075 = vadd.f32 %v5059, 0.2548296
    %v5076 = vadd.f32 %v5060, 0.2548296
    %v5077 = vadd.f32 %v5061, 0.2548296
    %v5078 = vadd.f32 %v5062, 0.2548296
    %v5079 = vadd.f32 %v5063, 0.2548296
    %v5080 = vadd.f32 %v5064, 0.2548296
    %v5081 = vadd.f32 %v5065, 0.2548296
    %v5082 = vadd.f32 %v5066, 0.2548296
    %v5083 = vadd.f32 %v5067, 0.2548296
    %v5084 = vadd.f32 %v5068, 0.2548296
    %v5085 = vadd.f32 %v5069, 0.2548296
    %v5086 = vadd.f32 %v5070, 0.2548296
    %v5087 = vadd.f32 %v5071, 0.2548296
    %v5088 = vadd.f32 %v5072, 0.2548296
    %v5089 = vadd.f32 %v5073, 0.2548296
    %v5090 = vmul.f32 %v5074, %v4946
    %v5091 = vmul.f32 %v5075, %v4947
    %v5092 = vmul.f32 %v5076, %v4948
    %v5093 = vmul.f32 %v5077, %v4949
    %v5094 = vmul.f32 %v5078, %v4950
    %v5095 = vmul.f32 %v5079, %v4951
    %v5096 = vmul.f32 %v5080, %v4952
    %v5097 = vmul.f32 %v5081, %v4953
    %v5098 = vmul.f32 %v5082, %v4954
    %v5099 = vmul.f32 %v5083, %v4955
    %v5100 = vmul.f32 %v5084, %v4956
    %v5101 = vmul.f32 %v5085, %v4957
    %v5102 = vmul.f32 %v5086, %v4958
    %v5103 = vmul.f32 %v5087, %v4959
    %v5104 = vmul.f32 %v5088, %v4960
    %v5105 = vmul.f32 %v5089, %v4961
    %v5106 = vsub.f32 0.0, %v4850
    %v5107 = vsub.f32 0.0, %v4851
    %v5108 = vsub.f32 0.0, %v4852
    %v5109 = vsub.f32 0.0, %v4853
    %v5110 = vsub.f32 0.0, %v4854
    %v5111 = vsub.f32 0.0, %v4855
    %v5112 = vsub.f32 0.0, %v4856
    %v5113 = vsub.f32 0.0, %v4857
    %v5114 = vsub.f32 0.0, %v4858
    %v5115 = vsub.f32 0.0, %v4859
    %v5116 = vsub.f32 0.0, %v4860
    %v5117 = vsub.f32 0.0, %v4861
    %v5118 = vsub.f32 0.0, %v4862
    %v5119 = vsub.f32 0.0, %v4863
    %v5120 = vsub.f32 0.0, %v4864
    %v5121 = vsub.f32 0.0, %v4865
    %v5122 = vmul.f32 %v5106, %v4850
    %v5123 = vmul.f32 %v5107, %v4851
    %v5124 = vmul.f32 %v5108, %v4852
    %v5125 = vmul.f32 %v5109, %v4853
    %v5126 = vmul.f32 %v5110, %v4854
    %v5127 = vmul.f32 %v5111, %v4855
    %v5128 = vmul.f32 %v5112, %v4856
    %v5129 = vmul.f32 %v5113, %v4857
    %v5130 = vmul.f32 %v5114, %v4858
    %v5131 = vmul.f32 %v5115, %v4859
    %v5132 = vmul.f32 %v5116, %v4860
    %v5133 = vmul.f32 %v5117, %v4861
    %v5134 = vmul.f32 %v5118, %v4862
    %v5135 = vmul.f32 %v5119, %v4863
    %v5136 = vmul.f32 %v5120, %v4864
    %v5137 = vmul.f32 %v5121, %v4865
    %v5138 = vmul.f32 %v5122, 1.442695
    %v5139 = vpow.pop %v5138
    %v5140 = vmul.f32 %v5123, 1.442695
    %v5141 = vpow.pop %v5140
    %v5142 = vmul.f32 %v5124, 1.442695
    %v5143 = vpow.pop %v5142
    %v5144 = vmul.f32 %v5125, 1.442695
    %v5145 = vpow.pop %v5144
    %v5146 = vmul.f32 %v5126, 1.442695
    %v5147 = vpow.pop %v5146
    %v5148 = vmul.f32 %v5127, 1.442695
    %v5149 = vpow.pop %v5148
    %v5150 = vmul.f32 %v5128, 1.442695
    %v5151 = vpow.pop %v5150
    %v5152 = vmul.f32 %v5129, 1.442695
    %v5153 = vpow.pop %v5152
    %v5154 = vmul.f32 %v5130, 1.442695
    %v5155 = vpow.pop %v5154
    %v5156 = vmul.f32 %v5131, 1.442695
    %v5157 = vpow.pop %v5156
    %v5158 = vmul.f32 %v5132, 1.442695
    %v5159 = vpow.pop %v5158
    %v5160 = vmul.f32 %v5133, 1.442695
    %v5161 = vpow.pop %v5160
    %v5162 = vmul.f32 %v5134, 1.442695
    %v5163 = vpow.pop %v5162
    %v5164 = vmul.f32 %v5135, 1.442695
    %v5165 = vpow.pop %v5164
    %v5166 = vmul.f32 %v5136, 1.442695
    %v5167 = vpow.pop %v5166
    %v5168 = vmul.f32 %v5137, 1.442695
    %v5169 = vpow.pop %v5168
    %v5170 = vmul.f32 %v5090, %v5139
    %v5171 = vmul.f32 %v5091, %v5141
    %v5172 = vmul.f32 %v5092, %v5143
    %v5173 = vmul.f32 %v5093, %v5145
    %v5174 = vmul.f32 %v5094, %v5147
    %v5175 = vmul.f32 %v5095, %v5149
    %v5176 = vmul.f32 %v5096, %v5151
    %v5177 = vmul.f32 %v5097, %v5153
    %v5178 = vmul.f32 %v5098, %v5155
    %v5179 = vmul.f32 %v5099, %v5157
    %v5180 = vmul.f32 %v5100, %v5159
    %v5181 = vmul.f32 %v5101, %v5161
    %v5182 = vmul.f32 %v5102, %v5163
    %v5183 = vmul.f32 %v5103, %v5165
    %v5184 = vmul.f32 %v5104, %v5167
    %v5185 = vmul.f32 %v5105, %v5169
    %v5186 = vsub.f32 1.0, %v5170
    %v5187 = vsub.f32 1.0, %v5171
    %v5188 = vsub.f32 1.0, %v5172
    %v5189 = vsub.f32 1.0, %v5173
    %v5190 = vsub.f32 1.0, %v5174
    %v5191 = vsub.f32 1.0, %v5175
    %v5192 = vsub.f32 1.0, %v5176
    %v5193 = vsub.f32 1.0, %v5177
    %v5194 = vsub.f32 1.0, %v5178
    %v5195 = vsub.f32 1.0, %v5179
    %v5196 = vsub.f32 1.0, %v5180
    %v5197 = vsub.f32 1.0, %v5181
    %v5198 = vsub.f32 1.0, %v5182
    %v5199 = vsub.f32 1.0, %v5183
    %v5200 = vsub.f32 1.0, %v5184
    %v5201 = vsub.f32 1.0, %v5185
    %vm5202 = vcmp.ge.f32.partialorder %v4834, 0.0
    %vm5203 = vcmp.ge.f32.partialorder %v4835, 0.0
    %vm5204 = vcmp.ge.f32.partialorder %v4836, 0.0
    %vm5205 = vcmp.ge.f32.partialorder %v4837, 0.0
    %vm5206 = vcmp.ge.f32.partialorder %v4838, 0.0
    %vm5207 = vcmp.ge.f32.partialorder %v4839, 0.0
    %vm5208 = vcmp.ge.f32.partialorder %v4840, 0.0
    %vm5209 = vcmp.ge.f32.partialorder %v4841, 0.0
    %vm5210 = vcmp.ge.f32.partialorder %v4842, 0.0
    %vm5211 = vcmp.ge.f32.partialorder %v4843, 0.0
    %vm5212 = vcmp.ge.f32.partialorder %v4844, 0.0
    %vm5213 = vcmp.ge.f32.partialorder %v4845, 0.0
    %vm5214 = vcmp.ge.f32.partialorder %v4846, 0.0
    %vm5215 = vcmp.ge.f32.partialorder %v4847, 0.0
    %vm5216 = vcmp.ge.f32.partialorder %v4848, 0.0
    %vm5217 = vcmp.ge.f32.partialorder %v4849, 0.0
    %v5218 = vsub.f32 0.0, %v5186
    %v5219 = vsub.f32 0.0, %v5187
    %v5220 = vsub.f32 0.0, %v5188
    %v5221 = vsub.f32 0.0, %v5189
    %v5222 = vsub.f32 0.0, %v5190
    %v5223 = vsub.f32 0.0, %v5191
    %v5224 = vsub.f32 0.0, %v5192
    %v5225 = vsub.f32 0.0, %v5193
    %v5226 = vsub.f32 0.0, %v5194
    %v5227 = vsub.f32 0.0, %v5195
    %v5228 = vsub.f32 0.0, %v5196
    %v5229 = vsub.f32 0.0, %v5197
    %v5230 = vsub.f32 0.0, %v5198
    %v5231 = vsub.f32 0.0, %v5199
    %v5232 = vsub.f32 0.0, %v5200
    %v5233 = vsub.f32 0.0, %v5201
    %v5234 = vsel %vm5202, %v5186, %v5218
    %v5235 = vsel %vm5203, %v5187, %v5219
    %v5236 = vsel %vm5204, %v5188, %v5220
    %v5237 = vsel %vm5205, %v5189, %v5221
    %v5238 = vsel %vm5206, %v5190, %v5222
    %v5239 = vsel %vm5207, %v5191, %v5223
    %v5240 = vsel %vm5208, %v5192, %v5224
    %v5241 = vsel %vm5209, %v5193, %v5225
    %v5242 = vsel %vm5210, %v5194, %v5226
    %v5243 = vsel %vm5211, %v5195, %v5227
    %v5244 = vsel %vm5212, %v5196, %v5228
    %v5245 = vsel %vm5213, %v5197, %v5229
    %v5246 = vsel %vm5214, %v5198, %v5230
    %v5247 = vsel %vm5215, %v5199, %v5231
    %v5248 = vsel %vm5216, %v5200, %v5232
    %v5249 = vsel %vm5217, %v5201, %v5233
    %v5250 = vadd.f32 %v5234, 1.0
    %v5251 = vadd.f32 %v5235, 1.0
    %v5252 = vadd.f32 %v5236, 1.0
    %v5253 = vadd.f32 %v5237, 1.0
    %v5254 = vadd.f32 %v5238, 1.0
    %v5255 = vadd.f32 %v5239, 1.0
    %v5256 = vadd.f32 %v5240, 1.0
    %v5257 = vadd.f32 %v5241, 1.0
    %v5258 = vadd.f32 %v5242, 1.0
    %v5259 = vadd.f32 %v5243, 1.0
    %v5260 = vadd.f32 %v5244, 1.0
    %v5261 = vadd.f32 %v5245, 1.0
    %v5262 = vadd.f32 %v5246, 1.0
    %v5263 = vadd.f32 %v5247, 1.0
    %v5264 = vadd.f32 %v5248, 1.0
    %v5265 = vadd.f32 %v5249, 1.0
    %v5266 = vmul.f32 %v4818, %v5250
    %v5267 = vmul.f32 %v4819, %v5251
    %v5268 = vmul.f32 %v4820, %v5252
    %v5269 = vmul.f32 %v4821, %v5253
    %v5270 = vmul.f32 %v4822, %v5254
    %v5271 = vmul.f32 %v4823, %v5255
    %v5272 = vmul.f32 %v4824, %v5256
    %v5273 = vmul.f32 %v4825, %v5257
    %v5274 = vmul.f32 %v4826, %v5258
    %v5275 = vmul.f32 %v4827, %v5259
    %v5276 = vmul.f32 %v4828, %v5260
    %v5277 = vmul.f32 %v4829, %v5261
    %v5278 = vmul.f32 %v4830, %v5262
    %v5279 = vmul.f32 %v4831, %v5263
    %v5280 = vmul.f32 %v4832, %v5264
    %v5281 = vmul.f32 %v4833, %v5265
    %v5282 = vld [vmem:[%s10] sm:$0xff]
    %v5283 = vld [vmem:[%s10 + $0x8] sm:$0xff]
    %v5284 = vld [vmem:[%s10 + $0x10] sm:$0xff]
    %v5285 = vld [vmem:[%s10 + $0x18] sm:$0xff]
    %v5286 = vld [vmem:[%s11] sm:$0x1]
    %v5288 = vlaneseq
    %v5289 = vshrl.u32 %v5288, 7
    %v5290 = vsub.s32 0, %v5289
    %v5291 = vrot.slane %v5286, %v5290
    %vm5293 = vcmask 523264
    %v5295 = vsel %vm5293, %v5266, 0
    %v5298 = vsel %vm5293, %v5282, 0
    %v5301 = vsel %vm5293, %v5283, 0
    %v5304 = vsel %vm5293, %v5284, 0
    %v5307 = vsel %vm5293, %v5285, 0
    %5309 = vmatprep.subr.mxu0 0.0
    %5310 = vmatpush1.xpose.msra.mxu0 0.0
    %5311 = vmatprep.subr.mxu0 0.0
    %5312 = vmatpush1.xpose.msra.mxu0 0.0
    %5313 = vmatprep.subr.mxu0 0.0
    %5314 = vmatpush1.xpose.msra.mxu0 0.0
    %5315 = vmatprep.subr.mxu0 0.0
    %5316 = vmatpush1.xpose.msra.mxu0 0.0
    %5317 = vmatprep.subr.mxu0 0.0
    %5318 = vmatpush1.xpose.msra.mxu0 0.0
    %5319 = vmatprep.subr.mxu0 0.0
    %5320 = vmatpush1.xpose.msra.mxu0 0.0
    %5321 = vmatprep.subr.mxu0 0.0
    %5322 = vmatpush1.xpose.msra.mxu0 0.0
    %5323 = vmatprep.subr.mxu0 0.0
    %5324 = vmatpush1.xpose.msra.mxu0 0.0
    %5325 = vmatprep.subr.mxu0 0.0
    %5326 = vmatpush1.xpose.msra.mxu0 0.0
    %5327 = vmatprep.subr.mxu0 0.0
    %5328 = vmatpush1.xpose.msra.mxu0 0.0
    %5329 = vmatprep.subr.mxu0 0.0
    %5330 = vmatpush1.xpose.msra.mxu0 0.0
    %5331 = vmatprep.subr.mxu0 0.0
    %5332 = vmatpush1.xpose.msra.mxu0 0.0
    %5333 = vmatprep.subr.mxu0 0.0
    %5334 = vmatpush1.xpose.msra.mxu0 %v5307
    %5335 = vmatprep.subr.mxu0 0.0
    %5336 = vmatpush1.xpose.msra.mxu0 %v5304
    %5337 = vmatprep.subr.mxu0 0.0
    %5338 = vmatpush1.xpose.msra.mxu0 %v5301
    %5339 = vmatprep.subr.mxu0 0.0
    %5340 = vmatpush1.xpose.msra.mxu0 %v5298
    %5341 = vmatprep.subr.mxu0 0.0
    %5342 = vmatpush2.xpose.msra.mxu0 0.0
    %5343 = vmatprep.subr.mxu0 0.0
    %5344 = vmatpush2.xpose.msra.mxu0 0.0
    %5345 = vmatprep.subr.mxu0 0.0
    %5346 = vmatpush2.xpose.msra.mxu0 0.0
    %5347 = vmatprep.subr.mxu0 0.0
    %5348 = vmatpush2.xpose.msra.mxu0 0.0
    %5349 = vmatprep.subr.mxu0 0.0
    %5350 = vmatpush2.xpose.msra.mxu0 0.0
    %5351 = vmatprep.subr.mxu0 0.0
    %5352 = vmatpush2.xpose.msra.mxu0 0.0
    %5353 = vmatprep.subr.mxu0 0.0
    %5354 = vmatpush2.xpose.msra.mxu0 0.0
    %5355 = vmatprep.subr.mxu0 0.0
    %5356 = vmatpush2.xpose.msra.mxu0 0.0
    %5357 = vmatprep.subr.mxu0 0.0
    %5358 = vmatpush2.xpose.msra.mxu0 0.0
    %5359 = vmatprep.subr.mxu0 0.0
    %5360 = vmatpush2.xpose.msra.mxu0 0.0
    %5361 = vmatprep.subr.mxu0 0.0
    %5362 = vmatpush2.xpose.msra.mxu0 0.0
    %5363 = vmatprep.subr.mxu0 0.0
    %5364 = vmatpush2.xpose.msra.mxu0 0.0
    %5365 = vmatprep.subr.mxu0 0.0
    %5366 = vmatpush2.xpose.msra.mxu0 0.0
    %5367 = vmatprep.subr.mxu0 0.0
    %5368 = vmatpush2.xpose.msra.mxu0 0.0
    %5369 = vmatprep.subr.mxu0 0.0
    %5370 = vmatpush2.xpose.msra.mxu0 0.0
    %5371 = vmatprep.subr.mxu0 0.0
    %5372 = vmatpush2.xpose.msra.mxu0 0.0
    %5373 = vmatprep.mubr.f32.mxu0 0.0
    %5374 = vmatmul.mubr.f32.gmra.mxu0 %v5295
    %v5375 = vpop.f32.mrf.mxu0
    %v5376 = vadd.f32 %v5291, %v5375
    %v5377 = vpop.f32.mrf.mxu0
    %5378 = vdwg.mxu0
    %v5380 = vsel %vm5293, %v5267, 0
    %5382 = vmatprep.subr.mxu0 0.0
    %5383 = vmatpush1.xpose.msra.mxu0 0.0
    %5384 = vmatprep.subr.mxu0 0.0
    %5385 = vmatpush1.xpose.msra.mxu0 0.0
    %5386 = vmatprep.subr.mxu0 0.0
    %5387 = vmatpush1.xpose.msra.mxu0 0.0
    %5388 = vmatprep.subr.mxu0 0.0
    %5389 = vmatpush1.xpose.msra.mxu0 0.0
    %5390 = vmatprep.subr.mxu0 0.0
    %5391 = vmatpush1.xpose.msra.mxu0 0.0
    %5392 = vmatprep.subr.mxu0 0.0
    %5393 = vmatpush1.xpose.msra.mxu0 0.0
    %5394 = vmatprep.subr.mxu0 0.0
    %5395 = vmatpush1.xpose.msra.mxu0 0.0
    %5396 = vmatprep.subr.mxu0 0.0
    %5397 = vmatpush1.xpose.msra.mxu0 0.0
    %5398 = vmatprep.subr.mxu0 0.0
    %5399 = vmatpush1.xpose.msra.mxu0 0.0
    %5400 = vmatprep.subr.mxu0 0.0
    %5401 = vmatpush1.xpose.msra.mxu0 0.0
    %5402 = vmatprep.subr.mxu0 0.0
    %5403 = vmatpush1.xpose.msra.mxu0 0.0
    %5404 = vmatprep.subr.mxu0 0.0
    %5405 = vmatpush1.xpose.msra.mxu0 0.0
    %5406 = vmatprep.subr.mxu0 0.0
    %5407 = vmatpush1.xpose.msra.mxu0 %v5307
    %5408 = vmatprep.subr.mxu0 0.0
    %5409 = vmatpush1.xpose.msra.mxu0 %v5304
    %5410 = vmatprep.subr.mxu0 0.0
    %5411 = vmatpush1.xpose.msra.mxu0 %v5301
    %5412 = vmatprep.subr.mxu0 0.0
    %5413 = vmatpush1.xpose.msra.mxu0 %v5298
    %5414 = vmatprep.subr.mxu0 0.0
    %5415 = vmatpush2.xpose.msra.mxu0 0.0
    %5416 = vmatprep.subr.mxu0 0.0
    %5417 = vmatpush2.xpose.msra.mxu0 0.0
    %5418 = vmatprep.subr.mxu0 0.0
    %5419 = vmatpush2.xpose.msra.mxu0 0.0
    %5420 = vmatprep.subr.mxu0 0.0
    %5421 = vmatpush2.xpose.msra.mxu0 0.0
    %5422 = vmatprep.subr.mxu0 0.0
    %5423 = vmatpush2.xpose.msra.mxu0 0.0
    %5424 = vmatprep.subr.mxu0 0.0
    %5425 = vmatpush2.xpose.msra.mxu0 0.0
    %5426 = vmatprep.subr.mxu0 0.0
    %5427 = vmatpush2.xpose.msra.mxu0 0.0
    %5428 = vmatprep.subr.mxu0 0.0
    %5429 = vmatpush2.xpose.msra.mxu0 0.0
    %5430 = vmatprep.subr.mxu0 0.0
    %5431 = vmatpush2.xpose.msra.mxu0 0.0
    %5432 = vmatprep.subr.mxu0 0.0
    %5433 = vmatpush2.xpose.msra.mxu0 0.0
    %5434 = vmatprep.subr.mxu0 0.0
    %5435 = vmatpush2.xpose.msra.mxu0 0.0
    %5436 = vmatprep.subr.mxu0 0.0
    %5437 = vmatpush2.xpose.msra.mxu0 0.0
    %5438 = vmatprep.subr.mxu0 0.0
    %5439 = vmatpush2.xpose.msra.mxu0 0.0
    %5440 = vmatprep.subr.mxu0 0.0
    %5441 = vmatpush2.xpose.msra.mxu0 0.0
    %5442 = vmatprep.subr.mxu0 0.0
    %5443 = vmatpush2.xpose.msra.mxu0 0.0
    %5444 = vmatprep.subr.mxu0 0.0
    %5445 = vmatpush2.xpose.msra.mxu0 0.0
    %5446 = vmatprep.mubr.f32.mxu0 0.0
    %5447 = vmatmul.mubr.f32.gmra.mxu0 %v5380
    %v5448 = vpop.f32.mrf.mxu0
    %v5449 = vadd.f32 %v5291, %v5448
    %v5450 = vpop.f32.mrf.mxu0
    %5451 = vdwg.mxu0
    %v5453 = vsel %vm5293, %v5268, 0
    %5455 = vmatprep.subr.mxu0 0.0
    %5456 = vmatpush1.xpose.msra.mxu0 0.0
    %5457 = vmatprep.subr.mxu0 0.0
    %5458 = vmatpush1.xpose.msra.mxu0 0.0
    %5459 = vmatprep.subr.mxu0 0.0
    %5460 = vmatpush1.xpose.msra.mxu0 0.0
    %5461 = vmatprep.subr.mxu0 0.0
    %5462 = vmatpush1.xpose.msra.mxu0 0.0
    %5463 = vmatprep.subr.mxu0 0.0
    %5464 = vmatpush1.xpose.msra.mxu0 0.0
    %5465 = vmatprep.subr.mxu0 0.0
    %5466 = vmatpush1.xpose.msra.mxu0 0.0
    %5467 = vmatprep.subr.mxu0 0.0
    %5468 = vmatpush1.xpose.msra.mxu0 0.0
    %5469 = vmatprep.subr.mxu0 0.0
    %5470 = vmatpush1.xpose.msra.mxu0 0.0
    %5471 = vmatprep.subr.mxu0 0.0
    %5472 = vmatpush1.xpose.msra.mxu0 0.0
    %5473 = vmatprep.subr.mxu0 0.0
    %5474 = vmatpush1.xpose.msra.mxu0 0.0
    %5475 = vmatprep.subr.mxu0 0.0
    %5476 = vmatpush1.xpose.msra.mxu0 0.0
    %5477 = vmatprep.subr.mxu0 0.0
    %5478 = vmatpush1.xpose.msra.mxu0 0.0
    %5479 = vmatprep.subr.mxu0 0.0
    %5480 = vmatpush1.xpose.msra.mxu0 %v5307
    %5481 = vmatprep.subr.mxu0 0.0
    %5482 = vmatpush1.xpose.msra.mxu0 %v5304
    %5483 = vmatprep.subr.mxu0 0.0
    %5484 = vmatpush1.xpose.msra.mxu0 %v5301
    %5485 = vmatprep.subr.mxu0 0.0
    %5486 = vmatpush1.xpose.msra.mxu0 %v5298
    %5487 = vmatprep.subr.mxu0 0.0
    %5488 = vmatpush2.xpose.msra.mxu0 0.0
    %5489 = vmatprep.subr.mxu0 0.0
    %5490 = vmatpush2.xpose.msra.mxu0 0.0
    %5491 = vmatprep.subr.mxu0 0.0
    %5492 = vmatpush2.xpose.msra.mxu0 0.0
    %5493 = vmatprep.subr.mxu0 0.0
    %5494 = vmatpush2.xpose.msra.mxu0 0.0
    %5495 = vmatprep.subr.mxu0 0.0
    %5496 = vmatpush2.xpose.msra.mxu0 0.0
    %5497 = vmatprep.subr.mxu0 0.0
    %5498 = vmatpush2.xpose.msra.mxu0 0.0
    %5499 = vmatprep.subr.mxu0 0.0
    %5500 = vmatpush2.xpose.msra.mxu0 0.0
    %5501 = vmatprep.subr.mxu0 0.0
    %5502 = vmatpush2.xpose.msra.mxu0 0.0
    %5503 = vmatprep.subr.mxu0 0.0
    %5504 = vmatpush2.xpose.msra.mxu0 0.0
    %5505 = vmatprep.subr.mxu0 0.0
    %5506 = vmatpush2.xpose.msra.mxu0 0.0
    %5507 = vmatprep.subr.mxu0 0.0
    %5508 = vmatpush2.xpose.msra.mxu0 0.0
    %5509 = vmatprep.subr.mxu0 0.0
    %5510 = vmatpush2.xpose.msra.mxu0 0.0
    %5511 = vmatprep.subr.mxu0 0.0
    %5512 = vmatpush2.xpose.msra.mxu0 0.0
    %5513 = vmatprep.subr.mxu0 0.0
    %5514 = vmatpush2.xpose.msra.mxu0 0.0
    %5515 = vmatprep.subr.mxu0 0.0
    %5516 = vmatpush2.xpose.msra.mxu0 0.0
    %5517 = vmatprep.subr.mxu0 0.0
    %5518 = vmatpush2.xpose.msra.mxu0 0.0
    %5519 = vmatprep.mubr.f32.mxu0 0.0
    %5520 = vmatmul.mubr.f32.gmra.mxu0 %v5453
    %v5521 = vpop.f32.mrf.mxu0
    %v5522 = vadd.f32 %v5291, %v5521
    %v5523 = vpop.f32.mrf.mxu0
    %5524 = vdwg.mxu0
    %v5526 = vsel %vm5293, %v5269, 0
    %5528 = vmatprep.subr.mxu0 0.0
    %5529 = vmatpush1.xpose.msra.mxu0 0.0
    %5530 = vmatprep.subr.mxu0 0.0
    %5531 = vmatpush1.xpose.msra.mxu0 0.0
    %5532 = vmatprep.subr.mxu0 0.0
    %5533 = vmatpush1.xpose.msra.mxu0 0.0
    %5534 = vmatprep.subr.mxu0 0.0
    %5535 = vmatpush1.xpose.msra.mxu0 0.0
    %5536 = vmatprep.subr.mxu0 0.0
    %5537 = vmatpush1.xpose.msra.mxu0 0.0
    %5538 = vmatprep.subr.mxu0 0.0
    %5539 = vmatpush1.xpose.msra.mxu0 0.0
    %5540 = vmatprep.subr.mxu0 0.0
    %5541 = vmatpush1.xpose.msra.mxu0 0.0
    %5542 = vmatprep.subr.mxu0 0.0
    %5543 = vmatpush1.xpose.msra.mxu0 0.0
    %5544 = vmatprep.subr.mxu0 0.0
    %5545 = vmatpush1.xpose.msra.mxu0 0.0
    %5546 = vmatprep.subr.mxu0 0.0
    %5547 = vmatpush1.xpose.msra.mxu0 0.0
    %5548 = vmatprep.subr.mxu0 0.0
    %5549 = vmatpush1.xpose.msra.mxu0 0.0
    %5550 = vmatprep.subr.mxu0 0.0
    %5551 = vmatpush1.xpose.msra.mxu0 0.0
    %5552 = vmatprep.subr.mxu0 0.0
    %5553 = vmatpush1.xpose.msra.mxu0 %v5307
    %5554 = vmatprep.subr.mxu0 0.0
    %5555 = vmatpush1.xpose.msra.mxu0 %v5304
    %5556 = vmatprep.subr.mxu0 0.0
    %5557 = vmatpush1.xpose.msra.mxu0 %v5301
    %5558 = vmatprep.subr.mxu0 0.0
    %5559 = vmatpush1.xpose.msra.mxu0 %v5298
    %5560 = vmatprep.subr.mxu0 0.0
    %5561 = vmatpush2.xpose.msra.mxu0 0.0
    %5562 = vmatprep.subr.mxu0 0.0
    %5563 = vmatpush2.xpose.msra.mxu0 0.0
    %5564 = vmatprep.subr.mxu0 0.0
    %5565 = vmatpush2.xpose.msra.mxu0 0.0
    %5566 = vmatprep.subr.mxu0 0.0
    %5567 = vmatpush2.xpose.msra.mxu0 0.0
    %5568 = vmatprep.subr.mxu0 0.0
    %5569 = vmatpush2.xpose.msra.mxu0 0.0
    %5570 = vmatprep.subr.mxu0 0.0
    %5571 = vmatpush2.xpose.msra.mxu0 0.0
    %5572 = vmatprep.subr.mxu0 0.0
    %5573 = vmatpush2.xpose.msra.mxu0 0.0
    %5574 = vmatprep.subr.mxu0 0.0
    %5575 = vmatpush2.xpose.msra.mxu0 0.0
    %5576 = vmatprep.subr.mxu0 0.0
    %5577 = vmatpush2.xpose.msra.mxu0 0.0
    %5578 = vmatprep.subr.mxu0 0.0
    %5579 = vmatpush2.xpose.msra.mxu0 0.0
    %5580 = vmatprep.subr.mxu0 0.0
    %5581 = vmatpush2.xpose.msra.mxu0 0.0
    %5582 = vmatprep.subr.mxu0 0.0
    %5583 = vmatpush2.xpose.msra.mxu0 0.0
    %5584 = vmatprep.subr.mxu0 0.0
    %5585 = vmatpush2.xpose.msra.mxu0 0.0
    %5586 = vmatprep.subr.mxu0 0.0
    %5587 = vmatpush2.xpose.msra.mxu0 0.0
    %5588 = vmatprep.subr.mxu0 0.0
    %5589 = vmatpush2.xpose.msra.mxu0 0.0
    %5590 = vmatprep.subr.mxu0 0.0
    %5591 = vmatpush2.xpose.msra.mxu0 0.0
    %5592 = vmatprep.mubr.f32.mxu0 0.0
    %5593 = vmatmul.mubr.f32.gmra.mxu0 %v5526
    %v5594 = vpop.f32.mrf.mxu0
    %v5595 = vadd.f32 %v5291, %v5594
    %v5596 = vpop.f32.mrf.mxu0
    %5597 = vdwg.mxu0
    %v5599 = vsel %vm5293, %v5270, 0
    %5601 = vmatprep.subr.mxu0 0.0
    %5602 = vmatpush1.xpose.msra.mxu0 0.0
    %5603 = vmatprep.subr.mxu0 0.0
    %5604 = vmatpush1.xpose.msra.mxu0 0.0
    %5605 = vmatprep.subr.mxu0 0.0
    %5606 = vmatpush1.xpose.msra.mxu0 0.0
    %5607 = vmatprep.subr.mxu0 0.0
    %5608 = vmatpush1.xpose.msra.mxu0 0.0
    %5609 = vmatprep.subr.mxu0 0.0
    %5610 = vmatpush1.xpose.msra.mxu0 0.0
    %5611 = vmatprep.subr.mxu0 0.0
    %5612 = vmatpush1.xpose.msra.mxu0 0.0
    %5613 = vmatprep.subr.mxu0 0.0
    %5614 = vmatpush1.xpose.msra.mxu0 0.0
    %5615 = vmatprep.subr.mxu0 0.0
    %5616 = vmatpush1.xpose.msra.mxu0 0.0
    %5617 = vmatprep.subr.mxu0 0.0
    %5618 = vmatpush1.xpose.msra.mxu0 0.0
    %5619 = vmatprep.subr.mxu0 0.0
    %5620 = vmatpush1.xpose.msra.mxu0 0.0
    %5621 = vmatprep.subr.mxu0 0.0
    %5622 = vmatpush1.xpose.msra.mxu0 0.0
    %5623 = vmatprep.subr.mxu0 0.0
    %5624 = vmatpush1.xpose.msra.mxu0 0.0
    %5625 = vmatprep.subr.mxu0 0.0
    %5626 = vmatpush1.xpose.msra.mxu0 %v5307
    %5627 = vmatprep.subr.mxu0 0.0
    %5628 = vmatpush1.xpose.msra.mxu0 %v5304
    %5629 = vmatprep.subr.mxu0 0.0
    %5630 = vmatpush1.xpose.msra.mxu0 %v5301
    %5631 = vmatprep.subr.mxu0 0.0
    %5632 = vmatpush1.xpose.msra.mxu0 %v5298
    %5633 = vmatprep.subr.mxu0 0.0
    %5634 = vmatpush2.xpose.msra.mxu0 0.0
    %5635 = vmatprep.subr.mxu0 0.0
    %5636 = vmatpush2.xpose.msra.mxu0 0.0
    %5637 = vmatprep.subr.mxu0 0.0
    %5638 = vmatpush2.xpose.msra.mxu0 0.0
    %5639 = vmatprep.subr.mxu0 0.0
    %5640 = vmatpush2.xpose.msra.mxu0 0.0
    %5641 = vmatprep.subr.mxu0 0.0
    %5642 = vmatpush2.xpose.msra.mxu0 0.0
    %5643 = vmatprep.subr.mxu0 0.0
    %5644 = vmatpush2.xpose.msra.mxu0 0.0
    %5645 = vmatprep.subr.mxu0 0.0
    %5646 = vmatpush2.xpose.msra.mxu0 0.0
    %5647 = vmatprep.subr.mxu0 0.0
    %5648 = vmatpush2.xpose.msra.mxu0 0.0
    %5649 = vmatprep.subr.mxu0 0.0
    %5650 = vmatpush2.xpose.msra.mxu0 0.0
    %5651 = vmatprep.subr.mxu0 0.0
    %5652 = vmatpush2.xpose.msra.mxu0 0.0
    %5653 = vmatprep.subr.mxu0 0.0
    %5654 = vmatpush2.xpose.msra.mxu0 0.0
    %5655 = vmatprep.subr.mxu0 0.0
    %5656 = vmatpush2.xpose.msra.mxu0 0.0
    %5657 = vmatprep.subr.mxu0 0.0
    %5658 = vmatpush2.xpose.msra.mxu0 0.0
    %5659 = vmatprep.subr.mxu0 0.0
    %5660 = vmatpush2.xpose.msra.mxu0 0.0
    %5661 = vmatprep.subr.mxu0 0.0
    %5662 = vmatpush2.xpose.msra.mxu0 0.0
    %5663 = vmatprep.subr.mxu0 0.0
    %5664 = vmatpush2.xpose.msra.mxu0 0.0
    %5665 = vmatprep.mubr.f32.mxu0 0.0
    %5666 = vmatmul.mubr.f32.gmra.mxu0 %v5599
    %v5667 = vpop.f32.mrf.mxu0
    %v5668 = vadd.f32 %v5291, %v5667
    %v5669 = vpop.f32.mrf.mxu0
    %5670 = vdwg.mxu0
    %v5672 = vsel %vm5293, %v5271, 0
    %5674 = vmatprep.subr.mxu0 0.0
    %5675 = vmatpush1.xpose.msra.mxu0 0.0
    %5676 = vmatprep.subr.mxu0 0.0
    %5677 = vmatpush1.xpose.msra.mxu0 0.0
    %5678 = vmatprep.subr.mxu0 0.0
    %5679 = vmatpush1.xpose.msra.mxu0 0.0
    %5680 = vmatprep.subr.mxu0 0.0
    %5681 = vmatpush1.xpose.msra.mxu0 0.0
    %5682 = vmatprep.subr.mxu0 0.0
    %5683 = vmatpush1.xpose.msra.mxu0 0.0
    %5684 = vmatprep.subr.mxu0 0.0
    %5685 = vmatpush1.xpose.msra.mxu0 0.0
    %5686 = vmatprep.subr.mxu0 0.0
    %5687 = vmatpush1.xpose.msra.mxu0 0.0
    %5688 = vmatprep.subr.mxu0 0.0
    %5689 = vmatpush1.xpose.msra.mxu0 0.0
    %5690 = vmatprep.subr.mxu0 0.0
    %5691 = vmatpush1.xpose.msra.mxu0 0.0
    %5692 = vmatprep.subr.mxu0 0.0
    %5693 = vmatpush1.xpose.msra.mxu0 0.0
    %5694 = vmatprep.subr.mxu0 0.0
    %5695 = vmatpush1.xpose.msra.mxu0 0.0
    %5696 = vmatprep.subr.mxu0 0.0
    %5697 = vmatpush1.xpose.msra.mxu0 0.0
    %5698 = vmatprep.subr.mxu0 0.0
    %5699 = vmatpush1.xpose.msra.mxu0 %v5307
    %5700 = vmatprep.subr.mxu0 0.0
    %5701 = vmatpush1.xpose.msra.mxu0 %v5304
    %5702 = vmatprep.subr.mxu0 0.0
    %5703 = vmatpush1.xpose.msra.mxu0 %v5301
    %5704 = vmatprep.subr.mxu0 0.0
    %5705 = vmatpush1.xpose.msra.mxu0 %v5298
    %5706 = vmatprep.subr.mxu0 0.0
    %5707 = vmatpush2.xpose.msra.mxu0 0.0
    %5708 = vmatprep.subr.mxu0 0.0
    %5709 = vmatpush2.xpose.msra.mxu0 0.0
    %5710 = vmatprep.subr.mxu0 0.0
    %5711 = vmatpush2.xpose.msra.mxu0 0.0
    %5712 = vmatprep.subr.mxu0 0.0
    %5713 = vmatpush2.xpose.msra.mxu0 0.0
    %5714 = vmatprep.subr.mxu0 0.0
    %5715 = vmatpush2.xpose.msra.mxu0 0.0
    %5716 = vmatprep.subr.mxu0 0.0
    %5717 = vmatpush2.xpose.msra.mxu0 0.0
    %5718 = vmatprep.subr.mxu0 0.0
    %5719 = vmatpush2.xpose.msra.mxu0 0.0
    %5720 = vmatprep.subr.mxu0 0.0
    %5721 = vmatpush2.xpose.msra.mxu0 0.0
    %5722 = vmatprep.subr.mxu0 0.0
    %5723 = vmatpush2.xpose.msra.mxu0 0.0
    %5724 = vmatprep.subr.mxu0 0.0
    %5725 = vmatpush2.xpose.msra.mxu0 0.0
    %5726 = vmatprep.subr.mxu0 0.0
    %5727 = vmatpush2.xpose.msra.mxu0 0.0
    %5728 = vmatprep.subr.mxu0 0.0
    %5729 = vmatpush2.xpose.msra.mxu0 0.0
    %5730 = vmatprep.subr.mxu0 0.0
    %5731 = vmatpush2.xpose.msra.mxu0 0.0
    %5732 = vmatprep.subr.mxu0 0.0
    %5733 = vmatpush2.xpose.msra.mxu0 0.0
    %5734 = vmatprep.subr.mxu0 0.0
    %5735 = vmatpush2.xpose.msra.mxu0 0.0
    %5736 = vmatprep.subr.mxu0 0.0
    %5737 = vmatpush2.xpose.msra.mxu0 0.0
    %5738 = vmatprep.mubr.f32.mxu0 0.0
    %5739 = vmatmul.mubr.f32.gmra.mxu0 %v5672
    %v5740 = vpop.f32.mrf.mxu0
    %v5741 = vadd.f32 %v5291, %v5740
    %v5742 = vpop.f32.mrf.mxu0
    %5743 = vdwg.mxu0
    %v5745 = vsel %vm5293, %v5272, 0
    %5747 = vmatprep.subr.mxu0 0.0
    %5748 = vmatpush1.xpose.msra.mxu0 0.0
    %5749 = vmatprep.subr.mxu0 0.0
    %5750 = vmatpush1.xpose.msra.mxu0 0.0
    %5751 = vmatprep.subr.mxu0 0.0
    %5752 = vmatpush1.xpose.msra.mxu0 0.0
    %5753 = vmatprep.subr.mxu0 0.0
    %5754 = vmatpush1.xpose.msra.mxu0 0.0
    %5755 = vmatprep.subr.mxu0 0.0
    %5756 = vmatpush1.xpose.msra.mxu0 0.0
    %5757 = vmatprep.subr.mxu0 0.0
    %5758 = vmatpush1.xpose.msra.mxu0 0.0
    %5759 = vmatprep.subr.mxu0 0.0
    %5760 = vmatpush1.xpose.msra.mxu0 0.0
    %5761 = vmatprep.subr.mxu0 0.0
    %5762 = vmatpush1.xpose.msra.mxu0 0.0
    %5763 = vmatprep.subr.mxu0 0.0
    %5764 = vmatpush1.xpose.msra.mxu0 0.0
    %5765 = vmatprep.subr.mxu0 0.0
    %5766 = vmatpush1.xpose.msra.mxu0 0.0
    %5767 = vmatprep.subr.mxu0 0.0
    %5768 = vmatpush1.xpose.msra.mxu0 0.0
    %5769 = vmatprep.subr.mxu0 0.0
    %5770 = vmatpush1.xpose.msra.mxu0 0.0
    %5771 = vmatprep.subr.mxu0 0.0
    %5772 = vmatpush1.xpose.msra.mxu0 %v5307
    %5773 = vmatprep.subr.mxu0 0.0
    %5774 = vmatpush1.xpose.msra.mxu0 %v5304
    %5775 = vmatprep.subr.mxu0 0.0
    %5776 = vmatpush1.xpose.msra.mxu0 %v5301
    %5777 = vmatprep.subr.mxu0 0.0
    %5778 = vmatpush1.xpose.msra.mxu0 %v5298
    %5779 = vmatprep.subr.mxu0 0.0
    %5780 = vmatpush2.xpose.msra.mxu0 0.0
    %5781 = vmatprep.subr.mxu0 0.0
    %5782 = vmatpush2.xpose.msra.mxu0 0.0
    %5783 = vmatprep.subr.mxu0 0.0
    %5784 = vmatpush2.xpose.msra.mxu0 0.0
    %5785 = vmatprep.subr.mxu0 0.0
    %5786 = vmatpush2.xpose.msra.mxu0 0.0
    %5787 = vmatprep.subr.mxu0 0.0
    %5788 = vmatpush2.xpose.msra.mxu0 0.0
    %5789 = vmatprep.subr.mxu0 0.0
    %5790 = vmatpush2.xpose.msra.mxu0 0.0
    %5791 = vmatprep.subr.mxu0 0.0
    %5792 = vmatpush2.xpose.msra.mxu0 0.0
    %5793 = vmatprep.subr.mxu0 0.0
    %5794 = vmatpush2.xpose.msra.mxu0 0.0
    %5795 = vmatprep.subr.mxu0 0.0
    %5796 = vmatpush2.xpose.msra.mxu0 0.0
    %5797 = vmatprep.subr.mxu0 0.0
    %5798 = vmatpush2.xpose.msra.mxu0 0.0
    %5799 = vmatprep.subr.mxu0 0.0
    %5800 = vmatpush2.xpose.msra.mxu0 0.0
    %5801 = vmatprep.subr.mxu0 0.0
    %5802 = vmatpush2.xpose.msra.mxu0 0.0
    %5803 = vmatprep.subr.mxu0 0.0
    %5804 = vmatpush2.xpose.msra.mxu0 0.0
    %5805 = vmatprep.subr.mxu0 0.0
    %5806 = vmatpush2.xpose.msra.mxu0 0.0
    %5807 = vmatprep.subr.mxu0 0.0
    %5808 = vmatpush2.xpose.msra.mxu0 0.0
    %5809 = vmatprep.subr.mxu0 0.0
    %5810 = vmatpush2.xpose.msra.mxu0 0.0
    %5811 = vmatprep.mubr.f32.mxu0 0.0
    %5812 = vmatmul.mubr.f32.gmra.mxu0 %v5745
    %v5813 = vpop.f32.mrf.mxu0
    %v5814 = vadd.f32 %v5291, %v5813
    %v5815 = vpop.f32.mrf.mxu0
    %5816 = vdwg.mxu0
    %v5818 = vsel %vm5293, %v5273, 0
    %5820 = vmatprep.subr.mxu0 0.0
    %5821 = vmatpush1.xpose.msra.mxu0 0.0
    %5822 = vmatprep.subr.mxu0 0.0
    %5823 = vmatpush1.xpose.msra.mxu0 0.0
    %5824 = vmatprep.subr.mxu0 0.0
    %5825 = vmatpush1.xpose.msra.mxu0 0.0
    %5826 = vmatprep.subr.mxu0 0.0
    %5827 = vmatpush1.xpose.msra.mxu0 0.0
    %5828 = vmatprep.subr.mxu0 0.0
    %5829 = vmatpush1.xpose.msra.mxu0 0.0
    %5830 = vmatprep.subr.mxu0 0.0
    %5831 = vmatpush1.xpose.msra.mxu0 0.0
    %5832 = vmatprep.subr.mxu0 0.0
    %5833 = vmatpush1.xpose.msra.mxu0 0.0
    %5834 = vmatprep.subr.mxu0 0.0
    %5835 = vmatpush1.xpose.msra.mxu0 0.0
    %5836 = vmatprep.subr.mxu0 0.0
    %5837 = vmatpush1.xpose.msra.mxu0 0.0
    %5838 = vmatprep.subr.mxu0 0.0
    %5839 = vmatpush1.xpose.msra.mxu0 0.0
    %5840 = vmatprep.subr.mxu0 0.0
    %5841 = vmatpush1.xpose.msra.mxu0 0.0
    %5842 = vmatprep.subr.mxu0 0.0
    %5843 = vmatpush1.xpose.msra.mxu0 0.0
    %5844 = vmatprep.subr.mxu0 0.0
    %5845 = vmatpush1.xpose.msra.mxu0 %v5307
    %5846 = vmatprep.subr.mxu0 0.0
    %5847 = vmatpush1.xpose.msra.mxu0 %v5304
    %5848 = vmatprep.subr.mxu0 0.0
    %5849 = vmatpush1.xpose.msra.mxu0 %v5301
    %5850 = vmatprep.subr.mxu0 0.0
    %5851 = vmatpush1.xpose.msra.mxu0 %v5298
    %5852 = vmatprep.subr.mxu0 0.0
    %5853 = vmatpush2.xpose.msra.mxu0 0.0
    %5854 = vmatprep.subr.mxu0 0.0
    %5855 = vmatpush2.xpose.msra.mxu0 0.0
    %5856 = vmatprep.subr.mxu0 0.0
    %5857 = vmatpush2.xpose.msra.mxu0 0.0
    %5858 = vmatprep.subr.mxu0 0.0
    %5859 = vmatpush2.xpose.msra.mxu0 0.0
    %5860 = vmatprep.subr.mxu0 0.0
    %5861 = vmatpush2.xpose.msra.mxu0 0.0
    %5862 = vmatprep.subr.mxu0 0.0
    %5863 = vmatpush2.xpose.msra.mxu0 0.0
    %5864 = vmatprep.subr.mxu0 0.0
    %5865 = vmatpush2.xpose.msra.mxu0 0.0
    %5866 = vmatprep.subr.mxu0 0.0
    %5867 = vmatpush2.xpose.msra.mxu0 0.0
    %5868 = vmatprep.subr.mxu0 0.0
    %5869 = vmatpush2.xpose.msra.mxu0 0.0
    %5870 = vmatprep.subr.mxu0 0.0
    %5871 = vmatpush2.xpose.msra.mxu0 0.0
    %5872 = vmatprep.subr.mxu0 0.0
    %5873 = vmatpush2.xpose.msra.mxu0 0.0
    %5874 = vmatprep.subr.mxu0 0.0
    %5875 = vmatpush2.xpose.msra.mxu0 0.0
    %5876 = vmatprep.subr.mxu0 0.0
    %5877 = vmatpush2.xpose.msra.mxu0 0.0
    %5878 = vmatprep.subr.mxu0 0.0
    %5879 = vmatpush2.xpose.msra.mxu0 0.0
    %5880 = vmatprep.subr.mxu0 0.0
    %5881 = vmatpush2.xpose.msra.mxu0 0.0
    %5882 = vmatprep.subr.mxu0 0.0
    %5883 = vmatpush2.xpose.msra.mxu0 0.0
    %5884 = vmatprep.mubr.f32.mxu0 0.0
    %5885 = vmatmul.mubr.f32.gmra.mxu0 %v5818
    %v5886 = vpop.f32.mrf.mxu0
    %v5887 = vadd.f32 %v5291, %v5886
    %v5888 = vpop.f32.mrf.mxu0
    %5889 = vdwg.mxu0
    %v5891 = vsel %vm5293, %v5274, 0
    %5893 = vmatprep.subr.mxu0 0.0
    %5894 = vmatpush1.xpose.msra.mxu0 0.0
    %5895 = vmatprep.subr.mxu0 0.0
    %5896 = vmatpush1.xpose.msra.mxu0 0.0
    %5897 = vmatprep.subr.mxu0 0.0
    %5898 = vmatpush1.xpose.msra.mxu0 0.0
    %5899 = vmatprep.subr.mxu0 0.0
    %5900 = vmatpush1.xpose.msra.mxu0 0.0
    %5901 = vmatprep.subr.mxu0 0.0
    %5902 = vmatpush1.xpose.msra.mxu0 0.0
    %5903 = vmatprep.subr.mxu0 0.0
    %5904 = vmatpush1.xpose.msra.mxu0 0.0
    %5905 = vmatprep.subr.mxu0 0.0
    %5906 = vmatpush1.xpose.msra.mxu0 0.0
    %5907 = vmatprep.subr.mxu0 0.0
    %5908 = vmatpush1.xpose.msra.mxu0 0.0
    %5909 = vmatprep.subr.mxu0 0.0
    %5910 = vmatpush1.xpose.msra.mxu0 0.0
    %5911 = vmatprep.subr.mxu0 0.0
    %5912 = vmatpush1.xpose.msra.mxu0 0.0
    %5913 = vmatprep.subr.mxu0 0.0
    %5914 = vmatpush1.xpose.msra.mxu0 0.0
    %5915 = vmatprep.subr.mxu0 0.0
    %5916 = vmatpush1.xpose.msra.mxu0 0.0
    %5917 = vmatprep.subr.mxu0 0.0
    %5918 = vmatpush1.xpose.msra.mxu0 %v5307
    %5919 = vmatprep.subr.mxu0 0.0
    %5920 = vmatpush1.xpose.msra.mxu0 %v5304
    %5921 = vmatprep.subr.mxu0 0.0
    %5922 = vmatpush1.xpose.msra.mxu0 %v5301
    %5923 = vmatprep.subr.mxu0 0.0
    %5924 = vmatpush1.xpose.msra.mxu0 %v5298
    %5925 = vmatprep.subr.mxu0 0.0
    %5926 = vmatpush2.xpose.msra.mxu0 0.0
    %5927 = vmatprep.subr.mxu0 0.0
    %5928 = vmatpush2.xpose.msra.mxu0 0.0
    %5929 = vmatprep.subr.mxu0 0.0
    %5930 = vmatpush2.xpose.msra.mxu0 0.0
    %5931 = vmatprep.subr.mxu0 0.0
    %5932 = vmatpush2.xpose.msra.mxu0 0.0
    %5933 = vmatprep.subr.mxu0 0.0
    %5934 = vmatpush2.xpose.msra.mxu0 0.0
    %5935 = vmatprep.subr.mxu0 0.0
    %5936 = vmatpush2.xpose.msra.mxu0 0.0
    %5937 = vmatprep.subr.mxu0 0.0
    %5938 = vmatpush2.xpose.msra.mxu0 0.0
    %5939 = vmatprep.subr.mxu0 0.0
    %5940 = vmatpush2.xpose.msra.mxu0 0.0
    %5941 = vmatprep.subr.mxu0 0.0
    %5942 = vmatpush2.xpose.msra.mxu0 0.0
    %5943 = vmatprep.subr.mxu0 0.0
    %5944 = vmatpush2.xpose.msra.mxu0 0.0
    %5945 = vmatprep.subr.mxu0 0.0
    %5946 = vmatpush2.xpose.msra.mxu0 0.0
    %5947 = vmatprep.subr.mxu0 0.0
    %5948 = vmatpush2.xpose.msra.mxu0 0.0
    %5949 = vmatprep.subr.mxu0 0.0
    %5950 = vmatpush2.xpose.msra.mxu0 0.0
    %5951 = vmatprep.subr.mxu0 0.0
    %5952 = vmatpush2.xpose.msra.mxu0 0.0
    %5953 = vmatprep.subr.mxu0 0.0
    %5954 = vmatpush2.xpose.msra.mxu0 0.0
    %5955 = vmatprep.subr.mxu0 0.0
    %5956 = vmatpush2.xpose.msra.mxu0 0.0
    %5957 = vmatprep.mubr.f32.mxu0 0.0
    %5958 = vmatmul.mubr.f32.gmra.mxu0 %v5891
    %v5959 = vpop.f32.mrf.mxu0
    %v5960 = vadd.f32 %v5291, %v5959
    %v5961 = vpop.f32.mrf.mxu0
    %5962 = vdwg.mxu0
    %v5964 = vsel %vm5293, %v5275, 0
    %5966 = vmatprep.subr.mxu0 0.0
    %5967 = vmatpush1.xpose.msra.mxu0 0.0
    %5968 = vmatprep.subr.mxu0 0.0
    %5969 = vmatpush1.xpose.msra.mxu0 0.0
    %5970 = vmatprep.subr.mxu0 0.0
    %5971 = vmatpush1.xpose.msra.mxu0 0.0
    %5972 = vmatprep.subr.mxu0 0.0
    %5973 = vmatpush1.xpose.msra.mxu0 0.0
    %5974 = vmatprep.subr.mxu0 0.0
    %5975 = vmatpush1.xpose.msra.mxu0 0.0
    %5976 = vmatprep.subr.mxu0 0.0
    %5977 = vmatpush1.xpose.msra.mxu0 0.0
    %5978 = vmatprep.subr.mxu0 0.0
    %5979 = vmatpush1.xpose.msra.mxu0 0.0
    %5980 = vmatprep.subr.mxu0 0.0
    %5981 = vmatpush1.xpose.msra.mxu0 0.0
    %5982 = vmatprep.subr.mxu0 0.0
    %5983 = vmatpush1.xpose.msra.mxu0 0.0
    %5984 = vmatprep.subr.mxu0 0.0
    %5985 = vmatpush1.xpose.msra.mxu0 0.0
    %5986 = vmatprep.subr.mxu0 0.0
    %5987 = vmatpush1.xpose.msra.mxu0 0.0
    %5988 = vmatprep.subr.mxu0 0.0
    %5989 = vmatpush1.xpose.msra.mxu0 0.0
    %5990 = vmatprep.subr.mxu0 0.0
    %5991 = vmatpush1.xpose.msra.mxu0 %v5307
    %5992 = vmatprep.subr.mxu0 0.0
    %5993 = vmatpush1.xpose.msra.mxu0 %v5304
    %5994 = vmatprep.subr.mxu0 0.0
    %5995 = vmatpush1.xpose.msra.mxu0 %v5301
    %5996 = vmatprep.subr.mxu0 0.0
    %5997 = vmatpush1.xpose.msra.mxu0 %v5298
    %5998 = vmatprep.subr.mxu0 0.0
    %5999 = vmatpush2.xpose.msra.mxu0 0.0
    %6000 = vmatprep.subr.mxu0 0.0
    %6001 = vmatpush2.xpose.msra.mxu0 0.0
    %6002 = vmatprep.subr.mxu0 0.0
    %6003 = vmatpush2.xpose.msra.mxu0 0.0
    %6004 = vmatprep.subr.mxu0 0.0
    %6005 = vmatpush2.xpose.msra.mxu0 0.0
    %6006 = vmatprep.subr.mxu0 0.0
    %6007 = vmatpush2.xpose.msra.mxu0 0.0
    %6008 = vmatprep.subr.mxu0 0.0
    %6009 = vmatpush2.xpose.msra.mxu0 0.0
    %6010 = vmatprep.subr.mxu0 0.0
    %6011 = vmatpush2.xpose.msra.mxu0 0.0
    %6012 = vmatprep.subr.mxu0 0.0
    %6013 = vmatpush2.xpose.msra.mxu0 0.0
    %6014 = vmatprep.subr.mxu0 0.0
    %6015 = vmatpush2.xpose.msra.mxu0 0.0
    %6016 = vmatprep.subr.mxu0 0.0
    %6017 = vmatpush2.xpose.msra.mxu0 0.0
    %6018 = vmatprep.subr.mxu0 0.0
    %6019 = vmatpush2.xpose.msra.mxu0 0.0
    %6020 = vmatprep.subr.mxu0 0.0
    %6021 = vmatpush2.xpose.msra.mxu0 0.0
    %6022 = vmatprep.subr.mxu0 0.0
    %6023 = vmatpush2.xpose.msra.mxu0 0.0
    %6024 = vmatprep.subr.mxu0 0.0
    %6025 = vmatpush2.xpose.msra.mxu0 0.0
    %6026 = vmatprep.subr.mxu0 0.0
    %6027 = vmatpush2.xpose.msra.mxu0 0.0
    %6028 = vmatprep.subr.mxu0 0.0
    %6029 = vmatpush2.xpose.msra.mxu0 0.0
    %6030 = vmatprep.mubr.f32.mxu0 0.0
    %6031 = vmatmul.mubr.f32.gmra.mxu0 %v5964
    %v6032 = vpop.f32.mrf.mxu0
    %v6033 = vadd.f32 %v5291, %v6032
    %v6034 = vpop.f32.mrf.mxu0
    %6035 = vdwg.mxu0
    %v6037 = vsel %vm5293, %v5276, 0
    %6039 = vmatprep.subr.mxu0 0.0
    %6040 = vmatpush1.xpose.msra.mxu0 0.0
    %6041 = vmatprep.subr.mxu0 0.0
    %6042 = vmatpush1.xpose.msra.mxu0 0.0
    %6043 = vmatprep.subr.mxu0 0.0
    %6044 = vmatpush1.xpose.msra.mxu0 0.0
    %6045 = vmatprep.subr.mxu0 0.0
    %6046 = vmatpush1.xpose.msra.mxu0 0.0
    %6047 = vmatprep.subr.mxu0 0.0
    %6048 = vmatpush1.xpose.msra.mxu0 0.0
    %6049 = vmatprep.subr.mxu0 0.0
    %6050 = vmatpush1.xpose.msra.mxu0 0.0
    %6051 = vmatprep.subr.mxu0 0.0
    %6052 = vmatpush1.xpose.msra.mxu0 0.0
    %6053 = vmatprep.subr.mxu0 0.0
    %6054 = vmatpush1.xpose.msra.mxu0 0.0
    %6055 = vmatprep.subr.mxu0 0.0
    %6056 = vmatpush1.xpose.msra.mxu0 0.0
    %6057 = vmatprep.subr.mxu0 0.0
    %6058 = vmatpush1.xpose.msra.mxu0 0.0
    %6059 = vmatprep.subr.mxu0 0.0
    %6060 = vmatpush1.xpose.msra.mxu0 0.0
    %6061 = vmatprep.subr.mxu0 0.0
    %6062 = vmatpush1.xpose.msra.mxu0 0.0
    %6063 = vmatprep.subr.mxu0 0.0
    %6064 = vmatpush1.xpose.msra.mxu0 %v5307
    %6065 = vmatprep.subr.mxu0 0.0
    %6066 = vmatpush1.xpose.msra.mxu0 %v5304
    %6067 = vmatprep.subr.mxu0 0.0
    %6068 = vmatpush1.xpose.msra.mxu0 %v5301
    %6069 = vmatprep.subr.mxu0 0.0
    %6070 = vmatpush1.xpose.msra.mxu0 %v5298
    %6071 = vmatprep.subr.mxu0 0.0
    %6072 = vmatpush2.xpose.msra.mxu0 0.0
    %6073 = vmatprep.subr.mxu0 0.0
    %6074 = vmatpush2.xpose.msra.mxu0 0.0
    %6075 = vmatprep.subr.mxu0 0.0
    %6076 = vmatpush2.xpose.msra.mxu0 0.0
    %6077 = vmatprep.subr.mxu0 0.0
    %6078 = vmatpush2.xpose.msra.mxu0 0.0
    %6079 = vmatprep.subr.mxu0 0.0
    %6080 = vmatpush2.xpose.msra.mxu0 0.0
    %6081 = vmatprep.subr.mxu0 0.0
    %6082 = vmatpush2.xpose.msra.mxu0 0.0
    %6083 = vmatprep.subr.mxu0 0.0
    %6084 = vmatpush2.xpose.msra.mxu0 0.0
    %6085 = vmatprep.subr.mxu0 0.0
    %6086 = vmatpush2.xpose.msra.mxu0 0.0
    %6087 = vmatprep.subr.mxu0 0.0
    %6088 = vmatpush2.xpose.msra.mxu0 0.0
    %6089 = vmatprep.subr.mxu0 0.0
    %6090 = vmatpush2.xpose.msra.mxu0 0.0
    %6091 = vmatprep.subr.mxu0 0.0
    %6092 = vmatpush2.xpose.msra.mxu0 0.0
    %6093 = vmatprep.subr.mxu0 0.0
    %6094 = vmatpush2.xpose.msra.mxu0 0.0
    %6095 = vmatprep.subr.mxu0 0.0
    %6096 = vmatpush2.xpose.msra.mxu0 0.0
    %6097 = vmatprep.subr.mxu0 0.0
    %6098 = vmatpush2.xpose.msra.mxu0 0.0
    %6099 = vmatprep.subr.mxu0 0.0
    %6100 = vmatpush2.xpose.msra.mxu0 0.0
    %6101 = vmatprep.subr.mxu0 0.0
    %6102 = vmatpush2.xpose.msra.mxu0 0.0
    %6103 = vmatprep.mubr.f32.mxu0 0.0
    %6104 = vmatmul.mubr.f32.gmra.mxu0 %v6037
    %v6105 = vpop.f32.mrf.mxu0
    %v6106 = vadd.f32 %v5291, %v6105
    %v6107 = vpop.f32.mrf.mxu0
    %6108 = vdwg.mxu0
    %v6110 = vsel %vm5293, %v5277, 0
    %6112 = vmatprep.subr.mxu0 0.0
    %6113 = vmatpush1.xpose.msra.mxu0 0.0
    %6114 = vmatprep.subr.mxu0 0.0
    %6115 = vmatpush1.xpose.msra.mxu0 0.0
    %6116 = vmatprep.subr.mxu0 0.0
    %6117 = vmatpush1.xpose.msra.mxu0 0.0
    %6118 = vmatprep.subr.mxu0 0.0
    %6119 = vmatpush1.xpose.msra.mxu0 0.0
    %6120 = vmatprep.subr.mxu0 0.0
    %6121 = vmatpush1.xpose.msra.mxu0 0.0
    %6122 = vmatprep.subr.mxu0 0.0
    %6123 = vmatpush1.xpose.msra.mxu0 0.0
    %6124 = vmatprep.subr.mxu0 0.0
    %6125 = vmatpush1.xpose.msra.mxu0 0.0
    %6126 = vmatprep.subr.mxu0 0.0
    %6127 = vmatpush1.xpose.msra.mxu0 0.0
    %6128 = vmatprep.subr.mxu0 0.0
    %6129 = vmatpush1.xpose.msra.mxu0 0.0
    %6130 = vmatprep.subr.mxu0 0.0
    %6131 = vmatpush1.xpose.msra.mxu0 0.0
    %6132 = vmatprep.subr.mxu0 0.0
    %6133 = vmatpush1.xpose.msra.mxu0 0.0
    %6134 = vmatprep.subr.mxu0 0.0
    %6135 = vmatpush1.xpose.msra.mxu0 0.0
    %6136 = vmatprep.subr.mxu0 0.0
    %6137 = vmatpush1.xpose.msra.mxu0 %v5307
    %6138 = vmatprep.subr.mxu0 0.0
    %6139 = vmatpush1.xpose.msra.mxu0 %v5304
    %6140 = vmatprep.subr.mxu0 0.0
    %6141 = vmatpush1.xpose.msra.mxu0 %v5301
    %6142 = vmatprep.subr.mxu0 0.0
    %6143 = vmatpush1.xpose.msra.mxu0 %v5298
    %6144 = vmatprep.subr.mxu0 0.0
    %6145 = vmatpush2.xpose.msra.mxu0 0.0
    %6146 = vmatprep.subr.mxu0 0.0
    %6147 = vmatpush2.xpose.msra.mxu0 0.0
    %6148 = vmatprep.subr.mxu0 0.0
    %6149 = vmatpush2.xpose.msra.mxu0 0.0
    %6150 = vmatprep.subr.mxu0 0.0
    %6151 = vmatpush2.xpose.msra.mxu0 0.0
    %6152 = vmatprep.subr.mxu0 0.0
    %6153 = vmatpush2.xpose.msra.mxu0 0.0
    %6154 = vmatprep.subr.mxu0 0.0
    %6155 = vmatpush2.xpose.msra.mxu0 0.0
    %6156 = vmatprep.subr.mxu0 0.0
    %6157 = vmatpush2.xpose.msra.mxu0 0.0
    %6158 = vmatprep.subr.mxu0 0.0
    %6159 = vmatpush2.xpose.msra.mxu0 0.0
    %6160 = vmatprep.subr.mxu0 0.0
    %6161 = vmatpush2.xpose.msra.mxu0 0.0
    %6162 = vmatprep.subr.mxu0 0.0
    %6163 = vmatpush2.xpose.msra.mxu0 0.0
    %6164 = vmatprep.subr.mxu0 0.0
    %6165 = vmatpush2.xpose.msra.mxu0 0.0
    %6166 = vmatprep.subr.mxu0 0.0
    %6167 = vmatpush2.xpose.msra.mxu0 0.0
    %6168 = vmatprep.subr.mxu0 0.0
    %6169 = vmatpush2.xpose.msra.mxu0 0.0
    %6170 = vmatprep.subr.mxu0 0.0
    %6171 = vmatpush2.xpose.msra.mxu0 0.0
    %6172 = vmatprep.subr.mxu0 0.0
    %6173 = vmatpush2.xpose.msra.mxu0 0.0
    %6174 = vmatprep.subr.mxu0 0.0
    %6175 = vmatpush2.xpose.msra.mxu0 0.0
    %6176 = vmatprep.mubr.f32.mxu0 0.0
    %6177 = vmatmul.mubr.f32.gmra.mxu0 %v6110
    %v6178 = vpop.f32.mrf.mxu0
    %v6179 = vadd.f32 %v5291, %v6178
    %v6180 = vpop.f32.mrf.mxu0
    %6181 = vdwg.mxu0
    %v6183 = vsel %vm5293, %v5278, 0
    %6185 = vmatprep.subr.mxu0 0.0
    %6186 = vmatpush1.xpose.msra.mxu0 0.0
    %6187 = vmatprep.subr.mxu0 0.0
    %6188 = vmatpush1.xpose.msra.mxu0 0.0
    %6189 = vmatprep.subr.mxu0 0.0
    %6190 = vmatpush1.xpose.msra.mxu0 0.0
    %6191 = vmatprep.subr.mxu0 0.0
    %6192 = vmatpush1.xpose.msra.mxu0 0.0
    %6193 = vmatprep.subr.mxu0 0.0
    %6194 = vmatpush1.xpose.msra.mxu0 0.0
    %6195 = vmatprep.subr.mxu0 0.0
    %6196 = vmatpush1.xpose.msra.mxu0 0.0
    %6197 = vmatprep.subr.mxu0 0.0
    %6198 = vmatpush1.xpose.msra.mxu0 0.0
    %6199 = vmatprep.subr.mxu0 0.0
    %6200 = vmatpush1.xpose.msra.mxu0 0.0
    %6201 = vmatprep.subr.mxu0 0.0
    %6202 = vmatpush1.xpose.msra.mxu0 0.0
    %6203 = vmatprep.subr.mxu0 0.0
    %6204 = vmatpush1.xpose.msra.mxu0 0.0
    %6205 = vmatprep.subr.mxu0 0.0
    %6206 = vmatpush1.xpose.msra.mxu0 0.0
    %6207 = vmatprep.subr.mxu0 0.0
    %6208 = vmatpush1.xpose.msra.mxu0 0.0
    %6209 = vmatprep.subr.mxu0 0.0
    %6210 = vmatpush1.xpose.msra.mxu0 %v5307
    %6211 = vmatprep.subr.mxu0 0.0
    %6212 = vmatpush1.xpose.msra.mxu0 %v5304
    %6213 = vmatprep.subr.mxu0 0.0
    %6214 = vmatpush1.xpose.msra.mxu0 %v5301
    %6215 = vmatprep.subr.mxu0 0.0
    %6216 = vmatpush1.xpose.msra.mxu0 %v5298
    %6217 = vmatprep.subr.mxu0 0.0
    %6218 = vmatpush2.xpose.msra.mxu0 0.0
    %6219 = vmatprep.subr.mxu0 0.0
    %6220 = vmatpush2.xpose.msra.mxu0 0.0
    %6221 = vmatprep.subr.mxu0 0.0
    %6222 = vmatpush2.xpose.msra.mxu0 0.0
    %6223 = vmatprep.subr.mxu0 0.0
    %6224 = vmatpush2.xpose.msra.mxu0 0.0
    %6225 = vmatprep.subr.mxu0 0.0
    %6226 = vmatpush2.xpose.msra.mxu0 0.0
    %6227 = vmatprep.subr.mxu0 0.0
    %6228 = vmatpush2.xpose.msra.mxu0 0.0
    %6229 = vmatprep.subr.mxu0 0.0
    %6230 = vmatpush2.xpose.msra.mxu0 0.0
    %6231 = vmatprep.subr.mxu0 0.0
    %6232 = vmatpush2.xpose.msra.mxu0 0.0
    %6233 = vmatprep.subr.mxu0 0.0
    %6234 = vmatpush2.xpose.msra.mxu0 0.0
    %6235 = vmatprep.subr.mxu0 0.0
    %6236 = vmatpush2.xpose.msra.mxu0 0.0
    %6237 = vmatprep.subr.mxu0 0.0
    %6238 = vmatpush2.xpose.msra.mxu0 0.0
    %6239 = vmatprep.subr.mxu0 0.0
    %6240 = vmatpush2.xpose.msra.mxu0 0.0
    %6241 = vmatprep.subr.mxu0 0.0
    %6242 = vmatpush2.xpose.msra.mxu0 0.0
    %6243 = vmatprep.subr.mxu0 0.0
    %6244 = vmatpush2.xpose.msra.mxu0 0.0
    %6245 = vmatprep.subr.mxu0 0.0
    %6246 = vmatpush2.xpose.msra.mxu0 0.0
    %6247 = vmatprep.subr.mxu0 0.0
    %6248 = vmatpush2.xpose.msra.mxu0 0.0
    %6249 = vmatprep.mubr.f32.mxu0 0.0
    %6250 = vmatmul.mubr.f32.gmra.mxu0 %v6183
    %v6251 = vpop.f32.mrf.mxu0
    %v6252 = vadd.f32 %v5291, %v6251
    %v6253 = vpop.f32.mrf.mxu0
    %6254 = vdwg.mxu0
    %v6256 = vsel %vm5293, %v5279, 0
    %6258 = vmatprep.subr.mxu0 0.0
    %6259 = vmatpush1.xpose.msra.mxu0 0.0
    %6260 = vmatprep.subr.mxu0 0.0
    %6261 = vmatpush1.xpose.msra.mxu0 0.0
    %6262 = vmatprep.subr.mxu0 0.0
    %6263 = vmatpush1.xpose.msra.mxu0 0.0
    %6264 = vmatprep.subr.mxu0 0.0
    %6265 = vmatpush1.xpose.msra.mxu0 0.0
    %6266 = vmatprep.subr.mxu0 0.0
    %6267 = vmatpush1.xpose.msra.mxu0 0.0
    %6268 = vmatprep.subr.mxu0 0.0
    %6269 = vmatpush1.xpose.msra.mxu0 0.0
    %6270 = vmatprep.subr.mxu0 0.0
    %6271 = vmatpush1.xpose.msra.mxu0 0.0
    %6272 = vmatprep.subr.mxu0 0.0
    %6273 = vmatpush1.xpose.msra.mxu0 0.0
    %6274 = vmatprep.subr.mxu0 0.0
    %6275 = vmatpush1.xpose.msra.mxu0 0.0
    %6276 = vmatprep.subr.mxu0 0.0
    %6277 = vmatpush1.xpose.msra.mxu0 0.0
    %6278 = vmatprep.subr.mxu0 0.0
    %6279 = vmatpush1.xpose.msra.mxu0 0.0
    %6280 = vmatprep.subr.mxu0 0.0
    %6281 = vmatpush1.xpose.msra.mxu0 0.0
    %6282 = vmatprep.subr.mxu0 0.0
    %6283 = vmatpush1.xpose.msra.mxu0 %v5307
    %6284 = vmatprep.subr.mxu0 0.0
    %6285 = vmatpush1.xpose.msra.mxu0 %v5304
    %6286 = vmatprep.subr.mxu0 0.0
    %6287 = vmatpush1.xpose.msra.mxu0 %v5301
    %6288 = vmatprep.subr.mxu0 0.0
    %6289 = vmatpush1.xpose.msra.mxu0 %v5298
    %6290 = vmatprep.subr.mxu0 0.0
    %6291 = vmatpush2.xpose.msra.mxu0 0.0
    %6292 = vmatprep.subr.mxu0 0.0
    %6293 = vmatpush2.xpose.msra.mxu0 0.0
    %6294 = vmatprep.subr.mxu0 0.0
    %6295 = vmatpush2.xpose.msra.mxu0 0.0
    %6296 = vmatprep.subr.mxu0 0.0
    %6297 = vmatpush2.xpose.msra.mxu0 0.0
    %6298 = vmatprep.subr.mxu0 0.0
    %6299 = vmatpush2.xpose.msra.mxu0 0.0
    %6300 = vmatprep.subr.mxu0 0.0
    %6301 = vmatpush2.xpose.msra.mxu0 0.0
    %6302 = vmatprep.subr.mxu0 0.0
    %6303 = vmatpush2.xpose.msra.mxu0 0.0
    %6304 = vmatprep.subr.mxu0 0.0
    %6305 = vmatpush2.xpose.msra.mxu0 0.0
    %6306 = vmatprep.subr.mxu0 0.0
    %6307 = vmatpush2.xpose.msra.mxu0 0.0
    %6308 = vmatprep.subr.mxu0 0.0
    %6309 = vmatpush2.xpose.msra.mxu0 0.0
    %6310 = vmatprep.subr.mxu0 0.0
    %6311 = vmatpush2.xpose.msra.mxu0 0.0
    %6312 = vmatprep.subr.mxu0 0.0
    %6313 = vmatpush2.xpose.msra.mxu0 0.0
    %6314 = vmatprep.subr.mxu0 0.0
    %6315 = vmatpush2.xpose.msra.mxu0 0.0
    %6316 = vmatprep.subr.mxu0 0.0
    %6317 = vmatpush2.xpose.msra.mxu0 0.0
    %6318 = vmatprep.subr.mxu0 0.0
    %6319 = vmatpush2.xpose.msra.mxu0 0.0
    %6320 = vmatprep.subr.mxu0 0.0
    %6321 = vmatpush2.xpose.msra.mxu0 0.0
    %6322 = vmatprep.mubr.f32.mxu0 0.0
    %6323 = vmatmul.mubr.f32.gmra.mxu0 %v6256
    %v6324 = vpop.f32.mrf.mxu0
    %v6325 = vadd.f32 %v5291, %v6324
    %v6326 = vpop.f32.mrf.mxu0
    %6327 = vdwg.mxu0
    %v6329 = vsel %vm5293, %v5280, 0
    %6331 = vmatprep.subr.mxu0 0.0
    %6332 = vmatpush1.xpose.msra.mxu0 0.0
    %6333 = vmatprep.subr.mxu0 0.0
    %6334 = vmatpush1.xpose.msra.mxu0 0.0
    %6335 = vmatprep.subr.mxu0 0.0
    %6336 = vmatpush1.xpose.msra.mxu0 0.0
    %6337 = vmatprep.subr.mxu0 0.0
    %6338 = vmatpush1.xpose.msra.mxu0 0.0
    %6339 = vmatprep.subr.mxu0 0.0
    %6340 = vmatpush1.xpose.msra.mxu0 0.0
    %6341 = vmatprep.subr.mxu0 0.0
    %6342 = vmatpush1.xpose.msra.mxu0 0.0
    %6343 = vmatprep.subr.mxu0 0.0
    %6344 = vmatpush1.xpose.msra.mxu0 0.0
    %6345 = vmatprep.subr.mxu0 0.0
    %6346 = vmatpush1.xpose.msra.mxu0 0.0
    %6347 = vmatprep.subr.mxu0 0.0
    %6348 = vmatpush1.xpose.msra.mxu0 0.0
    %6349 = vmatprep.subr.mxu0 0.0
    %6350 = vmatpush1.xpose.msra.mxu0 0.0
    %6351 = vmatprep.subr.mxu0 0.0
    %6352 = vmatpush1.xpose.msra.mxu0 0.0
    %6353 = vmatprep.subr.mxu0 0.0
    %6354 = vmatpush1.xpose.msra.mxu0 0.0
    %6355 = vmatprep.subr.mxu0 0.0
    %6356 = vmatpush1.xpose.msra.mxu0 %v5307
    %6357 = vmatprep.subr.mxu0 0.0
    %6358 = vmatpush1.xpose.msra.mxu0 %v5304
    %6359 = vmatprep.subr.mxu0 0.0
    %6360 = vmatpush1.xpose.msra.mxu0 %v5301
    %6361 = vmatprep.subr.mxu0 0.0
    %6362 = vmatpush1.xpose.msra.mxu0 %v5298
    %6363 = vmatprep.subr.mxu0 0.0
    %6364 = vmatpush2.xpose.msra.mxu0 0.0
    %6365 = vmatprep.subr.mxu0 0.0
    %6366 = vmatpush2.xpose.msra.mxu0 0.0
    %6367 = vmatprep.subr.mxu0 0.0
    %6368 = vmatpush2.xpose.msra.mxu0 0.0
    %6369 = vmatprep.subr.mxu0 0.0
    %6370 = vmatpush2.xpose.msra.mxu0 0.0
    %6371 = vmatprep.subr.mxu0 0.0
    %6372 = vmatpush2.xpose.msra.mxu0 0.0
    %6373 = vmatprep.subr.mxu0 0.0
    %6374 = vmatpush2.xpose.msra.mxu0 0.0
    %6375 = vmatprep.subr.mxu0 0.0
    %6376 = vmatpush2.xpose.msra.mxu0 0.0
    %6377 = vmatprep.subr.mxu0 0.0
    %6378 = vmatpush2.xpose.msra.mxu0 0.0
    %6379 = vmatprep.subr.mxu0 0.0
    %6380 = vmatpush2.xpose.msra.mxu0 0.0
    %6381 = vmatprep.subr.mxu0 0.0
    %6382 = vmatpush2.xpose.msra.mxu0 0.0
    %6383 = vmatprep.subr.mxu0 0.0
    %6384 = vmatpush2.xpose.msra.mxu0 0.0
    %6385 = vmatprep.subr.mxu0 0.0
    %6386 = vmatpush2.xpose.msra.mxu0 0.0
    %6387 = vmatprep.subr.mxu0 0.0
    %6388 = vmatpush2.xpose.msra.mxu0 0.0
    %6389 = vmatprep.subr.mxu0 0.0
    %6390 = vmatpush2.xpose.msra.mxu0 0.0
    %6391 = vmatprep.subr.mxu0 0.0
    %6392 = vmatpush2.xpose.msra.mxu0 0.0
    %6393 = vmatprep.subr.mxu0 0.0
    %6394 = vmatpush2.xpose.msra.mxu0 0.0
    %6395 = vmatprep.mubr.f32.mxu0 0.0
    %6396 = vmatmul.mubr.f32.gmra.mxu0 %v6329
    %v6397 = vpop.f32.mrf.mxu0
    %v6398 = vadd.f32 %v5291, %v6397
    %v6399 = vpop.f32.mrf.mxu0
    %6400 = vdwg.mxu0
    %v6402 = vsel %vm5293, %v5281, 0
    %6404 = vmatprep.subr.mxu0 0.0
    %6405 = vmatpush1.xpose.msra.mxu0 0.0
    %6406 = vmatprep.subr.mxu0 0.0
    %6407 = vmatpush1.xpose.msra.mxu0 0.0
    %6408 = vmatprep.subr.mxu0 0.0
    %6409 = vmatpush1.xpose.msra.mxu0 0.0
    %6410 = vmatprep.subr.mxu0 0.0
    %6411 = vmatpush1.xpose.msra.mxu0 0.0
    %6412 = vmatprep.subr.mxu0 0.0
    %6413 = vmatpush1.xpose.msra.mxu0 0.0
    %6414 = vmatprep.subr.mxu0 0.0
    %6415 = vmatpush1.xpose.msra.mxu0 0.0
    %6416 = vmatprep.subr.mxu0 0.0
    %6417 = vmatpush1.xpose.msra.mxu0 0.0
    %6418 = vmatprep.subr.mxu0 0.0
    %6419 = vmatpush1.xpose.msra.mxu0 0.0
    %6420 = vmatprep.subr.mxu0 0.0
    %6421 = vmatpush1.xpose.msra.mxu0 0.0
    %6422 = vmatprep.subr.mxu0 0.0
    %6423 = vmatpush1.xpose.msra.mxu0 0.0
    %6424 = vmatprep.subr.mxu0 0.0
    %6425 = vmatpush1.xpose.msra.mxu0 0.0
    %6426 = vmatprep.subr.mxu0 0.0
    %6427 = vmatpush1.xpose.msra.mxu0 0.0
    %6428 = vmatprep.subr.mxu0 0.0
    %6429 = vmatpush1.xpose.msra.mxu0 %v5307
    %6430 = vmatprep.subr.mxu0 0.0
    %6431 = vmatpush1.xpose.msra.mxu0 %v5304
    %6432 = vmatprep.subr.mxu0 0.0
    %6433 = vmatpush1.xpose.msra.mxu0 %v5301
    %6434 = vmatprep.subr.mxu0 0.0
    %6435 = vmatpush1.xpose.msra.mxu0 %v5298
    %6436 = vmatprep.subr.mxu0 0.0
    %6437 = vmatpush2.xpose.msra.mxu0 0.0
    %6438 = vmatprep.subr.mxu0 0.0
    %6439 = vmatpush2.xpose.msra.mxu0 0.0
    %6440 = vmatprep.subr.mxu0 0.0
    %6441 = vmatpush2.xpose.msra.mxu0 0.0
    %6442 = vmatprep.subr.mxu0 0.0
    %6443 = vmatpush2.xpose.msra.mxu0 0.0
    %6444 = vmatprep.subr.mxu0 0.0
    %6445 = vmatpush2.xpose.msra.mxu0 0.0
    %6446 = vmatprep.subr.mxu0 0.0
    %6447 = vmatpush2.xpose.msra.mxu0 0.0
    %6448 = vmatprep.subr.mxu0 0.0
    %6449 = vmatpush2.xpose.msra.mxu0 0.0
    %6450 = vmatprep.subr.mxu0 0.0
    %6451 = vmatpush2.xpose.msra.mxu0 0.0
    %6452 = vmatprep.subr.mxu0 0.0
    %6453 = vmatpush2.xpose.msra.mxu0 0.0
    %6454 = vmatprep.subr.mxu0 0.0
    %6455 = vmatpush2.xpose.msra.mxu0 0.0
    %6456 = vmatprep.subr.mxu0 0.0
    %6457 = vmatpush2.xpose.msra.mxu0 0.0
    %6458 = vmatprep.subr.mxu0 0.0
    %6459 = vmatpush2.xpose.msra.mxu0 0.0
    %6460 = vmatprep.subr.mxu0 0.0
    %6461 = vmatpush2.xpose.msra.mxu0 0.0
    %6462 = vmatprep.subr.mxu0 0.0
    %6463 = vmatpush2.xpose.msra.mxu0 0.0
    %6464 = vmatprep.subr.mxu0 0.0
    %6465 = vmatpush2.xpose.msra.mxu0 0.0
    %6466 = vmatprep.subr.mxu0 0.0
    %6467 = vmatpush2.xpose.msra.mxu0 0.0
    %6468 = vmatprep.mubr.f32.mxu0 0.0
    %6469 = vmatmul.mubr.f32.gmra.mxu0 %v6402
    %v6470 = vpop.f32.mrf.mxu0
    %v6471 = vadd.f32 %v5291, %v6470
    %v6472 = vpop.f32.mrf.mxu0
    %6473 = vdwg.mxu0
    %v6474 = vadd.f32 %v3339, %v5376
    %v6475 = vadd.f32 %v3340, %v5449
    %v6476 = vadd.f32 %v3341, %v5522
    %v6477 = vadd.f32 %v3342, %v5595
    %v6478 = vadd.f32 %v3343, %v5668
    %v6479 = vadd.f32 %v3344, %v5741
    %v6480 = vadd.f32 %v3345, %v5814
    %v6481 = vadd.f32 %v3346, %v5887
    %v6482 = vadd.f32 %v3347, %v5960
    %v6483 = vadd.f32 %v3348, %v6033
    %v6484 = vadd.f32 %v3349, %v6106
    %v6485 = vadd.f32 %v3350, %v6179
    %v6486 = vadd.f32 %v3351, %v6252
    %v6487 = vadd.f32 %v3352, %v6325
    %v6488 = vadd.f32 %v3353, %v6398
    %v6489 = vadd.f32 %v3354, %v6471
    %6490 = vst.msk [vmem:[#allocation2] sm:$0xff] %vm3357, %v6474
    %6491 = vst.msk [vmem:[#allocation2 + $0x8] sm:$0xff] %vm3357, %v6475
    %6492 = vst.msk [vmem:[#allocation2 + $0x10] sm:$0xff] %vm3357, %v6476
    %6493 = vst.msk [vmem:[#allocation2 + $0x18] sm:$0xff] %vm3357, %v6477
    %6494 = vst.msk [vmem:[#allocation2 + $0x20] sm:$0xff] %vm3357, %v6478
    %6495 = vst.msk [vmem:[#allocation2 + $0x28] sm:$0xff] %vm3357, %v6479
    %6496 = vst.msk [vmem:[#allocation2 + $0x30] sm:$0xff] %vm3357, %v6480
    %6497 = vst.msk [vmem:[#allocation2 + $0x38] sm:$0xff] %vm3357, %v6481
    %6498 = vst.msk [vmem:[#allocation2 + $0x40] sm:$0xff] %vm3357, %v6482
    %6499 = vst.msk [vmem:[#allocation2 + $0x48] sm:$0xff] %vm3357, %v6483
    %6500 = vst.msk [vmem:[#allocation2 + $0x50] sm:$0xff] %vm3357, %v6484
    %6501 = vst.msk [vmem:[#allocation2 + $0x58] sm:$0xff] %vm3357, %v6485
    %6502 = vst.msk [vmem:[#allocation2 + $0x60] sm:$0xff] %vm3357, %v6486
    %6503 = vst.msk [vmem:[#allocation2 + $0x68] sm:$0xff] %vm3357, %v6487
    %6504 = vst.msk [vmem:[#allocation2 + $0x70] sm:$0xff] %vm3357, %v6488
    %6505 = vst.msk [vmem:[#allocation2 + $0x78] sm:$0xff] %vm3357, %v6489
    // Predicated region
    $region50: #{mixer_forward.3} parent=1 // pred_check
      _
    $region51: #{mixer_forward.3} parent=1 // pred_check_branch
      %6507 = sbr.rel (0) target = $region53
    $region52: #{mixer_forward.3} parent=1 // pred_region
      %s6509 = ssub.s32 2048, 2048
      %6510 = vsyncadd [#allocation3], %s6509
      %s6511 = sshll.u32 [#allocation2], 4
      %s6512 = int_to_ptr.vmem [resolvable:$true] %s6511
      %6517 = dma.vmem_to_hbm [thread:$0]  %s6512, 2048, %s12, [#allocation3], 128, 128, 8
    $region53: #{mixer_forward.3} parent=1 // pred_fallthru
      _
    // Predicated region
    $region54: #{mixer_forward.3} parent=1 // pred_check
      _
    $region55: #{mixer_forward.3} parent=1 // pred_check_branch
      %6519 = sbr.rel (0) target = $region57
    $region56: #{mixer_forward.3} parent=1 // pred_region
      %6520 = dma.done [#allocation3], 2048
    $region57: #{mixer_forward.3} parent=1 // pred_fallthru
      _
    %6521 = vsyncpa [#allocation3], 1

</llo_original>
